<compile_context>
chip_gen: v6e
topology: v6e:2x2x1
jax: 0.10.0
libtpu: 0.0.40
codegen_flags: <defaults>
</compile_context>

<pallas_src>
import numpy as np
import jax
import jax.numpy as jnp
from jax.experimental import pallas as pl
from jax.experimental.pallas import tpu as pltpu

IN_CH = 12
HID_CH = 16
OUT_CH = 11
N_CONV = 7

# Matmul operand dtype. f32 everywhere for exactness; bf16 is fine on v6e/v7x
# (accumulation stays f32 via preferred_element_type), keep f32 on v5e.
MATMUL_DTYPE = jnp.float32


# ----------------------------- kernel helpers -----------------------------
def _conv1d(x, w48, b, zero_row):
    # Conv2d(kernel=(1,3), stride=1, padding=(0,1)) along the leading W axis.
    # x: (W, 16, TB) f32; w48: (16, 48) [o, tap*16+c]; b: (16, 1); zero_row: (1, 16, TB).
    Wl = x.shape[0]
    xp = jnp.concatenate([zero_row, x, zero_row], axis=0)        # (W+2, 16, TB)
    # Fused taps: rows [x[w-1] | x[w] | x[w+1]] on sublanes -> (W, 48, TB).
    x3 = jnp.concatenate([xp[:-2], xp[1:-1], xp[2:]], axis=1)
    # Weights-as-LHS batched matmul: (16,48) x (48,TB), batched over W.
    w48 = w48.astype(MATMUL_DTYPE)
    wb = jnp.broadcast_to(w48[None], (Wl,) + w48.shape)          # (W, 16, 48)
    y = jax.lax.dot_general(
        wb, x3.astype(MATMUL_DTYPE),
        dimension_numbers=(((2,), (1,)), ((0,), (0,))),
        preferred_element_type=jnp.float32)                      # (W, 16, TB)
    return y + b                                                 # (16,1) lane-broadcast


def _maxpool2(x):
    # MaxPool2d((1,2)) along W: leading-axis split (layout-free) + one VPU max.
    Wl = x.shape[0]
    x4 = x.reshape(Wl // 2, 2, *x.shape[1:])
    return jnp.maximum(x4[:, 0], x4[:, 1])


def _upsample2_bilinear(x):
    # nn.Upsample(scale_factor=(1,2), mode='bilinear', align_corners=False) along W:
    #   out[2i]   = 0.75*x[i] + 0.25*x[i-1]   (clamped at i=0)
    #   out[2i+1] = 0.75*x[i] + 0.25*x[i+1]   (clamped at i=W-1)
    Wl = x.shape[0]
    prev = jnp.concatenate([x[:1], x[:-1]], axis=0)
    nxt = jnp.concatenate([x[1:], x[-1:]], axis=0)
    even = 0.75 * x + 0.25 * prev
    odd = 0.75 * x + 0.25 * nxt
    y = jnp.concatenate([even[:, None], odd[:, None]], axis=1)   # (W, 2, 16, TB)
    return y.reshape(2 * Wl, *x.shape[1:])


def _avgpool(x, k):
    # AvgPool2d((1,k)) along W: leading-axis split + k-1 VPU adds.
    Wl = x.shape[0]
    x4 = x.reshape(Wl // k, k, *x.shape[1:])
    acc = x4[:, 0]
    for j in range(1, k):
        acc = acc + x4[:, j]
    return acc * (1.0 / k)


def autoencoder_kernel(x_ref, w_ref, b_ref, o_ref):
    x = x_ref[...]                                   # (W, 16, TB): 12 real ch + 4 zero pad
    _, C, TB = x.shape
    zero_row = jnp.zeros((1, C, TB), jnp.float32)    # hoisted: shared by all 7 convs

    def conv(h, i):
        return _conv1d(h, w_ref[i], b_ref[i], zero_row)

    # ----------------------------- encoder -----------------------------
    h = jnp.maximum(conv(x, 0), 0.0)     # Conv(12->16) + ReLU
    h = _maxpool2(h)                     # W -> W/2
    h = conv(h, 1)
    h = jnp.maximum(conv(h, 2), 0.0)     # Conv + ReLU

    # ----------------------------- decoder -----------------------------
    h = conv(h, 3)
    h = _maxpool2(h)                     # W/2 -> W/4
    h = conv(h, 4)
    h = _upsample2_bilinear(h)           # W/4 -> W/2
    h = conv(h, 5)
    h = _maxpool2(h)                     # W/2 -> W/4
    h = jnp.maximum(h, 0.0)              # ReLU
    h = conv(h, 6)                       # Conv(16 -> 11, zero-padded to 16)
    h = _avgpool(h, 5)                   # W/4 -> W/20
    y = jax.nn.sigmoid(h)                # (Wf, 16, TB)

    # Already channel-on-sublanes / slab-on-lanes: pure leading-dim reshape
    # (16 is a sublane-tile multiple), lane-dense unmasked store.
    o_ref[...] = y.reshape(-1, TB).astype(o_ref.dtype)


# ----------------------------- host-side glue -----------------------------
def _round_up(v, m):
    return ((v + m - 1) // m) * m


def pack_params(pt_ws, pt_bs):
    """Pack 7 PyTorch Conv2d (Cout, Cin, 1, 3) weights into (7, 16, 48) + (7, 16, 1).

    Row o, column layout: [tap w-1 (16 in-ch) | tap w (16) | tap w+1 (16)];
    input channels zero-padded 12->16 and output channels 11->16.
    """
    w_all = np.zeros((N_CONV, HID_CH, 3 * HID_CH), np.float32)
    b_all = np.zeros((N_CONV, HID_CH, 1), np.float32)
    for i, (w, b) in enumerate(zip(pt_ws, pt_bs)):
        w = np.asarray(w, np.float32)
        b = np.asarray(b, np.float32)
        cout, cin = w.shape[0], w.shape[1]
        for t in range(3):
            w_all[i, :cout, t * HID_CH:t * HID_CH + cin] = w[:, :, 0, t]
        b_all[i, :cout, 0] = b
    return jnp.asarray(w_all, jnp.float32), jnp.asarray(b_all, jnp.float32)


def autoencoder_forward(x_nchw, w_all, b_all):
    N, C, H, W = x_nchw.shape
    assert C == IN_CH and W % 20 == 0, "module needs W % 20 == 0"
    B = N * H
    Wf = W // 20

    # TB = 128: lane-dense blocks and the maximum number of "parallel" grid steps
    # (helps v7x's two TensorCores and keeps per-step VMEM small on 64 MiB parts).
    TB = 128
    B_pad = _round_up(B, TB)

    # Slab layout (W, 16, B_pad): channels on sublanes, slabs on lanes.  Minor dim is
    # B_pad (>=512 B contiguous per DMA row).
    # TODO(synk): accept an already-(W, C, B)-packed input to avoid this host relayout.
    x_slab = jnp.transpose(x_nchw, (3, 1, 0, 2)).reshape(W, C, B)
    x_slab = jnp.pad(x_slab, ((0, 0), (0, HID_CH - IN_CH), (0, B_pad - B)))

    # Explicit VMEM budget (block + pipelining + in-kernel temporaries), clamped to
    # v7x's 64 MiB physical VMEM; don't rely on the default scoped limit.
    act_bytes = W * HID_CH * TB * 4
    vmem_limit = int(min(64 << 20, max(32 << 20, 16 * act_bytes + (2 << 20))))

    out = pl.pallas_call(
        autoencoder_kernel,
        out_shape=jax.ShapeDtypeStruct((Wf * HID_CH, B_pad), jnp.float32),
        grid=(B_pad // TB,),
        in_specs=[
            pl.BlockSpec((W, HID_CH, TB), lambda i: (0, 0, i)),
            pl.BlockSpec(w_all.shape, lambda i: (0, 0, 0)),    # resident packed weights
            pl.BlockSpec(b_all.shape, lambda i: (0, 0, 0)),    # resident biases
        ],
        out_specs=pl.BlockSpec((Wf * HID_CH, TB), lambda i: (0, i)),
        compiler_params=pltpu.CompilerParams(
            dimension_semantics=("parallel",),
            vmem_limit_bytes=vmem_limit),
    )(x_slab, w_all, b_all)

    out = out.reshape(Wf, HID_CH, B_pad)[:, :OUT_CH, :B]      # drop channel / batch pad
    out = out.reshape(Wf, OUT_CH, N, H)
    out = jnp.transpose(out, (2, 1, 3, 0))                    # NCHW: (N, 11, H, W/20)
    return jnp.squeeze(out)                                   # torch.squeeze semantics


# ----------------------------- pure-JAX reference -----------------------------
def make_bilinear_upsample_x2(w_in):
    # Matches nn.Upsample(scale_factor=(1,2), mode='bilinear', align_corners=False)
    w_out = 2 * w_in
    u = np.zeros((w_out, w_in), np.float32)
    for j in range(w_out):
        src = max((j + 0.5) / 2.0 - 0.5, 0.0)
        i0 = min(int(np.floor(src)), w_in - 1)
        i1 = min(i0 + 1, w_in - 1)
        lam = src - i0
        u[j, i0] += 1.0 - lam
        u[j, i1] += lam
    return u


def reference_forward(x, pt_ws, pt_bs):
    def conv(x, w, b):
        xp = jnp.pad(x, ((0, 0), (0, 0), (0, 0), (1, 1)))
        out = sum(jnp.einsum('oc,nchw->nohw', w[:, :, 0, k],
                             xp[..., k:k + x.shape[-1]]) for k in range(3))
        return out + b[None, :, None, None]

    def maxpool2(x):
        return jnp.maximum(x[..., 0::2], x[..., 1::2])

    def avgpool5(x):
        n, c, h, w = x.shape
        return x.reshape(n, c, h, w // 5, 5).mean(-1)

    up_mat = jnp.asarray(make_bilinear_upsample_x2(x.shape[-1] // 4))
    relu = lambda v: jnp.maximum(v, 0.0)
    h = relu(conv(x, pt_ws[0], pt_bs[0]))
    h = maxpool2(h)
    h = conv(h, pt_ws[1], pt_bs[1])
    h = relu(conv(h, pt_ws[2], pt_bs[2]))
    h = conv(h, pt_ws[3], pt_bs[3])
    h = maxpool2(h)
    h = conv(h, pt_ws[4], pt_bs[4])
    h = jnp.einsum('ji,nchi->nchj', up_mat, h)
    h = conv(h, pt_ws[5], pt_bs[5])
    h = maxpool2(h)
    h = relu(h)
    h = conv(h, pt_ws[6], pt_bs[6])
    h = avgpool5(h)
    return jnp.squeeze(jax.nn.sigmoid(h))


if __name__ == "__main__":
    key = jax.random.PRNGKey(0)
    keys = jax.random.split(key, 15)

    # 7 conv layers: (12->16), 5x(16->16), (16->11). Deterministic synthetic init.
    layer_dims = [(IN_CH, HID_CH)] + [(HID_CH, HID_CH)] * 5 + [(HID_CH, OUT_CH)]
    pt_ws, pt_bs = [], []
    for i, (cin, cout) in enumerate(layer_dims):
        bound = 1.0 / np.sqrt(cin * 3)
        pt_ws.append(jax.random.uniform(keys[2 * i], (cout, cin, 1, 3),
                                        jnp.float32, -bound, bound))
        pt_bs.append(jax.random.uniform(keys[2 * i + 1], (cout,),
                                        jnp.float32, -bound, bound))

    w_all, b_all = pack_params(pt_ws, pt_bs)

    N, H, W = 2, 3, 40                      # W must be a multiple of 20
    x = jax.random.normal(keys[14], (N, IN_CH, H, W), jnp.float32)

    out = jax.block_until_ready(autoencoder_forward(x, w_all, b_all))

    ref = reference_forward(x, pt_ws, pt_bs)
    np.testing.assert_allclose(np.asarray(out), np.asarray(ref), atol=5e-3, rtol=0)
    print("KERNEL_OK")
</pallas_src>

<mosaic_0001>
module attributes {stable_mosaic.version = 11 : i64} {
  func.func @autoencoder_kernel(%arg0: i32, %arg1: memref<40x16x128xf32, #tpu.memory_space<vmem>>, %arg2: memref<7x16x48xf32, #tpu.memory_space<vmem>>, %arg3: memref<7x16x1xf32, #tpu.memory_space<vmem>>, %arg4: memref<32x128xf32, #tpu.memory_space<vmem>>) attributes {dimension_semantics = [#tpu.dimension_semantics<parallel>], iteration_bounds = array<i64: 1>, scalar_prefetch = 0 : i64, scratch_operands = 0 : i64, tpu.core_type = #tpu.core_type<tc>, window_params = [{transform_indices = @transform_0, window_bounds = array<i64: 40, 16, 128>}, {pipeline_mode = #tpu.pipeline_mode<synchronous>, transform_indices = @transform_1, window_bounds = array<i64: 7, 16, 48>}, {pipeline_mode = #tpu.pipeline_mode<synchronous>, transform_indices = @transform_2, window_bounds = array<i64: 7, 16, 1>}, {transform_indices = @transform_3, window_bounds = array<i64: 32, 128>}]} {
    %c0 = arith.constant 0 : index
    %c0_0 = arith.constant 0 : index
    %c0_1 = arith.constant 0 : index
    %0 = vector.load %arg1[%c0, %c0_0, %c0_1] : memref<40x16x128xf32, #tpu.memory_space<vmem>>, vector<40x16x128xf32>
    %cst = arith.constant 0.000000e+00 : f32
    %1 = vector.broadcast %cst : f32 to vector<1x16x128xf32>
    %c0_2 = arith.constant 0 : index
    %c0_3 = arith.constant 0 : index
    %c0_4 = arith.constant 0 : index
    %2 = vector.load %arg2[%c0_2, %c0_3, %c0_4] : memref<7x16x48xf32, #tpu.memory_space<vmem>>, vector<1x16x48xf32>
    %3 = vector.shape_cast %2 : vector<1x16x48xf32> to vector<16x48xf32>
    %c0_5 = arith.constant 0 : index
    %c0_6 = arith.constant 0 : index
    %c0_7 = arith.constant 0 : index
    %4 = vector.load %arg3[%c0_5, %c0_6, %c0_7] : memref<7x16x1xf32, #tpu.memory_space<vmem>>, vector<1x16x1xf32>
    %5 = vector.shape_cast %4 : vector<1x16x1xf32> to vector<16x1xf32>
    %6 = tpu.concatenate %1, %0, %1 in 0 : vector<1x16x128xf32>, vector<40x16x128xf32>, vector<1x16x128xf32> -> vector<42x16x128xf32>
    %7 = vector.extract_strided_slice %6 {offsets = [0, 0, 0], sizes = [40, 16, 128], strides = [1, 1, 1]} : vector<42x16x128xf32> to vector<40x16x128xf32>
    %8 = vector.extract_strided_slice %6 {offsets = [1, 0, 0], sizes = [40, 16, 128], strides = [1, 1, 1]} : vector<42x16x128xf32> to vector<40x16x128xf32>
    %9 = vector.extract_strided_slice %6 {offsets = [2, 0, 0], sizes = [40, 16, 128], strides = [1, 1, 1]} : vector<42x16x128xf32> to vector<40x16x128xf32>
    %10 = tpu.concatenate %7, %8, %9 in 1 : vector<40x16x128xf32>, vector<40x16x128xf32>, vector<40x16x128xf32> -> vector<40x48x128xf32>
    %11 = vector.shape_cast %3 : vector<16x48xf32> to vector<1x16x48xf32>
    %12 = vector.shape_cast %11 : vector<1x16x48xf32> to vector<1x16x48xf32>
    %13 = vector.broadcast %12 : vector<1x16x48xf32> to vector<40x16x48xf32>
    %cst_8 = arith.constant dense<0.000000e+00> : vector<40x16x128xf32>
    %14 = tpu.matmul %13, %10, %cst_8 {dimension_numbers = #tpu.dot_dimension_numbers<[2], [1], [1], [2], [0, 0, 0, 1, 1, 2], [0], [0]>} : vector<40x16x48xf32>, vector<40x48x128xf32>, vector<40x16x128xf32> -> vector<40x16x128xf32>
    %15 = vector.shape_cast %5 : vector<16x1xf32> to vector<1x16x1xf32>
    %16 = vector.broadcast %15 : vector<1x16x1xf32> to vector<40x16x128xf32>
    %17 = arith.addf %14, %16 : vector<40x16x128xf32>
    %cst_9 = arith.constant 0.000000e+00 : f32
    %18 = vector.broadcast %cst_9 : f32 to vector<40x16x128xf32>
    %19 = arith.maximumf %17, %18 : vector<40x16x128xf32>
    %20 = vector.shape_cast %19 : vector<40x16x128xf32> to vector<20x2x16x128xf32>
    %21 = vector.extract_strided_slice %20 {offsets = [0, 0, 0, 0], sizes = [20, 1, 16, 128], strides = [1, 1, 1, 1]} : vector<20x2x16x128xf32> to vector<20x1x16x128xf32>
    %22 = vector.shape_cast %21 : vector<20x1x16x128xf32> to vector<20x16x128xf32>
    %23 = vector.extract_strided_slice %20 {offsets = [0, 1, 0, 0], sizes = [20, 1, 16, 128], strides = [1, 1, 1, 1]} : vector<20x2x16x128xf32> to vector<20x1x16x128xf32>
    %24 = vector.shape_cast %23 : vector<20x1x16x128xf32> to vector<20x16x128xf32>
    %25 = arith.maximumf %22, %24 : vector<20x16x128xf32>
    %c1 = arith.constant 1 : index
    %c0_10 = arith.constant 0 : index
    %c0_11 = arith.constant 0 : index
    %26 = vector.load %arg2[%c1, %c0_10, %c0_11] : memref<7x16x48xf32, #tpu.memory_space<vmem>>, vector<1x16x48xf32>
    %27 = vector.shape_cast %26 : vector<1x16x48xf32> to vector<16x48xf32>
    %c1_12 = arith.constant 1 : index
    %c0_13 = arith.constant 0 : index
    %c0_14 = arith.constant 0 : index
    %28 = vector.load %arg3[%c1_12, %c0_13, %c0_14] : memref<7x16x1xf32, #tpu.memory_space<vmem>>, vector<1x16x1xf32>
    %29 = vector.shape_cast %28 : vector<1x16x1xf32> to vector<16x1xf32>
    %30 = tpu.concatenate %1, %25, %1 in 0 : vector<1x16x128xf32>, vector<20x16x128xf32>, vector<1x16x128xf32> -> vector<22x16x128xf32>
    %31 = vector.extract_strided_slice %30 {offsets = [0, 0, 0], sizes = [20, 16, 128], strides = [1, 1, 1]} : vector<22x16x128xf32> to vector<20x16x128xf32>
    %32 = vector.extract_strided_slice %30 {offsets = [1, 0, 0], sizes = [20, 16, 128], strides = [1, 1, 1]} : vector<22x16x128xf32> to vector<20x16x128xf32>
    %33 = vector.extract_strided_slice %30 {offsets = [2, 0, 0], sizes = [20, 16, 128], strides = [1, 1, 1]} : vector<22x16x128xf32> to vector<20x16x128xf32>
    %34 = tpu.concatenate %31, %32, %33 in 1 : vector<20x16x128xf32>, vector<20x16x128xf32>, vector<20x16x128xf32> -> vector<20x48x128xf32>
    %35 = vector.shape_cast %27 : vector<16x48xf32> to vector<1x16x48xf32>
    %36 = vector.shape_cast %35 : vector<1x16x48xf32> to vector<1x16x48xf32>
    %37 = vector.broadcast %36 : vector<1x16x48xf32> to vector<20x16x48xf32>
    %cst_15 = arith.constant dense<0.000000e+00> : vector<20x16x128xf32>
    %38 = tpu.matmul %37, %34, %cst_15 {dimension_numbers = #tpu.dot_dimension_numbers<[2], [1], [1], [2], [0, 0, 0, 1, 1, 2], [0], [0]>} : vector<20x16x48xf32>, vector<20x48x128xf32>, vector<20x16x128xf32> -> vector<20x16x128xf32>
    %39 = vector.shape_cast %29 : vector<16x1xf32> to vector<1x16x1xf32>
    %40 = vector.broadcast %39 : vector<1x16x1xf32> to vector<20x16x128xf32>
    %41 = arith.addf %38, %40 : vector<20x16x128xf32>
    %c2 = arith.constant 2 : index
    %c0_16 = arith.constant 0 : index
    %c0_17 = arith.constant 0 : index
    %42 = vector.load %arg2[%c2, %c0_16, %c0_17] : memref<7x16x48xf32, #tpu.memory_space<vmem>>, vector<1x16x48xf32>
    %43 = vector.shape_cast %42 : vector<1x16x48xf32> to vector<16x48xf32>
    %c2_18 = arith.constant 2 : index
    %c0_19 = arith.constant 0 : index
    %c0_20 = arith.constant 0 : index
    %44 = vector.load %arg3[%c2_18, %c0_19, %c0_20] : memref<7x16x1xf32, #tpu.memory_space<vmem>>, vector<1x16x1xf32>
    %45 = vector.shape_cast %44 : vector<1x16x1xf32> to vector<16x1xf32>
    %46 = tpu.concatenate %1, %41, %1 in 0 : vector<1x16x128xf32>, vector<20x16x128xf32>, vector<1x16x128xf32> -> vector<22x16x128xf32>
    %47 = vector.extract_strided_slice %46 {offsets = [0, 0, 0], sizes = [20, 16, 128], strides = [1, 1, 1]} : vector<22x16x128xf32> to vector<20x16x128xf32>
    %48 = vector.extract_strided_slice %46 {offsets = [1, 0, 0], sizes = [20, 16, 128], strides = [1, 1, 1]} : vector<22x16x128xf32> to vector<20x16x128xf32>
    %49 = vector.extract_strided_slice %46 {offsets = [2, 0, 0], sizes = [20, 16, 128], strides = [1, 1, 1]} : vector<22x16x128xf32> to vector<20x16x128xf32>
    %50 = tpu.concatenate %47, %48, %49 in 1 : vector<20x16x128xf32>, vector<20x16x128xf32>, vector<20x16x128xf32> -> vector<20x48x128xf32>
    %51 = vector.shape_cast %43 : vector<16x48xf32> to vector<1x16x48xf32>
    %52 = vector.shape_cast %51 : vector<1x16x48xf32> to vector<1x16x48xf32>
    %53 = vector.broadcast %52 : vector<1x16x48xf32> to vector<20x16x48xf32>
    %cst_21 = arith.constant dense<0.000000e+00> : vector<20x16x128xf32>
    %54 = tpu.matmul %53, %50, %cst_21 {dimension_numbers = #tpu.dot_dimension_numbers<[2], [1], [1], [2], [0, 0, 0, 1, 1, 2], [0], [0]>} : vector<20x16x48xf32>, vector<20x48x128xf32>, vector<20x16x128xf32> -> vector<20x16x128xf32>
    %55 = vector.shape_cast %45 : vector<16x1xf32> to vector<1x16x1xf32>
    %56 = vector.broadcast %55 : vector<1x16x1xf32> to vector<20x16x128xf32>
    %57 = arith.addf %54, %56 : vector<20x16x128xf32>
    %cst_22 = arith.constant 0.000000e+00 : f32
    %58 = vector.broadcast %cst_22 : f32 to vector<20x16x128xf32>
    %59 = arith.maximumf %57, %58 : vector<20x16x128xf32>
    %c3 = arith.constant 3 : index
    %c0_23 = arith.constant 0 : index
    %c0_24 = arith.constant 0 : index
    %60 = vector.load %arg2[%c3, %c0_23, %c0_24] : memref<7x16x48xf32, #tpu.memory_space<vmem>>, vector<1x16x48xf32>
    %61 = vector.shape_cast %60 : vector<1x16x48xf32> to vector<16x48xf32>
    %c3_25 = arith.constant 3 : index
    %c0_26 = arith.constant 0 : index
    %c0_27 = arith.constant 0 : index
    %62 = vector.load %arg3[%c3_25, %c0_26, %c0_27] : memref<7x16x1xf32, #tpu.memory_space<vmem>>, vector<1x16x1xf32>
    %63 = vector.shape_cast %62 : vector<1x16x1xf32> to vector<16x1xf32>
    %64 = tpu.concatenate %1, %59, %1 in 0 : vector<1x16x128xf32>, vector<20x16x128xf32>, vector<1x16x128xf32> -> vector<22x16x128xf32>
    %65 = vector.extract_strided_slice %64 {offsets = [0, 0, 0], sizes = [20, 16, 128], strides = [1, 1, 1]} : vector<22x16x128xf32> to vector<20x16x128xf32>
    %66 = vector.extract_strided_slice %64 {offsets = [1, 0, 0], sizes = [20, 16, 128], strides = [1, 1, 1]} : vector<22x16x128xf32> to vector<20x16x128xf32>
    %67 = vector.extract_strided_slice %64 {offsets = [2, 0, 0], sizes = [20, 16, 128], strides = [1, 1, 1]} : vector<22x16x128xf32> to vector<20x16x128xf32>
    %68 = tpu.concatenate %65, %66, %67 in 1 : vector<20x16x128xf32>, vector<20x16x128xf32>, vector<20x16x128xf32> -> vector<20x48x128xf32>
    %69 = vector.shape_cast %61 : vector<16x48xf32> to vector<1x16x48xf32>
    %70 = vector.shape_cast %69 : vector<1x16x48xf32> to vector<1x16x48xf32>
    %71 = vector.broadcast %70 : vector<1x16x48xf32> to vector<20x16x48xf32>
    %cst_28 = arith.constant dense<0.000000e+00> : vector<20x16x128xf32>
    %72 = tpu.matmul %71, %68, %cst_28 {dimension_numbers = #tpu.dot_dimension_numbers<[2], [1], [1], [2], [0, 0, 0, 1, 1, 2], [0], [0]>} : vector<20x16x48xf32>, vector<20x48x128xf32>, vector<20x16x128xf32> -> vector<20x16x128xf32>
    %73 = vector.shape_cast %63 : vector<16x1xf32> to vector<1x16x1xf32>
    %74 = vector.broadcast %73 : vector<1x16x1xf32> to vector<20x16x128xf32>
    %75 = arith.addf %72, %74 : vector<20x16x128xf32>
    %76 = vector.shape_cast %75 : vector<20x16x128xf32> to vector<10x2x16x128xf32>
    %77 = vector.extract_strided_slice %76 {offsets = [0, 0, 0, 0], sizes = [10, 1, 16, 128], strides = [1, 1, 1, 1]} : vector<10x2x16x128xf32> to vector<10x1x16x128xf32>
    %78 = vector.shape_cast %77 : vector<10x1x16x128xf32> to vector<10x16x128xf32>
    %79 = vector.extract_strided_slice %76 {offsets = [0, 1, 0, 0], sizes = [10, 1, 16, 128], strides = [1, 1, 1, 1]} : vector<10x2x16x128xf32> to vector<10x1x16x128xf32>
    %80 = vector.shape_cast %79 : vector<10x1x16x128xf32> to vector<10x16x128xf32>
    %81 = arith.maximumf %78, %80 : vector<10x16x128xf32>
    %c4 = arith.constant 4 : index
    %c0_29 = arith.constant 0 : index
    %c0_30 = arith.constant 0 : index
    %82 = vector.load %arg2[%c4, %c0_29, %c0_30] : memref<7x16x48xf32, #tpu.memory_space<vmem>>, vector<1x16x48xf32>
    %83 = vector.shape_cast %82 : vector<1x16x48xf32> to vector<16x48xf32>
    %c4_31 = arith.constant 4 : index
    %c0_32 = arith.constant 0 : index
    %c0_33 = arith.constant 0 : index
    %84 = vector.load %arg3[%c4_31, %c0_32, %c0_33] : memref<7x16x1xf32, #tpu.memory_space<vmem>>, vector<1x16x1xf32>
    %85 = vector.shape_cast %84 : vector<1x16x1xf32> to vector<16x1xf32>
    %86 = tpu.concatenate %1, %81, %1 in 0 : vector<1x16x128xf32>, vector<10x16x128xf32>, vector<1x16x128xf32> -> vector<12x16x128xf32>
    %87 = vector.extract_strided_slice %86 {offsets = [0, 0, 0], sizes = [10, 16, 128], strides = [1, 1, 1]} : vector<12x16x128xf32> to vector<10x16x128xf32>
    %88 = vector.extract_strided_slice %86 {offsets = [1, 0, 0], sizes = [10, 16, 128], strides = [1, 1, 1]} : vector<12x16x128xf32> to vector<10x16x128xf32>
    %89 = vector.extract_strided_slice %86 {offsets = [2, 0, 0], sizes = [10, 16, 128], strides = [1, 1, 1]} : vector<12x16x128xf32> to vector<10x16x128xf32>
    %90 = tpu.concatenate %87, %88, %89 in 1 : vector<10x16x128xf32>, vector<10x16x128xf32>, vector<10x16x128xf32> -> vector<10x48x128xf32>
    %91 = vector.shape_cast %83 : vector<16x48xf32> to vector<1x16x48xf32>
    %92 = vector.shape_cast %91 : vector<1x16x48xf32> to vector<1x16x48xf32>
    %93 = vector.broadcast %92 : vector<1x16x48xf32> to vector<10x16x48xf32>
    %cst_34 = arith.constant dense<0.000000e+00> : vector<10x16x128xf32>
    %94 = tpu.matmul %93, %90, %cst_34 {dimension_numbers = #tpu.dot_dimension_numbers<[2], [1], [1], [2], [0, 0, 0, 1, 1, 2], [0], [0]>} : vector<10x16x48xf32>, vector<10x48x128xf32>, vector<10x16x128xf32> -> vector<10x16x128xf32>
    %95 = vector.shape_cast %85 : vector<16x1xf32> to vector<1x16x1xf32>
    %96 = vector.broadcast %95 : vector<1x16x1xf32> to vector<10x16x128xf32>
    %97 = arith.addf %94, %96 : vector<10x16x128xf32>
    %98 = vector.extract_strided_slice %97 {offsets = [0, 0, 0], sizes = [1, 16, 128], strides = [1, 1, 1]} : vector<10x16x128xf32> to vector<1x16x128xf32>
    %99 = vector.extract_strided_slice %97 {offsets = [0, 0, 0], sizes = [9, 16, 128], strides = [1, 1, 1]} : vector<10x16x128xf32> to vector<9x16x128xf32>
    %100 = tpu.concatenate %98, %99 in 0 : vector<1x16x128xf32>, vector<9x16x128xf32> -> vector<10x16x128xf32>
    %101 = vector.extract_strided_slice %97 {offsets = [1, 0, 0], sizes = [9, 16, 128], strides = [1, 1, 1]} : vector<10x16x128xf32> to vector<9x16x128xf32>
    %102 = vector.extract_strided_slice %97 {offsets = [9, 0, 0], sizes = [1, 16, 128], strides = [1, 1, 1]} : vector<10x16x128xf32> to vector<1x16x128xf32>
    %103 = tpu.concatenate %101, %102 in 0 : vector<9x16x128xf32>, vector<1x16x128xf32> -> vector<10x16x128xf32>
    %cst_35 = arith.constant 7.500000e-01 : f32
    %104 = vector.broadcast %cst_35 : f32 to vector<10x16x128xf32>
    %105 = arith.mulf %104, %97 : vector<10x16x128xf32>
    %cst_36 = arith.constant 2.500000e-01 : f32
    %106 = vector.broadcast %cst_36 : f32 to vector<10x16x128xf32>
    %107 = arith.mulf %106, %100 : vector<10x16x128xf32>
    %108 = arith.addf %105, %107 : vector<10x16x128xf32>
    %cst_37 = arith.constant 7.500000e-01 : f32
    %109 = vector.broadcast %cst_37 : f32 to vector<10x16x128xf32>
    %110 = arith.mulf %109, %97 : vector<10x16x128xf32>
    %cst_38 = arith.constant 2.500000e-01 : f32
    %111 = vector.broadcast %cst_38 : f32 to vector<10x16x128xf32>
    %112 = arith.mulf %111, %103 : vector<10x16x128xf32>
    %113 = arith.addf %110, %112 : vector<10x16x128xf32>
    %114 = vector.shape_cast %108 : vector<10x16x128xf32> to vector<10x1x16x128xf32>
    %115 = vector.shape_cast %113 : vector<10x16x128xf32> to vector<10x1x16x128xf32>
    %116 = tpu.concatenate %114, %115 in 1 : vector<10x1x16x128xf32>, vector<10x1x16x128xf32> -> vector<10x2x16x128xf32>
    %117 = vector.shape_cast %116 : vector<10x2x16x128xf32> to vector<20x16x128xf32>
    %c5 = arith.constant 5 : index
    %c0_39 = arith.constant 0 : index
    %c0_40 = arith.constant 0 : index
    %118 = vector.load %arg2[%c5, %c0_39, %c0_40] : memref<7x16x48xf32, #tpu.memory_space<vmem>>, vector<1x16x48xf32>
    %119 = vector.shape_cast %118 : vector<1x16x48xf32> to vector<16x48xf32>
    %c5_41 = arith.constant 5 : index
    %c0_42 = arith.constant 0 : index
    %c0_43 = arith.constant 0 : index
    %120 = vector.load %arg3[%c5_41, %c0_42, %c0_43] : memref<7x16x1xf32, #tpu.memory_space<vmem>>, vector<1x16x1xf32>
    %121 = vector.shape_cast %120 : vector<1x16x1xf32> to vector<16x1xf32>
    %122 = tpu.concatenate %1, %117, %1 in 0 : vector<1x16x128xf32>, vector<20x16x128xf32>, vector<1x16x128xf32> -> vector<22x16x128xf32>
    %123 = vector.extract_strided_slice %122 {offsets = [0, 0, 0], sizes = [20, 16, 128], strides = [1, 1, 1]} : vector<22x16x128xf32> to vector<20x16x128xf32>
    %124 = vector.extract_strided_slice %122 {offsets = [1, 0, 0], sizes = [20, 16, 128], strides = [1, 1, 1]} : vector<22x16x128xf32> to vector<20x16x128xf32>
    %125 = vector.extract_strided_slice %122 {offsets = [2, 0, 0], sizes = [20, 16, 128], strides = [1, 1, 1]} : vector<22x16x128xf32> to vector<20x16x128xf32>
    %126 = tpu.concatenate %123, %124, %125 in 1 : vector<20x16x128xf32>, vector<20x16x128xf32>, vector<20x16x128xf32> -> vector<20x48x128xf32>
    %127 = vector.shape_cast %119 : vector<16x48xf32> to vector<1x16x48xf32>
    %128 = vector.shape_cast %127 : vector<1x16x48xf32> to vector<1x16x48xf32>
    %129 = vector.broadcast %128 : vector<1x16x48xf32> to vector<20x16x48xf32>
    %cst_44 = arith.constant dense<0.000000e+00> : vector<20x16x128xf32>
    %130 = tpu.matmul %129, %126, %cst_44 {dimension_numbers = #tpu.dot_dimension_numbers<[2], [1], [1], [2], [0, 0, 0, 1, 1, 2], [0], [0]>} : vector<20x16x48xf32>, vector<20x48x128xf32>, vector<20x16x128xf32> -> vector<20x16x128xf32>
    %131 = vector.shape_cast %121 : vector<16x1xf32> to vector<1x16x1xf32>
    %132 = vector.broadcast %131 : vector<1x16x1xf32> to vector<20x16x128xf32>
    %133 = arith.addf %130, %132 : vector<20x16x128xf32>
    %134 = vector.shape_cast %133 : vector<20x16x128xf32> to vector<10x2x16x128xf32>
    %135 = vector.extract_strided_slice %134 {offsets = [0, 0, 0, 0], sizes = [10, 1, 16, 128], strides = [1, 1, 1, 1]} : vector<10x2x16x128xf32> to vector<10x1x16x128xf32>
    %136 = vector.shape_cast %135 : vector<10x1x16x128xf32> to vector<10x16x128xf32>
    %137 = vector.extract_strided_slice %134 {offsets = [0, 1, 0, 0], sizes = [10, 1, 16, 128], strides = [1, 1, 1, 1]} : vector<10x2x16x128xf32> to vector<10x1x16x128xf32>
    %138 = vector.shape_cast %137 : vector<10x1x16x128xf32> to vector<10x16x128xf32>
    %139 = arith.maximumf %136, %138 : vector<10x16x128xf32>
    %cst_45 = arith.constant 0.000000e+00 : f32
    %140 = vector.broadcast %cst_45 : f32 to vector<10x16x128xf32>
    %141 = arith.maximumf %139, %140 : vector<10x16x128xf32>
    %c6 = arith.constant 6 : index
    %c0_46 = arith.constant 0 : index
    %c0_47 = arith.constant 0 : index
    %142 = vector.load %arg2[%c6, %c0_46, %c0_47] : memref<7x16x48xf32, #tpu.memory_space<vmem>>, vector<1x16x48xf32>
    %143 = vector.shape_cast %142 : vector<1x16x48xf32> to vector<16x48xf32>
    %c6_48 = arith.constant 6 : index
    %c0_49 = arith.constant 0 : index
    %c0_50 = arith.constant 0 : index
    %144 = vector.load %arg3[%c6_48, %c0_49, %c0_50] : memref<7x16x1xf32, #tpu.memory_space<vmem>>, vector<1x16x1xf32>
    %145 = vector.shape_cast %144 : vector<1x16x1xf32> to vector<16x1xf32>
    %146 = tpu.concatenate %1, %141, %1 in 0 : vector<1x16x128xf32>, vector<10x16x128xf32>, vector<1x16x128xf32> -> vector<12x16x128xf32>
    %147 = vector.extract_strided_slice %146 {offsets = [0, 0, 0], sizes = [10, 16, 128], strides = [1, 1, 1]} : vector<12x16x128xf32> to vector<10x16x128xf32>
    %148 = vector.extract_strided_slice %146 {offsets = [1, 0, 0], sizes = [10, 16, 128], strides = [1, 1, 1]} : vector<12x16x128xf32> to vector<10x16x128xf32>
    %149 = vector.extract_strided_slice %146 {offsets = [2, 0, 0], sizes = [10, 16, 128], strides = [1, 1, 1]} : vector<12x16x128xf32> to vector<10x16x128xf32>
    %150 = tpu.concatenate %147, %148, %149 in 1 : vector<10x16x128xf32>, vector<10x16x128xf32>, vector<10x16x128xf32> -> vector<10x48x128xf32>
    %151 = vector.shape_cast %143 : vector<16x48xf32> to vector<1x16x48xf32>
    %152 = vector.shape_cast %151 : vector<1x16x48xf32> to vector<1x16x48xf32>
    %153 = vector.broadcast %152 : vector<1x16x48xf32> to vector<10x16x48xf32>
    %cst_51 = arith.constant dense<0.000000e+00> : vector<10x16x128xf32>
    %154 = tpu.matmul %153, %150, %cst_51 {dimension_numbers = #tpu.dot_dimension_numbers<[2], [1], [1], [2], [0, 0, 0, 1, 1, 2], [0], [0]>} : vector<10x16x48xf32>, vector<10x48x128xf32>, vector<10x16x128xf32> -> vector<10x16x128xf32>
    %155 = vector.shape_cast %145 : vector<16x1xf32> to vector<1x16x1xf32>
    %156 = vector.broadcast %155 : vector<1x16x1xf32> to vector<10x16x128xf32>
    %157 = arith.addf %154, %156 : vector<10x16x128xf32>
    %158 = vector.shape_cast %157 : vector<10x16x128xf32> to vector<2x5x16x128xf32>
    %159 = vector.extract_strided_slice %158 {offsets = [0, 0, 0, 0], sizes = [2, 1, 16, 128], strides = [1, 1, 1, 1]} : vector<2x5x16x128xf32> to vector<2x1x16x128xf32>
    %160 = vector.shape_cast %159 : vector<2x1x16x128xf32> to vector<2x16x128xf32>
    %161 = vector.extract_strided_slice %158 {offsets = [0, 1, 0, 0], sizes = [2, 1, 16, 128], strides = [1, 1, 1, 1]} : vector<2x5x16x128xf32> to vector<2x1x16x128xf32>
    %162 = vector.shape_cast %161 : vector<2x1x16x128xf32> to vector<2x16x128xf32>
    %163 = arith.addf %160, %162 : vector<2x16x128xf32>
    %164 = vector.extract_strided_slice %158 {offsets = [0, 2, 0, 0], sizes = [2, 1, 16, 128], strides = [1, 1, 1, 1]} : vector<2x5x16x128xf32> to vector<2x1x16x128xf32>
    %165 = vector.shape_cast %164 : vector<2x1x16x128xf32> to vector<2x16x128xf32>
    %166 = arith.addf %163, %165 : vector<2x16x128xf32>
    %167 = vector.extract_strided_slice %158 {offsets = [0, 3, 0, 0], sizes = [2, 1, 16, 128], strides = [1, 1, 1, 1]} : vector<2x5x16x128xf32> to vector<2x1x16x128xf32>
    %168 = vector.shape_cast %167 : vector<2x1x16x128xf32> to vector<2x16x128xf32>
    %169 = arith.addf %166, %168 : vector<2x16x128xf32>
    %170 = vector.extract_strided_slice %158 {offsets = [0, 4, 0, 0], sizes = [2, 1, 16, 128], strides = [1, 1, 1, 1]} : vector<2x5x16x128xf32> to vector<2x1x16x128xf32>
    %171 = vector.shape_cast %170 : vector<2x1x16x128xf32> to vector<2x16x128xf32>
    %172 = arith.addf %169, %171 : vector<2x16x128xf32>
    %cst_52 = arith.constant 2.000000e-01 : f32
    %173 = vector.broadcast %cst_52 : f32 to vector<2x16x128xf32>
    %174 = arith.mulf %172, %173 : vector<2x16x128xf32>
    %175 = arith.negf %174 : vector<2x16x128xf32>
    %176 = math.exp %175 : vector<2x16x128xf32>
    %cst_53 = arith.constant 1.000000e+00 : f32
    %177 = vector.broadcast %cst_53 : f32 to vector<2x16x128xf32>
    %178 = arith.addf %177, %176 : vector<2x16x128xf32>
    %179 = arith.divf %177, %178 : vector<2x16x128xf32>
    %180 = vector.shape_cast %179 : vector<2x16x128xf32> to vector<32x128xf32>
    %c0_54 = arith.constant 0 : index
    %c0_55 = arith.constant 0 : index
    %181 = vector.load %arg4[%c0_54, %c0_55] : memref<32x128xf32, #tpu.memory_space<vmem>>, vector<32x128xf32>
    tpu.vector_store %arg4[%c0_54, %c0_55], %180 {strides = array<i32>} : memref<32x128xf32, #tpu.memory_space<vmem>>, vector<32x128xf32>,
    return
  }
  func.func @transform_0(%arg0: i32) -> (i32, i32, i32) {
    %c0_i32 = arith.constant 0 : i32
    %c0_i32_0 = arith.constant 0 : i32
    %c0_i32_1 = arith.constant 0 : i32
    return %c0_i32, %c0_i32_0, %arg0 : i32, i32, i32
  }
  func.func @transform_1(%arg0: i32) -> (i32, i32, i32) {
    %c0_i32 = arith.constant 0 : i32
    %c0_i32_0 = arith.constant 0 : i32
    %c0_i32_1 = arith.constant 0 : i32
    %c0_i32_2 = arith.constant 0 : i32
    return %c0_i32, %c0_i32_0, %c0_i32_1 : i32, i32, i32
  }
  func.func @transform_2(%arg0: i32) -> (i32, i32, i32) {
    %c0_i32 = arith.constant 0 : i32
    %c0_i32_0 = arith.constant 0 : i32
    %c0_i32_1 = arith.constant 0 : i32
    %c0_i32_2 = arith.constant 0 : i32
    return %c0_i32, %c0_i32_0, %c0_i32_1 : i32, i32, i32
  }
  func.func @transform_3(%arg0: i32) -> (i32, i32) {
    %c0_i32 = arith.constant 0 : i32
    %c0_i32_0 = arith.constant 0 : i32
    return %c0_i32, %arg0 : i32, i32
  }
}

</mosaic_0001>

<llo_original>
// kernel: tpu_custom_call.1
$region0: #{tpu_custom_call.1}
  #allocation0 [shape = 'u32[]', space=smem, size = 0x4, offset = 0x4, fixed_abs, tag = 'smem constant byte address 0x4 - core index']
  #allocation1 [shape = 'u32[144,128]{1,0:T(1,128)}', space=vmem, size = 0x12000, scoped, tag = 'internal scratch']
  %s0 = inlined_call_operand.hbm [shape: f32[40,16,128], index: 0, kind: input, shape index: {}]
  %s1 = inlined_call_operand.vmem [shape: f32[7,16,48], index: 1, kind: input, shape index: {}]
  %s2 = inlined_call_operand.vmem [shape: f32[7,16,1], index: 2, kind: input, shape index: {}]
  %s3 = inlined_call_operand.hbm [shape: f32[32,128], index: 3, kind: output, shape index: {}]
  %s4 = sld [smem:[#allocation0]]
  $region26: #{tpu_custom_call.1} parent=0
    _
  %s6 = ssub.s32 1, %s4
  %s7 = scalar_select 0, %s6, %s4
  $region1: #{tpu_custom_call.1} parent=0
    #allocation2 [shape = 'u8[327680]{0}', space=vmem, size = 0x50000, scoped, tag = 'input window, operand 0, single buffered']
    #allocation3 [shape = 's32[1]{0}', space=sflag, size = 0x4, scoped, tag = 'scoped memory for tpu_custom_call.1']
    #allocation4 [shape = 's32[1]{0}', space=sflag, size = 0x4, scoped, tag = 'scoped memory for tpu_custom_call.1']
    #allocation5 [shape = 'u8[16384]{0}', space=vmem, size = 0x4000, scoped, tag = 'output window, operand 0, single buffered']
    %8 = vsyncpa [#allocation3], 0
    %9 = vsyncpa [#allocation4], 0
    // Predicated region
    $region2: #{tpu_custom_call.1} parent=1 // pred_check
      _
    $region3: #{tpu_custom_call.1} parent=1 // pred_check_branch
      %11 = sbr.rel (0) target = $region5
    $region4: #{tpu_custom_call.1} parent=1 // pred_region
      %s13 = ssub.s32 10240, 10240
      %14 = vsyncadd [#allocation3], %s13
      %s15 = sshll.u32 [#allocation2], 4
      %s16 = int_to_ptr.vmem [resolvable:$true] %s15
      %21 = dma.hbm_to_vmem [thread:$0]  %s0, 10240, %s16, [#allocation3], 128, 128, 8
    $region5: #{tpu_custom_call.1} parent=1 // pred_fallthru
      _
    // Predicated region
    $region6: #{tpu_custom_call.1} parent=1 // pred_check
      _
    $region7: #{tpu_custom_call.1} parent=1 // pred_check_branch
      %23 = sbr.rel (0) target = $region9
    $region8: #{tpu_custom_call.1} parent=1 // pred_region
      _
    $region9: #{tpu_custom_call.1} parent=1 // pred_fallthru
      _
    // Predicated region
    $region10: #{tpu_custom_call.1} parent=1 // pred_check
      _
    $region11: #{tpu_custom_call.1} parent=1 // pred_check_branch
      %25 = sbr.rel (0) target = $region13
    $region12: #{tpu_custom_call.1} parent=1 // pred_region
      _
    $region13: #{tpu_custom_call.1} parent=1 // pred_fallthru
      _
    // Predicated region
    $region14: #{tpu_custom_call.1} parent=1 // pred_check
      _
    $region15: #{tpu_custom_call.1} parent=1 // pred_check_branch
      %27 = sbr.rel (0) target = $region17
    $region16: #{tpu_custom_call.1} parent=1 // pred_region
      %28 = dma.done [#allocation3], 10240
    $region17: #{tpu_custom_call.1} parent=1 // pred_fallthru
      _
    %v29 = vld [vmem:[#allocation2] sm:$0xff]
    %v30 = vld [vmem:[#allocation2 + $0x8] sm:$0xff]
    %v31 = vld [vmem:[#allocation2 + $0x10] sm:$0xff]
    %v32 = vld [vmem:[#allocation2 + $0x18] sm:$0xff]
    %v33 = vld [vmem:[#allocation2 + $0x20] sm:$0xff]
    %v34 = vld [vmem:[#allocation2 + $0x28] sm:$0xff]
    %v35 = vld [vmem:[#allocation2 + $0x30] sm:$0xff]
    %v36 = vld [vmem:[#allocation2 + $0x38] sm:$0xff]
    %v37 = vld [vmem:[#allocation2 + $0x40] sm:$0xff]
    %v38 = vld [vmem:[#allocation2 + $0x48] sm:$0xff]
    %v39 = vld [vmem:[#allocation2 + $0x50] sm:$0xff]
    %v40 = vld [vmem:[#allocation2 + $0x58] sm:$0xff]
    %v41 = vld [vmem:[#allocation2 + $0x60] sm:$0xff]
    %v42 = vld [vmem:[#allocation2 + $0x68] sm:$0xff]
    %v43 = vld [vmem:[#allocation2 + $0x70] sm:$0xff]
    %v44 = vld [vmem:[#allocation2 + $0x78] sm:$0xff]
    %v45 = vld [vmem:[#allocation2 + $0x80] sm:$0xff]
    %v46 = vld [vmem:[#allocation2 + $0x88] sm:$0xff]
    %v47 = vld [vmem:[#allocation2 + $0x90] sm:$0xff]
    %v48 = vld [vmem:[#allocation2 + $0x98] sm:$0xff]
    %v49 = vld [vmem:[#allocation2 + $0xa0] sm:$0xff]
    %v50 = vld [vmem:[#allocation2 + $0xa8] sm:$0xff]
    %v51 = vld [vmem:[#allocation2 + $0xb0] sm:$0xff]
    %v52 = vld [vmem:[#allocation2 + $0xb8] sm:$0xff]
    %v53 = vld [vmem:[#allocation2 + $0xc0] sm:$0xff]
    %v54 = vld [vmem:[#allocation2 + $0xc8] sm:$0xff]
    %v55 = vld [vmem:[#allocation2 + $0xd0] sm:$0xff]
    %v56 = vld [vmem:[#allocation2 + $0xd8] sm:$0xff]
    %v57 = vld [vmem:[#allocation2 + $0xe0] sm:$0xff]
    %v58 = vld [vmem:[#allocation2 + $0xe8] sm:$0xff]
    %v59 = vld [vmem:[#allocation2 + $0xf0] sm:$0xff]
    %v60 = vld [vmem:[#allocation2 + $0xf8] sm:$0xff]
    %v61 = vld [vmem:[#allocation2 + $0x100] sm:$0xff]
    %v62 = vld [vmem:[#allocation2 + $0x108] sm:$0xff]
    %v63 = vld [vmem:[#allocation2 + $0x110] sm:$0xff]
    %v64 = vld [vmem:[#allocation2 + $0x118] sm:$0xff]
    %v65 = vld [vmem:[#allocation2 + $0x120] sm:$0xff]
    %v66 = vld [vmem:[#allocation2 + $0x128] sm:$0xff]
    %v67 = vld [vmem:[#allocation2 + $0x130] sm:$0xff]
    %v68 = vld [vmem:[#allocation2 + $0x138] sm:$0xff]
    %v69 = vld [vmem:[#allocation2 + $0x140] sm:$0xff]
    %v70 = vld [vmem:[#allocation2 + $0x148] sm:$0xff]
    %v71 = vld [vmem:[#allocation2 + $0x150] sm:$0xff]
    %v72 = vld [vmem:[#allocation2 + $0x158] sm:$0xff]
    %v73 = vld [vmem:[#allocation2 + $0x160] sm:$0xff]
    %v74 = vld [vmem:[#allocation2 + $0x168] sm:$0xff]
    %v75 = vld [vmem:[#allocation2 + $0x170] sm:$0xff]
    %v76 = vld [vmem:[#allocation2 + $0x178] sm:$0xff]
    %v77 = vld [vmem:[#allocation2 + $0x180] sm:$0xff]
    %v78 = vld [vmem:[#allocation2 + $0x188] sm:$0xff]
    %v79 = vld [vmem:[#allocation2 + $0x190] sm:$0xff]
    %v80 = vld [vmem:[#allocation2 + $0x198] sm:$0xff]
    %v81 = vld [vmem:[#allocation2 + $0x1a0] sm:$0xff]
    %v82 = vld [vmem:[#allocation2 + $0x1a8] sm:$0xff]
    %v83 = vld [vmem:[#allocation2 + $0x1b0] sm:$0xff]
    %v84 = vld [vmem:[#allocation2 + $0x1b8] sm:$0xff]
    %v85 = vld [vmem:[#allocation2 + $0x1c0] sm:$0xff]
    %v86 = vld [vmem:[#allocation2 + $0x1c8] sm:$0xff]
    %v87 = vld [vmem:[#allocation2 + $0x1d0] sm:$0xff]
    %v88 = vld [vmem:[#allocation2 + $0x1d8] sm:$0xff]
    %v89 = vld [vmem:[#allocation2 + $0x1e0] sm:$0xff]
    %v90 = vld [vmem:[#allocation2 + $0x1e8] sm:$0xff]
    %v91 = vld [vmem:[#allocation2 + $0x1f0] sm:$0xff]
    %v92 = vld [vmem:[#allocation2 + $0x1f8] sm:$0xff]
    %v93 = vld [vmem:[#allocation2 + $0x200] sm:$0xff]
    %v94 = vld [vmem:[#allocation2 + $0x208] sm:$0xff]
    %v95 = vld [vmem:[#allocation2 + $0x210] sm:$0xff]
    %v96 = vld [vmem:[#allocation2 + $0x218] sm:$0xff]
    %v97 = vld [vmem:[#allocation2 + $0x220] sm:$0xff]
    %v98 = vld [vmem:[#allocation2 + $0x228] sm:$0xff]
    %v99 = vld [vmem:[#allocation2 + $0x230] sm:$0xff]
    %v100 = vld [vmem:[#allocation2 + $0x238] sm:$0xff]
    %v101 = vld [vmem:[#allocation2 + $0x240] sm:$0xff]
    %v102 = vld [vmem:[#allocation2 + $0x248] sm:$0xff]
    %v103 = vld [vmem:[#allocation2 + $0x250] sm:$0xff]
    %v104 = vld [vmem:[#allocation2 + $0x258] sm:$0xff]
    %v105 = vld [vmem:[#allocation2 + $0x260] sm:$0xff]
    %v106 = vld [vmem:[#allocation2 + $0x268] sm:$0xff]
    %v107 = vld [vmem:[#allocation2 + $0x270] sm:$0xff]
    %v108 = vld [vmem:[#allocation2 + $0x278] sm:$0xff]
    %v109 = vld [vmem:[%s1] sm:$0xff]
    %v110 = vld [vmem:[%s1 + $0x8] sm:$0xff]
    %v111 = vld [vmem:[%s2] sm:$0xff]
    %v112 = vld [vmem:[%s2 + $0x8] sm:$0xff]
    %114 = vset.pattern.permute.xlu0 0
    %115 = vperm.xlu0 %114, %v111
    %v116 = vpop.permute.xlu0 %115
    %119 = vset.pattern.permute.xlu0 0
    %120 = vperm.xlu0 %119, %v112
    %v121 = vpop.permute.xlu0 %120
    %vm123 = vcmask 392192
    %v125 = vsel %vm123, %v109, 0
    %v128 = vsel %vm123, %v110, 0
    %130 = vmatprep.subr.mxu0 0.0
    %131 = vmatpush1.msra.mxu0 0.0
    %132 = vmatprep.subr.mxu0 0.0
    %133 = vmatpush1.msra.mxu0 0.0
    %134 = vmatprep.subr.mxu0 0.0
    %135 = vmatpush1.msra.mxu0 0.0
    %136 = vmatprep.subr.mxu0 0.0
    %137 = vmatpush1.msra.mxu0 0.0
    %138 = vmatprep.subr.mxu0 0.0
    %139 = vmatpush1.msra.mxu0 0.0
    %140 = vmatprep.subr.mxu0 0.0
    %141 = vmatpush1.msra.mxu0 0.0
    %142 = vmatprep.subr.mxu0 0.0
    %143 = vmatpush1.msra.mxu0 0.0
    %144 = vmatprep.subr.mxu0 0.0
    %145 = vmatpush1.msra.mxu0 0.0
    %146 = vmatprep.subr.mxu0 0.0
    %147 = vmatpush1.msra.mxu0 0.0
    %148 = vmatprep.subr.mxu0 0.0
    %149 = vmatpush1.msra.mxu0 0.0
    %150 = vmatprep.subr.mxu0 0.0
    %151 = vmatpush1.msra.mxu0 %v32
    %152 = vmatprep.subr.mxu0 0.0
    %153 = vmatpush1.msra.mxu0 %v31
    %154 = vmatprep.subr.mxu0 0.0
    %155 = vmatpush1.msra.mxu0 %v30
    %156 = vmatprep.subr.mxu0 0.0
    %157 = vmatpush1.msra.mxu0 %v29
    %158 = vmatprep.subr.mxu0 0.0
    %159 = vmatpush1.msra.mxu0 0.0
    %160 = vmatprep.subr.mxu0 0.0
    %161 = vmatpush1.msra.mxu0 0.0
    %162 = vmatprep.subr.mxu0 0.0
    %163 = vmatpush2.msra.mxu0 0.0
    %164 = vmatprep.subr.mxu0 0.0
    %165 = vmatpush2.msra.mxu0 0.0
    %166 = vmatprep.subr.mxu0 0.0
    %167 = vmatpush2.msra.mxu0 0.0
    %168 = vmatprep.subr.mxu0 0.0
    %169 = vmatpush2.msra.mxu0 0.0
    %170 = vmatprep.subr.mxu0 0.0
    %171 = vmatpush2.msra.mxu0 0.0
    %172 = vmatprep.subr.mxu0 0.0
    %173 = vmatpush2.msra.mxu0 0.0
    %174 = vmatprep.subr.mxu0 0.0
    %175 = vmatpush2.msra.mxu0 0.0
    %176 = vmatprep.subr.mxu0 0.0
    %177 = vmatpush2.msra.mxu0 0.0
    %178 = vmatprep.subr.mxu0 0.0
    %179 = vmatpush2.msra.mxu0 0.0
    %180 = vmatprep.subr.mxu0 0.0
    %181 = vmatpush2.msra.mxu0 0.0
    %182 = vmatprep.subr.mxu0 0.0
    %183 = vmatpush2.msra.mxu0 0.0
    %184 = vmatprep.subr.mxu0 0.0
    %185 = vmatpush2.msra.mxu0 0.0
    %186 = vmatprep.subr.mxu0 0.0
    %187 = vmatpush2.msra.mxu0 0.0
    %188 = vmatprep.subr.mxu0 0.0
    %189 = vmatpush2.msra.mxu0 0.0
    %190 = vmatprep.subr.mxu0 0.0
    %191 = vmatpush2.msra.mxu0 0.0
    %192 = vmatprep.subr.mxu0 0.0
    %193 = vmatpush2.msra.mxu0 0.0
    %194 = vmatprep.mubr.f32.mxu0 0.0
    %195 = vmatmul.mubr.f32.gmra.mxu0 %v125
    %v196 = vpop.f32.mrf.mxu0
    %v197 = vadd.f32 %v116, %v196
    %v198 = vpop.f32.mrf.mxu0
    %199 = vmatprep.mubr.f32.mxu0 0.0
    %200 = vmatmul.mubr.f32.gmra.mxu0 %v128
    %v201 = vpop.f32.mrf.mxu0
    %v202 = vadd.f32 %v121, %v201
    %v203 = vpop.f32.mrf.mxu0
    %204 = vdwg.mxu0
    %205 = vmatprep.subr.mxu0 0.0
    %206 = vmatpush1.msra.mxu0 0.0
    %207 = vmatprep.subr.mxu0 0.0
    %208 = vmatpush1.msra.mxu0 0.0
    %209 = vmatprep.subr.mxu0 0.0
    %210 = vmatpush1.msra.mxu0 0.0
    %211 = vmatprep.subr.mxu0 0.0
    %212 = vmatpush1.msra.mxu0 0.0
    %213 = vmatprep.subr.mxu0 0.0
    %214 = vmatpush1.msra.mxu0 0.0
    %215 = vmatprep.subr.mxu0 0.0
    %216 = vmatpush1.msra.mxu0 0.0
    %217 = vmatprep.subr.mxu0 0.0
    %218 = vmatpush1.msra.mxu0 0.0
    %219 = vmatprep.subr.mxu0 0.0
    %220 = vmatpush1.msra.mxu0 0.0
    %221 = vmatprep.subr.mxu0 0.0
    %222 = vmatpush1.msra.mxu0 0.0
    %223 = vmatprep.subr.mxu0 0.0
    %224 = vmatpush1.msra.mxu0 0.0
    %225 = vmatprep.subr.mxu0 0.0
    %226 = vmatpush1.msra.mxu0 %v34
    %227 = vmatprep.subr.mxu0 0.0
    %228 = vmatpush1.msra.mxu0 %v33
    %229 = vmatprep.subr.mxu0 0.0
    %230 = vmatpush1.msra.mxu0 %v32
    %231 = vmatprep.subr.mxu0 0.0
    %232 = vmatpush1.msra.mxu0 %v31
    %233 = vmatprep.subr.mxu0 0.0
    %234 = vmatpush1.msra.mxu0 %v30
    %235 = vmatprep.subr.mxu0 0.0
    %236 = vmatpush1.msra.mxu0 %v29
    %237 = vmatprep.subr.mxu0 0.0
    %238 = vmatpush2.msra.mxu0 0.0
    %239 = vmatprep.subr.mxu0 0.0
    %240 = vmatpush2.msra.mxu0 0.0
    %241 = vmatprep.subr.mxu0 0.0
    %242 = vmatpush2.msra.mxu0 0.0
    %243 = vmatprep.subr.mxu0 0.0
    %244 = vmatpush2.msra.mxu0 0.0
    %245 = vmatprep.subr.mxu0 0.0
    %246 = vmatpush2.msra.mxu0 0.0
    %247 = vmatprep.subr.mxu0 0.0
    %248 = vmatpush2.msra.mxu0 0.0
    %249 = vmatprep.subr.mxu0 0.0
    %250 = vmatpush2.msra.mxu0 0.0
    %251 = vmatprep.subr.mxu0 0.0
    %252 = vmatpush2.msra.mxu0 0.0
    %253 = vmatprep.subr.mxu0 0.0
    %254 = vmatpush2.msra.mxu0 0.0
    %255 = vmatprep.subr.mxu0 0.0
    %256 = vmatpush2.msra.mxu0 0.0
    %257 = vmatprep.subr.mxu0 0.0
    %258 = vmatpush2.msra.mxu0 0.0
    %259 = vmatprep.subr.mxu0 0.0
    %260 = vmatpush2.msra.mxu0 0.0
    %261 = vmatprep.subr.mxu0 0.0
    %262 = vmatpush2.msra.mxu0 0.0
    %263 = vmatprep.subr.mxu0 0.0
    %264 = vmatpush2.msra.mxu0 0.0
    %265 = vmatprep.subr.mxu0 0.0
    %266 = vmatpush2.msra.mxu0 0.0
    %267 = vmatprep.subr.mxu0 0.0
    %268 = vmatpush2.msra.mxu0 0.0
    %269 = vmatprep.mubr.f32.mxu0 0.0
    %270 = vmatmul.mubr.f32.gmra.mxu0 %v125
    %v271 = vpop.f32.mrf.mxu0
    %v272 = vadd.f32 %v116, %v271
    %v273 = vpop.f32.mrf.mxu0
    %274 = vmatprep.mubr.f32.mxu0 0.0
    %275 = vmatmul.mubr.f32.gmra.mxu0 %v128
    %v276 = vpop.f32.mrf.mxu0
    %v277 = vadd.f32 %v121, %v276
    %v278 = vpop.f32.mrf.mxu0
    %279 = vdwg.mxu0
    %280 = vmatprep.subr.mxu0 0.0
    %281 = vmatpush1.msra.mxu0 0.0
    %282 = vmatprep.subr.mxu0 0.0
    %283 = vmatpush1.msra.mxu0 0.0
    %284 = vmatprep.subr.mxu0 0.0
    %285 = vmatpush1.msra.mxu0 0.0
    %286 = vmatprep.subr.mxu0 0.0
    %287 = vmatpush1.msra.mxu0 0.0
    %288 = vmatprep.subr.mxu0 0.0
    %289 = vmatpush1.msra.mxu0 0.0
    %290 = vmatprep.subr.mxu0 0.0
    %291 = vmatpush1.msra.mxu0 0.0
    %292 = vmatprep.subr.mxu0 0.0
    %293 = vmatpush1.msra.mxu0 0.0
    %294 = vmatprep.subr.mxu0 0.0
    %295 = vmatpush1.msra.mxu0 0.0
    %296 = vmatprep.subr.mxu0 0.0
    %297 = vmatpush1.msra.mxu0 0.0
    %298 = vmatprep.subr.mxu0 0.0
    %299 = vmatpush1.msra.mxu0 0.0
    %300 = vmatprep.subr.mxu0 0.0
    %301 = vmatpush1.msra.mxu0 %v36
    %302 = vmatprep.subr.mxu0 0.0
    %303 = vmatpush1.msra.mxu0 %v35
    %304 = vmatprep.subr.mxu0 0.0
    %305 = vmatpush1.msra.mxu0 %v34
    %306 = vmatprep.subr.mxu0 0.0
    %307 = vmatpush1.msra.mxu0 %v33
    %308 = vmatprep.subr.mxu0 0.0
    %309 = vmatpush1.msra.mxu0 %v32
    %310 = vmatprep.subr.mxu0 0.0
    %311 = vmatpush1.msra.mxu0 %v31
    %312 = vmatprep.subr.mxu0 0.0
    %313 = vmatpush2.msra.mxu0 0.0
    %314 = vmatprep.subr.mxu0 0.0
    %315 = vmatpush2.msra.mxu0 0.0
    %316 = vmatprep.subr.mxu0 0.0
    %317 = vmatpush2.msra.mxu0 0.0
    %318 = vmatprep.subr.mxu0 0.0
    %319 = vmatpush2.msra.mxu0 0.0
    %320 = vmatprep.subr.mxu0 0.0
    %321 = vmatpush2.msra.mxu0 0.0
    %322 = vmatprep.subr.mxu0 0.0
    %323 = vmatpush2.msra.mxu0 0.0
    %324 = vmatprep.subr.mxu0 0.0
    %325 = vmatpush2.msra.mxu0 0.0
    %326 = vmatprep.subr.mxu0 0.0
    %327 = vmatpush2.msra.mxu0 0.0
    %328 = vmatprep.subr.mxu0 0.0
    %329 = vmatpush2.msra.mxu0 0.0
    %330 = vmatprep.subr.mxu0 0.0
    %331 = vmatpush2.msra.mxu0 0.0
    %332 = vmatprep.subr.mxu0 0.0
    %333 = vmatpush2.msra.mxu0 0.0
    %334 = vmatprep.subr.mxu0 0.0
    %335 = vmatpush2.msra.mxu0 0.0
    %336 = vmatprep.subr.mxu0 0.0
    %337 = vmatpush2.msra.mxu0 0.0
    %338 = vmatprep.subr.mxu0 0.0
    %339 = vmatpush2.msra.mxu0 0.0
    %340 = vmatprep.subr.mxu0 0.0
    %341 = vmatpush2.msra.mxu0 0.0
    %342 = vmatprep.subr.mxu0 0.0
    %343 = vmatpush2.msra.mxu0 0.0
    %344 = vmatprep.mubr.f32.mxu0 0.0
    %345 = vmatmul.mubr.f32.gmra.mxu0 %v125
    %v346 = vpop.f32.mrf.mxu0
    %v347 = vadd.f32 %v116, %v346
    %v348 = vpop.f32.mrf.mxu0
    %349 = vmatprep.mubr.f32.mxu0 0.0
    %350 = vmatmul.mubr.f32.gmra.mxu0 %v128
    %v351 = vpop.f32.mrf.mxu0
    %v352 = vadd.f32 %v121, %v351
    %v353 = vpop.f32.mrf.mxu0
    %354 = vdwg.mxu0
    %355 = vmatprep.subr.mxu0 0.0
    %356 = vmatpush1.msra.mxu0 0.0
    %357 = vmatprep.subr.mxu0 0.0
    %358 = vmatpush1.msra.mxu0 0.0
    %359 = vmatprep.subr.mxu0 0.0
    %360 = vmatpush1.msra.mxu0 0.0
    %361 = vmatprep.subr.mxu0 0.0
    %362 = vmatpush1.msra.mxu0 0.0
    %363 = vmatprep.subr.mxu0 0.0
    %364 = vmatpush1.msra.mxu0 0.0
    %365 = vmatprep.subr.mxu0 0.0
    %366 = vmatpush1.msra.mxu0 0.0
    %367 = vmatprep.subr.mxu0 0.0
    %368 = vmatpush1.msra.mxu0 0.0
    %369 = vmatprep.subr.mxu0 0.0
    %370 = vmatpush1.msra.mxu0 0.0
    %371 = vmatprep.subr.mxu0 0.0
    %372 = vmatpush1.msra.mxu0 0.0
    %373 = vmatprep.subr.mxu0 0.0
    %374 = vmatpush1.msra.mxu0 0.0
    %375 = vmatprep.subr.mxu0 0.0
    %376 = vmatpush1.msra.mxu0 %v38
    %377 = vmatprep.subr.mxu0 0.0
    %378 = vmatpush1.msra.mxu0 %v37
    %379 = vmatprep.subr.mxu0 0.0
    %380 = vmatpush1.msra.mxu0 %v36
    %381 = vmatprep.subr.mxu0 0.0
    %382 = vmatpush1.msra.mxu0 %v35
    %383 = vmatprep.subr.mxu0 0.0
    %384 = vmatpush1.msra.mxu0 %v34
    %385 = vmatprep.subr.mxu0 0.0
    %386 = vmatpush1.msra.mxu0 %v33
    %387 = vmatprep.subr.mxu0 0.0
    %388 = vmatpush2.msra.mxu0 0.0
    %389 = vmatprep.subr.mxu0 0.0
    %390 = vmatpush2.msra.mxu0 0.0
    %391 = vmatprep.subr.mxu0 0.0
    %392 = vmatpush2.msra.mxu0 0.0
    %393 = vmatprep.subr.mxu0 0.0
    %394 = vmatpush2.msra.mxu0 0.0
    %395 = vmatprep.subr.mxu0 0.0
    %396 = vmatpush2.msra.mxu0 0.0
    %397 = vmatprep.subr.mxu0 0.0
    %398 = vmatpush2.msra.mxu0 0.0
    %399 = vmatprep.subr.mxu0 0.0
    %400 = vmatpush2.msra.mxu0 0.0
    %401 = vmatprep.subr.mxu0 0.0
    %402 = vmatpush2.msra.mxu0 0.0
    %403 = vmatprep.subr.mxu0 0.0
    %404 = vmatpush2.msra.mxu0 0.0
    %405 = vmatprep.subr.mxu0 0.0
    %406 = vmatpush2.msra.mxu0 0.0
    %407 = vmatprep.subr.mxu0 0.0
    %408 = vmatpush2.msra.mxu0 0.0
    %409 = vmatprep.subr.mxu0 0.0
    %410 = vmatpush2.msra.mxu0 0.0
    %411 = vmatprep.subr.mxu0 0.0
    %412 = vmatpush2.msra.mxu0 0.0
    %413 = vmatprep.subr.mxu0 0.0
    %414 = vmatpush2.msra.mxu0 0.0
    %415 = vmatprep.subr.mxu0 0.0
    %416 = vmatpush2.msra.mxu0 0.0
    %417 = vmatprep.subr.mxu0 0.0
    %418 = vmatpush2.msra.mxu0 0.0
    %419 = vmatprep.mubr.f32.mxu0 0.0
    %420 = vmatmul.mubr.f32.gmra.mxu0 %v125
    %v421 = vpop.f32.mrf.mxu0
    %v422 = vadd.f32 %v116, %v421
    %v423 = vpop.f32.mrf.mxu0
    %424 = vmatprep.mubr.f32.mxu0 0.0
    %425 = vmatmul.mubr.f32.gmra.mxu0 %v128
    %v426 = vpop.f32.mrf.mxu0
    %v427 = vadd.f32 %v121, %v426
    %v428 = vpop.f32.mrf.mxu0
    %429 = vdwg.mxu0
    %430 = vmatprep.subr.mxu0 0.0
    %431 = vmatpush1.msra.mxu0 0.0
    %432 = vmatprep.subr.mxu0 0.0
    %433 = vmatpush1.msra.mxu0 0.0
    %434 = vmatprep.subr.mxu0 0.0
    %435 = vmatpush1.msra.mxu0 0.0
    %436 = vmatprep.subr.mxu0 0.0
    %437 = vmatpush1.msra.mxu0 0.0
    %438 = vmatprep.subr.mxu0 0.0
    %439 = vmatpush1.msra.mxu0 0.0
    %440 = vmatprep.subr.mxu0 0.0
    %441 = vmatpush1.msra.mxu0 0.0
    %442 = vmatprep.subr.mxu0 0.0
    %443 = vmatpush1.msra.mxu0 0.0
    %444 = vmatprep.subr.mxu0 0.0
    %445 = vmatpush1.msra.mxu0 0.0
    %446 = vmatprep.subr.mxu0 0.0
    %447 = vmatpush1.msra.mxu0 0.0
    %448 = vmatprep.subr.mxu0 0.0
    %449 = vmatpush1.msra.mxu0 0.0
    %450 = vmatprep.subr.mxu0 0.0
    %451 = vmatpush1.msra.mxu0 %v40
    %452 = vmatprep.subr.mxu0 0.0
    %453 = vmatpush1.msra.mxu0 %v39
    %454 = vmatprep.subr.mxu0 0.0
    %455 = vmatpush1.msra.mxu0 %v38
    %456 = vmatprep.subr.mxu0 0.0
    %457 = vmatpush1.msra.mxu0 %v37
    %458 = vmatprep.subr.mxu0 0.0
    %459 = vmatpush1.msra.mxu0 %v36
    %460 = vmatprep.subr.mxu0 0.0
    %461 = vmatpush1.msra.mxu0 %v35
    %462 = vmatprep.subr.mxu0 0.0
    %463 = vmatpush2.msra.mxu0 0.0
    %464 = vmatprep.subr.mxu0 0.0
    %465 = vmatpush2.msra.mxu0 0.0
    %466 = vmatprep.subr.mxu0 0.0
    %467 = vmatpush2.msra.mxu0 0.0
    %468 = vmatprep.subr.mxu0 0.0
    %469 = vmatpush2.msra.mxu0 0.0
    %470 = vmatprep.subr.mxu0 0.0
    %471 = vmatpush2.msra.mxu0 0.0
    %472 = vmatprep.subr.mxu0 0.0
    %473 = vmatpush2.msra.mxu0 0.0
    %474 = vmatprep.subr.mxu0 0.0
    %475 = vmatpush2.msra.mxu0 0.0
    %476 = vmatprep.subr.mxu0 0.0
    %477 = vmatpush2.msra.mxu0 0.0
    %478 = vmatprep.subr.mxu0 0.0
    %479 = vmatpush2.msra.mxu0 0.0
    %480 = vmatprep.subr.mxu0 0.0
    %481 = vmatpush2.msra.mxu0 0.0
    %482 = vmatprep.subr.mxu0 0.0
    %483 = vmatpush2.msra.mxu0 0.0
    %484 = vmatprep.subr.mxu0 0.0
    %485 = vmatpush2.msra.mxu0 0.0
    %486 = vmatprep.subr.mxu0 0.0
    %487 = vmatpush2.msra.mxu0 0.0
    %488 = vmatprep.subr.mxu0 0.0
    %489 = vmatpush2.msra.mxu0 0.0
    %490 = vmatprep.subr.mxu0 0.0
    %491 = vmatpush2.msra.mxu0 0.0
    %492 = vmatprep.subr.mxu0 0.0
    %493 = vmatpush2.msra.mxu0 0.0
    %494 = vmatprep.mubr.f32.mxu0 0.0
    %495 = vmatmul.mubr.f32.gmra.mxu0 %v125
    %v496 = vpop.f32.mrf.mxu0
    %v497 = vadd.f32 %v116, %v496
    %v498 = vpop.f32.mrf.mxu0
    %499 = vmatprep.mubr.f32.mxu0 0.0
    %500 = vmatmul.mubr.f32.gmra.mxu0 %v128
    %v501 = vpop.f32.mrf.mxu0
    %v502 = vadd.f32 %v121, %v501
    %v503 = vpop.f32.mrf.mxu0
    %504 = vdwg.mxu0
    %505 = vmatprep.subr.mxu0 0.0
    %506 = vmatpush1.msra.mxu0 0.0
    %507 = vmatprep.subr.mxu0 0.0
    %508 = vmatpush1.msra.mxu0 0.0
    %509 = vmatprep.subr.mxu0 0.0
    %510 = vmatpush1.msra.mxu0 0.0
    %511 = vmatprep.subr.mxu0 0.0
    %512 = vmatpush1.msra.mxu0 0.0
    %513 = vmatprep.subr.mxu0 0.0
    %514 = vmatpush1.msra.mxu0 0.0
    %515 = vmatprep.subr.mxu0 0.0
    %516 = vmatpush1.msra.mxu0 0.0
    %517 = vmatprep.subr.mxu0 0.0
    %518 = vmatpush1.msra.mxu0 0.0
    %519 = vmatprep.subr.mxu0 0.0
    %520 = vmatpush1.msra.mxu0 0.0
    %521 = vmatprep.subr.mxu0 0.0
    %522 = vmatpush1.msra.mxu0 0.0
    %523 = vmatprep.subr.mxu0 0.0
    %524 = vmatpush1.msra.mxu0 0.0
    %525 = vmatprep.subr.mxu0 0.0
    %526 = vmatpush1.msra.mxu0 %v42
    %527 = vmatprep.subr.mxu0 0.0
    %528 = vmatpush1.msra.mxu0 %v41
    %529 = vmatprep.subr.mxu0 0.0
    %530 = vmatpush1.msra.mxu0 %v40
    %531 = vmatprep.subr.mxu0 0.0
    %532 = vmatpush1.msra.mxu0 %v39
    %533 = vmatprep.subr.mxu0 0.0
    %534 = vmatpush1.msra.mxu0 %v38
    %535 = vmatprep.subr.mxu0 0.0
    %536 = vmatpush1.msra.mxu0 %v37
    %537 = vmatprep.subr.mxu0 0.0
    %538 = vmatpush2.msra.mxu0 0.0
    %539 = vmatprep.subr.mxu0 0.0
    %540 = vmatpush2.msra.mxu0 0.0
    %541 = vmatprep.subr.mxu0 0.0
    %542 = vmatpush2.msra.mxu0 0.0
    %543 = vmatprep.subr.mxu0 0.0
    %544 = vmatpush2.msra.mxu0 0.0
    %545 = vmatprep.subr.mxu0 0.0
    %546 = vmatpush2.msra.mxu0 0.0
    %547 = vmatprep.subr.mxu0 0.0
    %548 = vmatpush2.msra.mxu0 0.0
    %549 = vmatprep.subr.mxu0 0.0
    %550 = vmatpush2.msra.mxu0 0.0
    %551 = vmatprep.subr.mxu0 0.0
    %552 = vmatpush2.msra.mxu0 0.0
    %553 = vmatprep.subr.mxu0 0.0
    %554 = vmatpush2.msra.mxu0 0.0
    %555 = vmatprep.subr.mxu0 0.0
    %556 = vmatpush2.msra.mxu0 0.0
    %557 = vmatprep.subr.mxu0 0.0
    %558 = vmatpush2.msra.mxu0 0.0
    %559 = vmatprep.subr.mxu0 0.0
    %560 = vmatpush2.msra.mxu0 0.0
    %561 = vmatprep.subr.mxu0 0.0
    %562 = vmatpush2.msra.mxu0 0.0
    %563 = vmatprep.subr.mxu0 0.0
    %564 = vmatpush2.msra.mxu0 0.0
    %565 = vmatprep.subr.mxu0 0.0
    %566 = vmatpush2.msra.mxu0 0.0
    %567 = vmatprep.subr.mxu0 0.0
    %568 = vmatpush2.msra.mxu0 0.0
    %569 = vmatprep.mubr.f32.mxu0 0.0
    %570 = vmatmul.mubr.f32.gmra.mxu0 %v125
    %v571 = vpop.f32.mrf.mxu0
    %v572 = vadd.f32 %v116, %v571
    %v573 = vpop.f32.mrf.mxu0
    %574 = vmatprep.mubr.f32.mxu0 0.0
    %575 = vmatmul.mubr.f32.gmra.mxu0 %v128
    %v576 = vpop.f32.mrf.mxu0
    %v577 = vadd.f32 %v121, %v576
    %v578 = vpop.f32.mrf.mxu0
    %579 = vdwg.mxu0
    %580 = vmatprep.subr.mxu0 0.0
    %581 = vmatpush1.msra.mxu0 0.0
    %582 = vmatprep.subr.mxu0 0.0
    %583 = vmatpush1.msra.mxu0 0.0
    %584 = vmatprep.subr.mxu0 0.0
    %585 = vmatpush1.msra.mxu0 0.0
    %586 = vmatprep.subr.mxu0 0.0
    %587 = vmatpush1.msra.mxu0 0.0
    %588 = vmatprep.subr.mxu0 0.0
    %589 = vmatpush1.msra.mxu0 0.0
    %590 = vmatprep.subr.mxu0 0.0
    %591 = vmatpush1.msra.mxu0 0.0
    %592 = vmatprep.subr.mxu0 0.0
    %593 = vmatpush1.msra.mxu0 0.0
    %594 = vmatprep.subr.mxu0 0.0
    %595 = vmatpush1.msra.mxu0 0.0
    %596 = vmatprep.subr.mxu0 0.0
    %597 = vmatpush1.msra.mxu0 0.0
    %598 = vmatprep.subr.mxu0 0.0
    %599 = vmatpush1.msra.mxu0 0.0
    %600 = vmatprep.subr.mxu0 0.0
    %601 = vmatpush1.msra.mxu0 %v44
    %602 = vmatprep.subr.mxu0 0.0
    %603 = vmatpush1.msra.mxu0 %v43
    %604 = vmatprep.subr.mxu0 0.0
    %605 = vmatpush1.msra.mxu0 %v42
    %606 = vmatprep.subr.mxu0 0.0
    %607 = vmatpush1.msra.mxu0 %v41
    %608 = vmatprep.subr.mxu0 0.0
    %609 = vmatpush1.msra.mxu0 %v40
    %610 = vmatprep.subr.mxu0 0.0
    %611 = vmatpush1.msra.mxu0 %v39
    %612 = vmatprep.subr.mxu0 0.0
    %613 = vmatpush2.msra.mxu0 0.0
    %614 = vmatprep.subr.mxu0 0.0
    %615 = vmatpush2.msra.mxu0 0.0
    %616 = vmatprep.subr.mxu0 0.0
    %617 = vmatpush2.msra.mxu0 0.0
    %618 = vmatprep.subr.mxu0 0.0
    %619 = vmatpush2.msra.mxu0 0.0
    %620 = vmatprep.subr.mxu0 0.0
    %621 = vmatpush2.msra.mxu0 0.0
    %622 = vmatprep.subr.mxu0 0.0
    %623 = vmatpush2.msra.mxu0 0.0
    %624 = vmatprep.subr.mxu0 0.0
    %625 = vmatpush2.msra.mxu0 0.0
    %626 = vmatprep.subr.mxu0 0.0
    %627 = vmatpush2.msra.mxu0 0.0
    %628 = vmatprep.subr.mxu0 0.0
    %629 = vmatpush2.msra.mxu0 0.0
    %630 = vmatprep.subr.mxu0 0.0
    %631 = vmatpush2.msra.mxu0 0.0
    %632 = vmatprep.subr.mxu0 0.0
    %633 = vmatpush2.msra.mxu0 0.0
    %634 = vmatprep.subr.mxu0 0.0
    %635 = vmatpush2.msra.mxu0 0.0
    %636 = vmatprep.subr.mxu0 0.0
    %637 = vmatpush2.msra.mxu0 0.0
    %638 = vmatprep.subr.mxu0 0.0
    %639 = vmatpush2.msra.mxu0 0.0
    %640 = vmatprep.subr.mxu0 0.0
    %641 = vmatpush2.msra.mxu0 0.0
    %642 = vmatprep.subr.mxu0 0.0
    %643 = vmatpush2.msra.mxu0 0.0
    %644 = vmatprep.mubr.f32.mxu0 0.0
    %645 = vmatmul.mubr.f32.gmra.mxu0 %v125
    %v646 = vpop.f32.mrf.mxu0
    %v647 = vadd.f32 %v116, %v646
    %v648 = vpop.f32.mrf.mxu0
    %649 = vmatprep.mubr.f32.mxu0 0.0
    %650 = vmatmul.mubr.f32.gmra.mxu0 %v128
    %v651 = vpop.f32.mrf.mxu0
    %v652 = vadd.f32 %v121, %v651
    %v653 = vpop.f32.mrf.mxu0
    %654 = vdwg.mxu0
    %655 = vmatprep.subr.mxu0 0.0
    %656 = vmatpush1.msra.mxu0 0.0
    %657 = vmatprep.subr.mxu0 0.0
    %658 = vmatpush1.msra.mxu0 0.0
    %659 = vmatprep.subr.mxu0 0.0
    %660 = vmatpush1.msra.mxu0 0.0
    %661 = vmatprep.subr.mxu0 0.0
    %662 = vmatpush1.msra.mxu0 0.0
    %663 = vmatprep.subr.mxu0 0.0
    %664 = vmatpush1.msra.mxu0 0.0
    %665 = vmatprep.subr.mxu0 0.0
    %666 = vmatpush1.msra.mxu0 0.0
    %667 = vmatprep.subr.mxu0 0.0
    %668 = vmatpush1.msra.mxu0 0.0
    %669 = vmatprep.subr.mxu0 0.0
    %670 = vmatpush1.msra.mxu0 0.0
    %671 = vmatprep.subr.mxu0 0.0
    %672 = vmatpush1.msra.mxu0 0.0
    %673 = vmatprep.subr.mxu0 0.0
    %674 = vmatpush1.msra.mxu0 0.0
    %675 = vmatprep.subr.mxu0 0.0
    %676 = vmatpush1.msra.mxu0 %v46
    %677 = vmatprep.subr.mxu0 0.0
    %678 = vmatpush1.msra.mxu0 %v45
    %679 = vmatprep.subr.mxu0 0.0
    %680 = vmatpush1.msra.mxu0 %v44
    %681 = vmatprep.subr.mxu0 0.0
    %682 = vmatpush1.msra.mxu0 %v43
    %683 = vmatprep.subr.mxu0 0.0
    %684 = vmatpush1.msra.mxu0 %v42
    %685 = vmatprep.subr.mxu0 0.0
    %686 = vmatpush1.msra.mxu0 %v41
    %687 = vmatprep.subr.mxu0 0.0
    %688 = vmatpush2.msra.mxu0 0.0
    %689 = vmatprep.subr.mxu0 0.0
    %690 = vmatpush2.msra.mxu0 0.0
    %691 = vmatprep.subr.mxu0 0.0
    %692 = vmatpush2.msra.mxu0 0.0
    %693 = vmatprep.subr.mxu0 0.0
    %694 = vmatpush2.msra.mxu0 0.0
    %695 = vmatprep.subr.mxu0 0.0
    %696 = vmatpush2.msra.mxu0 0.0
    %697 = vmatprep.subr.mxu0 0.0
    %698 = vmatpush2.msra.mxu0 0.0
    %699 = vmatprep.subr.mxu0 0.0
    %700 = vmatpush2.msra.mxu0 0.0
    %701 = vmatprep.subr.mxu0 0.0
    %702 = vmatpush2.msra.mxu0 0.0
    %703 = vmatprep.subr.mxu0 0.0
    %704 = vmatpush2.msra.mxu0 0.0
    %705 = vmatprep.subr.mxu0 0.0
    %706 = vmatpush2.msra.mxu0 0.0
    %707 = vmatprep.subr.mxu0 0.0
    %708 = vmatpush2.msra.mxu0 0.0
    %709 = vmatprep.subr.mxu0 0.0
    %710 = vmatpush2.msra.mxu0 0.0
    %711 = vmatprep.subr.mxu0 0.0
    %712 = vmatpush2.msra.mxu0 0.0
    %713 = vmatprep.subr.mxu0 0.0
    %714 = vmatpush2.msra.mxu0 0.0
    %715 = vmatprep.subr.mxu0 0.0
    %716 = vmatpush2.msra.mxu0 0.0
    %717 = vmatprep.subr.mxu0 0.0
    %718 = vmatpush2.msra.mxu0 0.0
    %719 = vmatprep.mubr.f32.mxu0 0.0
    %720 = vmatmul.mubr.f32.gmra.mxu0 %v125
    %v721 = vpop.f32.mrf.mxu0
    %v722 = vadd.f32 %v116, %v721
    %v723 = vpop.f32.mrf.mxu0
    %724 = vmatprep.mubr.f32.mxu0 0.0
    %725 = vmatmul.mubr.f32.gmra.mxu0 %v128
    %v726 = vpop.f32.mrf.mxu0
    %v727 = vadd.f32 %v121, %v726
    %v728 = vpop.f32.mrf.mxu0
    %729 = vdwg.mxu0
    %730 = vmatprep.subr.mxu0 0.0
    %731 = vmatpush1.msra.mxu0 0.0
    %732 = vmatprep.subr.mxu0 0.0
    %733 = vmatpush1.msra.mxu0 0.0
    %734 = vmatprep.subr.mxu0 0.0
    %735 = vmatpush1.msra.mxu0 0.0
    %736 = vmatprep.subr.mxu0 0.0
    %737 = vmatpush1.msra.mxu0 0.0
    %738 = vmatprep.subr.mxu0 0.0
    %739 = vmatpush1.msra.mxu0 0.0
    %740 = vmatprep.subr.mxu0 0.0
    %741 = vmatpush1.msra.mxu0 0.0
    %742 = vmatprep.subr.mxu0 0.0
    %743 = vmatpush1.msra.mxu0 0.0
    %744 = vmatprep.subr.mxu0 0.0
    %745 = vmatpush1.msra.mxu0 0.0
    %746 = vmatprep.subr.mxu0 0.0
    %747 = vmatpush1.msra.mxu0 0.0
    %748 = vmatprep.subr.mxu0 0.0
    %749 = vmatpush1.msra.mxu0 0.0
    %750 = vmatprep.subr.mxu0 0.0
    %751 = vmatpush1.msra.mxu0 %v48
    %752 = vmatprep.subr.mxu0 0.0
    %753 = vmatpush1.msra.mxu0 %v47
    %754 = vmatprep.subr.mxu0 0.0
    %755 = vmatpush1.msra.mxu0 %v46
    %756 = vmatprep.subr.mxu0 0.0
    %757 = vmatpush1.msra.mxu0 %v45
    %758 = vmatprep.subr.mxu0 0.0
    %759 = vmatpush1.msra.mxu0 %v44
    %760 = vmatprep.subr.mxu0 0.0
    %761 = vmatpush1.msra.mxu0 %v43
    %762 = vmatprep.subr.mxu0 0.0
    %763 = vmatpush2.msra.mxu0 0.0
    %764 = vmatprep.subr.mxu0 0.0
    %765 = vmatpush2.msra.mxu0 0.0
    %766 = vmatprep.subr.mxu0 0.0
    %767 = vmatpush2.msra.mxu0 0.0
    %768 = vmatprep.subr.mxu0 0.0
    %769 = vmatpush2.msra.mxu0 0.0
    %770 = vmatprep.subr.mxu0 0.0
    %771 = vmatpush2.msra.mxu0 0.0
    %772 = vmatprep.subr.mxu0 0.0
    %773 = vmatpush2.msra.mxu0 0.0
    %774 = vmatprep.subr.mxu0 0.0
    %775 = vmatpush2.msra.mxu0 0.0
    %776 = vmatprep.subr.mxu0 0.0
    %777 = vmatpush2.msra.mxu0 0.0
    %778 = vmatprep.subr.mxu0 0.0
    %779 = vmatpush2.msra.mxu0 0.0
    %780 = vmatprep.subr.mxu0 0.0
    %781 = vmatpush2.msra.mxu0 0.0
    %782 = vmatprep.subr.mxu0 0.0
    %783 = vmatpush2.msra.mxu0 0.0
    %784 = vmatprep.subr.mxu0 0.0
    %785 = vmatpush2.msra.mxu0 0.0
    %786 = vmatprep.subr.mxu0 0.0
    %787 = vmatpush2.msra.mxu0 0.0
    %788 = vmatprep.subr.mxu0 0.0
    %789 = vmatpush2.msra.mxu0 0.0
    %790 = vmatprep.subr.mxu0 0.0
    %791 = vmatpush2.msra.mxu0 0.0
    %792 = vmatprep.subr.mxu0 0.0
    %793 = vmatpush2.msra.mxu0 0.0
    %794 = vmatprep.mubr.f32.mxu0 0.0
    %795 = vmatmul.mubr.f32.gmra.mxu0 %v125
    %v796 = vpop.f32.mrf.mxu0
    %v797 = vadd.f32 %v116, %v796
    %v798 = vpop.f32.mrf.mxu0
    %799 = vmatprep.mubr.f32.mxu0 0.0
    %800 = vmatmul.mubr.f32.gmra.mxu0 %v128
    %v801 = vpop.f32.mrf.mxu0
    %v802 = vadd.f32 %v121, %v801
    %v803 = vpop.f32.mrf.mxu0
    %804 = vdwg.mxu0
    %805 = vmatprep.subr.mxu0 0.0
    %806 = vmatpush1.msra.mxu0 0.0
    %807 = vmatprep.subr.mxu0 0.0
    %808 = vmatpush1.msra.mxu0 0.0
    %809 = vmatprep.subr.mxu0 0.0
    %810 = vmatpush1.msra.mxu0 0.0
    %811 = vmatprep.subr.mxu0 0.0
    %812 = vmatpush1.msra.mxu0 0.0
    %813 = vmatprep.subr.mxu0 0.0
    %814 = vmatpush1.msra.mxu0 0.0
    %815 = vmatprep.subr.mxu0 0.0
    %816 = vmatpush1.msra.mxu0 0.0
    %817 = vmatprep.subr.mxu0 0.0
    %818 = vmatpush1.msra.mxu0 0.0
    %819 = vmatprep.subr.mxu0 0.0
    %820 = vmatpush1.msra.mxu0 0.0
    %821 = vmatprep.subr.mxu0 0.0
    %822 = vmatpush1.msra.mxu0 0.0
    %823 = vmatprep.subr.mxu0 0.0
    %824 = vmatpush1.msra.mxu0 0.0
    %825 = vmatprep.subr.mxu0 0.0
    %826 = vmatpush1.msra.mxu0 %v50
    %827 = vmatprep.subr.mxu0 0.0
    %828 = vmatpush1.msra.mxu0 %v49
    %829 = vmatprep.subr.mxu0 0.0
    %830 = vmatpush1.msra.mxu0 %v48
    %831 = vmatprep.subr.mxu0 0.0
    %832 = vmatpush1.msra.mxu0 %v47
    %833 = vmatprep.subr.mxu0 0.0
    %834 = vmatpush1.msra.mxu0 %v46
    %835 = vmatprep.subr.mxu0 0.0
    %836 = vmatpush1.msra.mxu0 %v45
    %837 = vmatprep.subr.mxu0 0.0
    %838 = vmatpush2.msra.mxu0 0.0
    %839 = vmatprep.subr.mxu0 0.0
    %840 = vmatpush2.msra.mxu0 0.0
    %841 = vmatprep.subr.mxu0 0.0
    %842 = vmatpush2.msra.mxu0 0.0
    %843 = vmatprep.subr.mxu0 0.0
    %844 = vmatpush2.msra.mxu0 0.0
    %845 = vmatprep.subr.mxu0 0.0
    %846 = vmatpush2.msra.mxu0 0.0
    %847 = vmatprep.subr.mxu0 0.0
    %848 = vmatpush2.msra.mxu0 0.0
    %849 = vmatprep.subr.mxu0 0.0
    %850 = vmatpush2.msra.mxu0 0.0
    %851 = vmatprep.subr.mxu0 0.0
    %852 = vmatpush2.msra.mxu0 0.0
    %853 = vmatprep.subr.mxu0 0.0
    %854 = vmatpush2.msra.mxu0 0.0
    %855 = vmatprep.subr.mxu0 0.0
    %856 = vmatpush2.msra.mxu0 0.0
    %857 = vmatprep.subr.mxu0 0.0
    %858 = vmatpush2.msra.mxu0 0.0
    %859 = vmatprep.subr.mxu0 0.0
    %860 = vmatpush2.msra.mxu0 0.0
    %861 = vmatprep.subr.mxu0 0.0
    %862 = vmatpush2.msra.mxu0 0.0
    %863 = vmatprep.subr.mxu0 0.0
    %864 = vmatpush2.msra.mxu0 0.0
    %865 = vmatprep.subr.mxu0 0.0
    %866 = vmatpush2.msra.mxu0 0.0
    %867 = vmatprep.subr.mxu0 0.0
    %868 = vmatpush2.msra.mxu0 0.0
    %869 = vmatprep.mubr.f32.mxu0 0.0
    %870 = vmatmul.mubr.f32.gmra.mxu0 %v125
    %v871 = vpop.f32.mrf.mxu0
    %v872 = vadd.f32 %v116, %v871
    %v873 = vpop.f32.mrf.mxu0
    %874 = vmatprep.mubr.f32.mxu0 0.0
    %875 = vmatmul.mubr.f32.gmra.mxu0 %v128
    %v876 = vpop.f32.mrf.mxu0
    %v877 = vadd.f32 %v121, %v876
    %v878 = vpop.f32.mrf.mxu0
    %879 = vdwg.mxu0
    %880 = vmatprep.subr.mxu0 0.0
    %881 = vmatpush1.msra.mxu0 0.0
    %882 = vmatprep.subr.mxu0 0.0
    %883 = vmatpush1.msra.mxu0 0.0
    %884 = vmatprep.subr.mxu0 0.0
    %885 = vmatpush1.msra.mxu0 0.0
    %886 = vmatprep.subr.mxu0 0.0
    %887 = vmatpush1.msra.mxu0 0.0
    %888 = vmatprep.subr.mxu0 0.0
    %889 = vmatpush1.msra.mxu0 0.0
    %890 = vmatprep.subr.mxu0 0.0
    %891 = vmatpush1.msra.mxu0 0.0
    %892 = vmatprep.subr.mxu0 0.0
    %893 = vmatpush1.msra.mxu0 0.0
    %894 = vmatprep.subr.mxu0 0.0
    %895 = vmatpush1.msra.mxu0 0.0
    %896 = vmatprep.subr.mxu0 0.0
    %897 = vmatpush1.msra.mxu0 0.0
    %898 = vmatprep.subr.mxu0 0.0
    %899 = vmatpush1.msra.mxu0 0.0
    %900 = vmatprep.subr.mxu0 0.0
    %901 = vmatpush1.msra.mxu0 %v52
    %902 = vmatprep.subr.mxu0 0.0
    %903 = vmatpush1.msra.mxu0 %v51
    %904 = vmatprep.subr.mxu0 0.0
    %905 = vmatpush1.msra.mxu0 %v50
    %906 = vmatprep.subr.mxu0 0.0
    %907 = vmatpush1.msra.mxu0 %v49
    %908 = vmatprep.subr.mxu0 0.0
    %909 = vmatpush1.msra.mxu0 %v48
    %910 = vmatprep.subr.mxu0 0.0
    %911 = vmatpush1.msra.mxu0 %v47
    %912 = vmatprep.subr.mxu0 0.0
    %913 = vmatpush2.msra.mxu0 0.0
    %914 = vmatprep.subr.mxu0 0.0
    %915 = vmatpush2.msra.mxu0 0.0
    %916 = vmatprep.subr.mxu0 0.0
    %917 = vmatpush2.msra.mxu0 0.0
    %918 = vmatprep.subr.mxu0 0.0
    %919 = vmatpush2.msra.mxu0 0.0
    %920 = vmatprep.subr.mxu0 0.0
    %921 = vmatpush2.msra.mxu0 0.0
    %922 = vmatprep.subr.mxu0 0.0
    %923 = vmatpush2.msra.mxu0 0.0
    %924 = vmatprep.subr.mxu0 0.0
    %925 = vmatpush2.msra.mxu0 0.0
    %926 = vmatprep.subr.mxu0 0.0
    %927 = vmatpush2.msra.mxu0 0.0
    %928 = vmatprep.subr.mxu0 0.0
    %929 = vmatpush2.msra.mxu0 0.0
    %930 = vmatprep.subr.mxu0 0.0
    %931 = vmatpush2.msra.mxu0 0.0
    %932 = vmatprep.subr.mxu0 0.0
    %933 = vmatpush2.msra.mxu0 0.0
    %934 = vmatprep.subr.mxu0 0.0
    %935 = vmatpush2.msra.mxu0 0.0
    %936 = vmatprep.subr.mxu0 0.0
    %937 = vmatpush2.msra.mxu0 0.0
    %938 = vmatprep.subr.mxu0 0.0
    %939 = vmatpush2.msra.mxu0 0.0
    %940 = vmatprep.subr.mxu0 0.0
    %941 = vmatpush2.msra.mxu0 0.0
    %942 = vmatprep.subr.mxu0 0.0
    %943 = vmatpush2.msra.mxu0 0.0
    %944 = vmatprep.mubr.f32.mxu0 0.0
    %945 = vmatmul.mubr.f32.gmra.mxu0 %v125
    %v946 = vpop.f32.mrf.mxu0
    %v947 = vadd.f32 %v116, %v946
    %v948 = vpop.f32.mrf.mxu0
    %949 = vmatprep.mubr.f32.mxu0 0.0
    %950 = vmatmul.mubr.f32.gmra.mxu0 %v128
    %v951 = vpop.f32.mrf.mxu0
    %v952 = vadd.f32 %v121, %v951
    %v953 = vpop.f32.mrf.mxu0
    %954 = vdwg.mxu0
    %955 = vmatprep.subr.mxu0 0.0
    %956 = vmatpush1.msra.mxu0 0.0
    %957 = vmatprep.subr.mxu0 0.0
    %958 = vmatpush1.msra.mxu0 0.0
    %959 = vmatprep.subr.mxu0 0.0
    %960 = vmatpush1.msra.mxu0 0.0
    %961 = vmatprep.subr.mxu0 0.0
    %962 = vmatpush1.msra.mxu0 0.0
    %963 = vmatprep.subr.mxu0 0.0
    %964 = vmatpush1.msra.mxu0 0.0
    %965 = vmatprep.subr.mxu0 0.0
    %966 = vmatpush1.msra.mxu0 0.0
    %967 = vmatprep.subr.mxu0 0.0
    %968 = vmatpush1.msra.mxu0 0.0
    %969 = vmatprep.subr.mxu0 0.0
    %970 = vmatpush1.msra.mxu0 0.0
    %971 = vmatprep.subr.mxu0 0.0
    %972 = vmatpush1.msra.mxu0 0.0
    %973 = vmatprep.subr.mxu0 0.0
    %974 = vmatpush1.msra.mxu0 0.0
    %975 = vmatprep.subr.mxu0 0.0
    %976 = vmatpush1.msra.mxu0 %v54
    %977 = vmatprep.subr.mxu0 0.0
    %978 = vmatpush1.msra.mxu0 %v53
    %979 = vmatprep.subr.mxu0 0.0
    %980 = vmatpush1.msra.mxu0 %v52
    %981 = vmatprep.subr.mxu0 0.0
    %982 = vmatpush1.msra.mxu0 %v51
    %983 = vmatprep.subr.mxu0 0.0
    %984 = vmatpush1.msra.mxu0 %v50
    %985 = vmatprep.subr.mxu0 0.0
    %986 = vmatpush1.msra.mxu0 %v49
    %987 = vmatprep.subr.mxu0 0.0
    %988 = vmatpush2.msra.mxu0 0.0
    %989 = vmatprep.subr.mxu0 0.0
    %990 = vmatpush2.msra.mxu0 0.0
    %991 = vmatprep.subr.mxu0 0.0
    %992 = vmatpush2.msra.mxu0 0.0
    %993 = vmatprep.subr.mxu0 0.0
    %994 = vmatpush2.msra.mxu0 0.0
    %995 = vmatprep.subr.mxu0 0.0
    %996 = vmatpush2.msra.mxu0 0.0
    %997 = vmatprep.subr.mxu0 0.0
    %998 = vmatpush2.msra.mxu0 0.0
    %999 = vmatprep.subr.mxu0 0.0
    %1000 = vmatpush2.msra.mxu0 0.0
    %1001 = vmatprep.subr.mxu0 0.0
    %1002 = vmatpush2.msra.mxu0 0.0
    %1003 = vmatprep.subr.mxu0 0.0
    %1004 = vmatpush2.msra.mxu0 0.0
    %1005 = vmatprep.subr.mxu0 0.0
    %1006 = vmatpush2.msra.mxu0 0.0
    %1007 = vmatprep.subr.mxu0 0.0
    %1008 = vmatpush2.msra.mxu0 0.0
    %1009 = vmatprep.subr.mxu0 0.0
    %1010 = vmatpush2.msra.mxu0 0.0
    %1011 = vmatprep.subr.mxu0 0.0
    %1012 = vmatpush2.msra.mxu0 0.0
    %1013 = vmatprep.subr.mxu0 0.0
    %1014 = vmatpush2.msra.mxu0 0.0
    %1015 = vmatprep.subr.mxu0 0.0
    %1016 = vmatpush2.msra.mxu0 0.0
    %1017 = vmatprep.subr.mxu0 0.0
    %1018 = vmatpush2.msra.mxu0 0.0
    %1019 = vmatprep.mubr.f32.mxu0 0.0
    %1020 = vmatmul.mubr.f32.gmra.mxu0 %v125
    %v1021 = vpop.f32.mrf.mxu0
    %v1022 = vadd.f32 %v116, %v1021
    %v1023 = vpop.f32.mrf.mxu0
    %1024 = vmatprep.mubr.f32.mxu0 0.0
    %1025 = vmatmul.mubr.f32.gmra.mxu0 %v128
    %v1026 = vpop.f32.mrf.mxu0
    %v1027 = vadd.f32 %v121, %v1026
    %v1028 = vpop.f32.mrf.mxu0
    %1029 = vdwg.mxu0
    %1030 = vmatprep.subr.mxu0 0.0
    %1031 = vmatpush1.msra.mxu0 0.0
    %1032 = vmatprep.subr.mxu0 0.0
    %1033 = vmatpush1.msra.mxu0 0.0
    %1034 = vmatprep.subr.mxu0 0.0
    %1035 = vmatpush1.msra.mxu0 0.0
    %1036 = vmatprep.subr.mxu0 0.0
    %1037 = vmatpush1.msra.mxu0 0.0
    %1038 = vmatprep.subr.mxu0 0.0
    %1039 = vmatpush1.msra.mxu0 0.0
    %1040 = vmatprep.subr.mxu0 0.0
    %1041 = vmatpush1.msra.mxu0 0.0
    %1042 = vmatprep.subr.mxu0 0.0
    %1043 = vmatpush1.msra.mxu0 0.0
    %1044 = vmatprep.subr.mxu0 0.0
    %1045 = vmatpush1.msra.mxu0 0.0
    %1046 = vmatprep.subr.mxu0 0.0
    %1047 = vmatpush1.msra.mxu0 0.0
    %1048 = vmatprep.subr.mxu0 0.0
    %1049 = vmatpush1.msra.mxu0 0.0
    %1050 = vmatprep.subr.mxu0 0.0
    %1051 = vmatpush1.msra.mxu0 %v56
    %1052 = vmatprep.subr.mxu0 0.0
    %1053 = vmatpush1.msra.mxu0 %v55
    %1054 = vmatprep.subr.mxu0 0.0
    %1055 = vmatpush1.msra.mxu0 %v54
    %1056 = vmatprep.subr.mxu0 0.0
    %1057 = vmatpush1.msra.mxu0 %v53
    %1058 = vmatprep.subr.mxu0 0.0
    %1059 = vmatpush1.msra.mxu0 %v52
    %1060 = vmatprep.subr.mxu0 0.0
    %1061 = vmatpush1.msra.mxu0 %v51
    %1062 = vmatprep.subr.mxu0 0.0
    %1063 = vmatpush2.msra.mxu0 0.0
    %1064 = vmatprep.subr.mxu0 0.0
    %1065 = vmatpush2.msra.mxu0 0.0
    %1066 = vmatprep.subr.mxu0 0.0
    %1067 = vmatpush2.msra.mxu0 0.0
    %1068 = vmatprep.subr.mxu0 0.0
    %1069 = vmatpush2.msra.mxu0 0.0
    %1070 = vmatprep.subr.mxu0 0.0
    %1071 = vmatpush2.msra.mxu0 0.0
    %1072 = vmatprep.subr.mxu0 0.0
    %1073 = vmatpush2.msra.mxu0 0.0
    %1074 = vmatprep.subr.mxu0 0.0
    %1075 = vmatpush2.msra.mxu0 0.0
    %1076 = vmatprep.subr.mxu0 0.0
    %1077 = vmatpush2.msra.mxu0 0.0
    %1078 = vmatprep.subr.mxu0 0.0
    %1079 = vmatpush2.msra.mxu0 0.0
    %1080 = vmatprep.subr.mxu0 0.0
    %1081 = vmatpush2.msra.mxu0 0.0
    %1082 = vmatprep.subr.mxu0 0.0
    %1083 = vmatpush2.msra.mxu0 0.0
    %1084 = vmatprep.subr.mxu0 0.0
    %1085 = vmatpush2.msra.mxu0 0.0
    %1086 = vmatprep.subr.mxu0 0.0
    %1087 = vmatpush2.msra.mxu0 0.0
    %1088 = vmatprep.subr.mxu0 0.0
    %1089 = vmatpush2.msra.mxu0 0.0
    %1090 = vmatprep.subr.mxu0 0.0
    %1091 = vmatpush2.msra.mxu0 0.0
    %1092 = vmatprep.subr.mxu0 0.0
    %1093 = vmatpush2.msra.mxu0 0.0
    %1094 = vmatprep.mubr.f32.mxu0 0.0
    %1095 = vmatmul.mubr.f32.gmra.mxu0 %v125
    %v1096 = vpop.f32.mrf.mxu0
    %v1097 = vadd.f32 %v116, %v1096
    %v1098 = vpop.f32.mrf.mxu0
    %1099 = vmatprep.mubr.f32.mxu0 0.0
    %1100 = vmatmul.mubr.f32.gmra.mxu0 %v128
    %v1101 = vpop.f32.mrf.mxu0
    %v1102 = vadd.f32 %v121, %v1101
    %v1103 = vpop.f32.mrf.mxu0
    %1104 = vdwg.mxu0
    %1105 = vmatprep.subr.mxu0 0.0
    %1106 = vmatpush1.msra.mxu0 0.0
    %1107 = vmatprep.subr.mxu0 0.0
    %1108 = vmatpush1.msra.mxu0 0.0
    %1109 = vmatprep.subr.mxu0 0.0
    %1110 = vmatpush1.msra.mxu0 0.0
    %1111 = vmatprep.subr.mxu0 0.0
    %1112 = vmatpush1.msra.mxu0 0.0
    %1113 = vmatprep.subr.mxu0 0.0
    %1114 = vmatpush1.msra.mxu0 0.0
    %1115 = vmatprep.subr.mxu0 0.0
    %1116 = vmatpush1.msra.mxu0 0.0
    %1117 = vmatprep.subr.mxu0 0.0
    %1118 = vmatpush1.msra.mxu0 0.0
    %1119 = vmatprep.subr.mxu0 0.0
    %1120 = vmatpush1.msra.mxu0 0.0
    %1121 = vmatprep.subr.mxu0 0.0
    %1122 = vmatpush1.msra.mxu0 0.0
    %1123 = vmatprep.subr.mxu0 0.0
    %1124 = vmatpush1.msra.mxu0 0.0
    %1125 = vmatprep.subr.mxu0 0.0
    %1126 = vmatpush1.msra.mxu0 %v58
    %1127 = vmatprep.subr.mxu0 0.0
    %1128 = vmatpush1.msra.mxu0 %v57
    %1129 = vmatprep.subr.mxu0 0.0
    %1130 = vmatpush1.msra.mxu0 %v56
    %1131 = vmatprep.subr.mxu0 0.0
    %1132 = vmatpush1.msra.mxu0 %v55
    %1133 = vmatprep.subr.mxu0 0.0
    %1134 = vmatpush1.msra.mxu0 %v54
    %1135 = vmatprep.subr.mxu0 0.0
    %1136 = vmatpush1.msra.mxu0 %v53
    %1137 = vmatprep.subr.mxu0 0.0
    %1138 = vmatpush2.msra.mxu0 0.0
    %1139 = vmatprep.subr.mxu0 0.0
    %1140 = vmatpush2.msra.mxu0 0.0
    %1141 = vmatprep.subr.mxu0 0.0
    %1142 = vmatpush2.msra.mxu0 0.0
    %1143 = vmatprep.subr.mxu0 0.0
    %1144 = vmatpush2.msra.mxu0 0.0
    %1145 = vmatprep.subr.mxu0 0.0
    %1146 = vmatpush2.msra.mxu0 0.0
    %1147 = vmatprep.subr.mxu0 0.0
    %1148 = vmatpush2.msra.mxu0 0.0
    %1149 = vmatprep.subr.mxu0 0.0
    %1150 = vmatpush2.msra.mxu0 0.0
    %1151 = vmatprep.subr.mxu0 0.0
    %1152 = vmatpush2.msra.mxu0 0.0
    %1153 = vmatprep.subr.mxu0 0.0
    %1154 = vmatpush2.msra.mxu0 0.0
    %1155 = vmatprep.subr.mxu0 0.0
    %1156 = vmatpush2.msra.mxu0 0.0
    %1157 = vmatprep.subr.mxu0 0.0
    %1158 = vmatpush2.msra.mxu0 0.0
    %1159 = vmatprep.subr.mxu0 0.0
    %1160 = vmatpush2.msra.mxu0 0.0
    %1161 = vmatprep.subr.mxu0 0.0
    %1162 = vmatpush2.msra.mxu0 0.0
    %1163 = vmatprep.subr.mxu0 0.0
    %1164 = vmatpush2.msra.mxu0 0.0
    %1165 = vmatprep.subr.mxu0 0.0
    %1166 = vmatpush2.msra.mxu0 0.0
    %1167 = vmatprep.subr.mxu0 0.0
    %1168 = vmatpush2.msra.mxu0 0.0
    %1169 = vmatprep.mubr.f32.mxu0 0.0
    %1170 = vmatmul.mubr.f32.gmra.mxu0 %v125
    %v1171 = vpop.f32.mrf.mxu0
    %v1172 = vadd.f32 %v116, %v1171
    %v1173 = vpop.f32.mrf.mxu0
    %1174 = vmatprep.mubr.f32.mxu0 0.0
    %1175 = vmatmul.mubr.f32.gmra.mxu0 %v128
    %v1176 = vpop.f32.mrf.mxu0
    %v1177 = vadd.f32 %v121, %v1176
    %v1178 = vpop.f32.mrf.mxu0
    %1179 = vdwg.mxu0
    %1180 = vmatprep.subr.mxu0 0.0
    %1181 = vmatpush1.msra.mxu0 0.0
    %1182 = vmatprep.subr.mxu0 0.0
    %1183 = vmatpush1.msra.mxu0 0.0
    %1184 = vmatprep.subr.mxu0 0.0
    %1185 = vmatpush1.msra.mxu0 0.0
    %1186 = vmatprep.subr.mxu0 0.0
    %1187 = vmatpush1.msra.mxu0 0.0
    %1188 = vmatprep.subr.mxu0 0.0
    %1189 = vmatpush1.msra.mxu0 0.0
    %1190 = vmatprep.subr.mxu0 0.0
    %1191 = vmatpush1.msra.mxu0 0.0
    %1192 = vmatprep.subr.mxu0 0.0
    %1193 = vmatpush1.msra.mxu0 0.0
    %1194 = vmatprep.subr.mxu0 0.0
    %1195 = vmatpush1.msra.mxu0 0.0
    %1196 = vmatprep.subr.mxu0 0.0
    %1197 = vmatpush1.msra.mxu0 0.0
    %1198 = vmatprep.subr.mxu0 0.0
    %1199 = vmatpush1.msra.mxu0 0.0
    %1200 = vmatprep.subr.mxu0 0.0
    %1201 = vmatpush1.msra.mxu0 %v60
    %1202 = vmatprep.subr.mxu0 0.0
    %1203 = vmatpush1.msra.mxu0 %v59
    %1204 = vmatprep.subr.mxu0 0.0
    %1205 = vmatpush1.msra.mxu0 %v58
    %1206 = vmatprep.subr.mxu0 0.0
    %1207 = vmatpush1.msra.mxu0 %v57
    %1208 = vmatprep.subr.mxu0 0.0
    %1209 = vmatpush1.msra.mxu0 %v56
    %1210 = vmatprep.subr.mxu0 0.0
    %1211 = vmatpush1.msra.mxu0 %v55
    %1212 = vmatprep.subr.mxu0 0.0
    %1213 = vmatpush2.msra.mxu0 0.0
    %1214 = vmatprep.subr.mxu0 0.0
    %1215 = vmatpush2.msra.mxu0 0.0
    %1216 = vmatprep.subr.mxu0 0.0
    %1217 = vmatpush2.msra.mxu0 0.0
    %1218 = vmatprep.subr.mxu0 0.0
    %1219 = vmatpush2.msra.mxu0 0.0
    %1220 = vmatprep.subr.mxu0 0.0
    %1221 = vmatpush2.msra.mxu0 0.0
    %1222 = vmatprep.subr.mxu0 0.0
    %1223 = vmatpush2.msra.mxu0 0.0
    %1224 = vmatprep.subr.mxu0 0.0
    %1225 = vmatpush2.msra.mxu0 0.0
    %1226 = vmatprep.subr.mxu0 0.0
    %1227 = vmatpush2.msra.mxu0 0.0
    %1228 = vmatprep.subr.mxu0 0.0
    %1229 = vmatpush2.msra.mxu0 0.0
    %1230 = vmatprep.subr.mxu0 0.0
    %1231 = vmatpush2.msra.mxu0 0.0
    %1232 = vmatprep.subr.mxu0 0.0
    %1233 = vmatpush2.msra.mxu0 0.0
    %1234 = vmatprep.subr.mxu0 0.0
    %1235 = vmatpush2.msra.mxu0 0.0
    %1236 = vmatprep.subr.mxu0 0.0
    %1237 = vmatpush2.msra.mxu0 0.0
    %1238 = vmatprep.subr.mxu0 0.0
    %1239 = vmatpush2.msra.mxu0 0.0
    %1240 = vmatprep.subr.mxu0 0.0
    %1241 = vmatpush2.msra.mxu0 0.0
    %1242 = vmatprep.subr.mxu0 0.0
    %1243 = vmatpush2.msra.mxu0 0.0
    %1244 = vmatprep.mubr.f32.mxu0 0.0
    %1245 = vmatmul.mubr.f32.gmra.mxu0 %v125
    %v1246 = vpop.f32.mrf.mxu0
    %v1247 = vadd.f32 %v116, %v1246
    %v1248 = vpop.f32.mrf.mxu0
    %1249 = vmatprep.mubr.f32.mxu0 0.0
    %1250 = vmatmul.mubr.f32.gmra.mxu0 %v128
    %v1251 = vpop.f32.mrf.mxu0
    %v1252 = vadd.f32 %v121, %v1251
    %v1253 = vpop.f32.mrf.mxu0
    %1254 = vdwg.mxu0
    %1255 = vmatprep.subr.mxu0 0.0
    %1256 = vmatpush1.msra.mxu0 0.0
    %1257 = vmatprep.subr.mxu0 0.0
    %1258 = vmatpush1.msra.mxu0 0.0
    %1259 = vmatprep.subr.mxu0 0.0
    %1260 = vmatpush1.msra.mxu0 0.0
    %1261 = vmatprep.subr.mxu0 0.0
    %1262 = vmatpush1.msra.mxu0 0.0
    %1263 = vmatprep.subr.mxu0 0.0
    %1264 = vmatpush1.msra.mxu0 0.0
    %1265 = vmatprep.subr.mxu0 0.0
    %1266 = vmatpush1.msra.mxu0 0.0
    %1267 = vmatprep.subr.mxu0 0.0
    %1268 = vmatpush1.msra.mxu0 0.0
    %1269 = vmatprep.subr.mxu0 0.0
    %1270 = vmatpush1.msra.mxu0 0.0
    %1271 = vmatprep.subr.mxu0 0.0
    %1272 = vmatpush1.msra.mxu0 0.0
    %1273 = vmatprep.subr.mxu0 0.0
    %1274 = vmatpush1.msra.mxu0 0.0
    %1275 = vmatprep.subr.mxu0 0.0
    %1276 = vmatpush1.msra.mxu0 %v62
    %1277 = vmatprep.subr.mxu0 0.0
    %1278 = vmatpush1.msra.mxu0 %v61
    %1279 = vmatprep.subr.mxu0 0.0
    %1280 = vmatpush1.msra.mxu0 %v60
    %1281 = vmatprep.subr.mxu0 0.0
    %1282 = vmatpush1.msra.mxu0 %v59
    %1283 = vmatprep.subr.mxu0 0.0
    %1284 = vmatpush1.msra.mxu0 %v58
    %1285 = vmatprep.subr.mxu0 0.0
    %1286 = vmatpush1.msra.mxu0 %v57
    %1287 = vmatprep.subr.mxu0 0.0
    %1288 = vmatpush2.msra.mxu0 0.0
    %1289 = vmatprep.subr.mxu0 0.0
    %1290 = vmatpush2.msra.mxu0 0.0
    %1291 = vmatprep.subr.mxu0 0.0
    %1292 = vmatpush2.msra.mxu0 0.0
    %1293 = vmatprep.subr.mxu0 0.0
    %1294 = vmatpush2.msra.mxu0 0.0
    %1295 = vmatprep.subr.mxu0 0.0
    %1296 = vmatpush2.msra.mxu0 0.0
    %1297 = vmatprep.subr.mxu0 0.0
    %1298 = vmatpush2.msra.mxu0 0.0
    %1299 = vmatprep.subr.mxu0 0.0
    %1300 = vmatpush2.msra.mxu0 0.0
    %1301 = vmatprep.subr.mxu0 0.0
    %1302 = vmatpush2.msra.mxu0 0.0
    %1303 = vmatprep.subr.mxu0 0.0
    %1304 = vmatpush2.msra.mxu0 0.0
    %1305 = vmatprep.subr.mxu0 0.0
    %1306 = vmatpush2.msra.mxu0 0.0
    %1307 = vmatprep.subr.mxu0 0.0
    %1308 = vmatpush2.msra.mxu0 0.0
    %1309 = vmatprep.subr.mxu0 0.0
    %1310 = vmatpush2.msra.mxu0 0.0
    %1311 = vmatprep.subr.mxu0 0.0
    %1312 = vmatpush2.msra.mxu0 0.0
    %1313 = vmatprep.subr.mxu0 0.0
    %1314 = vmatpush2.msra.mxu0 0.0
    %1315 = vmatprep.subr.mxu0 0.0
    %1316 = vmatpush2.msra.mxu0 0.0
    %1317 = vmatprep.subr.mxu0 0.0
    %1318 = vmatpush2.msra.mxu0 0.0
    %1319 = vmatprep.mubr.f32.mxu0 0.0
    %1320 = vmatmul.mubr.f32.gmra.mxu0 %v125
    %v1321 = vpop.f32.mrf.mxu0
    %v1322 = vadd.f32 %v116, %v1321
    %v1323 = vpop.f32.mrf.mxu0
    %1324 = vmatprep.mubr.f32.mxu0 0.0
    %1325 = vmatmul.mubr.f32.gmra.mxu0 %v128
    %v1326 = vpop.f32.mrf.mxu0
    %v1327 = vadd.f32 %v121, %v1326
    %v1328 = vpop.f32.mrf.mxu0
    %1329 = vdwg.mxu0
    %1330 = vmatprep.subr.mxu0 0.0
    %1331 = vmatpush1.msra.mxu0 0.0
    %1332 = vmatprep.subr.mxu0 0.0
    %1333 = vmatpush1.msra.mxu0 0.0
    %1334 = vmatprep.subr.mxu0 0.0
    %1335 = vmatpush1.msra.mxu0 0.0
    %1336 = vmatprep.subr.mxu0 0.0
    %1337 = vmatpush1.msra.mxu0 0.0
    %1338 = vmatprep.subr.mxu0 0.0
    %1339 = vmatpush1.msra.mxu0 0.0
    %1340 = vmatprep.subr.mxu0 0.0
    %1341 = vmatpush1.msra.mxu0 0.0
    %1342 = vmatprep.subr.mxu0 0.0
    %1343 = vmatpush1.msra.mxu0 0.0
    %1344 = vmatprep.subr.mxu0 0.0
    %1345 = vmatpush1.msra.mxu0 0.0
    %1346 = vmatprep.subr.mxu0 0.0
    %1347 = vmatpush1.msra.mxu0 0.0
    %1348 = vmatprep.subr.mxu0 0.0
    %1349 = vmatpush1.msra.mxu0 0.0
    %1350 = vmatprep.subr.mxu0 0.0
    %1351 = vmatpush1.msra.mxu0 %v64
    %1352 = vmatprep.subr.mxu0 0.0
    %1353 = vmatpush1.msra.mxu0 %v63
    %1354 = vmatprep.subr.mxu0 0.0
    %1355 = vmatpush1.msra.mxu0 %v62
    %1356 = vmatprep.subr.mxu0 0.0
    %1357 = vmatpush1.msra.mxu0 %v61
    %1358 = vmatprep.subr.mxu0 0.0
    %1359 = vmatpush1.msra.mxu0 %v60
    %1360 = vmatprep.subr.mxu0 0.0
    %1361 = vmatpush1.msra.mxu0 %v59
    %1362 = vmatprep.subr.mxu0 0.0
    %1363 = vmatpush2.msra.mxu0 0.0
    %1364 = vmatprep.subr.mxu0 0.0
    %1365 = vmatpush2.msra.mxu0 0.0
    %1366 = vmatprep.subr.mxu0 0.0
    %1367 = vmatpush2.msra.mxu0 0.0
    %1368 = vmatprep.subr.mxu0 0.0
    %1369 = vmatpush2.msra.mxu0 0.0
    %1370 = vmatprep.subr.mxu0 0.0
    %1371 = vmatpush2.msra.mxu0 0.0
    %1372 = vmatprep.subr.mxu0 0.0
    %1373 = vmatpush2.msra.mxu0 0.0
    %1374 = vmatprep.subr.mxu0 0.0
    %1375 = vmatpush2.msra.mxu0 0.0
    %1376 = vmatprep.subr.mxu0 0.0
    %1377 = vmatpush2.msra.mxu0 0.0
    %1378 = vmatprep.subr.mxu0 0.0
    %1379 = vmatpush2.msra.mxu0 0.0
    %1380 = vmatprep.subr.mxu0 0.0
    %1381 = vmatpush2.msra.mxu0 0.0
    %1382 = vmatprep.subr.mxu0 0.0
    %1383 = vmatpush2.msra.mxu0 0.0
    %1384 = vmatprep.subr.mxu0 0.0
    %1385 = vmatpush2.msra.mxu0 0.0
    %1386 = vmatprep.subr.mxu0 0.0
    %1387 = vmatpush2.msra.mxu0 0.0
    %1388 = vmatprep.subr.mxu0 0.0
    %1389 = vmatpush2.msra.mxu0 0.0
    %1390 = vmatprep.subr.mxu0 0.0
    %1391 = vmatpush2.msra.mxu0 0.0
    %1392 = vmatprep.subr.mxu0 0.0
    %1393 = vmatpush2.msra.mxu0 0.0
    %1394 = vmatprep.mubr.f32.mxu0 0.0
    %1395 = vmatmul.mubr.f32.gmra.mxu0 %v125
    %v1396 = vpop.f32.mrf.mxu0
    %v1397 = vadd.f32 %v116, %v1396
    %v1398 = vpop.f32.mrf.mxu0
    %1399 = vmatprep.mubr.f32.mxu0 0.0
    %1400 = vmatmul.mubr.f32.gmra.mxu0 %v128
    %v1401 = vpop.f32.mrf.mxu0
    %v1402 = vadd.f32 %v121, %v1401
    %v1403 = vpop.f32.mrf.mxu0
    %1404 = vdwg.mxu0
    %1405 = vmatprep.subr.mxu0 0.0
    %1406 = vmatpush1.msra.mxu0 0.0
    %1407 = vmatprep.subr.mxu0 0.0
    %1408 = vmatpush1.msra.mxu0 0.0
    %1409 = vmatprep.subr.mxu0 0.0
    %1410 = vmatpush1.msra.mxu0 0.0
    %1411 = vmatprep.subr.mxu0 0.0
    %1412 = vmatpush1.msra.mxu0 0.0
    %1413 = vmatprep.subr.mxu0 0.0
    %1414 = vmatpush1.msra.mxu0 0.0
    %1415 = vmatprep.subr.mxu0 0.0
    %1416 = vmatpush1.msra.mxu0 0.0
    %1417 = vmatprep.subr.mxu0 0.0
    %1418 = vmatpush1.msra.mxu0 0.0
    %1419 = vmatprep.subr.mxu0 0.0
    %1420 = vmatpush1.msra.mxu0 0.0
    %1421 = vmatprep.subr.mxu0 0.0
    %1422 = vmatpush1.msra.mxu0 0.0
    %1423 = vmatprep.subr.mxu0 0.0
    %1424 = vmatpush1.msra.mxu0 0.0
    %1425 = vmatprep.subr.mxu0 0.0
    %1426 = vmatpush1.msra.mxu0 %v66
    %1427 = vmatprep.subr.mxu0 0.0
    %1428 = vmatpush1.msra.mxu0 %v65
    %1429 = vmatprep.subr.mxu0 0.0
    %1430 = vmatpush1.msra.mxu0 %v64
    %1431 = vmatprep.subr.mxu0 0.0
    %1432 = vmatpush1.msra.mxu0 %v63
    %1433 = vmatprep.subr.mxu0 0.0
    %1434 = vmatpush1.msra.mxu0 %v62
    %1435 = vmatprep.subr.mxu0 0.0
    %1436 = vmatpush1.msra.mxu0 %v61
    %1437 = vmatprep.subr.mxu0 0.0
    %1438 = vmatpush2.msra.mxu0 0.0
    %1439 = vmatprep.subr.mxu0 0.0
    %1440 = vmatpush2.msra.mxu0 0.0
    %1441 = vmatprep.subr.mxu0 0.0
    %1442 = vmatpush2.msra.mxu0 0.0
    %1443 = vmatprep.subr.mxu0 0.0
    %1444 = vmatpush2.msra.mxu0 0.0
    %1445 = vmatprep.subr.mxu0 0.0
    %1446 = vmatpush2.msra.mxu0 0.0
    %1447 = vmatprep.subr.mxu0 0.0
    %1448 = vmatpush2.msra.mxu0 0.0
    %1449 = vmatprep.subr.mxu0 0.0
    %1450 = vmatpush2.msra.mxu0 0.0
    %1451 = vmatprep.subr.mxu0 0.0
    %1452 = vmatpush2.msra.mxu0 0.0
    %1453 = vmatprep.subr.mxu0 0.0
    %1454 = vmatpush2.msra.mxu0 0.0
    %1455 = vmatprep.subr.mxu0 0.0
    %1456 = vmatpush2.msra.mxu0 0.0
    %1457 = vmatprep.subr.mxu0 0.0
    %1458 = vmatpush2.msra.mxu0 0.0
    %1459 = vmatprep.subr.mxu0 0.0
    %1460 = vmatpush2.msra.mxu0 0.0
    %1461 = vmatprep.subr.mxu0 0.0
    %1462 = vmatpush2.msra.mxu0 0.0
    %1463 = vmatprep.subr.mxu0 0.0
    %1464 = vmatpush2.msra.mxu0 0.0
    %1465 = vmatprep.subr.mxu0 0.0
    %1466 = vmatpush2.msra.mxu0 0.0
    %1467 = vmatprep.subr.mxu0 0.0
    %1468 = vmatpush2.msra.mxu0 0.0
    %1469 = vmatprep.mubr.f32.mxu0 0.0
    %1470 = vmatmul.mubr.f32.gmra.mxu0 %v125
    %v1471 = vpop.f32.mrf.mxu0
    %v1472 = vadd.f32 %v116, %v1471
    %v1473 = vpop.f32.mrf.mxu0
    %1474 = vmatprep.mubr.f32.mxu0 0.0
    %1475 = vmatmul.mubr.f32.gmra.mxu0 %v128
    %v1476 = vpop.f32.mrf.mxu0
    %v1477 = vadd.f32 %v121, %v1476
    %v1478 = vpop.f32.mrf.mxu0
    %1479 = vdwg.mxu0
    %1480 = vmatprep.subr.mxu0 0.0
    %1481 = vmatpush1.msra.mxu0 0.0
    %1482 = vmatprep.subr.mxu0 0.0
    %1483 = vmatpush1.msra.mxu0 0.0
    %1484 = vmatprep.subr.mxu0 0.0
    %1485 = vmatpush1.msra.mxu0 0.0
    %1486 = vmatprep.subr.mxu0 0.0
    %1487 = vmatpush1.msra.mxu0 0.0
    %1488 = vmatprep.subr.mxu0 0.0
    %1489 = vmatpush1.msra.mxu0 0.0
    %1490 = vmatprep.subr.mxu0 0.0
    %1491 = vmatpush1.msra.mxu0 0.0
    %1492 = vmatprep.subr.mxu0 0.0
    %1493 = vmatpush1.msra.mxu0 0.0
    %1494 = vmatprep.subr.mxu0 0.0
    %1495 = vmatpush1.msra.mxu0 0.0
    %1496 = vmatprep.subr.mxu0 0.0
    %1497 = vmatpush1.msra.mxu0 0.0
    %1498 = vmatprep.subr.mxu0 0.0
    %1499 = vmatpush1.msra.mxu0 0.0
    %1500 = vmatprep.subr.mxu0 0.0
    %1501 = vmatpush1.msra.mxu0 %v68
    %1502 = vmatprep.subr.mxu0 0.0
    %1503 = vmatpush1.msra.mxu0 %v67
    %1504 = vmatprep.subr.mxu0 0.0
    %1505 = vmatpush1.msra.mxu0 %v66
    %1506 = vmatprep.subr.mxu0 0.0
    %1507 = vmatpush1.msra.mxu0 %v65
    %1508 = vmatprep.subr.mxu0 0.0
    %1509 = vmatpush1.msra.mxu0 %v64
    %1510 = vmatprep.subr.mxu0 0.0
    %1511 = vmatpush1.msra.mxu0 %v63
    %1512 = vmatprep.subr.mxu0 0.0
    %1513 = vmatpush2.msra.mxu0 0.0
    %1514 = vmatprep.subr.mxu0 0.0
    %1515 = vmatpush2.msra.mxu0 0.0
    %1516 = vmatprep.subr.mxu0 0.0
    %1517 = vmatpush2.msra.mxu0 0.0
    %1518 = vmatprep.subr.mxu0 0.0
    %1519 = vmatpush2.msra.mxu0 0.0
    %1520 = vmatprep.subr.mxu0 0.0
    %1521 = vmatpush2.msra.mxu0 0.0
    %1522 = vmatprep.subr.mxu0 0.0
    %1523 = vmatpush2.msra.mxu0 0.0
    %1524 = vmatprep.subr.mxu0 0.0
    %1525 = vmatpush2.msra.mxu0 0.0
    %1526 = vmatprep.subr.mxu0 0.0
    %1527 = vmatpush2.msra.mxu0 0.0
    %1528 = vmatprep.subr.mxu0 0.0
    %1529 = vmatpush2.msra.mxu0 0.0
    %1530 = vmatprep.subr.mxu0 0.0
    %1531 = vmatpush2.msra.mxu0 0.0
    %1532 = vmatprep.subr.mxu0 0.0
    %1533 = vmatpush2.msra.mxu0 0.0
    %1534 = vmatprep.subr.mxu0 0.0
    %1535 = vmatpush2.msra.mxu0 0.0
    %1536 = vmatprep.subr.mxu0 0.0
    %1537 = vmatpush2.msra.mxu0 0.0
    %1538 = vmatprep.subr.mxu0 0.0
    %1539 = vmatpush2.msra.mxu0 0.0
    %1540 = vmatprep.subr.mxu0 0.0
    %1541 = vmatpush2.msra.mxu0 0.0
    %1542 = vmatprep.subr.mxu0 0.0
    %1543 = vmatpush2.msra.mxu0 0.0
    %1544 = vmatprep.mubr.f32.mxu0 0.0
    %1545 = vmatmul.mubr.f32.gmra.mxu0 %v125
    %v1546 = vpop.f32.mrf.mxu0
    %v1547 = vadd.f32 %v116, %v1546
    %v1548 = vpop.f32.mrf.mxu0
    %1549 = vmatprep.mubr.f32.mxu0 0.0
    %1550 = vmatmul.mubr.f32.gmra.mxu0 %v128
    %v1551 = vpop.f32.mrf.mxu0
    %v1552 = vadd.f32 %v121, %v1551
    %v1553 = vpop.f32.mrf.mxu0
    %1554 = vdwg.mxu0
    %1555 = vmatprep.subr.mxu0 0.0
    %1556 = vmatpush1.msra.mxu0 0.0
    %1557 = vmatprep.subr.mxu0 0.0
    %1558 = vmatpush1.msra.mxu0 0.0
    %1559 = vmatprep.subr.mxu0 0.0
    %1560 = vmatpush1.msra.mxu0 0.0
    %1561 = vmatprep.subr.mxu0 0.0
    %1562 = vmatpush1.msra.mxu0 0.0
    %1563 = vmatprep.subr.mxu0 0.0
    %1564 = vmatpush1.msra.mxu0 0.0
    %1565 = vmatprep.subr.mxu0 0.0
    %1566 = vmatpush1.msra.mxu0 0.0
    %1567 = vmatprep.subr.mxu0 0.0
    %1568 = vmatpush1.msra.mxu0 0.0
    %1569 = vmatprep.subr.mxu0 0.0
    %1570 = vmatpush1.msra.mxu0 0.0
    %1571 = vmatprep.subr.mxu0 0.0
    %1572 = vmatpush1.msra.mxu0 0.0
    %1573 = vmatprep.subr.mxu0 0.0
    %1574 = vmatpush1.msra.mxu0 0.0
    %1575 = vmatprep.subr.mxu0 0.0
    %1576 = vmatpush1.msra.mxu0 %v70
    %1577 = vmatprep.subr.mxu0 0.0
    %1578 = vmatpush1.msra.mxu0 %v69
    %1579 = vmatprep.subr.mxu0 0.0
    %1580 = vmatpush1.msra.mxu0 %v68
    %1581 = vmatprep.subr.mxu0 0.0
    %1582 = vmatpush1.msra.mxu0 %v67
    %1583 = vmatprep.subr.mxu0 0.0
    %1584 = vmatpush1.msra.mxu0 %v66
    %1585 = vmatprep.subr.mxu0 0.0
    %1586 = vmatpush1.msra.mxu0 %v65
    %1587 = vmatprep.subr.mxu0 0.0
    %1588 = vmatpush2.msra.mxu0 0.0
    %1589 = vmatprep.subr.mxu0 0.0
    %1590 = vmatpush2.msra.mxu0 0.0
    %1591 = vmatprep.subr.mxu0 0.0
    %1592 = vmatpush2.msra.mxu0 0.0
    %1593 = vmatprep.subr.mxu0 0.0
    %1594 = vmatpush2.msra.mxu0 0.0
    %1595 = vmatprep.subr.mxu0 0.0
    %1596 = vmatpush2.msra.mxu0 0.0
    %1597 = vmatprep.subr.mxu0 0.0
    %1598 = vmatpush2.msra.mxu0 0.0
    %1599 = vmatprep.subr.mxu0 0.0
    %1600 = vmatpush2.msra.mxu0 0.0
    %1601 = vmatprep.subr.mxu0 0.0
    %1602 = vmatpush2.msra.mxu0 0.0
    %1603 = vmatprep.subr.mxu0 0.0
    %1604 = vmatpush2.msra.mxu0 0.0
    %1605 = vmatprep.subr.mxu0 0.0
    %1606 = vmatpush2.msra.mxu0 0.0
    %1607 = vmatprep.subr.mxu0 0.0
    %1608 = vmatpush2.msra.mxu0 0.0
    %1609 = vmatprep.subr.mxu0 0.0
    %1610 = vmatpush2.msra.mxu0 0.0
    %1611 = vmatprep.subr.mxu0 0.0
    %1612 = vmatpush2.msra.mxu0 0.0
    %1613 = vmatprep.subr.mxu0 0.0
    %1614 = vmatpush2.msra.mxu0 0.0
    %1615 = vmatprep.subr.mxu0 0.0
    %1616 = vmatpush2.msra.mxu0 0.0
    %1617 = vmatprep.subr.mxu0 0.0
    %1618 = vmatpush2.msra.mxu0 0.0
    %1619 = vmatprep.mubr.f32.mxu0 0.0
    %1620 = vmatmul.mubr.f32.gmra.mxu0 %v125
    %v1621 = vpop.f32.mrf.mxu0
    %v1622 = vadd.f32 %v116, %v1621
    %v1623 = vpop.f32.mrf.mxu0
    %1624 = vmatprep.mubr.f32.mxu0 0.0
    %1625 = vmatmul.mubr.f32.gmra.mxu0 %v128
    %v1626 = vpop.f32.mrf.mxu0
    %v1627 = vadd.f32 %v121, %v1626
    %v1628 = vpop.f32.mrf.mxu0
    %1629 = vdwg.mxu0
    %1630 = vmatprep.subr.mxu0 0.0
    %1631 = vmatpush1.msra.mxu0 0.0
    %1632 = vmatprep.subr.mxu0 0.0
    %1633 = vmatpush1.msra.mxu0 0.0
    %1634 = vmatprep.subr.mxu0 0.0
    %1635 = vmatpush1.msra.mxu0 0.0
    %1636 = vmatprep.subr.mxu0 0.0
    %1637 = vmatpush1.msra.mxu0 0.0
    %1638 = vmatprep.subr.mxu0 0.0
    %1639 = vmatpush1.msra.mxu0 0.0
    %1640 = vmatprep.subr.mxu0 0.0
    %1641 = vmatpush1.msra.mxu0 0.0
    %1642 = vmatprep.subr.mxu0 0.0
    %1643 = vmatpush1.msra.mxu0 0.0
    %1644 = vmatprep.subr.mxu0 0.0
    %1645 = vmatpush1.msra.mxu0 0.0
    %1646 = vmatprep.subr.mxu0 0.0
    %1647 = vmatpush1.msra.mxu0 0.0
    %1648 = vmatprep.subr.mxu0 0.0
    %1649 = vmatpush1.msra.mxu0 0.0
    %1650 = vmatprep.subr.mxu0 0.0
    %1651 = vmatpush1.msra.mxu0 %v72
    %1652 = vmatprep.subr.mxu0 0.0
    %1653 = vmatpush1.msra.mxu0 %v71
    %1654 = vmatprep.subr.mxu0 0.0
    %1655 = vmatpush1.msra.mxu0 %v70
    %1656 = vmatprep.subr.mxu0 0.0
    %1657 = vmatpush1.msra.mxu0 %v69
    %1658 = vmatprep.subr.mxu0 0.0
    %1659 = vmatpush1.msra.mxu0 %v68
    %1660 = vmatprep.subr.mxu0 0.0
    %1661 = vmatpush1.msra.mxu0 %v67
    %1662 = vmatprep.subr.mxu0 0.0
    %1663 = vmatpush2.msra.mxu0 0.0
    %1664 = vmatprep.subr.mxu0 0.0
    %1665 = vmatpush2.msra.mxu0 0.0
    %1666 = vmatprep.subr.mxu0 0.0
    %1667 = vmatpush2.msra.mxu0 0.0
    %1668 = vmatprep.subr.mxu0 0.0
    %1669 = vmatpush2.msra.mxu0 0.0
    %1670 = vmatprep.subr.mxu0 0.0
    %1671 = vmatpush2.msra.mxu0 0.0
    %1672 = vmatprep.subr.mxu0 0.0
    %1673 = vmatpush2.msra.mxu0 0.0
    %1674 = vmatprep.subr.mxu0 0.0
    %1675 = vmatpush2.msra.mxu0 0.0
    %1676 = vmatprep.subr.mxu0 0.0
    %1677 = vmatpush2.msra.mxu0 0.0
    %1678 = vmatprep.subr.mxu0 0.0
    %1679 = vmatpush2.msra.mxu0 0.0
    %1680 = vmatprep.subr.mxu0 0.0
    %1681 = vmatpush2.msra.mxu0 0.0
    %1682 = vmatprep.subr.mxu0 0.0
    %1683 = vmatpush2.msra.mxu0 0.0
    %1684 = vmatprep.subr.mxu0 0.0
    %1685 = vmatpush2.msra.mxu0 0.0
    %1686 = vmatprep.subr.mxu0 0.0
    %1687 = vmatpush2.msra.mxu0 0.0
    %1688 = vmatprep.subr.mxu0 0.0
    %1689 = vmatpush2.msra.mxu0 0.0
    %1690 = vmatprep.subr.mxu0 0.0
    %1691 = vmatpush2.msra.mxu0 0.0
    %1692 = vmatprep.subr.mxu0 0.0
    %1693 = vmatpush2.msra.mxu0 0.0
    %1694 = vmatprep.mubr.f32.mxu0 0.0
    %1695 = vmatmul.mubr.f32.gmra.mxu0 %v125
    %v1696 = vpop.f32.mrf.mxu0
    %v1697 = vadd.f32 %v116, %v1696
    %v1698 = vpop.f32.mrf.mxu0
    %1699 = vmatprep.mubr.f32.mxu0 0.0
    %1700 = vmatmul.mubr.f32.gmra.mxu0 %v128
    %v1701 = vpop.f32.mrf.mxu0
    %v1702 = vadd.f32 %v121, %v1701
    %v1703 = vpop.f32.mrf.mxu0
    %1704 = vdwg.mxu0
    %1705 = vmatprep.subr.mxu0 0.0
    %1706 = vmatpush1.msra.mxu0 0.0
    %1707 = vmatprep.subr.mxu0 0.0
    %1708 = vmatpush1.msra.mxu0 0.0
    %1709 = vmatprep.subr.mxu0 0.0
    %1710 = vmatpush1.msra.mxu0 0.0
    %1711 = vmatprep.subr.mxu0 0.0
    %1712 = vmatpush1.msra.mxu0 0.0
    %1713 = vmatprep.subr.mxu0 0.0
    %1714 = vmatpush1.msra.mxu0 0.0
    %1715 = vmatprep.subr.mxu0 0.0
    %1716 = vmatpush1.msra.mxu0 0.0
    %1717 = vmatprep.subr.mxu0 0.0
    %1718 = vmatpush1.msra.mxu0 0.0
    %1719 = vmatprep.subr.mxu0 0.0
    %1720 = vmatpush1.msra.mxu0 0.0
    %1721 = vmatprep.subr.mxu0 0.0
    %1722 = vmatpush1.msra.mxu0 0.0
    %1723 = vmatprep.subr.mxu0 0.0
    %1724 = vmatpush1.msra.mxu0 0.0
    %1725 = vmatprep.subr.mxu0 0.0
    %1726 = vmatpush1.msra.mxu0 %v74
    %1727 = vmatprep.subr.mxu0 0.0
    %1728 = vmatpush1.msra.mxu0 %v73
    %1729 = vmatprep.subr.mxu0 0.0
    %1730 = vmatpush1.msra.mxu0 %v72
    %1731 = vmatprep.subr.mxu0 0.0
    %1732 = vmatpush1.msra.mxu0 %v71
    %1733 = vmatprep.subr.mxu0 0.0
    %1734 = vmatpush1.msra.mxu0 %v70
    %1735 = vmatprep.subr.mxu0 0.0
    %1736 = vmatpush1.msra.mxu0 %v69
    %1737 = vmatprep.subr.mxu0 0.0
    %1738 = vmatpush2.msra.mxu0 0.0
    %1739 = vmatprep.subr.mxu0 0.0
    %1740 = vmatpush2.msra.mxu0 0.0
    %1741 = vmatprep.subr.mxu0 0.0
    %1742 = vmatpush2.msra.mxu0 0.0
    %1743 = vmatprep.subr.mxu0 0.0
    %1744 = vmatpush2.msra.mxu0 0.0
    %1745 = vmatprep.subr.mxu0 0.0
    %1746 = vmatpush2.msra.mxu0 0.0
    %1747 = vmatprep.subr.mxu0 0.0
    %1748 = vmatpush2.msra.mxu0 0.0
    %1749 = vmatprep.subr.mxu0 0.0
    %1750 = vmatpush2.msra.mxu0 0.0
    %1751 = vmatprep.subr.mxu0 0.0
    %1752 = vmatpush2.msra.mxu0 0.0
    %1753 = vmatprep.subr.mxu0 0.0
    %1754 = vmatpush2.msra.mxu0 0.0
    %1755 = vmatprep.subr.mxu0 0.0
    %1756 = vmatpush2.msra.mxu0 0.0
    %1757 = vmatprep.subr.mxu0 0.0
    %1758 = vmatpush2.msra.mxu0 0.0
    %1759 = vmatprep.subr.mxu0 0.0
    %1760 = vmatpush2.msra.mxu0 0.0
    %1761 = vmatprep.subr.mxu0 0.0
    %1762 = vmatpush2.msra.mxu0 0.0
    %1763 = vmatprep.subr.mxu0 0.0
    %1764 = vmatpush2.msra.mxu0 0.0
    %1765 = vmatprep.subr.mxu0 0.0
    %1766 = vmatpush2.msra.mxu0 0.0
    %1767 = vmatprep.subr.mxu0 0.0
    %1768 = vmatpush2.msra.mxu0 0.0
    %1769 = vmatprep.mubr.f32.mxu0 0.0
    %1770 = vmatmul.mubr.f32.gmra.mxu0 %v125
    %v1771 = vpop.f32.mrf.mxu0
    %v1772 = vadd.f32 %v116, %v1771
    %v1773 = vpop.f32.mrf.mxu0
    %1774 = vmatprep.mubr.f32.mxu0 0.0
    %1775 = vmatmul.mubr.f32.gmra.mxu0 %v128
    %v1776 = vpop.f32.mrf.mxu0
    %v1777 = vadd.f32 %v121, %v1776
    %v1778 = vpop.f32.mrf.mxu0
    %1779 = vdwg.mxu0
    %1780 = vmatprep.subr.mxu0 0.0
    %1781 = vmatpush1.msra.mxu0 0.0
    %1782 = vmatprep.subr.mxu0 0.0
    %1783 = vmatpush1.msra.mxu0 0.0
    %1784 = vmatprep.subr.mxu0 0.0
    %1785 = vmatpush1.msra.mxu0 0.0
    %1786 = vmatprep.subr.mxu0 0.0
    %1787 = vmatpush1.msra.mxu0 0.0
    %1788 = vmatprep.subr.mxu0 0.0
    %1789 = vmatpush1.msra.mxu0 0.0
    %1790 = vmatprep.subr.mxu0 0.0
    %1791 = vmatpush1.msra.mxu0 0.0
    %1792 = vmatprep.subr.mxu0 0.0
    %1793 = vmatpush1.msra.mxu0 0.0
    %1794 = vmatprep.subr.mxu0 0.0
    %1795 = vmatpush1.msra.mxu0 0.0
    %1796 = vmatprep.subr.mxu0 0.0
    %1797 = vmatpush1.msra.mxu0 0.0
    %1798 = vmatprep.subr.mxu0 0.0
    %1799 = vmatpush1.msra.mxu0 0.0
    %1800 = vmatprep.subr.mxu0 0.0
    %1801 = vmatpush1.msra.mxu0 %v76
    %1802 = vmatprep.subr.mxu0 0.0
    %1803 = vmatpush1.msra.mxu0 %v75
    %1804 = vmatprep.subr.mxu0 0.0
    %1805 = vmatpush1.msra.mxu0 %v74
    %1806 = vmatprep.subr.mxu0 0.0
    %1807 = vmatpush1.msra.mxu0 %v73
    %1808 = vmatprep.subr.mxu0 0.0
    %1809 = vmatpush1.msra.mxu0 %v72
    %1810 = vmatprep.subr.mxu0 0.0
    %1811 = vmatpush1.msra.mxu0 %v71
    %1812 = vmatprep.subr.mxu0 0.0
    %1813 = vmatpush2.msra.mxu0 0.0
    %1814 = vmatprep.subr.mxu0 0.0
    %1815 = vmatpush2.msra.mxu0 0.0
    %1816 = vmatprep.subr.mxu0 0.0
    %1817 = vmatpush2.msra.mxu0 0.0
    %1818 = vmatprep.subr.mxu0 0.0
    %1819 = vmatpush2.msra.mxu0 0.0
    %1820 = vmatprep.subr.mxu0 0.0
    %1821 = vmatpush2.msra.mxu0 0.0
    %1822 = vmatprep.subr.mxu0 0.0
    %1823 = vmatpush2.msra.mxu0 0.0
    %1824 = vmatprep.subr.mxu0 0.0
    %1825 = vmatpush2.msra.mxu0 0.0
    %1826 = vmatprep.subr.mxu0 0.0
    %1827 = vmatpush2.msra.mxu0 0.0
    %1828 = vmatprep.subr.mxu0 0.0
    %1829 = vmatpush2.msra.mxu0 0.0
    %1830 = vmatprep.subr.mxu0 0.0
    %1831 = vmatpush2.msra.mxu0 0.0
    %1832 = vmatprep.subr.mxu0 0.0
    %1833 = vmatpush2.msra.mxu0 0.0
    %1834 = vmatprep.subr.mxu0 0.0
    %1835 = vmatpush2.msra.mxu0 0.0
    %1836 = vmatprep.subr.mxu0 0.0
    %1837 = vmatpush2.msra.mxu0 0.0
    %1838 = vmatprep.subr.mxu0 0.0
    %1839 = vmatpush2.msra.mxu0 0.0
    %1840 = vmatprep.subr.mxu0 0.0
    %1841 = vmatpush2.msra.mxu0 0.0
    %1842 = vmatprep.subr.mxu0 0.0
    %1843 = vmatpush2.msra.mxu0 0.0
    %1844 = vmatprep.mubr.f32.mxu0 0.0
    %1845 = vmatmul.mubr.f32.gmra.mxu0 %v125
    %v1846 = vpop.f32.mrf.mxu0
    %v1847 = vadd.f32 %v116, %v1846
    %v1848 = vpop.f32.mrf.mxu0
    %1849 = vmatprep.mubr.f32.mxu0 0.0
    %1850 = vmatmul.mubr.f32.gmra.mxu0 %v128
    %v1851 = vpop.f32.mrf.mxu0
    %v1852 = vadd.f32 %v121, %v1851
    %v1853 = vpop.f32.mrf.mxu0
    %1854 = vdwg.mxu0
    %1855 = vmatprep.subr.mxu0 0.0
    %1856 = vmatpush1.msra.mxu0 0.0
    %1857 = vmatprep.subr.mxu0 0.0
    %1858 = vmatpush1.msra.mxu0 0.0
    %1859 = vmatprep.subr.mxu0 0.0
    %1860 = vmatpush1.msra.mxu0 0.0
    %1861 = vmatprep.subr.mxu0 0.0
    %1862 = vmatpush1.msra.mxu0 0.0
    %1863 = vmatprep.subr.mxu0 0.0
    %1864 = vmatpush1.msra.mxu0 0.0
    %1865 = vmatprep.subr.mxu0 0.0
    %1866 = vmatpush1.msra.mxu0 0.0
    %1867 = vmatprep.subr.mxu0 0.0
    %1868 = vmatpush1.msra.mxu0 0.0
    %1869 = vmatprep.subr.mxu0 0.0
    %1870 = vmatpush1.msra.mxu0 0.0
    %1871 = vmatprep.subr.mxu0 0.0
    %1872 = vmatpush1.msra.mxu0 0.0
    %1873 = vmatprep.subr.mxu0 0.0
    %1874 = vmatpush1.msra.mxu0 0.0
    %1875 = vmatprep.subr.mxu0 0.0
    %1876 = vmatpush1.msra.mxu0 %v78
    %1877 = vmatprep.subr.mxu0 0.0
    %1878 = vmatpush1.msra.mxu0 %v77
    %1879 = vmatprep.subr.mxu0 0.0
    %1880 = vmatpush1.msra.mxu0 %v76
    %1881 = vmatprep.subr.mxu0 0.0
    %1882 = vmatpush1.msra.mxu0 %v75
    %1883 = vmatprep.subr.mxu0 0.0
    %1884 = vmatpush1.msra.mxu0 %v74
    %1885 = vmatprep.subr.mxu0 0.0
    %1886 = vmatpush1.msra.mxu0 %v73
    %1887 = vmatprep.subr.mxu0 0.0
    %1888 = vmatpush2.msra.mxu0 0.0
    %1889 = vmatprep.subr.mxu0 0.0
    %1890 = vmatpush2.msra.mxu0 0.0
    %1891 = vmatprep.subr.mxu0 0.0
    %1892 = vmatpush2.msra.mxu0 0.0
    %1893 = vmatprep.subr.mxu0 0.0
    %1894 = vmatpush2.msra.mxu0 0.0
    %1895 = vmatprep.subr.mxu0 0.0
    %1896 = vmatpush2.msra.mxu0 0.0
    %1897 = vmatprep.subr.mxu0 0.0
    %1898 = vmatpush2.msra.mxu0 0.0
    %1899 = vmatprep.subr.mxu0 0.0
    %1900 = vmatpush2.msra.mxu0 0.0
    %1901 = vmatprep.subr.mxu0 0.0
    %1902 = vmatpush2.msra.mxu0 0.0
    %1903 = vmatprep.subr.mxu0 0.0
    %1904 = vmatpush2.msra.mxu0 0.0
    %1905 = vmatprep.subr.mxu0 0.0
    %1906 = vmatpush2.msra.mxu0 0.0
    %1907 = vmatprep.subr.mxu0 0.0
    %1908 = vmatpush2.msra.mxu0 0.0
    %1909 = vmatprep.subr.mxu0 0.0
    %1910 = vmatpush2.msra.mxu0 0.0
    %1911 = vmatprep.subr.mxu0 0.0
    %1912 = vmatpush2.msra.mxu0 0.0
    %1913 = vmatprep.subr.mxu0 0.0
    %1914 = vmatpush2.msra.mxu0 0.0
    %1915 = vmatprep.subr.mxu0 0.0
    %1916 = vmatpush2.msra.mxu0 0.0
    %1917 = vmatprep.subr.mxu0 0.0
    %1918 = vmatpush2.msra.mxu0 0.0
    %1919 = vmatprep.mubr.f32.mxu0 0.0
    %1920 = vmatmul.mubr.f32.gmra.mxu0 %v125
    %v1921 = vpop.f32.mrf.mxu0
    %v1922 = vadd.f32 %v116, %v1921
    %v1923 = vpop.f32.mrf.mxu0
    %1924 = vmatprep.mubr.f32.mxu0 0.0
    %1925 = vmatmul.mubr.f32.gmra.mxu0 %v128
    %v1926 = vpop.f32.mrf.mxu0
    %v1927 = vadd.f32 %v121, %v1926
    %v1928 = vpop.f32.mrf.mxu0
    %1929 = vdwg.mxu0
    %1930 = vmatprep.subr.mxu0 0.0
    %1931 = vmatpush1.msra.mxu0 0.0
    %1932 = vmatprep.subr.mxu0 0.0
    %1933 = vmatpush1.msra.mxu0 0.0
    %1934 = vmatprep.subr.mxu0 0.0
    %1935 = vmatpush1.msra.mxu0 0.0
    %1936 = vmatprep.subr.mxu0 0.0
    %1937 = vmatpush1.msra.mxu0 0.0
    %1938 = vmatprep.subr.mxu0 0.0
    %1939 = vmatpush1.msra.mxu0 0.0
    %1940 = vmatprep.subr.mxu0 0.0
    %1941 = vmatpush1.msra.mxu0 0.0
    %1942 = vmatprep.subr.mxu0 0.0
    %1943 = vmatpush1.msra.mxu0 0.0
    %1944 = vmatprep.subr.mxu0 0.0
    %1945 = vmatpush1.msra.mxu0 0.0
    %1946 = vmatprep.subr.mxu0 0.0
    %1947 = vmatpush1.msra.mxu0 0.0
    %1948 = vmatprep.subr.mxu0 0.0
    %1949 = vmatpush1.msra.mxu0 0.0
    %1950 = vmatprep.subr.mxu0 0.0
    %1951 = vmatpush1.msra.mxu0 %v80
    %1952 = vmatprep.subr.mxu0 0.0
    %1953 = vmatpush1.msra.mxu0 %v79
    %1954 = vmatprep.subr.mxu0 0.0
    %1955 = vmatpush1.msra.mxu0 %v78
    %1956 = vmatprep.subr.mxu0 0.0
    %1957 = vmatpush1.msra.mxu0 %v77
    %1958 = vmatprep.subr.mxu0 0.0
    %1959 = vmatpush1.msra.mxu0 %v76
    %1960 = vmatprep.subr.mxu0 0.0
    %1961 = vmatpush1.msra.mxu0 %v75
    %1962 = vmatprep.subr.mxu0 0.0
    %1963 = vmatpush2.msra.mxu0 0.0
    %1964 = vmatprep.subr.mxu0 0.0
    %1965 = vmatpush2.msra.mxu0 0.0
    %1966 = vmatprep.subr.mxu0 0.0
    %1967 = vmatpush2.msra.mxu0 0.0
    %1968 = vmatprep.subr.mxu0 0.0
    %1969 = vmatpush2.msra.mxu0 0.0
    %1970 = vmatprep.subr.mxu0 0.0
    %1971 = vmatpush2.msra.mxu0 0.0
    %1972 = vmatprep.subr.mxu0 0.0
    %1973 = vmatpush2.msra.mxu0 0.0
    %1974 = vmatprep.subr.mxu0 0.0
    %1975 = vmatpush2.msra.mxu0 0.0
    %1976 = vmatprep.subr.mxu0 0.0
    %1977 = vmatpush2.msra.mxu0 0.0
    %1978 = vmatprep.subr.mxu0 0.0
    %1979 = vmatpush2.msra.mxu0 0.0
    %1980 = vmatprep.subr.mxu0 0.0
    %1981 = vmatpush2.msra.mxu0 0.0
    %1982 = vmatprep.subr.mxu0 0.0
    %1983 = vmatpush2.msra.mxu0 0.0
    %1984 = vmatprep.subr.mxu0 0.0
    %1985 = vmatpush2.msra.mxu0 0.0
    %1986 = vmatprep.subr.mxu0 0.0
    %1987 = vmatpush2.msra.mxu0 0.0
    %1988 = vmatprep.subr.mxu0 0.0
    %1989 = vmatpush2.msra.mxu0 0.0
    %1990 = vmatprep.subr.mxu0 0.0
    %1991 = vmatpush2.msra.mxu0 0.0
    %1992 = vmatprep.subr.mxu0 0.0
    %1993 = vmatpush2.msra.mxu0 0.0
    %1994 = vmatprep.mubr.f32.mxu0 0.0
    %1995 = vmatmul.mubr.f32.gmra.mxu0 %v125
    %v1996 = vpop.f32.mrf.mxu0
    %v1997 = vadd.f32 %v116, %v1996
    %v1998 = vpop.f32.mrf.mxu0
    %1999 = vmatprep.mubr.f32.mxu0 0.0
    %2000 = vmatmul.mubr.f32.gmra.mxu0 %v128
    %v2001 = vpop.f32.mrf.mxu0
    %v2002 = vadd.f32 %v121, %v2001
    %v2003 = vpop.f32.mrf.mxu0
    %2004 = vdwg.mxu0
    %2005 = vmatprep.subr.mxu0 0.0
    %2006 = vmatpush1.msra.mxu0 0.0
    %2007 = vmatprep.subr.mxu0 0.0
    %2008 = vmatpush1.msra.mxu0 0.0
    %2009 = vmatprep.subr.mxu0 0.0
    %2010 = vmatpush1.msra.mxu0 0.0
    %2011 = vmatprep.subr.mxu0 0.0
    %2012 = vmatpush1.msra.mxu0 0.0
    %2013 = vmatprep.subr.mxu0 0.0
    %2014 = vmatpush1.msra.mxu0 0.0
    %2015 = vmatprep.subr.mxu0 0.0
    %2016 = vmatpush1.msra.mxu0 0.0
    %2017 = vmatprep.subr.mxu0 0.0
    %2018 = vmatpush1.msra.mxu0 0.0
    %2019 = vmatprep.subr.mxu0 0.0
    %2020 = vmatpush1.msra.mxu0 0.0
    %2021 = vmatprep.subr.mxu0 0.0
    %2022 = vmatpush1.msra.mxu0 0.0
    %2023 = vmatprep.subr.mxu0 0.0
    %2024 = vmatpush1.msra.mxu0 0.0
    %2025 = vmatprep.subr.mxu0 0.0
    %2026 = vmatpush1.msra.mxu0 %v82
    %2027 = vmatprep.subr.mxu0 0.0
    %2028 = vmatpush1.msra.mxu0 %v81
    %2029 = vmatprep.subr.mxu0 0.0
    %2030 = vmatpush1.msra.mxu0 %v80
    %2031 = vmatprep.subr.mxu0 0.0
    %2032 = vmatpush1.msra.mxu0 %v79
    %2033 = vmatprep.subr.mxu0 0.0
    %2034 = vmatpush1.msra.mxu0 %v78
    %2035 = vmatprep.subr.mxu0 0.0
    %2036 = vmatpush1.msra.mxu0 %v77
    %2037 = vmatprep.subr.mxu0 0.0
    %2038 = vmatpush2.msra.mxu0 0.0
    %2039 = vmatprep.subr.mxu0 0.0
    %2040 = vmatpush2.msra.mxu0 0.0
    %2041 = vmatprep.subr.mxu0 0.0
    %2042 = vmatpush2.msra.mxu0 0.0
    %2043 = vmatprep.subr.mxu0 0.0
    %2044 = vmatpush2.msra.mxu0 0.0
    %2045 = vmatprep.subr.mxu0 0.0
    %2046 = vmatpush2.msra.mxu0 0.0
    %2047 = vmatprep.subr.mxu0 0.0
    %2048 = vmatpush2.msra.mxu0 0.0
    %2049 = vmatprep.subr.mxu0 0.0
    %2050 = vmatpush2.msra.mxu0 0.0
    %2051 = vmatprep.subr.mxu0 0.0
    %2052 = vmatpush2.msra.mxu0 0.0
    %2053 = vmatprep.subr.mxu0 0.0
    %2054 = vmatpush2.msra.mxu0 0.0
    %2055 = vmatprep.subr.mxu0 0.0
    %2056 = vmatpush2.msra.mxu0 0.0
    %2057 = vmatprep.subr.mxu0 0.0
    %2058 = vmatpush2.msra.mxu0 0.0
    %2059 = vmatprep.subr.mxu0 0.0
    %2060 = vmatpush2.msra.mxu0 0.0
    %2061 = vmatprep.subr.mxu0 0.0
    %2062 = vmatpush2.msra.mxu0 0.0
    %2063 = vmatprep.subr.mxu0 0.0
    %2064 = vmatpush2.msra.mxu0 0.0
    %2065 = vmatprep.subr.mxu0 0.0
    %2066 = vmatpush2.msra.mxu0 0.0
    %2067 = vmatprep.subr.mxu0 0.0
    %2068 = vmatpush2.msra.mxu0 0.0
    %2069 = vmatprep.mubr.f32.mxu0 0.0
    %2070 = vmatmul.mubr.f32.gmra.mxu0 %v125
    %v2071 = vpop.f32.mrf.mxu0
    %v2072 = vadd.f32 %v116, %v2071
    %v2073 = vpop.f32.mrf.mxu0
    %2074 = vmatprep.mubr.f32.mxu0 0.0
    %2075 = vmatmul.mubr.f32.gmra.mxu0 %v128
    %v2076 = vpop.f32.mrf.mxu0
    %v2077 = vadd.f32 %v121, %v2076
    %v2078 = vpop.f32.mrf.mxu0
    %2079 = vdwg.mxu0
    %2080 = vmatprep.subr.mxu0 0.0
    %2081 = vmatpush1.msra.mxu0 0.0
    %2082 = vmatprep.subr.mxu0 0.0
    %2083 = vmatpush1.msra.mxu0 0.0
    %2084 = vmatprep.subr.mxu0 0.0
    %2085 = vmatpush1.msra.mxu0 0.0
    %2086 = vmatprep.subr.mxu0 0.0
    %2087 = vmatpush1.msra.mxu0 0.0
    %2088 = vmatprep.subr.mxu0 0.0
    %2089 = vmatpush1.msra.mxu0 0.0
    %2090 = vmatprep.subr.mxu0 0.0
    %2091 = vmatpush1.msra.mxu0 0.0
    %2092 = vmatprep.subr.mxu0 0.0
    %2093 = vmatpush1.msra.mxu0 0.0
    %2094 = vmatprep.subr.mxu0 0.0
    %2095 = vmatpush1.msra.mxu0 0.0
    %2096 = vmatprep.subr.mxu0 0.0
    %2097 = vmatpush1.msra.mxu0 0.0
    %2098 = vmatprep.subr.mxu0 0.0
    %2099 = vmatpush1.msra.mxu0 0.0
    %2100 = vmatprep.subr.mxu0 0.0
    %2101 = vmatpush1.msra.mxu0 %v84
    %2102 = vmatprep.subr.mxu0 0.0
    %2103 = vmatpush1.msra.mxu0 %v83
    %2104 = vmatprep.subr.mxu0 0.0
    %2105 = vmatpush1.msra.mxu0 %v82
    %2106 = vmatprep.subr.mxu0 0.0
    %2107 = vmatpush1.msra.mxu0 %v81
    %2108 = vmatprep.subr.mxu0 0.0
    %2109 = vmatpush1.msra.mxu0 %v80
    %2110 = vmatprep.subr.mxu0 0.0
    %2111 = vmatpush1.msra.mxu0 %v79
    %2112 = vmatprep.subr.mxu0 0.0
    %2113 = vmatpush2.msra.mxu0 0.0
    %2114 = vmatprep.subr.mxu0 0.0
    %2115 = vmatpush2.msra.mxu0 0.0
    %2116 = vmatprep.subr.mxu0 0.0
    %2117 = vmatpush2.msra.mxu0 0.0
    %2118 = vmatprep.subr.mxu0 0.0
    %2119 = vmatpush2.msra.mxu0 0.0
    %2120 = vmatprep.subr.mxu0 0.0
    %2121 = vmatpush2.msra.mxu0 0.0
    %2122 = vmatprep.subr.mxu0 0.0
    %2123 = vmatpush2.msra.mxu0 0.0
    %2124 = vmatprep.subr.mxu0 0.0
    %2125 = vmatpush2.msra.mxu0 0.0
    %2126 = vmatprep.subr.mxu0 0.0
    %2127 = vmatpush2.msra.mxu0 0.0
    %2128 = vmatprep.subr.mxu0 0.0
    %2129 = vmatpush2.msra.mxu0 0.0
    %2130 = vmatprep.subr.mxu0 0.0
    %2131 = vmatpush2.msra.mxu0 0.0
    %2132 = vmatprep.subr.mxu0 0.0
    %2133 = vmatpush2.msra.mxu0 0.0
    %2134 = vmatprep.subr.mxu0 0.0
    %2135 = vmatpush2.msra.mxu0 0.0
    %2136 = vmatprep.subr.mxu0 0.0
    %2137 = vmatpush2.msra.mxu0 0.0
    %2138 = vmatprep.subr.mxu0 0.0
    %2139 = vmatpush2.msra.mxu0 0.0
    %2140 = vmatprep.subr.mxu0 0.0
    %2141 = vmatpush2.msra.mxu0 0.0
    %2142 = vmatprep.subr.mxu0 0.0
    %2143 = vmatpush2.msra.mxu0 0.0
    %2144 = vmatprep.mubr.f32.mxu0 0.0
    %2145 = vmatmul.mubr.f32.gmra.mxu0 %v125
    %v2146 = vpop.f32.mrf.mxu0
    %v2147 = vadd.f32 %v116, %v2146
    %v2148 = vpop.f32.mrf.mxu0
    %2149 = vmatprep.mubr.f32.mxu0 0.0
    %2150 = vmatmul.mubr.f32.gmra.mxu0 %v128
    %v2151 = vpop.f32.mrf.mxu0
    %v2152 = vadd.f32 %v121, %v2151
    %v2153 = vpop.f32.mrf.mxu0
    %2154 = vdwg.mxu0
    %2155 = vmatprep.subr.mxu0 0.0
    %2156 = vmatpush1.msra.mxu0 0.0
    %2157 = vmatprep.subr.mxu0 0.0
    %2158 = vmatpush1.msra.mxu0 0.0
    %2159 = vmatprep.subr.mxu0 0.0
    %2160 = vmatpush1.msra.mxu0 0.0
    %2161 = vmatprep.subr.mxu0 0.0
    %2162 = vmatpush1.msra.mxu0 0.0
    %2163 = vmatprep.subr.mxu0 0.0
    %2164 = vmatpush1.msra.mxu0 0.0
    %2165 = vmatprep.subr.mxu0 0.0
    %2166 = vmatpush1.msra.mxu0 0.0
    %2167 = vmatprep.subr.mxu0 0.0
    %2168 = vmatpush1.msra.mxu0 0.0
    %2169 = vmatprep.subr.mxu0 0.0
    %2170 = vmatpush1.msra.mxu0 0.0
    %2171 = vmatprep.subr.mxu0 0.0
    %2172 = vmatpush1.msra.mxu0 0.0
    %2173 = vmatprep.subr.mxu0 0.0
    %2174 = vmatpush1.msra.mxu0 0.0
    %2175 = vmatprep.subr.mxu0 0.0
    %2176 = vmatpush1.msra.mxu0 %v86
    %2177 = vmatprep.subr.mxu0 0.0
    %2178 = vmatpush1.msra.mxu0 %v85
    %2179 = vmatprep.subr.mxu0 0.0
    %2180 = vmatpush1.msra.mxu0 %v84
    %2181 = vmatprep.subr.mxu0 0.0
    %2182 = vmatpush1.msra.mxu0 %v83
    %2183 = vmatprep.subr.mxu0 0.0
    %2184 = vmatpush1.msra.mxu0 %v82
    %2185 = vmatprep.subr.mxu0 0.0
    %2186 = vmatpush1.msra.mxu0 %v81
    %2187 = vmatprep.subr.mxu0 0.0
    %2188 = vmatpush2.msra.mxu0 0.0
    %2189 = vmatprep.subr.mxu0 0.0
    %2190 = vmatpush2.msra.mxu0 0.0
    %2191 = vmatprep.subr.mxu0 0.0
    %2192 = vmatpush2.msra.mxu0 0.0
    %2193 = vmatprep.subr.mxu0 0.0
    %2194 = vmatpush2.msra.mxu0 0.0
    %2195 = vmatprep.subr.mxu0 0.0
    %2196 = vmatpush2.msra.mxu0 0.0
    %2197 = vmatprep.subr.mxu0 0.0
    %2198 = vmatpush2.msra.mxu0 0.0
    %2199 = vmatprep.subr.mxu0 0.0
    %2200 = vmatpush2.msra.mxu0 0.0
    %2201 = vmatprep.subr.mxu0 0.0
    %2202 = vmatpush2.msra.mxu0 0.0
    %2203 = vmatprep.subr.mxu0 0.0
    %2204 = vmatpush2.msra.mxu0 0.0
    %2205 = vmatprep.subr.mxu0 0.0
    %2206 = vmatpush2.msra.mxu0 0.0
    %2207 = vmatprep.subr.mxu0 0.0
    %2208 = vmatpush2.msra.mxu0 0.0
    %2209 = vmatprep.subr.mxu0 0.0
    %2210 = vmatpush2.msra.mxu0 0.0
    %2211 = vmatprep.subr.mxu0 0.0
    %2212 = vmatpush2.msra.mxu0 0.0
    %2213 = vmatprep.subr.mxu0 0.0
    %2214 = vmatpush2.msra.mxu0 0.0
    %2215 = vmatprep.subr.mxu0 0.0
    %2216 = vmatpush2.msra.mxu0 0.0
    %2217 = vmatprep.subr.mxu0 0.0
    %2218 = vmatpush2.msra.mxu0 0.0
    %2219 = vmatprep.mubr.f32.mxu0 0.0
    %2220 = vmatmul.mubr.f32.gmra.mxu0 %v125
    %v2221 = vpop.f32.mrf.mxu0
    %v2222 = vadd.f32 %v116, %v2221
    %v2223 = vpop.f32.mrf.mxu0
    %2224 = vmatprep.mubr.f32.mxu0 0.0
    %2225 = vmatmul.mubr.f32.gmra.mxu0 %v128
    %v2226 = vpop.f32.mrf.mxu0
    %v2227 = vadd.f32 %v121, %v2226
    %v2228 = vpop.f32.mrf.mxu0
    %2229 = vdwg.mxu0
    %2230 = vmatprep.subr.mxu0 0.0
    %2231 = vmatpush1.msra.mxu0 0.0
    %2232 = vmatprep.subr.mxu0 0.0
    %2233 = vmatpush1.msra.mxu0 0.0
    %2234 = vmatprep.subr.mxu0 0.0
    %2235 = vmatpush1.msra.mxu0 0.0
    %2236 = vmatprep.subr.mxu0 0.0
    %2237 = vmatpush1.msra.mxu0 0.0
    %2238 = vmatprep.subr.mxu0 0.0
    %2239 = vmatpush1.msra.mxu0 0.0
    %2240 = vmatprep.subr.mxu0 0.0
    %2241 = vmatpush1.msra.mxu0 0.0
    %2242 = vmatprep.subr.mxu0 0.0
    %2243 = vmatpush1.msra.mxu0 0.0
    %2244 = vmatprep.subr.mxu0 0.0
    %2245 = vmatpush1.msra.mxu0 0.0
    %2246 = vmatprep.subr.mxu0 0.0
    %2247 = vmatpush1.msra.mxu0 0.0
    %2248 = vmatprep.subr.mxu0 0.0
    %2249 = vmatpush1.msra.mxu0 0.0
    %2250 = vmatprep.subr.mxu0 0.0
    %2251 = vmatpush1.msra.mxu0 %v88
    %2252 = vmatprep.subr.mxu0 0.0
    %2253 = vmatpush1.msra.mxu0 %v87
    %2254 = vmatprep.subr.mxu0 0.0
    %2255 = vmatpush1.msra.mxu0 %v86
    %2256 = vmatprep.subr.mxu0 0.0
    %2257 = vmatpush1.msra.mxu0 %v85
    %2258 = vmatprep.subr.mxu0 0.0
    %2259 = vmatpush1.msra.mxu0 %v84
    %2260 = vmatprep.subr.mxu0 0.0
    %2261 = vmatpush1.msra.mxu0 %v83
    %2262 = vmatprep.subr.mxu0 0.0
    %2263 = vmatpush2.msra.mxu0 0.0
    %2264 = vmatprep.subr.mxu0 0.0
    %2265 = vmatpush2.msra.mxu0 0.0
    %2266 = vmatprep.subr.mxu0 0.0
    %2267 = vmatpush2.msra.mxu0 0.0
    %2268 = vmatprep.subr.mxu0 0.0
    %2269 = vmatpush2.msra.mxu0 0.0
    %2270 = vmatprep.subr.mxu0 0.0
    %2271 = vmatpush2.msra.mxu0 0.0
    %2272 = vmatprep.subr.mxu0 0.0
    %2273 = vmatpush2.msra.mxu0 0.0
    %2274 = vmatprep.subr.mxu0 0.0
    %2275 = vmatpush2.msra.mxu0 0.0
    %2276 = vmatprep.subr.mxu0 0.0
    %2277 = vmatpush2.msra.mxu0 0.0
    %2278 = vmatprep.subr.mxu0 0.0
    %2279 = vmatpush2.msra.mxu0 0.0
    %2280 = vmatprep.subr.mxu0 0.0
    %2281 = vmatpush2.msra.mxu0 0.0
    %2282 = vmatprep.subr.mxu0 0.0
    %2283 = vmatpush2.msra.mxu0 0.0
    %2284 = vmatprep.subr.mxu0 0.0
    %2285 = vmatpush2.msra.mxu0 0.0
    %2286 = vmatprep.subr.mxu0 0.0
    %2287 = vmatpush2.msra.mxu0 0.0
    %2288 = vmatprep.subr.mxu0 0.0
    %2289 = vmatpush2.msra.mxu0 0.0
    %2290 = vmatprep.subr.mxu0 0.0
    %2291 = vmatpush2.msra.mxu0 0.0
    %2292 = vmatprep.subr.mxu0 0.0
    %2293 = vmatpush2.msra.mxu0 0.0
    %2294 = vmatprep.mubr.f32.mxu0 0.0
    %2295 = vmatmul.mubr.f32.gmra.mxu0 %v125
    %v2296 = vpop.f32.mrf.mxu0
    %v2297 = vadd.f32 %v116, %v2296
    %v2298 = vpop.f32.mrf.mxu0
    %2299 = vmatprep.mubr.f32.mxu0 0.0
    %2300 = vmatmul.mubr.f32.gmra.mxu0 %v128
    %v2301 = vpop.f32.mrf.mxu0
    %v2302 = vadd.f32 %v121, %v2301
    %v2303 = vpop.f32.mrf.mxu0
    %2304 = vdwg.mxu0
    %2305 = vmatprep.subr.mxu0 0.0
    %2306 = vmatpush1.msra.mxu0 0.0
    %2307 = vmatprep.subr.mxu0 0.0
    %2308 = vmatpush1.msra.mxu0 0.0
    %2309 = vmatprep.subr.mxu0 0.0
    %2310 = vmatpush1.msra.mxu0 0.0
    %2311 = vmatprep.subr.mxu0 0.0
    %2312 = vmatpush1.msra.mxu0 0.0
    %2313 = vmatprep.subr.mxu0 0.0
    %2314 = vmatpush1.msra.mxu0 0.0
    %2315 = vmatprep.subr.mxu0 0.0
    %2316 = vmatpush1.msra.mxu0 0.0
    %2317 = vmatprep.subr.mxu0 0.0
    %2318 = vmatpush1.msra.mxu0 0.0
    %2319 = vmatprep.subr.mxu0 0.0
    %2320 = vmatpush1.msra.mxu0 0.0
    %2321 = vmatprep.subr.mxu0 0.0
    %2322 = vmatpush1.msra.mxu0 0.0
    %2323 = vmatprep.subr.mxu0 0.0
    %2324 = vmatpush1.msra.mxu0 0.0
    %2325 = vmatprep.subr.mxu0 0.0
    %2326 = vmatpush1.msra.mxu0 %v90
    %2327 = vmatprep.subr.mxu0 0.0
    %2328 = vmatpush1.msra.mxu0 %v89
    %2329 = vmatprep.subr.mxu0 0.0
    %2330 = vmatpush1.msra.mxu0 %v88
    %2331 = vmatprep.subr.mxu0 0.0
    %2332 = vmatpush1.msra.mxu0 %v87
    %2333 = vmatprep.subr.mxu0 0.0
    %2334 = vmatpush1.msra.mxu0 %v86
    %2335 = vmatprep.subr.mxu0 0.0
    %2336 = vmatpush1.msra.mxu0 %v85
    %2337 = vmatprep.subr.mxu0 0.0
    %2338 = vmatpush2.msra.mxu0 0.0
    %2339 = vmatprep.subr.mxu0 0.0
    %2340 = vmatpush2.msra.mxu0 0.0
    %2341 = vmatprep.subr.mxu0 0.0
    %2342 = vmatpush2.msra.mxu0 0.0
    %2343 = vmatprep.subr.mxu0 0.0
    %2344 = vmatpush2.msra.mxu0 0.0
    %2345 = vmatprep.subr.mxu0 0.0
    %2346 = vmatpush2.msra.mxu0 0.0
    %2347 = vmatprep.subr.mxu0 0.0
    %2348 = vmatpush2.msra.mxu0 0.0
    %2349 = vmatprep.subr.mxu0 0.0
    %2350 = vmatpush2.msra.mxu0 0.0
    %2351 = vmatprep.subr.mxu0 0.0
    %2352 = vmatpush2.msra.mxu0 0.0
    %2353 = vmatprep.subr.mxu0 0.0
    %2354 = vmatpush2.msra.mxu0 0.0
    %2355 = vmatprep.subr.mxu0 0.0
    %2356 = vmatpush2.msra.mxu0 0.0
    %2357 = vmatprep.subr.mxu0 0.0
    %2358 = vmatpush2.msra.mxu0 0.0
    %2359 = vmatprep.subr.mxu0 0.0
    %2360 = vmatpush2.msra.mxu0 0.0
    %2361 = vmatprep.subr.mxu0 0.0
    %2362 = vmatpush2.msra.mxu0 0.0
    %2363 = vmatprep.subr.mxu0 0.0
    %2364 = vmatpush2.msra.mxu0 0.0
    %2365 = vmatprep.subr.mxu0 0.0
    %2366 = vmatpush2.msra.mxu0 0.0
    %2367 = vmatprep.subr.mxu0 0.0
    %2368 = vmatpush2.msra.mxu0 0.0
    %2369 = vmatprep.mubr.f32.mxu0 0.0
    %2370 = vmatmul.mubr.f32.gmra.mxu0 %v125
    %v2371 = vpop.f32.mrf.mxu0
    %v2372 = vadd.f32 %v116, %v2371
    %v2373 = vpop.f32.mrf.mxu0
    %2374 = vmatprep.mubr.f32.mxu0 0.0
    %2375 = vmatmul.mubr.f32.gmra.mxu0 %v128
    %v2376 = vpop.f32.mrf.mxu0
    %v2377 = vadd.f32 %v121, %v2376
    %v2378 = vpop.f32.mrf.mxu0
    %2379 = vdwg.mxu0
    %2380 = vmatprep.subr.mxu0 0.0
    %2381 = vmatpush1.msra.mxu0 0.0
    %2382 = vmatprep.subr.mxu0 0.0
    %2383 = vmatpush1.msra.mxu0 0.0
    %2384 = vmatprep.subr.mxu0 0.0
    %2385 = vmatpush1.msra.mxu0 0.0
    %2386 = vmatprep.subr.mxu0 0.0
    %2387 = vmatpush1.msra.mxu0 0.0
    %2388 = vmatprep.subr.mxu0 0.0
    %2389 = vmatpush1.msra.mxu0 0.0
    %2390 = vmatprep.subr.mxu0 0.0
    %2391 = vmatpush1.msra.mxu0 0.0
    %2392 = vmatprep.subr.mxu0 0.0
    %2393 = vmatpush1.msra.mxu0 0.0
    %2394 = vmatprep.subr.mxu0 0.0
    %2395 = vmatpush1.msra.mxu0 0.0
    %2396 = vmatprep.subr.mxu0 0.0
    %2397 = vmatpush1.msra.mxu0 0.0
    %2398 = vmatprep.subr.mxu0 0.0
    %2399 = vmatpush1.msra.mxu0 0.0
    %2400 = vmatprep.subr.mxu0 0.0
    %2401 = vmatpush1.msra.mxu0 %v92
    %2402 = vmatprep.subr.mxu0 0.0
    %2403 = vmatpush1.msra.mxu0 %v91
    %2404 = vmatprep.subr.mxu0 0.0
    %2405 = vmatpush1.msra.mxu0 %v90
    %2406 = vmatprep.subr.mxu0 0.0
    %2407 = vmatpush1.msra.mxu0 %v89
    %2408 = vmatprep.subr.mxu0 0.0
    %2409 = vmatpush1.msra.mxu0 %v88
    %2410 = vmatprep.subr.mxu0 0.0
    %2411 = vmatpush1.msra.mxu0 %v87
    %2412 = vmatprep.subr.mxu0 0.0
    %2413 = vmatpush2.msra.mxu0 0.0
    %2414 = vmatprep.subr.mxu0 0.0
    %2415 = vmatpush2.msra.mxu0 0.0
    %2416 = vmatprep.subr.mxu0 0.0
    %2417 = vmatpush2.msra.mxu0 0.0
    %2418 = vmatprep.subr.mxu0 0.0
    %2419 = vmatpush2.msra.mxu0 0.0
    %2420 = vmatprep.subr.mxu0 0.0
    %2421 = vmatpush2.msra.mxu0 0.0
    %2422 = vmatprep.subr.mxu0 0.0
    %2423 = vmatpush2.msra.mxu0 0.0
    %2424 = vmatprep.subr.mxu0 0.0
    %2425 = vmatpush2.msra.mxu0 0.0
    %2426 = vmatprep.subr.mxu0 0.0
    %2427 = vmatpush2.msra.mxu0 0.0
    %2428 = vmatprep.subr.mxu0 0.0
    %2429 = vmatpush2.msra.mxu0 0.0
    %2430 = vmatprep.subr.mxu0 0.0
    %2431 = vmatpush2.msra.mxu0 0.0
    %2432 = vmatprep.subr.mxu0 0.0
    %2433 = vmatpush2.msra.mxu0 0.0
    %2434 = vmatprep.subr.mxu0 0.0
    %2435 = vmatpush2.msra.mxu0 0.0
    %2436 = vmatprep.subr.mxu0 0.0
    %2437 = vmatpush2.msra.mxu0 0.0
    %2438 = vmatprep.subr.mxu0 0.0
    %2439 = vmatpush2.msra.mxu0 0.0
    %2440 = vmatprep.subr.mxu0 0.0
    %2441 = vmatpush2.msra.mxu0 0.0
    %2442 = vmatprep.subr.mxu0 0.0
    %2443 = vmatpush2.msra.mxu0 0.0
    %2444 = vmatprep.mubr.f32.mxu0 0.0
    %2445 = vmatmul.mubr.f32.gmra.mxu0 %v125
    %v2446 = vpop.f32.mrf.mxu0
    %v2447 = vadd.f32 %v116, %v2446
    %v2448 = vpop.f32.mrf.mxu0
    %2449 = vmatprep.mubr.f32.mxu0 0.0
    %2450 = vmatmul.mubr.f32.gmra.mxu0 %v128
    %v2451 = vpop.f32.mrf.mxu0
    %v2452 = vadd.f32 %v121, %v2451
    %v2453 = vpop.f32.mrf.mxu0
    %2454 = vdwg.mxu0
    %2455 = vmatprep.subr.mxu0 0.0
    %2456 = vmatpush1.msra.mxu0 0.0
    %2457 = vmatprep.subr.mxu0 0.0
    %2458 = vmatpush1.msra.mxu0 0.0
    %2459 = vmatprep.subr.mxu0 0.0
    %2460 = vmatpush1.msra.mxu0 0.0
    %2461 = vmatprep.subr.mxu0 0.0
    %2462 = vmatpush1.msra.mxu0 0.0
    %2463 = vmatprep.subr.mxu0 0.0
    %2464 = vmatpush1.msra.mxu0 0.0
    %2465 = vmatprep.subr.mxu0 0.0
    %2466 = vmatpush1.msra.mxu0 0.0
    %2467 = vmatprep.subr.mxu0 0.0
    %2468 = vmatpush1.msra.mxu0 0.0
    %2469 = vmatprep.subr.mxu0 0.0
    %2470 = vmatpush1.msra.mxu0 0.0
    %2471 = vmatprep.subr.mxu0 0.0
    %2472 = vmatpush1.msra.mxu0 0.0
    %2473 = vmatprep.subr.mxu0 0.0
    %2474 = vmatpush1.msra.mxu0 0.0
    %2475 = vmatprep.subr.mxu0 0.0
    %2476 = vmatpush1.msra.mxu0 %v94
    %2477 = vmatprep.subr.mxu0 0.0
    %2478 = vmatpush1.msra.mxu0 %v93
    %2479 = vmatprep.subr.mxu0 0.0
    %2480 = vmatpush1.msra.mxu0 %v92
    %2481 = vmatprep.subr.mxu0 0.0
    %2482 = vmatpush1.msra.mxu0 %v91
    %2483 = vmatprep.subr.mxu0 0.0
    %2484 = vmatpush1.msra.mxu0 %v90
    %2485 = vmatprep.subr.mxu0 0.0
    %2486 = vmatpush1.msra.mxu0 %v89
    %2487 = vmatprep.subr.mxu0 0.0
    %2488 = vmatpush2.msra.mxu0 0.0
    %2489 = vmatprep.subr.mxu0 0.0
    %2490 = vmatpush2.msra.mxu0 0.0
    %2491 = vmatprep.subr.mxu0 0.0
    %2492 = vmatpush2.msra.mxu0 0.0
    %2493 = vmatprep.subr.mxu0 0.0
    %2494 = vmatpush2.msra.mxu0 0.0
    %2495 = vmatprep.subr.mxu0 0.0
    %2496 = vmatpush2.msra.mxu0 0.0
    %2497 = vmatprep.subr.mxu0 0.0
    %2498 = vmatpush2.msra.mxu0 0.0
    %2499 = vmatprep.subr.mxu0 0.0
    %2500 = vmatpush2.msra.mxu0 0.0
    %2501 = vmatprep.subr.mxu0 0.0
    %2502 = vmatpush2.msra.mxu0 0.0
    %2503 = vmatprep.subr.mxu0 0.0
    %2504 = vmatpush2.msra.mxu0 0.0
    %2505 = vmatprep.subr.mxu0 0.0
    %2506 = vmatpush2.msra.mxu0 0.0
    %2507 = vmatprep.subr.mxu0 0.0
    %2508 = vmatpush2.msra.mxu0 0.0
    %2509 = vmatprep.subr.mxu0 0.0
    %2510 = vmatpush2.msra.mxu0 0.0
    %2511 = vmatprep.subr.mxu0 0.0
    %2512 = vmatpush2.msra.mxu0 0.0
    %2513 = vmatprep.subr.mxu0 0.0
    %2514 = vmatpush2.msra.mxu0 0.0
    %2515 = vmatprep.subr.mxu0 0.0
    %2516 = vmatpush2.msra.mxu0 0.0
    %2517 = vmatprep.subr.mxu0 0.0
    %2518 = vmatpush2.msra.mxu0 0.0
    %2519 = vmatprep.mubr.f32.mxu0 0.0
    %2520 = vmatmul.mubr.f32.gmra.mxu0 %v125
    %v2521 = vpop.f32.mrf.mxu0
    %v2522 = vadd.f32 %v116, %v2521
    %v2523 = vpop.f32.mrf.mxu0
    %2524 = vmatprep.mubr.f32.mxu0 0.0
    %2525 = vmatmul.mubr.f32.gmra.mxu0 %v128
    %v2526 = vpop.f32.mrf.mxu0
    %v2527 = vadd.f32 %v121, %v2526
    %v2528 = vpop.f32.mrf.mxu0
    %2529 = vdwg.mxu0
    %2530 = vmatprep.subr.mxu0 0.0
    %2531 = vmatpush1.msra.mxu0 0.0
    %2532 = vmatprep.subr.mxu0 0.0
    %2533 = vmatpush1.msra.mxu0 0.0
    %2534 = vmatprep.subr.mxu0 0.0
    %2535 = vmatpush1.msra.mxu0 0.0
    %2536 = vmatprep.subr.mxu0 0.0
    %2537 = vmatpush1.msra.mxu0 0.0
    %2538 = vmatprep.subr.mxu0 0.0
    %2539 = vmatpush1.msra.mxu0 0.0
    %2540 = vmatprep.subr.mxu0 0.0
    %2541 = vmatpush1.msra.mxu0 0.0
    %2542 = vmatprep.subr.mxu0 0.0
    %2543 = vmatpush1.msra.mxu0 0.0
    %2544 = vmatprep.subr.mxu0 0.0
    %2545 = vmatpush1.msra.mxu0 0.0
    %2546 = vmatprep.subr.mxu0 0.0
    %2547 = vmatpush1.msra.mxu0 0.0
    %2548 = vmatprep.subr.mxu0 0.0
    %2549 = vmatpush1.msra.mxu0 0.0
    %2550 = vmatprep.subr.mxu0 0.0
    %2551 = vmatpush1.msra.mxu0 %v96
    %2552 = vmatprep.subr.mxu0 0.0
    %2553 = vmatpush1.msra.mxu0 %v95
    %2554 = vmatprep.subr.mxu0 0.0
    %2555 = vmatpush1.msra.mxu0 %v94
    %2556 = vmatprep.subr.mxu0 0.0
    %2557 = vmatpush1.msra.mxu0 %v93
    %2558 = vmatprep.subr.mxu0 0.0
    %2559 = vmatpush1.msra.mxu0 %v92
    %2560 = vmatprep.subr.mxu0 0.0
    %2561 = vmatpush1.msra.mxu0 %v91
    %2562 = vmatprep.subr.mxu0 0.0
    %2563 = vmatpush2.msra.mxu0 0.0
    %2564 = vmatprep.subr.mxu0 0.0
    %2565 = vmatpush2.msra.mxu0 0.0
    %2566 = vmatprep.subr.mxu0 0.0
    %2567 = vmatpush2.msra.mxu0 0.0
    %2568 = vmatprep.subr.mxu0 0.0
    %2569 = vmatpush2.msra.mxu0 0.0
    %2570 = vmatprep.subr.mxu0 0.0
    %2571 = vmatpush2.msra.mxu0 0.0
    %2572 = vmatprep.subr.mxu0 0.0
    %2573 = vmatpush2.msra.mxu0 0.0
    %2574 = vmatprep.subr.mxu0 0.0
    %2575 = vmatpush2.msra.mxu0 0.0
    %2576 = vmatprep.subr.mxu0 0.0
    %2577 = vmatpush2.msra.mxu0 0.0
    %2578 = vmatprep.subr.mxu0 0.0
    %2579 = vmatpush2.msra.mxu0 0.0
    %2580 = vmatprep.subr.mxu0 0.0
    %2581 = vmatpush2.msra.mxu0 0.0
    %2582 = vmatprep.subr.mxu0 0.0
    %2583 = vmatpush2.msra.mxu0 0.0
    %2584 = vmatprep.subr.mxu0 0.0
    %2585 = vmatpush2.msra.mxu0 0.0
    %2586 = vmatprep.subr.mxu0 0.0
    %2587 = vmatpush2.msra.mxu0 0.0
    %2588 = vmatprep.subr.mxu0 0.0
    %2589 = vmatpush2.msra.mxu0 0.0
    %2590 = vmatprep.subr.mxu0 0.0
    %2591 = vmatpush2.msra.mxu0 0.0
    %2592 = vmatprep.subr.mxu0 0.0
    %2593 = vmatpush2.msra.mxu0 0.0
    %2594 = vmatprep.mubr.f32.mxu0 0.0
    %2595 = vmatmul.mubr.f32.gmra.mxu0 %v125
    %v2596 = vpop.f32.mrf.mxu0
    %v2597 = vadd.f32 %v116, %v2596
    %v2598 = vpop.f32.mrf.mxu0
    %2599 = vmatprep.mubr.f32.mxu0 0.0
    %2600 = vmatmul.mubr.f32.gmra.mxu0 %v128
    %v2601 = vpop.f32.mrf.mxu0
    %v2602 = vadd.f32 %v121, %v2601
    %v2603 = vpop.f32.mrf.mxu0
    %2604 = vdwg.mxu0
    %2605 = vmatprep.subr.mxu0 0.0
    %2606 = vmatpush1.msra.mxu0 0.0
    %2607 = vmatprep.subr.mxu0 0.0
    %2608 = vmatpush1.msra.mxu0 0.0
    %2609 = vmatprep.subr.mxu0 0.0
    %2610 = vmatpush1.msra.mxu0 0.0
    %2611 = vmatprep.subr.mxu0 0.0
    %2612 = vmatpush1.msra.mxu0 0.0
    %2613 = vmatprep.subr.mxu0 0.0
    %2614 = vmatpush1.msra.mxu0 0.0
    %2615 = vmatprep.subr.mxu0 0.0
    %2616 = vmatpush1.msra.mxu0 0.0
    %2617 = vmatprep.subr.mxu0 0.0
    %2618 = vmatpush1.msra.mxu0 0.0
    %2619 = vmatprep.subr.mxu0 0.0
    %2620 = vmatpush1.msra.mxu0 0.0
    %2621 = vmatprep.subr.mxu0 0.0
    %2622 = vmatpush1.msra.mxu0 0.0
    %2623 = vmatprep.subr.mxu0 0.0
    %2624 = vmatpush1.msra.mxu0 0.0
    %2625 = vmatprep.subr.mxu0 0.0
    %2626 = vmatpush1.msra.mxu0 %v98
    %2627 = vmatprep.subr.mxu0 0.0
    %2628 = vmatpush1.msra.mxu0 %v97
    %2629 = vmatprep.subr.mxu0 0.0
    %2630 = vmatpush1.msra.mxu0 %v96
    %2631 = vmatprep.subr.mxu0 0.0
    %2632 = vmatpush1.msra.mxu0 %v95
    %2633 = vmatprep.subr.mxu0 0.0
    %2634 = vmatpush1.msra.mxu0 %v94
    %2635 = vmatprep.subr.mxu0 0.0
    %2636 = vmatpush1.msra.mxu0 %v93
    %2637 = vmatprep.subr.mxu0 0.0
    %2638 = vmatpush2.msra.mxu0 0.0
    %2639 = vmatprep.subr.mxu0 0.0
    %2640 = vmatpush2.msra.mxu0 0.0
    %2641 = vmatprep.subr.mxu0 0.0
    %2642 = vmatpush2.msra.mxu0 0.0
    %2643 = vmatprep.subr.mxu0 0.0
    %2644 = vmatpush2.msra.mxu0 0.0
    %2645 = vmatprep.subr.mxu0 0.0
    %2646 = vmatpush2.msra.mxu0 0.0
    %2647 = vmatprep.subr.mxu0 0.0
    %2648 = vmatpush2.msra.mxu0 0.0
    %2649 = vmatprep.subr.mxu0 0.0
    %2650 = vmatpush2.msra.mxu0 0.0
    %2651 = vmatprep.subr.mxu0 0.0
    %2652 = vmatpush2.msra.mxu0 0.0
    %2653 = vmatprep.subr.mxu0 0.0
    %2654 = vmatpush2.msra.mxu0 0.0
    %2655 = vmatprep.subr.mxu0 0.0
    %2656 = vmatpush2.msra.mxu0 0.0
    %2657 = vmatprep.subr.mxu0 0.0
    %2658 = vmatpush2.msra.mxu0 0.0
    %2659 = vmatprep.subr.mxu0 0.0
    %2660 = vmatpush2.msra.mxu0 0.0
    %2661 = vmatprep.subr.mxu0 0.0
    %2662 = vmatpush2.msra.mxu0 0.0
    %2663 = vmatprep.subr.mxu0 0.0
    %2664 = vmatpush2.msra.mxu0 0.0
    %2665 = vmatprep.subr.mxu0 0.0
    %2666 = vmatpush2.msra.mxu0 0.0
    %2667 = vmatprep.subr.mxu0 0.0
    %2668 = vmatpush2.msra.mxu0 0.0
    %2669 = vmatprep.mubr.f32.mxu0 0.0
    %2670 = vmatmul.mubr.f32.gmra.mxu0 %v125
    %v2671 = vpop.f32.mrf.mxu0
    %v2672 = vadd.f32 %v116, %v2671
    %v2673 = vpop.f32.mrf.mxu0
    %2674 = vmatprep.mubr.f32.mxu0 0.0
    %2675 = vmatmul.mubr.f32.gmra.mxu0 %v128
    %v2676 = vpop.f32.mrf.mxu0
    %v2677 = vadd.f32 %v121, %v2676
    %v2678 = vpop.f32.mrf.mxu0
    %2679 = vdwg.mxu0
    %2680 = vmatprep.subr.mxu0 0.0
    %2681 = vmatpush1.msra.mxu0 0.0
    %2682 = vmatprep.subr.mxu0 0.0
    %2683 = vmatpush1.msra.mxu0 0.0
    %2684 = vmatprep.subr.mxu0 0.0
    %2685 = vmatpush1.msra.mxu0 0.0
    %2686 = vmatprep.subr.mxu0 0.0
    %2687 = vmatpush1.msra.mxu0 0.0
    %2688 = vmatprep.subr.mxu0 0.0
    %2689 = vmatpush1.msra.mxu0 0.0
    %2690 = vmatprep.subr.mxu0 0.0
    %2691 = vmatpush1.msra.mxu0 0.0
    %2692 = vmatprep.subr.mxu0 0.0
    %2693 = vmatpush1.msra.mxu0 0.0
    %2694 = vmatprep.subr.mxu0 0.0
    %2695 = vmatpush1.msra.mxu0 0.0
    %2696 = vmatprep.subr.mxu0 0.0
    %2697 = vmatpush1.msra.mxu0 0.0
    %2698 = vmatprep.subr.mxu0 0.0
    %2699 = vmatpush1.msra.mxu0 0.0
    %2700 = vmatprep.subr.mxu0 0.0
    %2701 = vmatpush1.msra.mxu0 %v100
    %2702 = vmatprep.subr.mxu0 0.0
    %2703 = vmatpush1.msra.mxu0 %v99
    %2704 = vmatprep.subr.mxu0 0.0
    %2705 = vmatpush1.msra.mxu0 %v98
    %2706 = vmatprep.subr.mxu0 0.0
    %2707 = vmatpush1.msra.mxu0 %v97
    %2708 = vmatprep.subr.mxu0 0.0
    %2709 = vmatpush1.msra.mxu0 %v96
    %2710 = vmatprep.subr.mxu0 0.0
    %2711 = vmatpush1.msra.mxu0 %v95
    %2712 = vmatprep.subr.mxu0 0.0
    %2713 = vmatpush2.msra.mxu0 0.0
    %2714 = vmatprep.subr.mxu0 0.0
    %2715 = vmatpush2.msra.mxu0 0.0
    %2716 = vmatprep.subr.mxu0 0.0
    %2717 = vmatpush2.msra.mxu0 0.0
    %2718 = vmatprep.subr.mxu0 0.0
    %2719 = vmatpush2.msra.mxu0 0.0
    %2720 = vmatprep.subr.mxu0 0.0
    %2721 = vmatpush2.msra.mxu0 0.0
    %2722 = vmatprep.subr.mxu0 0.0
    %2723 = vmatpush2.msra.mxu0 0.0
    %2724 = vmatprep.subr.mxu0 0.0
    %2725 = vmatpush2.msra.mxu0 0.0
    %2726 = vmatprep.subr.mxu0 0.0
    %2727 = vmatpush2.msra.mxu0 0.0
    %2728 = vmatprep.subr.mxu0 0.0
    %2729 = vmatpush2.msra.mxu0 0.0
    %2730 = vmatprep.subr.mxu0 0.0
    %2731 = vmatpush2.msra.mxu0 0.0
    %2732 = vmatprep.subr.mxu0 0.0
    %2733 = vmatpush2.msra.mxu0 0.0
    %2734 = vmatprep.subr.mxu0 0.0
    %2735 = vmatpush2.msra.mxu0 0.0
    %2736 = vmatprep.subr.mxu0 0.0
    %2737 = vmatpush2.msra.mxu0 0.0
    %2738 = vmatprep.subr.mxu0 0.0
    %2739 = vmatpush2.msra.mxu0 0.0
    %2740 = vmatprep.subr.mxu0 0.0
    %2741 = vmatpush2.msra.mxu0 0.0
    %2742 = vmatprep.subr.mxu0 0.0
    %2743 = vmatpush2.msra.mxu0 0.0
    %2744 = vmatprep.mubr.f32.mxu0 0.0
    %2745 = vmatmul.mubr.f32.gmra.mxu0 %v125
    %v2746 = vpop.f32.mrf.mxu0
    %v2747 = vadd.f32 %v116, %v2746
    %v2748 = vpop.f32.mrf.mxu0
    %2749 = vmatprep.mubr.f32.mxu0 0.0
    %2750 = vmatmul.mubr.f32.gmra.mxu0 %v128
    %v2751 = vpop.f32.mrf.mxu0
    %v2752 = vadd.f32 %v121, %v2751
    %v2753 = vpop.f32.mrf.mxu0
    %2754 = vdwg.mxu0
    %2755 = vmatprep.subr.mxu0 0.0
    %2756 = vmatpush1.msra.mxu0 0.0
    %2757 = vmatprep.subr.mxu0 0.0
    %2758 = vmatpush1.msra.mxu0 0.0
    %2759 = vmatprep.subr.mxu0 0.0
    %2760 = vmatpush1.msra.mxu0 0.0
    %2761 = vmatprep.subr.mxu0 0.0
    %2762 = vmatpush1.msra.mxu0 0.0
    %2763 = vmatprep.subr.mxu0 0.0
    %2764 = vmatpush1.msra.mxu0 0.0
    %2765 = vmatprep.subr.mxu0 0.0
    %2766 = vmatpush1.msra.mxu0 0.0
    %2767 = vmatprep.subr.mxu0 0.0
    %2768 = vmatpush1.msra.mxu0 0.0
    %2769 = vmatprep.subr.mxu0 0.0
    %2770 = vmatpush1.msra.mxu0 0.0
    %2771 = vmatprep.subr.mxu0 0.0
    %2772 = vmatpush1.msra.mxu0 0.0
    %2773 = vmatprep.subr.mxu0 0.0
    %2774 = vmatpush1.msra.mxu0 0.0
    %2775 = vmatprep.subr.mxu0 0.0
    %2776 = vmatpush1.msra.mxu0 %v102
    %2777 = vmatprep.subr.mxu0 0.0
    %2778 = vmatpush1.msra.mxu0 %v101
    %2779 = vmatprep.subr.mxu0 0.0
    %2780 = vmatpush1.msra.mxu0 %v100
    %2781 = vmatprep.subr.mxu0 0.0
    %2782 = vmatpush1.msra.mxu0 %v99
    %2783 = vmatprep.subr.mxu0 0.0
    %2784 = vmatpush1.msra.mxu0 %v98
    %2785 = vmatprep.subr.mxu0 0.0
    %2786 = vmatpush1.msra.mxu0 %v97
    %2787 = vmatprep.subr.mxu0 0.0
    %2788 = vmatpush2.msra.mxu0 0.0
    %2789 = vmatprep.subr.mxu0 0.0
    %2790 = vmatpush2.msra.mxu0 0.0
    %2791 = vmatprep.subr.mxu0 0.0
    %2792 = vmatpush2.msra.mxu0 0.0
    %2793 = vmatprep.subr.mxu0 0.0
    %2794 = vmatpush2.msra.mxu0 0.0
    %2795 = vmatprep.subr.mxu0 0.0
    %2796 = vmatpush2.msra.mxu0 0.0
    %2797 = vmatprep.subr.mxu0 0.0
    %2798 = vmatpush2.msra.mxu0 0.0
    %2799 = vmatprep.subr.mxu0 0.0
    %2800 = vmatpush2.msra.mxu0 0.0
    %2801 = vmatprep.subr.mxu0 0.0
    %2802 = vmatpush2.msra.mxu0 0.0
    %2803 = vmatprep.subr.mxu0 0.0
    %2804 = vmatpush2.msra.mxu0 0.0
    %2805 = vmatprep.subr.mxu0 0.0
    %2806 = vmatpush2.msra.mxu0 0.0
    %2807 = vmatprep.subr.mxu0 0.0
    %2808 = vmatpush2.msra.mxu0 0.0
    %2809 = vmatprep.subr.mxu0 0.0
    %2810 = vmatpush2.msra.mxu0 0.0
    %2811 = vmatprep.subr.mxu0 0.0
    %2812 = vmatpush2.msra.mxu0 0.0
    %2813 = vmatprep.subr.mxu0 0.0
    %2814 = vmatpush2.msra.mxu0 0.0
    %2815 = vmatprep.subr.mxu0 0.0
    %2816 = vmatpush2.msra.mxu0 0.0
    %2817 = vmatprep.subr.mxu0 0.0
    %2818 = vmatpush2.msra.mxu0 0.0
    %2819 = vmatprep.mubr.f32.mxu0 0.0
    %2820 = vmatmul.mubr.f32.gmra.mxu0 %v125
    %v2821 = vpop.f32.mrf.mxu0
    %v2822 = vadd.f32 %v116, %v2821
    %v2823 = vpop.f32.mrf.mxu0
    %2824 = vmatprep.mubr.f32.mxu0 0.0
    %2825 = vmatmul.mubr.f32.gmra.mxu0 %v128
    %v2826 = vpop.f32.mrf.mxu0
    %v2827 = vadd.f32 %v121, %v2826
    %v2828 = vpop.f32.mrf.mxu0
    %2829 = vdwg.mxu0
    %2830 = vmatprep.subr.mxu0 0.0
    %2831 = vmatpush1.msra.mxu0 0.0
    %2832 = vmatprep.subr.mxu0 0.0
    %2833 = vmatpush1.msra.mxu0 0.0
    %2834 = vmatprep.subr.mxu0 0.0
    %2835 = vmatpush1.msra.mxu0 0.0
    %2836 = vmatprep.subr.mxu0 0.0
    %2837 = vmatpush1.msra.mxu0 0.0
    %2838 = vmatprep.subr.mxu0 0.0
    %2839 = vmatpush1.msra.mxu0 0.0
    %2840 = vmatprep.subr.mxu0 0.0
    %2841 = vmatpush1.msra.mxu0 0.0
    %2842 = vmatprep.subr.mxu0 0.0
    %2843 = vmatpush1.msra.mxu0 0.0
    %2844 = vmatprep.subr.mxu0 0.0
    %2845 = vmatpush1.msra.mxu0 0.0
    %2846 = vmatprep.subr.mxu0 0.0
    %2847 = vmatpush1.msra.mxu0 0.0
    %2848 = vmatprep.subr.mxu0 0.0
    %2849 = vmatpush1.msra.mxu0 0.0
    %2850 = vmatprep.subr.mxu0 0.0
    %2851 = vmatpush1.msra.mxu0 %v104
    %2852 = vmatprep.subr.mxu0 0.0
    %2853 = vmatpush1.msra.mxu0 %v103
    %2854 = vmatprep.subr.mxu0 0.0
    %2855 = vmatpush1.msra.mxu0 %v102
    %2856 = vmatprep.subr.mxu0 0.0
    %2857 = vmatpush1.msra.mxu0 %v101
    %2858 = vmatprep.subr.mxu0 0.0
    %2859 = vmatpush1.msra.mxu0 %v100
    %2860 = vmatprep.subr.mxu0 0.0
    %2861 = vmatpush1.msra.mxu0 %v99
    %2862 = vmatprep.subr.mxu0 0.0
    %2863 = vmatpush2.msra.mxu0 0.0
    %2864 = vmatprep.subr.mxu0 0.0
    %2865 = vmatpush2.msra.mxu0 0.0
    %2866 = vmatprep.subr.mxu0 0.0
    %2867 = vmatpush2.msra.mxu0 0.0
    %2868 = vmatprep.subr.mxu0 0.0
    %2869 = vmatpush2.msra.mxu0 0.0
    %2870 = vmatprep.subr.mxu0 0.0
    %2871 = vmatpush2.msra.mxu0 0.0
    %2872 = vmatprep.subr.mxu0 0.0
    %2873 = vmatpush2.msra.mxu0 0.0
    %2874 = vmatprep.subr.mxu0 0.0
    %2875 = vmatpush2.msra.mxu0 0.0
    %2876 = vmatprep.subr.mxu0 0.0
    %2877 = vmatpush2.msra.mxu0 0.0
    %2878 = vmatprep.subr.mxu0 0.0
    %2879 = vmatpush2.msra.mxu0 0.0
    %2880 = vmatprep.subr.mxu0 0.0
    %2881 = vmatpush2.msra.mxu0 0.0
    %2882 = vmatprep.subr.mxu0 0.0
    %2883 = vmatpush2.msra.mxu0 0.0
    %2884 = vmatprep.subr.mxu0 0.0
    %2885 = vmatpush2.msra.mxu0 0.0
    %2886 = vmatprep.subr.mxu0 0.0
    %2887 = vmatpush2.msra.mxu0 0.0
    %2888 = vmatprep.subr.mxu0 0.0
    %2889 = vmatpush2.msra.mxu0 0.0
    %2890 = vmatprep.subr.mxu0 0.0
    %2891 = vmatpush2.msra.mxu0 0.0
    %2892 = vmatprep.subr.mxu0 0.0
    %2893 = vmatpush2.msra.mxu0 0.0
    %2894 = vmatprep.mubr.f32.mxu0 0.0
    %2895 = vmatmul.mubr.f32.gmra.mxu0 %v125
    %v2896 = vpop.f32.mrf.mxu0
    %v2897 = vadd.f32 %v116, %v2896
    %v2898 = vpop.f32.mrf.mxu0
    %2899 = vmatprep.mubr.f32.mxu0 0.0
    %2900 = vmatmul.mubr.f32.gmra.mxu0 %v128
    %v2901 = vpop.f32.mrf.mxu0
    %v2902 = vadd.f32 %v121, %v2901
    %v2903 = vpop.f32.mrf.mxu0
    %2904 = vdwg.mxu0
    %2905 = vmatprep.subr.mxu0 0.0
    %2906 = vmatpush1.msra.mxu0 0.0
    %2907 = vmatprep.subr.mxu0 0.0
    %2908 = vmatpush1.msra.mxu0 0.0
    %2909 = vmatprep.subr.mxu0 0.0
    %2910 = vmatpush1.msra.mxu0 0.0
    %2911 = vmatprep.subr.mxu0 0.0
    %2912 = vmatpush1.msra.mxu0 0.0
    %2913 = vmatprep.subr.mxu0 0.0
    %2914 = vmatpush1.msra.mxu0 0.0
    %2915 = vmatprep.subr.mxu0 0.0
    %2916 = vmatpush1.msra.mxu0 0.0
    %2917 = vmatprep.subr.mxu0 0.0
    %2918 = vmatpush1.msra.mxu0 0.0
    %2919 = vmatprep.subr.mxu0 0.0
    %2920 = vmatpush1.msra.mxu0 0.0
    %2921 = vmatprep.subr.mxu0 0.0
    %2922 = vmatpush1.msra.mxu0 0.0
    %2923 = vmatprep.subr.mxu0 0.0
    %2924 = vmatpush1.msra.mxu0 0.0
    %2925 = vmatprep.subr.mxu0 0.0
    %2926 = vmatpush1.msra.mxu0 %v106
    %2927 = vmatprep.subr.mxu0 0.0
    %2928 = vmatpush1.msra.mxu0 %v105
    %2929 = vmatprep.subr.mxu0 0.0
    %2930 = vmatpush1.msra.mxu0 %v104
    %2931 = vmatprep.subr.mxu0 0.0
    %2932 = vmatpush1.msra.mxu0 %v103
    %2933 = vmatprep.subr.mxu0 0.0
    %2934 = vmatpush1.msra.mxu0 %v102
    %2935 = vmatprep.subr.mxu0 0.0
    %2936 = vmatpush1.msra.mxu0 %v101
    %2937 = vmatprep.subr.mxu0 0.0
    %2938 = vmatpush2.msra.mxu0 0.0
    %2939 = vmatprep.subr.mxu0 0.0
    %2940 = vmatpush2.msra.mxu0 0.0
    %2941 = vmatprep.subr.mxu0 0.0
    %2942 = vmatpush2.msra.mxu0 0.0
    %2943 = vmatprep.subr.mxu0 0.0
    %2944 = vmatpush2.msra.mxu0 0.0
    %2945 = vmatprep.subr.mxu0 0.0
    %2946 = vmatpush2.msra.mxu0 0.0
    %2947 = vmatprep.subr.mxu0 0.0
    %2948 = vmatpush2.msra.mxu0 0.0
    %2949 = vmatprep.subr.mxu0 0.0
    %2950 = vmatpush2.msra.mxu0 0.0
    %2951 = vmatprep.subr.mxu0 0.0
    %2952 = vmatpush2.msra.mxu0 0.0
    %2953 = vmatprep.subr.mxu0 0.0
    %2954 = vmatpush2.msra.mxu0 0.0
    %2955 = vmatprep.subr.mxu0 0.0
    %2956 = vmatpush2.msra.mxu0 0.0
    %2957 = vmatprep.subr.mxu0 0.0
    %2958 = vmatpush2.msra.mxu0 0.0
    %2959 = vmatprep.subr.mxu0 0.0
    %2960 = vmatpush2.msra.mxu0 0.0
    %2961 = vmatprep.subr.mxu0 0.0
    %2962 = vmatpush2.msra.mxu0 0.0
    %2963 = vmatprep.subr.mxu0 0.0
    %2964 = vmatpush2.msra.mxu0 0.0
    %2965 = vmatprep.subr.mxu0 0.0
    %2966 = vmatpush2.msra.mxu0 0.0
    %2967 = vmatprep.subr.mxu0 0.0
    %2968 = vmatpush2.msra.mxu0 0.0
    %2969 = vmatprep.mubr.f32.mxu0 0.0
    %2970 = vmatmul.mubr.f32.gmra.mxu0 %v125
    %v2971 = vpop.f32.mrf.mxu0
    %v2972 = vadd.f32 %v116, %v2971
    %v2973 = vpop.f32.mrf.mxu0
    %2974 = vmatprep.mubr.f32.mxu0 0.0
    %2975 = vmatmul.mubr.f32.gmra.mxu0 %v128
    %v2976 = vpop.f32.mrf.mxu0
    %v2977 = vadd.f32 %v121, %v2976
    %v2978 = vpop.f32.mrf.mxu0
    %2979 = vdwg.mxu0
    %2980 = vmatprep.subr.mxu0 0.0
    %2981 = vmatpush1.msra.mxu0 0.0
    %2982 = vmatprep.subr.mxu0 0.0
    %2983 = vmatpush1.msra.mxu0 0.0
    %2984 = vmatprep.subr.mxu0 0.0
    %2985 = vmatpush1.msra.mxu0 0.0
    %2986 = vmatprep.subr.mxu0 0.0
    %2987 = vmatpush1.msra.mxu0 0.0
    %2988 = vmatprep.subr.mxu0 0.0
    %2989 = vmatpush1.msra.mxu0 0.0
    %2990 = vmatprep.subr.mxu0 0.0
    %2991 = vmatpush1.msra.mxu0 0.0
    %2992 = vmatprep.subr.mxu0 0.0
    %2993 = vmatpush1.msra.mxu0 0.0
    %2994 = vmatprep.subr.mxu0 0.0
    %2995 = vmatpush1.msra.mxu0 0.0
    %2996 = vmatprep.subr.mxu0 0.0
    %2997 = vmatpush1.msra.mxu0 0.0
    %2998 = vmatprep.subr.mxu0 0.0
    %2999 = vmatpush1.msra.mxu0 0.0
    %3000 = vmatprep.subr.mxu0 0.0
    %3001 = vmatpush1.msra.mxu0 %v108
    %3002 = vmatprep.subr.mxu0 0.0
    %3003 = vmatpush1.msra.mxu0 %v107
    %3004 = vmatprep.subr.mxu0 0.0
    %3005 = vmatpush1.msra.mxu0 %v106
    %3006 = vmatprep.subr.mxu0 0.0
    %3007 = vmatpush1.msra.mxu0 %v105
    %3008 = vmatprep.subr.mxu0 0.0
    %3009 = vmatpush1.msra.mxu0 %v104
    %3010 = vmatprep.subr.mxu0 0.0
    %3011 = vmatpush1.msra.mxu0 %v103
    %3012 = vmatprep.subr.mxu0 0.0
    %3013 = vmatpush2.msra.mxu0 0.0
    %3014 = vmatprep.subr.mxu0 0.0
    %3015 = vmatpush2.msra.mxu0 0.0
    %3016 = vmatprep.subr.mxu0 0.0
    %3017 = vmatpush2.msra.mxu0 0.0
    %3018 = vmatprep.subr.mxu0 0.0
    %3019 = vmatpush2.msra.mxu0 0.0
    %3020 = vmatprep.subr.mxu0 0.0
    %3021 = vmatpush2.msra.mxu0 0.0
    %3022 = vmatprep.subr.mxu0 0.0
    %3023 = vmatpush2.msra.mxu0 0.0
    %3024 = vmatprep.subr.mxu0 0.0
    %3025 = vmatpush2.msra.mxu0 0.0
    %3026 = vmatprep.subr.mxu0 0.0
    %3027 = vmatpush2.msra.mxu0 0.0
    %3028 = vmatprep.subr.mxu0 0.0
    %3029 = vmatpush2.msra.mxu0 0.0
    %3030 = vmatprep.subr.mxu0 0.0
    %3031 = vmatpush2.msra.mxu0 0.0
    %3032 = vmatprep.subr.mxu0 0.0
    %3033 = vmatpush2.msra.mxu0 0.0
    %3034 = vmatprep.subr.mxu0 0.0
    %3035 = vmatpush2.msra.mxu0 0.0
    %3036 = vmatprep.subr.mxu0 0.0
    %3037 = vmatpush2.msra.mxu0 0.0
    %3038 = vmatprep.subr.mxu0 0.0
    %3039 = vmatpush2.msra.mxu0 0.0
    %3040 = vmatprep.subr.mxu0 0.0
    %3041 = vmatpush2.msra.mxu0 0.0
    %3042 = vmatprep.subr.mxu0 0.0
    %3043 = vmatpush2.msra.mxu0 0.0
    %3044 = vmatprep.mubr.f32.mxu0 0.0
    %3045 = vmatmul.mubr.f32.gmra.mxu0 %v125
    %v3046 = vpop.f32.mrf.mxu0
    %v3047 = vadd.f32 %v116, %v3046
    %v3048 = vpop.f32.mrf.mxu0
    %3049 = vmatprep.mubr.f32.mxu0 0.0
    %3050 = vmatmul.mubr.f32.gmra.mxu0 %v128
    %v3051 = vpop.f32.mrf.mxu0
    %v3052 = vadd.f32 %v121, %v3051
    %v3053 = vpop.f32.mrf.mxu0
    %3054 = vdwg.mxu0
    %3055 = vmatprep.subr.mxu0 0.0
    %3056 = vmatpush1.msra.mxu0 0.0
    %3057 = vmatprep.subr.mxu0 0.0
    %3058 = vmatpush1.msra.mxu0 0.0
    %3059 = vmatprep.subr.mxu0 0.0
    %3060 = vmatpush1.msra.mxu0 0.0
    %3061 = vmatprep.subr.mxu0 0.0
    %3062 = vmatpush1.msra.mxu0 0.0
    %3063 = vmatprep.subr.mxu0 0.0
    %3064 = vmatpush1.msra.mxu0 0.0
    %3065 = vmatprep.subr.mxu0 0.0
    %3066 = vmatpush1.msra.mxu0 0.0
    %3067 = vmatprep.subr.mxu0 0.0
    %3068 = vmatpush1.msra.mxu0 0.0
    %3069 = vmatprep.subr.mxu0 0.0
    %3070 = vmatpush1.msra.mxu0 0.0
    %3071 = vmatprep.subr.mxu0 0.0
    %3072 = vmatpush1.msra.mxu0 0.0
    %3073 = vmatprep.subr.mxu0 0.0
    %3074 = vmatpush1.msra.mxu0 0.0
    %3075 = vmatprep.subr.mxu0 0.0
    %3076 = vmatpush1.msra.mxu0 0.0
    %3077 = vmatprep.subr.mxu0 0.0
    %3078 = vmatpush1.msra.mxu0 0.0
    %3079 = vmatprep.subr.mxu0 0.0
    %3080 = vmatpush1.msra.mxu0 %v108
    %3081 = vmatprep.subr.mxu0 0.0
    %3082 = vmatpush1.msra.mxu0 %v107
    %3083 = vmatprep.subr.mxu0 0.0
    %3084 = vmatpush1.msra.mxu0 %v106
    %3085 = vmatprep.subr.mxu0 0.0
    %3086 = vmatpush1.msra.mxu0 %v105
    %3087 = vmatprep.subr.mxu0 0.0
    %3088 = vmatpush2.msra.mxu0 0.0
    %3089 = vmatprep.subr.mxu0 0.0
    %3090 = vmatpush2.msra.mxu0 0.0
    %3091 = vmatprep.subr.mxu0 0.0
    %3092 = vmatpush2.msra.mxu0 0.0
    %3093 = vmatprep.subr.mxu0 0.0
    %3094 = vmatpush2.msra.mxu0 0.0
    %3095 = vmatprep.subr.mxu0 0.0
    %3096 = vmatpush2.msra.mxu0 0.0
    %3097 = vmatprep.subr.mxu0 0.0
    %3098 = vmatpush2.msra.mxu0 0.0
    %3099 = vmatprep.subr.mxu0 0.0
    %3100 = vmatpush2.msra.mxu0 0.0
    %3101 = vmatprep.subr.mxu0 0.0
    %3102 = vmatpush2.msra.mxu0 0.0
    %3103 = vmatprep.subr.mxu0 0.0
    %3104 = vmatpush2.msra.mxu0 0.0
    %3105 = vmatprep.subr.mxu0 0.0
    %3106 = vmatpush2.msra.mxu0 0.0
    %3107 = vmatprep.subr.mxu0 0.0
    %3108 = vmatpush2.msra.mxu0 0.0
    %3109 = vmatprep.subr.mxu0 0.0
    %3110 = vmatpush2.msra.mxu0 0.0
    %3111 = vmatprep.subr.mxu0 0.0
    %3112 = vmatpush2.msra.mxu0 0.0
    %3113 = vmatprep.subr.mxu0 0.0
    %3114 = vmatpush2.msra.mxu0 0.0
    %3115 = vmatprep.subr.mxu0 0.0
    %3116 = vmatpush2.msra.mxu0 0.0
    %3117 = vmatprep.subr.mxu0 0.0
    %3118 = vmatpush2.msra.mxu0 0.0
    %3119 = vmatprep.mubr.f32.mxu0 0.0
    %3120 = vmatmul.mubr.f32.gmra.mxu0 %v125
    %v3121 = vpop.f32.mrf.mxu0
    %v3122 = vadd.f32 %v116, %v3121
    %v3123 = vpop.f32.mrf.mxu0
    %3124 = vmatprep.mubr.f32.mxu0 0.0
    %3125 = vmatmul.mubr.f32.gmra.mxu0 %v128
    %v3126 = vpop.f32.mrf.mxu0
    %v3127 = vadd.f32 %v121, %v3126
    %v3128 = vpop.f32.mrf.mxu0
    %3129 = vdwg.mxu0
    %v3130 = vmax.f32 %v197, 0.0
    %v3131 = vmax.f32 %v202, 0.0
    %v3132 = vmax.f32 %v272, 0.0
    %v3133 = vmax.f32 %v277, 0.0
    %v3134 = vmax.f32 %v347, 0.0
    %v3135 = vmax.f32 %v352, 0.0
    %v3136 = vmax.f32 %v422, 0.0
    %v3137 = vmax.f32 %v427, 0.0
    %v3138 = vmax.f32 %v497, 0.0
    %v3139 = vmax.f32 %v502, 0.0
    %v3140 = vmax.f32 %v572, 0.0
    %v3141 = vmax.f32 %v577, 0.0
    %v3142 = vmax.f32 %v647, 0.0
    %v3143 = vmax.f32 %v652, 0.0
    %v3144 = vmax.f32 %v722, 0.0
    %v3145 = vmax.f32 %v727, 0.0
    %v3146 = vmax.f32 %v797, 0.0
    %v3147 = vmax.f32 %v802, 0.0
    %v3148 = vmax.f32 %v872, 0.0
    %v3149 = vmax.f32 %v877, 0.0
    %v3150 = vmax.f32 %v947, 0.0
    %v3151 = vmax.f32 %v952, 0.0
    %v3152 = vmax.f32 %v1022, 0.0
    %v3153 = vmax.f32 %v1027, 0.0
    %v3154 = vmax.f32 %v1097, 0.0
    %v3155 = vmax.f32 %v1102, 0.0
    %v3156 = vmax.f32 %v1172, 0.0
    %v3157 = vmax.f32 %v1177, 0.0
    %v3158 = vmax.f32 %v1247, 0.0
    %v3159 = vmax.f32 %v1252, 0.0
    %v3160 = vmax.f32 %v1322, 0.0
    %v3161 = vmax.f32 %v1327, 0.0
    %v3162 = vmax.f32 %v1397, 0.0
    %v3163 = vmax.f32 %v1402, 0.0
    %v3164 = vmax.f32 %v1472, 0.0
    %v3165 = vmax.f32 %v1477, 0.0
    %v3166 = vmax.f32 %v1547, 0.0
    %v3167 = vmax.f32 %v1552, 0.0
    %v3168 = vmax.f32 %v1622, 0.0
    %v3169 = vmax.f32 %v1627, 0.0
    %v3170 = vmax.f32 %v1697, 0.0
    %v3171 = vmax.f32 %v1702, 0.0
    %v3172 = vmax.f32 %v1772, 0.0
    %v3173 = vmax.f32 %v1777, 0.0
    %v3174 = vmax.f32 %v1847, 0.0
    %v3175 = vmax.f32 %v1852, 0.0
    %v3176 = vmax.f32 %v1922, 0.0
    %v3177 = vmax.f32 %v1927, 0.0
    %v3178 = vmax.f32 %v1997, 0.0
    %v3179 = vmax.f32 %v2002, 0.0
    %v3180 = vmax.f32 %v2072, 0.0
    %v3181 = vmax.f32 %v2077, 0.0
    %v3182 = vmax.f32 %v2147, 0.0
    %v3183 = vmax.f32 %v2152, 0.0
    %v3184 = vmax.f32 %v2222, 0.0
    %v3185 = vmax.f32 %v2227, 0.0
    %v3186 = vmax.f32 %v2297, 0.0
    %v3187 = vmax.f32 %v2302, 0.0
    %v3188 = vmax.f32 %v2372, 0.0
    %v3189 = vmax.f32 %v2377, 0.0
    %v3190 = vmax.f32 %v2447, 0.0
    %v3191 = vmax.f32 %v2452, 0.0
    %v3192 = vmax.f32 %v2522, 0.0
    %v3193 = vmax.f32 %v2527, 0.0
    %v3194 = vmax.f32 %v2597, 0.0
    %v3195 = vmax.f32 %v2602, 0.0
    %v3196 = vmax.f32 %v2672, 0.0
    %v3197 = vmax.f32 %v2677, 0.0
    %v3198 = vmax.f32 %v2747, 0.0
    %v3199 = vmax.f32 %v2752, 0.0
    %v3200 = vmax.f32 %v2822, 0.0
    %v3201 = vmax.f32 %v2827, 0.0
    %v3202 = vmax.f32 %v2897, 0.0
    %v3203 = vmax.f32 %v2902, 0.0
    %v3204 = vmax.f32 %v2972, 0.0
    %v3205 = vmax.f32 %v2977, 0.0
    %v3206 = vmax.f32 %v3047, 0.0
    %v3207 = vmax.f32 %v3052, 0.0
    %v3208 = vmax.f32 %v3122, 0.0
    %v3209 = vmax.f32 %v3127, 0.0
    %v3210 = vmax.f32 %v3130, %v3132
    %v3211 = vmax.f32 %v3131, %v3133
    %v3212 = vmax.f32 %v3134, %v3136
    %v3213 = vmax.f32 %v3135, %v3137
    %v3214 = vmax.f32 %v3138, %v3140
    %v3215 = vmax.f32 %v3139, %v3141
    %v3216 = vmax.f32 %v3142, %v3144
    %v3217 = vmax.f32 %v3143, %v3145
    %v3218 = vmax.f32 %v3146, %v3148
    %v3219 = vmax.f32 %v3147, %v3149
    %v3220 = vmax.f32 %v3150, %v3152
    %v3221 = vmax.f32 %v3151, %v3153
    %v3222 = vmax.f32 %v3154, %v3156
    %v3223 = vmax.f32 %v3155, %v3157
    %v3224 = vmax.f32 %v3158, %v3160
    %v3225 = vmax.f32 %v3159, %v3161
    %v3226 = vmax.f32 %v3162, %v3164
    %v3227 = vmax.f32 %v3163, %v3165
    %v3228 = vmax.f32 %v3166, %v3168
    %v3229 = vmax.f32 %v3167, %v3169
    %v3230 = vmax.f32 %v3170, %v3172
    %v3231 = vmax.f32 %v3171, %v3173
    %v3232 = vmax.f32 %v3174, %v3176
    %v3233 = vmax.f32 %v3175, %v3177
    %v3234 = vmax.f32 %v3178, %v3180
    %v3235 = vmax.f32 %v3179, %v3181
    %v3236 = vmax.f32 %v3182, %v3184
    %v3237 = vmax.f32 %v3183, %v3185
    %v3238 = vmax.f32 %v3186, %v3188
    %v3239 = vmax.f32 %v3187, %v3189
    %v3240 = vmax.f32 %v3190, %v3192
    %v3241 = vmax.f32 %v3191, %v3193
    %v3242 = vmax.f32 %v3194, %v3196
    %v3243 = vmax.f32 %v3195, %v3197
    %v3244 = vmax.f32 %v3198, %v3200
    %v3245 = vmax.f32 %v3199, %v3201
    %v3246 = vmax.f32 %v3202, %v3204
    %v3247 = vmax.f32 %v3203, %v3205
    %v3248 = vmax.f32 %v3206, %v3208
    %v3249 = vmax.f32 %v3207, %v3209
    %s3250 = scalar_lea.vmem %s1, 16
    %v3251 = vld [vmem:[%s3250] sm:$0xff]
    %v3252 = vld [vmem:[%s3250 + $0x8] sm:$0xff]
    %s3253 = scalar_lea.vmem %s2, 16
    %v3254 = vld [vmem:[%s3253] sm:$0xff]
    %v3255 = vld [vmem:[%s3253 + $0x8] sm:$0xff]
    %3257 = vset.pattern.permute.xlu0 0
    %3258 = vperm.xlu0 %3257, %v3254
    %v3259 = vpop.permute.xlu0 %3258
    %3262 = vset.pattern.permute.xlu0 0
    %3263 = vperm.xlu0 %3262, %v3255
    %v3264 = vpop.permute.xlu0 %3263
    %v3267 = vsel %vm123, %v3251, 0
    %v3270 = vsel %vm123, %v3252, 0
    %3272 = vmatprep.subr.mxu0 0.0
    %3273 = vmatpush1.msra.mxu0 0.0
    %3274 = vmatprep.subr.mxu0 0.0
    %3275 = vmatpush1.msra.mxu0 0.0
    %3276 = vmatprep.subr.mxu0 0.0
    %3277 = vmatpush1.msra.mxu0 0.0
    %3278 = vmatprep.subr.mxu0 0.0
    %3279 = vmatpush1.msra.mxu0 0.0
    %3280 = vmatprep.subr.mxu0 0.0
    %3281 = vmatpush1.msra.mxu0 0.0
    %3282 = vmatprep.subr.mxu0 0.0
    %3283 = vmatpush1.msra.mxu0 0.0
    %3284 = vmatprep.subr.mxu0 0.0
    %3285 = vmatpush1.msra.mxu0 0.0
    %3286 = vmatprep.subr.mxu0 0.0
    %3287 = vmatpush1.msra.mxu0 0.0
    %3288 = vmatprep.subr.mxu0 0.0
    %3289 = vmatpush1.msra.mxu0 0.0
    %3290 = vmatprep.subr.mxu0 0.0
    %3291 = vmatpush1.msra.mxu0 0.0
    %3292 = vmatprep.subr.mxu0 0.0
    %3293 = vmatpush1.msra.mxu0 %v3213
    %3294 = vmatprep.subr.mxu0 0.0
    %3295 = vmatpush1.msra.mxu0 %v3212
    %3296 = vmatprep.subr.mxu0 0.0
    %3297 = vmatpush1.msra.mxu0 %v3211
    %3298 = vmatprep.subr.mxu0 0.0
    %3299 = vmatpush1.msra.mxu0 %v3210
    %3300 = vmatprep.subr.mxu0 0.0
    %3301 = vmatpush1.msra.mxu0 0.0
    %3302 = vmatprep.subr.mxu0 0.0
    %3303 = vmatpush1.msra.mxu0 0.0
    %3304 = vmatprep.subr.mxu0 0.0
    %3305 = vmatpush2.msra.mxu0 0.0
    %3306 = vmatprep.subr.mxu0 0.0
    %3307 = vmatpush2.msra.mxu0 0.0
    %3308 = vmatprep.subr.mxu0 0.0
    %3309 = vmatpush2.msra.mxu0 0.0
    %3310 = vmatprep.subr.mxu0 0.0
    %3311 = vmatpush2.msra.mxu0 0.0
    %3312 = vmatprep.subr.mxu0 0.0
    %3313 = vmatpush2.msra.mxu0 0.0
    %3314 = vmatprep.subr.mxu0 0.0
    %3315 = vmatpush2.msra.mxu0 0.0
    %3316 = vmatprep.subr.mxu0 0.0
    %3317 = vmatpush2.msra.mxu0 0.0
    %3318 = vmatprep.subr.mxu0 0.0
    %3319 = vmatpush2.msra.mxu0 0.0
    %3320 = vmatprep.subr.mxu0 0.0
    %3321 = vmatpush2.msra.mxu0 0.0
    %3322 = vmatprep.subr.mxu0 0.0
    %3323 = vmatpush2.msra.mxu0 0.0
    %3324 = vmatprep.subr.mxu0 0.0
    %3325 = vmatpush2.msra.mxu0 0.0
    %3326 = vmatprep.subr.mxu0 0.0
    %3327 = vmatpush2.msra.mxu0 0.0
    %3328 = vmatprep.subr.mxu0 0.0
    %3329 = vmatpush2.msra.mxu0 0.0
    %3330 = vmatprep.subr.mxu0 0.0
    %3331 = vmatpush2.msra.mxu0 0.0
    %3332 = vmatprep.subr.mxu0 0.0
    %3333 = vmatpush2.msra.mxu0 0.0
    %3334 = vmatprep.subr.mxu0 0.0
    %3335 = vmatpush2.msra.mxu0 0.0
    %3336 = vmatprep.mubr.f32.mxu0 0.0
    %3337 = vmatmul.mubr.f32.gmra.mxu0 %v3267
    %v3338 = vpop.f32.mrf.mxu0
    %v3339 = vadd.f32 %v3259, %v3338
    %v3340 = vpop.f32.mrf.mxu0
    %3341 = vmatprep.mubr.f32.mxu0 0.0
    %3342 = vmatmul.mubr.f32.gmra.mxu0 %v3270
    %v3343 = vpop.f32.mrf.mxu0
    %v3344 = vadd.f32 %v3264, %v3343
    %v3345 = vpop.f32.mrf.mxu0
    %3346 = vdwg.mxu0
    %3347 = vmatprep.subr.mxu0 0.0
    %3348 = vmatpush1.msra.mxu0 0.0
    %3349 = vmatprep.subr.mxu0 0.0
    %3350 = vmatpush1.msra.mxu0 0.0
    %3351 = vmatprep.subr.mxu0 0.0
    %3352 = vmatpush1.msra.mxu0 0.0
    %3353 = vmatprep.subr.mxu0 0.0
    %3354 = vmatpush1.msra.mxu0 0.0
    %3355 = vmatprep.subr.mxu0 0.0
    %3356 = vmatpush1.msra.mxu0 0.0
    %3357 = vmatprep.subr.mxu0 0.0
    %3358 = vmatpush1.msra.mxu0 0.0
    %3359 = vmatprep.subr.mxu0 0.0
    %3360 = vmatpush1.msra.mxu0 0.0
    %3361 = vmatprep.subr.mxu0 0.0
    %3362 = vmatpush1.msra.mxu0 0.0
    %3363 = vmatprep.subr.mxu0 0.0
    %3364 = vmatpush1.msra.mxu0 0.0
    %3365 = vmatprep.subr.mxu0 0.0
    %3366 = vmatpush1.msra.mxu0 0.0
    %3367 = vmatprep.subr.mxu0 0.0
    %3368 = vmatpush1.msra.mxu0 %v3215
    %3369 = vmatprep.subr.mxu0 0.0
    %3370 = vmatpush1.msra.mxu0 %v3214
    %3371 = vmatprep.subr.mxu0 0.0
    %3372 = vmatpush1.msra.mxu0 %v3213
    %3373 = vmatprep.subr.mxu0 0.0
    %3374 = vmatpush1.msra.mxu0 %v3212
    %3375 = vmatprep.subr.mxu0 0.0
    %3376 = vmatpush1.msra.mxu0 %v3211
    %3377 = vmatprep.subr.mxu0 0.0
    %3378 = vmatpush1.msra.mxu0 %v3210
    %3379 = vmatprep.subr.mxu0 0.0
    %3380 = vmatpush2.msra.mxu0 0.0
    %3381 = vmatprep.subr.mxu0 0.0
    %3382 = vmatpush2.msra.mxu0 0.0
    %3383 = vmatprep.subr.mxu0 0.0
    %3384 = vmatpush2.msra.mxu0 0.0
    %3385 = vmatprep.subr.mxu0 0.0
    %3386 = vmatpush2.msra.mxu0 0.0
    %3387 = vmatprep.subr.mxu0 0.0
    %3388 = vmatpush2.msra.mxu0 0.0
    %3389 = vmatprep.subr.mxu0 0.0
    %3390 = vmatpush2.msra.mxu0 0.0
    %3391 = vmatprep.subr.mxu0 0.0
    %3392 = vmatpush2.msra.mxu0 0.0
    %3393 = vmatprep.subr.mxu0 0.0
    %3394 = vmatpush2.msra.mxu0 0.0
    %3395 = vmatprep.subr.mxu0 0.0
    %3396 = vmatpush2.msra.mxu0 0.0
    %3397 = vmatprep.subr.mxu0 0.0
    %3398 = vmatpush2.msra.mxu0 0.0
    %3399 = vmatprep.subr.mxu0 0.0
    %3400 = vmatpush2.msra.mxu0 0.0
    %3401 = vmatprep.subr.mxu0 0.0
    %3402 = vmatpush2.msra.mxu0 0.0
    %3403 = vmatprep.subr.mxu0 0.0
    %3404 = vmatpush2.msra.mxu0 0.0
    %3405 = vmatprep.subr.mxu0 0.0
    %3406 = vmatpush2.msra.mxu0 0.0
    %3407 = vmatprep.subr.mxu0 0.0
    %3408 = vmatpush2.msra.mxu0 0.0
    %3409 = vmatprep.subr.mxu0 0.0
    %3410 = vmatpush2.msra.mxu0 0.0
    %3411 = vmatprep.mubr.f32.mxu0 0.0
    %3412 = vmatmul.mubr.f32.gmra.mxu0 %v3267
    %v3413 = vpop.f32.mrf.mxu0
    %v3414 = vadd.f32 %v3259, %v3413
    %v3415 = vpop.f32.mrf.mxu0
    %3416 = vmatprep.mubr.f32.mxu0 0.0
    %3417 = vmatmul.mubr.f32.gmra.mxu0 %v3270
    %v3418 = vpop.f32.mrf.mxu0
    %v3419 = vadd.f32 %v3264, %v3418
    %v3420 = vpop.f32.mrf.mxu0
    %3421 = vdwg.mxu0
    %3422 = vmatprep.subr.mxu0 0.0
    %3423 = vmatpush1.msra.mxu0 0.0
    %3424 = vmatprep.subr.mxu0 0.0
    %3425 = vmatpush1.msra.mxu0 0.0
    %3426 = vmatprep.subr.mxu0 0.0
    %3427 = vmatpush1.msra.mxu0 0.0
    %3428 = vmatprep.subr.mxu0 0.0
    %3429 = vmatpush1.msra.mxu0 0.0
    %3430 = vmatprep.subr.mxu0 0.0
    %3431 = vmatpush1.msra.mxu0 0.0
    %3432 = vmatprep.subr.mxu0 0.0
    %3433 = vmatpush1.msra.mxu0 0.0
    %3434 = vmatprep.subr.mxu0 0.0
    %3435 = vmatpush1.msra.mxu0 0.0
    %3436 = vmatprep.subr.mxu0 0.0
    %3437 = vmatpush1.msra.mxu0 0.0
    %3438 = vmatprep.subr.mxu0 0.0
    %3439 = vmatpush1.msra.mxu0 0.0
    %3440 = vmatprep.subr.mxu0 0.0
    %3441 = vmatpush1.msra.mxu0 0.0
    %3442 = vmatprep.subr.mxu0 0.0
    %3443 = vmatpush1.msra.mxu0 %v3217
    %3444 = vmatprep.subr.mxu0 0.0
    %3445 = vmatpush1.msra.mxu0 %v3216
    %3446 = vmatprep.subr.mxu0 0.0
    %3447 = vmatpush1.msra.mxu0 %v3215
    %3448 = vmatprep.subr.mxu0 0.0
    %3449 = vmatpush1.msra.mxu0 %v3214
    %3450 = vmatprep.subr.mxu0 0.0
    %3451 = vmatpush1.msra.mxu0 %v3213
    %3452 = vmatprep.subr.mxu0 0.0
    %3453 = vmatpush1.msra.mxu0 %v3212
    %3454 = vmatprep.subr.mxu0 0.0
    %3455 = vmatpush2.msra.mxu0 0.0
    %3456 = vmatprep.subr.mxu0 0.0
    %3457 = vmatpush2.msra.mxu0 0.0
    %3458 = vmatprep.subr.mxu0 0.0
    %3459 = vmatpush2.msra.mxu0 0.0
    %3460 = vmatprep.subr.mxu0 0.0
    %3461 = vmatpush2.msra.mxu0 0.0
    %3462 = vmatprep.subr.mxu0 0.0
    %3463 = vmatpush2.msra.mxu0 0.0
    %3464 = vmatprep.subr.mxu0 0.0
    %3465 = vmatpush2.msra.mxu0 0.0
    %3466 = vmatprep.subr.mxu0 0.0
    %3467 = vmatpush2.msra.mxu0 0.0
    %3468 = vmatprep.subr.mxu0 0.0
    %3469 = vmatpush2.msra.mxu0 0.0
    %3470 = vmatprep.subr.mxu0 0.0
    %3471 = vmatpush2.msra.mxu0 0.0
    %3472 = vmatprep.subr.mxu0 0.0
    %3473 = vmatpush2.msra.mxu0 0.0
    %3474 = vmatprep.subr.mxu0 0.0
    %3475 = vmatpush2.msra.mxu0 0.0
    %3476 = vmatprep.subr.mxu0 0.0
    %3477 = vmatpush2.msra.mxu0 0.0
    %3478 = vmatprep.subr.mxu0 0.0
    %3479 = vmatpush2.msra.mxu0 0.0
    %3480 = vmatprep.subr.mxu0 0.0
    %3481 = vmatpush2.msra.mxu0 0.0
    %3482 = vmatprep.subr.mxu0 0.0
    %3483 = vmatpush2.msra.mxu0 0.0
    %3484 = vmatprep.subr.mxu0 0.0
    %3485 = vmatpush2.msra.mxu0 0.0
    %3486 = vmatprep.mubr.f32.mxu0 0.0
    %3487 = vmatmul.mubr.f32.gmra.mxu0 %v3267
    %v3488 = vpop.f32.mrf.mxu0
    %v3489 = vadd.f32 %v3259, %v3488
    %v3490 = vpop.f32.mrf.mxu0
    %3491 = vmatprep.mubr.f32.mxu0 0.0
    %3492 = vmatmul.mubr.f32.gmra.mxu0 %v3270
    %v3493 = vpop.f32.mrf.mxu0
    %v3494 = vadd.f32 %v3264, %v3493
    %v3495 = vpop.f32.mrf.mxu0
    %3496 = vdwg.mxu0
    %3497 = vmatprep.subr.mxu0 0.0
    %3498 = vmatpush1.msra.mxu0 0.0
    %3499 = vmatprep.subr.mxu0 0.0
    %3500 = vmatpush1.msra.mxu0 0.0
    %3501 = vmatprep.subr.mxu0 0.0
    %3502 = vmatpush1.msra.mxu0 0.0
    %3503 = vmatprep.subr.mxu0 0.0
    %3504 = vmatpush1.msra.mxu0 0.0
    %3505 = vmatprep.subr.mxu0 0.0
    %3506 = vmatpush1.msra.mxu0 0.0
    %3507 = vmatprep.subr.mxu0 0.0
    %3508 = vmatpush1.msra.mxu0 0.0
    %3509 = vmatprep.subr.mxu0 0.0
    %3510 = vmatpush1.msra.mxu0 0.0
    %3511 = vmatprep.subr.mxu0 0.0
    %3512 = vmatpush1.msra.mxu0 0.0
    %3513 = vmatprep.subr.mxu0 0.0
    %3514 = vmatpush1.msra.mxu0 0.0
    %3515 = vmatprep.subr.mxu0 0.0
    %3516 = vmatpush1.msra.mxu0 0.0
    %3517 = vmatprep.subr.mxu0 0.0
    %3518 = vmatpush1.msra.mxu0 %v3219
    %3519 = vmatprep.subr.mxu0 0.0
    %3520 = vmatpush1.msra.mxu0 %v3218
    %3521 = vmatprep.subr.mxu0 0.0
    %3522 = vmatpush1.msra.mxu0 %v3217
    %3523 = vmatprep.subr.mxu0 0.0
    %3524 = vmatpush1.msra.mxu0 %v3216
    %3525 = vmatprep.subr.mxu0 0.0
    %3526 = vmatpush1.msra.mxu0 %v3215
    %3527 = vmatprep.subr.mxu0 0.0
    %3528 = vmatpush1.msra.mxu0 %v3214
    %3529 = vmatprep.subr.mxu0 0.0
    %3530 = vmatpush2.msra.mxu0 0.0
    %3531 = vmatprep.subr.mxu0 0.0
    %3532 = vmatpush2.msra.mxu0 0.0
    %3533 = vmatprep.subr.mxu0 0.0
    %3534 = vmatpush2.msra.mxu0 0.0
    %3535 = vmatprep.subr.mxu0 0.0
    %3536 = vmatpush2.msra.mxu0 0.0
    %3537 = vmatprep.subr.mxu0 0.0
    %3538 = vmatpush2.msra.mxu0 0.0
    %3539 = vmatprep.subr.mxu0 0.0
    %3540 = vmatpush2.msra.mxu0 0.0
    %3541 = vmatprep.subr.mxu0 0.0
    %3542 = vmatpush2.msra.mxu0 0.0
    %3543 = vmatprep.subr.mxu0 0.0
    %3544 = vmatpush2.msra.mxu0 0.0
    %3545 = vmatprep.subr.mxu0 0.0
    %3546 = vmatpush2.msra.mxu0 0.0
    %3547 = vmatprep.subr.mxu0 0.0
    %3548 = vmatpush2.msra.mxu0 0.0
    %3549 = vmatprep.subr.mxu0 0.0
    %3550 = vmatpush2.msra.mxu0 0.0
    %3551 = vmatprep.subr.mxu0 0.0
    %3552 = vmatpush2.msra.mxu0 0.0
    %3553 = vmatprep.subr.mxu0 0.0
    %3554 = vmatpush2.msra.mxu0 0.0
    %3555 = vmatprep.subr.mxu0 0.0
    %3556 = vmatpush2.msra.mxu0 0.0
    %3557 = vmatprep.subr.mxu0 0.0
    %3558 = vmatpush2.msra.mxu0 0.0
    %3559 = vmatprep.subr.mxu0 0.0
    %3560 = vmatpush2.msra.mxu0 0.0
    %3561 = vmatprep.mubr.f32.mxu0 0.0
    %3562 = vmatmul.mubr.f32.gmra.mxu0 %v3267
    %v3563 = vpop.f32.mrf.mxu0
    %v3564 = vadd.f32 %v3259, %v3563
    %v3565 = vpop.f32.mrf.mxu0
    %3566 = vmatprep.mubr.f32.mxu0 0.0
    %3567 = vmatmul.mubr.f32.gmra.mxu0 %v3270
    %v3568 = vpop.f32.mrf.mxu0
    %v3569 = vadd.f32 %v3264, %v3568
    %v3570 = vpop.f32.mrf.mxu0
    %3571 = vdwg.mxu0
    %3572 = vmatprep.subr.mxu0 0.0
    %3573 = vmatpush1.msra.mxu0 0.0
    %3574 = vmatprep.subr.mxu0 0.0
    %3575 = vmatpush1.msra.mxu0 0.0
    %3576 = vmatprep.subr.mxu0 0.0
    %3577 = vmatpush1.msra.mxu0 0.0
    %3578 = vmatprep.subr.mxu0 0.0
    %3579 = vmatpush1.msra.mxu0 0.0
    %3580 = vmatprep.subr.mxu0 0.0
    %3581 = vmatpush1.msra.mxu0 0.0
    %3582 = vmatprep.subr.mxu0 0.0
    %3583 = vmatpush1.msra.mxu0 0.0
    %3584 = vmatprep.subr.mxu0 0.0
    %3585 = vmatpush1.msra.mxu0 0.0
    %3586 = vmatprep.subr.mxu0 0.0
    %3587 = vmatpush1.msra.mxu0 0.0
    %3588 = vmatprep.subr.mxu0 0.0
    %3589 = vmatpush1.msra.mxu0 0.0
    %3590 = vmatprep.subr.mxu0 0.0
    %3591 = vmatpush1.msra.mxu0 0.0
    %3592 = vmatprep.subr.mxu0 0.0
    %3593 = vmatpush1.msra.mxu0 %v3221
    %3594 = vmatprep.subr.mxu0 0.0
    %3595 = vmatpush1.msra.mxu0 %v3220
    %3596 = vmatprep.subr.mxu0 0.0
    %3597 = vmatpush1.msra.mxu0 %v3219
    %3598 = vmatprep.subr.mxu0 0.0
    %3599 = vmatpush1.msra.mxu0 %v3218
    %3600 = vmatprep.subr.mxu0 0.0
    %3601 = vmatpush1.msra.mxu0 %v3217
    %3602 = vmatprep.subr.mxu0 0.0
    %3603 = vmatpush1.msra.mxu0 %v3216
    %3604 = vmatprep.subr.mxu0 0.0
    %3605 = vmatpush2.msra.mxu0 0.0
    %3606 = vmatprep.subr.mxu0 0.0
    %3607 = vmatpush2.msra.mxu0 0.0
    %3608 = vmatprep.subr.mxu0 0.0
    %3609 = vmatpush2.msra.mxu0 0.0
    %3610 = vmatprep.subr.mxu0 0.0
    %3611 = vmatpush2.msra.mxu0 0.0
    %3612 = vmatprep.subr.mxu0 0.0
    %3613 = vmatpush2.msra.mxu0 0.0
    %3614 = vmatprep.subr.mxu0 0.0
    %3615 = vmatpush2.msra.mxu0 0.0
    %3616 = vmatprep.subr.mxu0 0.0
    %3617 = vmatpush2.msra.mxu0 0.0
    %3618 = vmatprep.subr.mxu0 0.0
    %3619 = vmatpush2.msra.mxu0 0.0
    %3620 = vmatprep.subr.mxu0 0.0
    %3621 = vmatpush2.msra.mxu0 0.0
    %3622 = vmatprep.subr.mxu0 0.0
    %3623 = vmatpush2.msra.mxu0 0.0
    %3624 = vmatprep.subr.mxu0 0.0
    %3625 = vmatpush2.msra.mxu0 0.0
    %3626 = vmatprep.subr.mxu0 0.0
    %3627 = vmatpush2.msra.mxu0 0.0
    %3628 = vmatprep.subr.mxu0 0.0
    %3629 = vmatpush2.msra.mxu0 0.0
    %3630 = vmatprep.subr.mxu0 0.0
    %3631 = vmatpush2.msra.mxu0 0.0
    %3632 = vmatprep.subr.mxu0 0.0
    %3633 = vmatpush2.msra.mxu0 0.0
    %3634 = vmatprep.subr.mxu0 0.0
    %3635 = vmatpush2.msra.mxu0 0.0
    %3636 = vmatprep.mubr.f32.mxu0 0.0
    %3637 = vmatmul.mubr.f32.gmra.mxu0 %v3267
    %v3638 = vpop.f32.mrf.mxu0
    %v3639 = vadd.f32 %v3259, %v3638
    %v3640 = vpop.f32.mrf.mxu0
    %3641 = vmatprep.mubr.f32.mxu0 0.0
    %3642 = vmatmul.mubr.f32.gmra.mxu0 %v3270
    %v3643 = vpop.f32.mrf.mxu0
    %v3644 = vadd.f32 %v3264, %v3643
    %v3645 = vpop.f32.mrf.mxu0
    %3646 = vdwg.mxu0
    %3647 = vmatprep.subr.mxu0 0.0
    %3648 = vmatpush1.msra.mxu0 0.0
    %3649 = vmatprep.subr.mxu0 0.0
    %3650 = vmatpush1.msra.mxu0 0.0
    %3651 = vmatprep.subr.mxu0 0.0
    %3652 = vmatpush1.msra.mxu0 0.0
    %3653 = vmatprep.subr.mxu0 0.0
    %3654 = vmatpush1.msra.mxu0 0.0
    %3655 = vmatprep.subr.mxu0 0.0
    %3656 = vmatpush1.msra.mxu0 0.0
    %3657 = vmatprep.subr.mxu0 0.0
    %3658 = vmatpush1.msra.mxu0 0.0
    %3659 = vmatprep.subr.mxu0 0.0
    %3660 = vmatpush1.msra.mxu0 0.0
    %3661 = vmatprep.subr.mxu0 0.0
    %3662 = vmatpush1.msra.mxu0 0.0
    %3663 = vmatprep.subr.mxu0 0.0
    %3664 = vmatpush1.msra.mxu0 0.0
    %3665 = vmatprep.subr.mxu0 0.0
    %3666 = vmatpush1.msra.mxu0 0.0
    %3667 = vmatprep.subr.mxu0 0.0
    %3668 = vmatpush1.msra.mxu0 %v3223
    %3669 = vmatprep.subr.mxu0 0.0
    %3670 = vmatpush1.msra.mxu0 %v3222
    %3671 = vmatprep.subr.mxu0 0.0
    %3672 = vmatpush1.msra.mxu0 %v3221
    %3673 = vmatprep.subr.mxu0 0.0
    %3674 = vmatpush1.msra.mxu0 %v3220
    %3675 = vmatprep.subr.mxu0 0.0
    %3676 = vmatpush1.msra.mxu0 %v3219
    %3677 = vmatprep.subr.mxu0 0.0
    %3678 = vmatpush1.msra.mxu0 %v3218
    %3679 = vmatprep.subr.mxu0 0.0
    %3680 = vmatpush2.msra.mxu0 0.0
    %3681 = vmatprep.subr.mxu0 0.0
    %3682 = vmatpush2.msra.mxu0 0.0
    %3683 = vmatprep.subr.mxu0 0.0
    %3684 = vmatpush2.msra.mxu0 0.0
    %3685 = vmatprep.subr.mxu0 0.0
    %3686 = vmatpush2.msra.mxu0 0.0
    %3687 = vmatprep.subr.mxu0 0.0
    %3688 = vmatpush2.msra.mxu0 0.0
    %3689 = vmatprep.subr.mxu0 0.0
    %3690 = vmatpush2.msra.mxu0 0.0
    %3691 = vmatprep.subr.mxu0 0.0
    %3692 = vmatpush2.msra.mxu0 0.0
    %3693 = vmatprep.subr.mxu0 0.0
    %3694 = vmatpush2.msra.mxu0 0.0
    %3695 = vmatprep.subr.mxu0 0.0
    %3696 = vmatpush2.msra.mxu0 0.0
    %3697 = vmatprep.subr.mxu0 0.0
    %3698 = vmatpush2.msra.mxu0 0.0
    %3699 = vmatprep.subr.mxu0 0.0
    %3700 = vmatpush2.msra.mxu0 0.0
    %3701 = vmatprep.subr.mxu0 0.0
    %3702 = vmatpush2.msra.mxu0 0.0
    %3703 = vmatprep.subr.mxu0 0.0
    %3704 = vmatpush2.msra.mxu0 0.0
    %3705 = vmatprep.subr.mxu0 0.0
    %3706 = vmatpush2.msra.mxu0 0.0
    %3707 = vmatprep.subr.mxu0 0.0
    %3708 = vmatpush2.msra.mxu0 0.0
    %3709 = vmatprep.subr.mxu0 0.0
    %3710 = vmatpush2.msra.mxu0 0.0
    %3711 = vmatprep.mubr.f32.mxu0 0.0
    %3712 = vmatmul.mubr.f32.gmra.mxu0 %v3267
    %v3713 = vpop.f32.mrf.mxu0
    %v3714 = vadd.f32 %v3259, %v3713
    %v3715 = vpop.f32.mrf.mxu0
    %3716 = vmatprep.mubr.f32.mxu0 0.0
    %3717 = vmatmul.mubr.f32.gmra.mxu0 %v3270
    %v3718 = vpop.f32.mrf.mxu0
    %v3719 = vadd.f32 %v3264, %v3718
    %v3720 = vpop.f32.mrf.mxu0
    %3721 = vdwg.mxu0
    %3722 = vmatprep.subr.mxu0 0.0
    %3723 = vmatpush1.msra.mxu0 0.0
    %3724 = vmatprep.subr.mxu0 0.0
    %3725 = vmatpush1.msra.mxu0 0.0
    %3726 = vmatprep.subr.mxu0 0.0
    %3727 = vmatpush1.msra.mxu0 0.0
    %3728 = vmatprep.subr.mxu0 0.0
    %3729 = vmatpush1.msra.mxu0 0.0
    %3730 = vmatprep.subr.mxu0 0.0
    %3731 = vmatpush1.msra.mxu0 0.0
    %3732 = vmatprep.subr.mxu0 0.0
    %3733 = vmatpush1.msra.mxu0 0.0
    %3734 = vmatprep.subr.mxu0 0.0
    %3735 = vmatpush1.msra.mxu0 0.0
    %3736 = vmatprep.subr.mxu0 0.0
    %3737 = vmatpush1.msra.mxu0 0.0
    %3738 = vmatprep.subr.mxu0 0.0
    %3739 = vmatpush1.msra.mxu0 0.0
    %3740 = vmatprep.subr.mxu0 0.0
    %3741 = vmatpush1.msra.mxu0 0.0
    %3742 = vmatprep.subr.mxu0 0.0
    %3743 = vmatpush1.msra.mxu0 %v3225
    %3744 = vmatprep.subr.mxu0 0.0
    %3745 = vmatpush1.msra.mxu0 %v3224
    %3746 = vmatprep.subr.mxu0 0.0
    %3747 = vmatpush1.msra.mxu0 %v3223
    %3748 = vmatprep.subr.mxu0 0.0
    %3749 = vmatpush1.msra.mxu0 %v3222
    %3750 = vmatprep.subr.mxu0 0.0
    %3751 = vmatpush1.msra.mxu0 %v3221
    %3752 = vmatprep.subr.mxu0 0.0
    %3753 = vmatpush1.msra.mxu0 %v3220
    %3754 = vmatprep.subr.mxu0 0.0
    %3755 = vmatpush2.msra.mxu0 0.0
    %3756 = vmatprep.subr.mxu0 0.0
    %3757 = vmatpush2.msra.mxu0 0.0
    %3758 = vmatprep.subr.mxu0 0.0
    %3759 = vmatpush2.msra.mxu0 0.0
    %3760 = vmatprep.subr.mxu0 0.0
    %3761 = vmatpush2.msra.mxu0 0.0
    %3762 = vmatprep.subr.mxu0 0.0
    %3763 = vmatpush2.msra.mxu0 0.0
    %3764 = vmatprep.subr.mxu0 0.0
    %3765 = vmatpush2.msra.mxu0 0.0
    %3766 = vmatprep.subr.mxu0 0.0
    %3767 = vmatpush2.msra.mxu0 0.0
    %3768 = vmatprep.subr.mxu0 0.0
    %3769 = vmatpush2.msra.mxu0 0.0
    %3770 = vmatprep.subr.mxu0 0.0
    %3771 = vmatpush2.msra.mxu0 0.0
    %3772 = vmatprep.subr.mxu0 0.0
    %3773 = vmatpush2.msra.mxu0 0.0
    %3774 = vmatprep.subr.mxu0 0.0
    %3775 = vmatpush2.msra.mxu0 0.0
    %3776 = vmatprep.subr.mxu0 0.0
    %3777 = vmatpush2.msra.mxu0 0.0
    %3778 = vmatprep.subr.mxu0 0.0
    %3779 = vmatpush2.msra.mxu0 0.0
    %3780 = vmatprep.subr.mxu0 0.0
    %3781 = vmatpush2.msra.mxu0 0.0
    %3782 = vmatprep.subr.mxu0 0.0
    %3783 = vmatpush2.msra.mxu0 0.0
    %3784 = vmatprep.subr.mxu0 0.0
    %3785 = vmatpush2.msra.mxu0 0.0
    %3786 = vmatprep.mubr.f32.mxu0 0.0
    %3787 = vmatmul.mubr.f32.gmra.mxu0 %v3267
    %v3788 = vpop.f32.mrf.mxu0
    %v3789 = vadd.f32 %v3259, %v3788
    %v3790 = vpop.f32.mrf.mxu0
    %3791 = vmatprep.mubr.f32.mxu0 0.0
    %3792 = vmatmul.mubr.f32.gmra.mxu0 %v3270
    %v3793 = vpop.f32.mrf.mxu0
    %v3794 = vadd.f32 %v3264, %v3793
    %v3795 = vpop.f32.mrf.mxu0
    %3796 = vdwg.mxu0
    %3797 = vmatprep.subr.mxu0 0.0
    %3798 = vmatpush1.msra.mxu0 0.0
    %3799 = vmatprep.subr.mxu0 0.0
    %3800 = vmatpush1.msra.mxu0 0.0
    %3801 = vmatprep.subr.mxu0 0.0
    %3802 = vmatpush1.msra.mxu0 0.0
    %3803 = vmatprep.subr.mxu0 0.0
    %3804 = vmatpush1.msra.mxu0 0.0
    %3805 = vmatprep.subr.mxu0 0.0
    %3806 = vmatpush1.msra.mxu0 0.0
    %3807 = vmatprep.subr.mxu0 0.0
    %3808 = vmatpush1.msra.mxu0 0.0
    %3809 = vmatprep.subr.mxu0 0.0
    %3810 = vmatpush1.msra.mxu0 0.0
    %3811 = vmatprep.subr.mxu0 0.0
    %3812 = vmatpush1.msra.mxu0 0.0
    %3813 = vmatprep.subr.mxu0 0.0
    %3814 = vmatpush1.msra.mxu0 0.0
    %3815 = vmatprep.subr.mxu0 0.0
    %3816 = vmatpush1.msra.mxu0 0.0
    %3817 = vmatprep.subr.mxu0 0.0
    %3818 = vmatpush1.msra.mxu0 %v3227
    %3819 = vmatprep.subr.mxu0 0.0
    %3820 = vmatpush1.msra.mxu0 %v3226
    %3821 = vmatprep.subr.mxu0 0.0
    %3822 = vmatpush1.msra.mxu0 %v3225
    %3823 = vmatprep.subr.mxu0 0.0
    %3824 = vmatpush1.msra.mxu0 %v3224
    %3825 = vmatprep.subr.mxu0 0.0
    %3826 = vmatpush1.msra.mxu0 %v3223
    %3827 = vmatprep.subr.mxu0 0.0
    %3828 = vmatpush1.msra.mxu0 %v3222
    %3829 = vmatprep.subr.mxu0 0.0
    %3830 = vmatpush2.msra.mxu0 0.0
    %3831 = vmatprep.subr.mxu0 0.0
    %3832 = vmatpush2.msra.mxu0 0.0
    %3833 = vmatprep.subr.mxu0 0.0
    %3834 = vmatpush2.msra.mxu0 0.0
    %3835 = vmatprep.subr.mxu0 0.0
    %3836 = vmatpush2.msra.mxu0 0.0
    %3837 = vmatprep.subr.mxu0 0.0
    %3838 = vmatpush2.msra.mxu0 0.0
    %3839 = vmatprep.subr.mxu0 0.0
    %3840 = vmatpush2.msra.mxu0 0.0
    %3841 = vmatprep.subr.mxu0 0.0
    %3842 = vmatpush2.msra.mxu0 0.0
    %3843 = vmatprep.subr.mxu0 0.0
    %3844 = vmatpush2.msra.mxu0 0.0
    %3845 = vmatprep.subr.mxu0 0.0
    %3846 = vmatpush2.msra.mxu0 0.0
    %3847 = vmatprep.subr.mxu0 0.0
    %3848 = vmatpush2.msra.mxu0 0.0
    %3849 = vmatprep.subr.mxu0 0.0
    %3850 = vmatpush2.msra.mxu0 0.0
    %3851 = vmatprep.subr.mxu0 0.0
    %3852 = vmatpush2.msra.mxu0 0.0
    %3853 = vmatprep.subr.mxu0 0.0
    %3854 = vmatpush2.msra.mxu0 0.0
    %3855 = vmatprep.subr.mxu0 0.0
    %3856 = vmatpush2.msra.mxu0 0.0
    %3857 = vmatprep.subr.mxu0 0.0
    %3858 = vmatpush2.msra.mxu0 0.0
    %3859 = vmatprep.subr.mxu0 0.0
    %3860 = vmatpush2.msra.mxu0 0.0
    %3861 = vmatprep.mubr.f32.mxu0 0.0
    %3862 = vmatmul.mubr.f32.gmra.mxu0 %v3267
    %v3863 = vpop.f32.mrf.mxu0
    %v3864 = vadd.f32 %v3259, %v3863
    %v3865 = vpop.f32.mrf.mxu0
    %3866 = vmatprep.mubr.f32.mxu0 0.0
    %3867 = vmatmul.mubr.f32.gmra.mxu0 %v3270
    %v3868 = vpop.f32.mrf.mxu0
    %v3869 = vadd.f32 %v3264, %v3868
    %v3870 = vpop.f32.mrf.mxu0
    %3871 = vdwg.mxu0
    %3872 = vmatprep.subr.mxu0 0.0
    %3873 = vmatpush1.msra.mxu0 0.0
    %3874 = vmatprep.subr.mxu0 0.0
    %3875 = vmatpush1.msra.mxu0 0.0
    %3876 = vmatprep.subr.mxu0 0.0
    %3877 = vmatpush1.msra.mxu0 0.0
    %3878 = vmatprep.subr.mxu0 0.0
    %3879 = vmatpush1.msra.mxu0 0.0
    %3880 = vmatprep.subr.mxu0 0.0
    %3881 = vmatpush1.msra.mxu0 0.0
    %3882 = vmatprep.subr.mxu0 0.0
    %3883 = vmatpush1.msra.mxu0 0.0
    %3884 = vmatprep.subr.mxu0 0.0
    %3885 = vmatpush1.msra.mxu0 0.0
    %3886 = vmatprep.subr.mxu0 0.0
    %3887 = vmatpush1.msra.mxu0 0.0
    %3888 = vmatprep.subr.mxu0 0.0
    %3889 = vmatpush1.msra.mxu0 0.0
    %3890 = vmatprep.subr.mxu0 0.0
    %3891 = vmatpush1.msra.mxu0 0.0
    %3892 = vmatprep.subr.mxu0 0.0
    %3893 = vmatpush1.msra.mxu0 %v3229
    %3894 = vmatprep.subr.mxu0 0.0
    %3895 = vmatpush1.msra.mxu0 %v3228
    %3896 = vmatprep.subr.mxu0 0.0
    %3897 = vmatpush1.msra.mxu0 %v3227
    %3898 = vmatprep.subr.mxu0 0.0
    %3899 = vmatpush1.msra.mxu0 %v3226
    %3900 = vmatprep.subr.mxu0 0.0
    %3901 = vmatpush1.msra.mxu0 %v3225
    %3902 = vmatprep.subr.mxu0 0.0
    %3903 = vmatpush1.msra.mxu0 %v3224
    %3904 = vmatprep.subr.mxu0 0.0
    %3905 = vmatpush2.msra.mxu0 0.0
    %3906 = vmatprep.subr.mxu0 0.0
    %3907 = vmatpush2.msra.mxu0 0.0
    %3908 = vmatprep.subr.mxu0 0.0
    %3909 = vmatpush2.msra.mxu0 0.0
    %3910 = vmatprep.subr.mxu0 0.0
    %3911 = vmatpush2.msra.mxu0 0.0
    %3912 = vmatprep.subr.mxu0 0.0
    %3913 = vmatpush2.msra.mxu0 0.0
    %3914 = vmatprep.subr.mxu0 0.0
    %3915 = vmatpush2.msra.mxu0 0.0
    %3916 = vmatprep.subr.mxu0 0.0
    %3917 = vmatpush2.msra.mxu0 0.0
    %3918 = vmatprep.subr.mxu0 0.0
    %3919 = vmatpush2.msra.mxu0 0.0
    %3920 = vmatprep.subr.mxu0 0.0
    %3921 = vmatpush2.msra.mxu0 0.0
    %3922 = vmatprep.subr.mxu0 0.0
    %3923 = vmatpush2.msra.mxu0 0.0
    %3924 = vmatprep.subr.mxu0 0.0
    %3925 = vmatpush2.msra.mxu0 0.0
    %3926 = vmatprep.subr.mxu0 0.0
    %3927 = vmatpush2.msra.mxu0 0.0
    %3928 = vmatprep.subr.mxu0 0.0
    %3929 = vmatpush2.msra.mxu0 0.0
    %3930 = vmatprep.subr.mxu0 0.0
    %3931 = vmatpush2.msra.mxu0 0.0
    %3932 = vmatprep.subr.mxu0 0.0
    %3933 = vmatpush2.msra.mxu0 0.0
    %3934 = vmatprep.subr.mxu0 0.0
    %3935 = vmatpush2.msra.mxu0 0.0
    %3936 = vmatprep.mubr.f32.mxu0 0.0
    %3937 = vmatmul.mubr.f32.gmra.mxu0 %v3267
    %v3938 = vpop.f32.mrf.mxu0
    %v3939 = vadd.f32 %v3259, %v3938
    %v3940 = vpop.f32.mrf.mxu0
    %3941 = vmatprep.mubr.f32.mxu0 0.0
    %3942 = vmatmul.mubr.f32.gmra.mxu0 %v3270
    %v3943 = vpop.f32.mrf.mxu0
    %v3944 = vadd.f32 %v3264, %v3943
    %v3945 = vpop.f32.mrf.mxu0
    %3946 = vdwg.mxu0
    %3947 = vmatprep.subr.mxu0 0.0
    %3948 = vmatpush1.msra.mxu0 0.0
    %3949 = vmatprep.subr.mxu0 0.0
    %3950 = vmatpush1.msra.mxu0 0.0
    %3951 = vmatprep.subr.mxu0 0.0
    %3952 = vmatpush1.msra.mxu0 0.0
    %3953 = vmatprep.subr.mxu0 0.0
    %3954 = vmatpush1.msra.mxu0 0.0
    %3955 = vmatprep.subr.mxu0 0.0
    %3956 = vmatpush1.msra.mxu0 0.0
    %3957 = vmatprep.subr.mxu0 0.0
    %3958 = vmatpush1.msra.mxu0 0.0
    %3959 = vmatprep.subr.mxu0 0.0
    %3960 = vmatpush1.msra.mxu0 0.0
    %3961 = vmatprep.subr.mxu0 0.0
    %3962 = vmatpush1.msra.mxu0 0.0
    %3963 = vmatprep.subr.mxu0 0.0
    %3964 = vmatpush1.msra.mxu0 0.0
    %3965 = vmatprep.subr.mxu0 0.0
    %3966 = vmatpush1.msra.mxu0 0.0
    %3967 = vmatprep.subr.mxu0 0.0
    %3968 = vmatpush1.msra.mxu0 %v3231
    %3969 = vmatprep.subr.mxu0 0.0
    %3970 = vmatpush1.msra.mxu0 %v3230
    %3971 = vmatprep.subr.mxu0 0.0
    %3972 = vmatpush1.msra.mxu0 %v3229
    %3973 = vmatprep.subr.mxu0 0.0
    %3974 = vmatpush1.msra.mxu0 %v3228
    %3975 = vmatprep.subr.mxu0 0.0
    %3976 = vmatpush1.msra.mxu0 %v3227
    %3977 = vmatprep.subr.mxu0 0.0
    %3978 = vmatpush1.msra.mxu0 %v3226
    %3979 = vmatprep.subr.mxu0 0.0
    %3980 = vmatpush2.msra.mxu0 0.0
    %3981 = vmatprep.subr.mxu0 0.0
    %3982 = vmatpush2.msra.mxu0 0.0
    %3983 = vmatprep.subr.mxu0 0.0
    %3984 = vmatpush2.msra.mxu0 0.0
    %3985 = vmatprep.subr.mxu0 0.0
    %3986 = vmatpush2.msra.mxu0 0.0
    %3987 = vmatprep.subr.mxu0 0.0
    %3988 = vmatpush2.msra.mxu0 0.0
    %3989 = vmatprep.subr.mxu0 0.0
    %3990 = vmatpush2.msra.mxu0 0.0
    %3991 = vmatprep.subr.mxu0 0.0
    %3992 = vmatpush2.msra.mxu0 0.0
    %3993 = vmatprep.subr.mxu0 0.0
    %3994 = vmatpush2.msra.mxu0 0.0
    %3995 = vmatprep.subr.mxu0 0.0
    %3996 = vmatpush2.msra.mxu0 0.0
    %3997 = vmatprep.subr.mxu0 0.0
    %3998 = vmatpush2.msra.mxu0 0.0
    %3999 = vmatprep.subr.mxu0 0.0
    %4000 = vmatpush2.msra.mxu0 0.0
    %4001 = vmatprep.subr.mxu0 0.0
    %4002 = vmatpush2.msra.mxu0 0.0
    %4003 = vmatprep.subr.mxu0 0.0
    %4004 = vmatpush2.msra.mxu0 0.0
    %4005 = vmatprep.subr.mxu0 0.0
    %4006 = vmatpush2.msra.mxu0 0.0
    %4007 = vmatprep.subr.mxu0 0.0
    %4008 = vmatpush2.msra.mxu0 0.0
    %4009 = vmatprep.subr.mxu0 0.0
    %4010 = vmatpush2.msra.mxu0 0.0
    %4011 = vmatprep.mubr.f32.mxu0 0.0
    %4012 = vmatmul.mubr.f32.gmra.mxu0 %v3267
    %v4013 = vpop.f32.mrf.mxu0
    %v4014 = vadd.f32 %v3259, %v4013
    %v4015 = vpop.f32.mrf.mxu0
    %4016 = vmatprep.mubr.f32.mxu0 0.0
    %4017 = vmatmul.mubr.f32.gmra.mxu0 %v3270
    %v4018 = vpop.f32.mrf.mxu0
    %v4019 = vadd.f32 %v3264, %v4018
    %v4020 = vpop.f32.mrf.mxu0
    %4021 = vdwg.mxu0
    %4022 = vmatprep.subr.mxu0 0.0
    %4023 = vmatpush1.msra.mxu0 0.0
    %4024 = vmatprep.subr.mxu0 0.0
    %4025 = vmatpush1.msra.mxu0 0.0
    %4026 = vmatprep.subr.mxu0 0.0
    %4027 = vmatpush1.msra.mxu0 0.0
    %4028 = vmatprep.subr.mxu0 0.0
    %4029 = vmatpush1.msra.mxu0 0.0
    %4030 = vmatprep.subr.mxu0 0.0
    %4031 = vmatpush1.msra.mxu0 0.0
    %4032 = vmatprep.subr.mxu0 0.0
    %4033 = vmatpush1.msra.mxu0 0.0
    %4034 = vmatprep.subr.mxu0 0.0
    %4035 = vmatpush1.msra.mxu0 0.0
    %4036 = vmatprep.subr.mxu0 0.0
    %4037 = vmatpush1.msra.mxu0 0.0
    %4038 = vmatprep.subr.mxu0 0.0
    %4039 = vmatpush1.msra.mxu0 0.0
    %4040 = vmatprep.subr.mxu0 0.0
    %4041 = vmatpush1.msra.mxu0 0.0
    %4042 = vmatprep.subr.mxu0 0.0
    %4043 = vmatpush1.msra.mxu0 %v3233
    %4044 = vmatprep.subr.mxu0 0.0
    %4045 = vmatpush1.msra.mxu0 %v3232
    %4046 = vmatprep.subr.mxu0 0.0
    %4047 = vmatpush1.msra.mxu0 %v3231
    %4048 = vmatprep.subr.mxu0 0.0
    %4049 = vmatpush1.msra.mxu0 %v3230
    %4050 = vmatprep.subr.mxu0 0.0
    %4051 = vmatpush1.msra.mxu0 %v3229
    %4052 = vmatprep.subr.mxu0 0.0
    %4053 = vmatpush1.msra.mxu0 %v3228
    %4054 = vmatprep.subr.mxu0 0.0
    %4055 = vmatpush2.msra.mxu0 0.0
    %4056 = vmatprep.subr.mxu0 0.0
    %4057 = vmatpush2.msra.mxu0 0.0
    %4058 = vmatprep.subr.mxu0 0.0
    %4059 = vmatpush2.msra.mxu0 0.0
    %4060 = vmatprep.subr.mxu0 0.0
    %4061 = vmatpush2.msra.mxu0 0.0
    %4062 = vmatprep.subr.mxu0 0.0
    %4063 = vmatpush2.msra.mxu0 0.0
    %4064 = vmatprep.subr.mxu0 0.0
    %4065 = vmatpush2.msra.mxu0 0.0
    %4066 = vmatprep.subr.mxu0 0.0
    %4067 = vmatpush2.msra.mxu0 0.0
    %4068 = vmatprep.subr.mxu0 0.0
    %4069 = vmatpush2.msra.mxu0 0.0
    %4070 = vmatprep.subr.mxu0 0.0
    %4071 = vmatpush2.msra.mxu0 0.0
    %4072 = vmatprep.subr.mxu0 0.0
    %4073 = vmatpush2.msra.mxu0 0.0
    %4074 = vmatprep.subr.mxu0 0.0
    %4075 = vmatpush2.msra.mxu0 0.0
    %4076 = vmatprep.subr.mxu0 0.0
    %4077 = vmatpush2.msra.mxu0 0.0
    %4078 = vmatprep.subr.mxu0 0.0
    %4079 = vmatpush2.msra.mxu0 0.0
    %4080 = vmatprep.subr.mxu0 0.0
    %4081 = vmatpush2.msra.mxu0 0.0
    %4082 = vmatprep.subr.mxu0 0.0
    %4083 = vmatpush2.msra.mxu0 0.0
    %4084 = vmatprep.subr.mxu0 0.0
    %4085 = vmatpush2.msra.mxu0 0.0
    %4086 = vmatprep.mubr.f32.mxu0 0.0
    %4087 = vmatmul.mubr.f32.gmra.mxu0 %v3267
    %v4088 = vpop.f32.mrf.mxu0
    %v4089 = vadd.f32 %v3259, %v4088
    %v4090 = vpop.f32.mrf.mxu0
    %4091 = vmatprep.mubr.f32.mxu0 0.0
    %4092 = vmatmul.mubr.f32.gmra.mxu0 %v3270
    %v4093 = vpop.f32.mrf.mxu0
    %v4094 = vadd.f32 %v3264, %v4093
    %v4095 = vpop.f32.mrf.mxu0
    %4096 = vdwg.mxu0
    %4097 = vmatprep.subr.mxu0 0.0
    %4098 = vmatpush1.msra.mxu0 0.0
    %4099 = vmatprep.subr.mxu0 0.0
    %4100 = vmatpush1.msra.mxu0 0.0
    %4101 = vmatprep.subr.mxu0 0.0
    %4102 = vmatpush1.msra.mxu0 0.0
    %4103 = vmatprep.subr.mxu0 0.0
    %4104 = vmatpush1.msra.mxu0 0.0
    %4105 = vmatprep.subr.mxu0 0.0
    %4106 = vmatpush1.msra.mxu0 0.0
    %4107 = vmatprep.subr.mxu0 0.0
    %4108 = vmatpush1.msra.mxu0 0.0
    %4109 = vmatprep.subr.mxu0 0.0
    %4110 = vmatpush1.msra.mxu0 0.0
    %4111 = vmatprep.subr.mxu0 0.0
    %4112 = vmatpush1.msra.mxu0 0.0
    %4113 = vmatprep.subr.mxu0 0.0
    %4114 = vmatpush1.msra.mxu0 0.0
    %4115 = vmatprep.subr.mxu0 0.0
    %4116 = vmatpush1.msra.mxu0 0.0
    %4117 = vmatprep.subr.mxu0 0.0
    %4118 = vmatpush1.msra.mxu0 %v3235
    %4119 = vmatprep.subr.mxu0 0.0
    %4120 = vmatpush1.msra.mxu0 %v3234
    %4121 = vmatprep.subr.mxu0 0.0
    %4122 = vmatpush1.msra.mxu0 %v3233
    %4123 = vmatprep.subr.mxu0 0.0
    %4124 = vmatpush1.msra.mxu0 %v3232
    %4125 = vmatprep.subr.mxu0 0.0
    %4126 = vmatpush1.msra.mxu0 %v3231
    %4127 = vmatprep.subr.mxu0 0.0
    %4128 = vmatpush1.msra.mxu0 %v3230
    %4129 = vmatprep.subr.mxu0 0.0
    %4130 = vmatpush2.msra.mxu0 0.0
    %4131 = vmatprep.subr.mxu0 0.0
    %4132 = vmatpush2.msra.mxu0 0.0
    %4133 = vmatprep.subr.mxu0 0.0
    %4134 = vmatpush2.msra.mxu0 0.0
    %4135 = vmatprep.subr.mxu0 0.0
    %4136 = vmatpush2.msra.mxu0 0.0
    %4137 = vmatprep.subr.mxu0 0.0
    %4138 = vmatpush2.msra.mxu0 0.0
    %4139 = vmatprep.subr.mxu0 0.0
    %4140 = vmatpush2.msra.mxu0 0.0
    %4141 = vmatprep.subr.mxu0 0.0
    %4142 = vmatpush2.msra.mxu0 0.0
    %4143 = vmatprep.subr.mxu0 0.0
    %4144 = vmatpush2.msra.mxu0 0.0
    %4145 = vmatprep.subr.mxu0 0.0
    %4146 = vmatpush2.msra.mxu0 0.0
    %4147 = vmatprep.subr.mxu0 0.0
    %4148 = vmatpush2.msra.mxu0 0.0
    %4149 = vmatprep.subr.mxu0 0.0
    %4150 = vmatpush2.msra.mxu0 0.0
    %4151 = vmatprep.subr.mxu0 0.0
    %4152 = vmatpush2.msra.mxu0 0.0
    %4153 = vmatprep.subr.mxu0 0.0
    %4154 = vmatpush2.msra.mxu0 0.0
    %4155 = vmatprep.subr.mxu0 0.0
    %4156 = vmatpush2.msra.mxu0 0.0
    %4157 = vmatprep.subr.mxu0 0.0
    %4158 = vmatpush2.msra.mxu0 0.0
    %4159 = vmatprep.subr.mxu0 0.0
    %4160 = vmatpush2.msra.mxu0 0.0
    %4161 = vmatprep.mubr.f32.mxu0 0.0
    %4162 = vmatmul.mubr.f32.gmra.mxu0 %v3267
    %v4163 = vpop.f32.mrf.mxu0
    %v4164 = vadd.f32 %v3259, %v4163
    %v4165 = vpop.f32.mrf.mxu0
    %4166 = vmatprep.mubr.f32.mxu0 0.0
    %4167 = vmatmul.mubr.f32.gmra.mxu0 %v3270
    %v4168 = vpop.f32.mrf.mxu0
    %v4169 = vadd.f32 %v3264, %v4168
    %v4170 = vpop.f32.mrf.mxu0
    %4171 = vdwg.mxu0
    %4172 = vmatprep.subr.mxu0 0.0
    %4173 = vmatpush1.msra.mxu0 0.0
    %4174 = vmatprep.subr.mxu0 0.0
    %4175 = vmatpush1.msra.mxu0 0.0
    %4176 = vmatprep.subr.mxu0 0.0
    %4177 = vmatpush1.msra.mxu0 0.0
    %4178 = vmatprep.subr.mxu0 0.0
    %4179 = vmatpush1.msra.mxu0 0.0
    %4180 = vmatprep.subr.mxu0 0.0
    %4181 = vmatpush1.msra.mxu0 0.0
    %4182 = vmatprep.subr.mxu0 0.0
    %4183 = vmatpush1.msra.mxu0 0.0
    %4184 = vmatprep.subr.mxu0 0.0
    %4185 = vmatpush1.msra.mxu0 0.0
    %4186 = vmatprep.subr.mxu0 0.0
    %4187 = vmatpush1.msra.mxu0 0.0
    %4188 = vmatprep.subr.mxu0 0.0
    %4189 = vmatpush1.msra.mxu0 0.0
    %4190 = vmatprep.subr.mxu0 0.0
    %4191 = vmatpush1.msra.mxu0 0.0
    %4192 = vmatprep.subr.mxu0 0.0
    %4193 = vmatpush1.msra.mxu0 %v3237
    %4194 = vmatprep.subr.mxu0 0.0
    %4195 = vmatpush1.msra.mxu0 %v3236
    %4196 = vmatprep.subr.mxu0 0.0
    %4197 = vmatpush1.msra.mxu0 %v3235
    %4198 = vmatprep.subr.mxu0 0.0
    %4199 = vmatpush1.msra.mxu0 %v3234
    %4200 = vmatprep.subr.mxu0 0.0
    %4201 = vmatpush1.msra.mxu0 %v3233
    %4202 = vmatprep.subr.mxu0 0.0
    %4203 = vmatpush1.msra.mxu0 %v3232
    %4204 = vmatprep.subr.mxu0 0.0
    %4205 = vmatpush2.msra.mxu0 0.0
    %4206 = vmatprep.subr.mxu0 0.0
    %4207 = vmatpush2.msra.mxu0 0.0
    %4208 = vmatprep.subr.mxu0 0.0
    %4209 = vmatpush2.msra.mxu0 0.0
    %4210 = vmatprep.subr.mxu0 0.0
    %4211 = vmatpush2.msra.mxu0 0.0
    %4212 = vmatprep.subr.mxu0 0.0
    %4213 = vmatpush2.msra.mxu0 0.0
    %4214 = vmatprep.subr.mxu0 0.0
    %4215 = vmatpush2.msra.mxu0 0.0
    %4216 = vmatprep.subr.mxu0 0.0
    %4217 = vmatpush2.msra.mxu0 0.0
    %4218 = vmatprep.subr.mxu0 0.0
    %4219 = vmatpush2.msra.mxu0 0.0
    %4220 = vmatprep.subr.mxu0 0.0
    %4221 = vmatpush2.msra.mxu0 0.0
    %4222 = vmatprep.subr.mxu0 0.0
    %4223 = vmatpush2.msra.mxu0 0.0
    %4224 = vmatprep.subr.mxu0 0.0
    %4225 = vmatpush2.msra.mxu0 0.0
    %4226 = vmatprep.subr.mxu0 0.0
    %4227 = vmatpush2.msra.mxu0 0.0
    %4228 = vmatprep.subr.mxu0 0.0
    %4229 = vmatpush2.msra.mxu0 0.0
    %4230 = vmatprep.subr.mxu0 0.0
    %4231 = vmatpush2.msra.mxu0 0.0
    %4232 = vmatprep.subr.mxu0 0.0
    %4233 = vmatpush2.msra.mxu0 0.0
    %4234 = vmatprep.subr.mxu0 0.0
    %4235 = vmatpush2.msra.mxu0 0.0
    %4236 = vmatprep.mubr.f32.mxu0 0.0
    %4237 = vmatmul.mubr.f32.gmra.mxu0 %v3267
    %v4238 = vpop.f32.mrf.mxu0
    %v4239 = vadd.f32 %v3259, %v4238
    %v4240 = vpop.f32.mrf.mxu0
    %4241 = vmatprep.mubr.f32.mxu0 0.0
    %4242 = vmatmul.mubr.f32.gmra.mxu0 %v3270
    %v4243 = vpop.f32.mrf.mxu0
    %v4244 = vadd.f32 %v3264, %v4243
    %v4245 = vpop.f32.mrf.mxu0
    %4246 = vdwg.mxu0
    %4247 = vmatprep.subr.mxu0 0.0
    %4248 = vmatpush1.msra.mxu0 0.0
    %4249 = vmatprep.subr.mxu0 0.0
    %4250 = vmatpush1.msra.mxu0 0.0
    %4251 = vmatprep.subr.mxu0 0.0
    %4252 = vmatpush1.msra.mxu0 0.0
    %4253 = vmatprep.subr.mxu0 0.0
    %4254 = vmatpush1.msra.mxu0 0.0
    %4255 = vmatprep.subr.mxu0 0.0
    %4256 = vmatpush1.msra.mxu0 0.0
    %4257 = vmatprep.subr.mxu0 0.0
    %4258 = vmatpush1.msra.mxu0 0.0
    %4259 = vmatprep.subr.mxu0 0.0
    %4260 = vmatpush1.msra.mxu0 0.0
    %4261 = vmatprep.subr.mxu0 0.0
    %4262 = vmatpush1.msra.mxu0 0.0
    %4263 = vmatprep.subr.mxu0 0.0
    %4264 = vmatpush1.msra.mxu0 0.0
    %4265 = vmatprep.subr.mxu0 0.0
    %4266 = vmatpush1.msra.mxu0 0.0
    %4267 = vmatprep.subr.mxu0 0.0
    %4268 = vmatpush1.msra.mxu0 %v3239
    %4269 = vmatprep.subr.mxu0 0.0
    %4270 = vmatpush1.msra.mxu0 %v3238
    %4271 = vmatprep.subr.mxu0 0.0
    %4272 = vmatpush1.msra.mxu0 %v3237
    %4273 = vmatprep.subr.mxu0 0.0
    %4274 = vmatpush1.msra.mxu0 %v3236
    %4275 = vmatprep.subr.mxu0 0.0
    %4276 = vmatpush1.msra.mxu0 %v3235
    %4277 = vmatprep.subr.mxu0 0.0
    %4278 = vmatpush1.msra.mxu0 %v3234
    %4279 = vmatprep.subr.mxu0 0.0
    %4280 = vmatpush2.msra.mxu0 0.0
    %4281 = vmatprep.subr.mxu0 0.0
    %4282 = vmatpush2.msra.mxu0 0.0
    %4283 = vmatprep.subr.mxu0 0.0
    %4284 = vmatpush2.msra.mxu0 0.0
    %4285 = vmatprep.subr.mxu0 0.0
    %4286 = vmatpush2.msra.mxu0 0.0
    %4287 = vmatprep.subr.mxu0 0.0
    %4288 = vmatpush2.msra.mxu0 0.0
    %4289 = vmatprep.subr.mxu0 0.0
    %4290 = vmatpush2.msra.mxu0 0.0
    %4291 = vmatprep.subr.mxu0 0.0
    %4292 = vmatpush2.msra.mxu0 0.0
    %4293 = vmatprep.subr.mxu0 0.0
    %4294 = vmatpush2.msra.mxu0 0.0
    %4295 = vmatprep.subr.mxu0 0.0
    %4296 = vmatpush2.msra.mxu0 0.0
    %4297 = vmatprep.subr.mxu0 0.0
    %4298 = vmatpush2.msra.mxu0 0.0
    %4299 = vmatprep.subr.mxu0 0.0
    %4300 = vmatpush2.msra.mxu0 0.0
    %4301 = vmatprep.subr.mxu0 0.0
    %4302 = vmatpush2.msra.mxu0 0.0
    %4303 = vmatprep.subr.mxu0 0.0
    %4304 = vmatpush2.msra.mxu0 0.0
    %4305 = vmatprep.subr.mxu0 0.0
    %4306 = vmatpush2.msra.mxu0 0.0
    %4307 = vmatprep.subr.mxu0 0.0
    %4308 = vmatpush2.msra.mxu0 0.0
    %4309 = vmatprep.subr.mxu0 0.0
    %4310 = vmatpush2.msra.mxu0 0.0
    %4311 = vmatprep.mubr.f32.mxu0 0.0
    %4312 = vmatmul.mubr.f32.gmra.mxu0 %v3267
    %v4313 = vpop.f32.mrf.mxu0
    %v4314 = vadd.f32 %v3259, %v4313
    %v4315 = vpop.f32.mrf.mxu0
    %4316 = vmatprep.mubr.f32.mxu0 0.0
    %4317 = vmatmul.mubr.f32.gmra.mxu0 %v3270
    %v4318 = vpop.f32.mrf.mxu0
    %v4319 = vadd.f32 %v3264, %v4318
    %v4320 = vpop.f32.mrf.mxu0
    %4321 = vdwg.mxu0
    %4322 = vmatprep.subr.mxu0 0.0
    %4323 = vmatpush1.msra.mxu0 0.0
    %4324 = vmatprep.subr.mxu0 0.0
    %4325 = vmatpush1.msra.mxu0 0.0
    %4326 = vmatprep.subr.mxu0 0.0
    %4327 = vmatpush1.msra.mxu0 0.0
    %4328 = vmatprep.subr.mxu0 0.0
    %4329 = vmatpush1.msra.mxu0 0.0
    %4330 = vmatprep.subr.mxu0 0.0
    %4331 = vmatpush1.msra.mxu0 0.0
    %4332 = vmatprep.subr.mxu0 0.0
    %4333 = vmatpush1.msra.mxu0 0.0
    %4334 = vmatprep.subr.mxu0 0.0
    %4335 = vmatpush1.msra.mxu0 0.0
    %4336 = vmatprep.subr.mxu0 0.0
    %4337 = vmatpush1.msra.mxu0 0.0
    %4338 = vmatprep.subr.mxu0 0.0
    %4339 = vmatpush1.msra.mxu0 0.0
    %4340 = vmatprep.subr.mxu0 0.0
    %4341 = vmatpush1.msra.mxu0 0.0
    %4342 = vmatprep.subr.mxu0 0.0
    %4343 = vmatpush1.msra.mxu0 %v3241
    %4344 = vmatprep.subr.mxu0 0.0
    %4345 = vmatpush1.msra.mxu0 %v3240
    %4346 = vmatprep.subr.mxu0 0.0
    %4347 = vmatpush1.msra.mxu0 %v3239
    %4348 = vmatprep.subr.mxu0 0.0
    %4349 = vmatpush1.msra.mxu0 %v3238
    %4350 = vmatprep.subr.mxu0 0.0
    %4351 = vmatpush1.msra.mxu0 %v3237
    %4352 = vmatprep.subr.mxu0 0.0
    %4353 = vmatpush1.msra.mxu0 %v3236
    %4354 = vmatprep.subr.mxu0 0.0
    %4355 = vmatpush2.msra.mxu0 0.0
    %4356 = vmatprep.subr.mxu0 0.0
    %4357 = vmatpush2.msra.mxu0 0.0
    %4358 = vmatprep.subr.mxu0 0.0
    %4359 = vmatpush2.msra.mxu0 0.0
    %4360 = vmatprep.subr.mxu0 0.0
    %4361 = vmatpush2.msra.mxu0 0.0
    %4362 = vmatprep.subr.mxu0 0.0
    %4363 = vmatpush2.msra.mxu0 0.0
    %4364 = vmatprep.subr.mxu0 0.0
    %4365 = vmatpush2.msra.mxu0 0.0
    %4366 = vmatprep.subr.mxu0 0.0
    %4367 = vmatpush2.msra.mxu0 0.0
    %4368 = vmatprep.subr.mxu0 0.0
    %4369 = vmatpush2.msra.mxu0 0.0
    %4370 = vmatprep.subr.mxu0 0.0
    %4371 = vmatpush2.msra.mxu0 0.0
    %4372 = vmatprep.subr.mxu0 0.0
    %4373 = vmatpush2.msra.mxu0 0.0
    %4374 = vmatprep.subr.mxu0 0.0
    %4375 = vmatpush2.msra.mxu0 0.0
    %4376 = vmatprep.subr.mxu0 0.0
    %4377 = vmatpush2.msra.mxu0 0.0
    %4378 = vmatprep.subr.mxu0 0.0
    %4379 = vmatpush2.msra.mxu0 0.0
    %4380 = vmatprep.subr.mxu0 0.0
    %4381 = vmatpush2.msra.mxu0 0.0
    %4382 = vmatprep.subr.mxu0 0.0
    %4383 = vmatpush2.msra.mxu0 0.0
    %4384 = vmatprep.subr.mxu0 0.0
    %4385 = vmatpush2.msra.mxu0 0.0
    %4386 = vmatprep.mubr.f32.mxu0 0.0
    %4387 = vmatmul.mubr.f32.gmra.mxu0 %v3267
    %v4388 = vpop.f32.mrf.mxu0
    %v4389 = vadd.f32 %v3259, %v4388
    %v4390 = vpop.f32.mrf.mxu0
    %4391 = vmatprep.mubr.f32.mxu0 0.0
    %4392 = vmatmul.mubr.f32.gmra.mxu0 %v3270
    %v4393 = vpop.f32.mrf.mxu0
    %v4394 = vadd.f32 %v3264, %v4393
    %v4395 = vpop.f32.mrf.mxu0
    %4396 = vdwg.mxu0
    %4397 = vmatprep.subr.mxu0 0.0
    %4398 = vmatpush1.msra.mxu0 0.0
    %4399 = vmatprep.subr.mxu0 0.0
    %4400 = vmatpush1.msra.mxu0 0.0
    %4401 = vmatprep.subr.mxu0 0.0
    %4402 = vmatpush1.msra.mxu0 0.0
    %4403 = vmatprep.subr.mxu0 0.0
    %4404 = vmatpush1.msra.mxu0 0.0
    %4405 = vmatprep.subr.mxu0 0.0
    %4406 = vmatpush1.msra.mxu0 0.0
    %4407 = vmatprep.subr.mxu0 0.0
    %4408 = vmatpush1.msra.mxu0 0.0
    %4409 = vmatprep.subr.mxu0 0.0
    %4410 = vmatpush1.msra.mxu0 0.0
    %4411 = vmatprep.subr.mxu0 0.0
    %4412 = vmatpush1.msra.mxu0 0.0
    %4413 = vmatprep.subr.mxu0 0.0
    %4414 = vmatpush1.msra.mxu0 0.0
    %4415 = vmatprep.subr.mxu0 0.0
    %4416 = vmatpush1.msra.mxu0 0.0
    %4417 = vmatprep.subr.mxu0 0.0
    %4418 = vmatpush1.msra.mxu0 %v3243
    %4419 = vmatprep.subr.mxu0 0.0
    %4420 = vmatpush1.msra.mxu0 %v3242
    %4421 = vmatprep.subr.mxu0 0.0
    %4422 = vmatpush1.msra.mxu0 %v3241
    %4423 = vmatprep.subr.mxu0 0.0
    %4424 = vmatpush1.msra.mxu0 %v3240
    %4425 = vmatprep.subr.mxu0 0.0
    %4426 = vmatpush1.msra.mxu0 %v3239
    %4427 = vmatprep.subr.mxu0 0.0
    %4428 = vmatpush1.msra.mxu0 %v3238
    %4429 = vmatprep.subr.mxu0 0.0
    %4430 = vmatpush2.msra.mxu0 0.0
    %4431 = vmatprep.subr.mxu0 0.0
    %4432 = vmatpush2.msra.mxu0 0.0
    %4433 = vmatprep.subr.mxu0 0.0
    %4434 = vmatpush2.msra.mxu0 0.0
    %4435 = vmatprep.subr.mxu0 0.0
    %4436 = vmatpush2.msra.mxu0 0.0
    %4437 = vmatprep.subr.mxu0 0.0
    %4438 = vmatpush2.msra.mxu0 0.0
    %4439 = vmatprep.subr.mxu0 0.0
    %4440 = vmatpush2.msra.mxu0 0.0
    %4441 = vmatprep.subr.mxu0 0.0
    %4442 = vmatpush2.msra.mxu0 0.0
    %4443 = vmatprep.subr.mxu0 0.0
    %4444 = vmatpush2.msra.mxu0 0.0
    %4445 = vmatprep.subr.mxu0 0.0
    %4446 = vmatpush2.msra.mxu0 0.0
    %4447 = vmatprep.subr.mxu0 0.0
    %4448 = vmatpush2.msra.mxu0 0.0
    %4449 = vmatprep.subr.mxu0 0.0
    %4450 = vmatpush2.msra.mxu0 0.0
    %4451 = vmatprep.subr.mxu0 0.0
    %4452 = vmatpush2.msra.mxu0 0.0
    %4453 = vmatprep.subr.mxu0 0.0
    %4454 = vmatpush2.msra.mxu0 0.0
    %4455 = vmatprep.subr.mxu0 0.0
    %4456 = vmatpush2.msra.mxu0 0.0
    %4457 = vmatprep.subr.mxu0 0.0
    %4458 = vmatpush2.msra.mxu0 0.0
    %4459 = vmatprep.subr.mxu0 0.0
    %4460 = vmatpush2.msra.mxu0 0.0
    %4461 = vmatprep.mubr.f32.mxu0 0.0
    %4462 = vmatmul.mubr.f32.gmra.mxu0 %v3267
    %v4463 = vpop.f32.mrf.mxu0
    %v4464 = vadd.f32 %v3259, %v4463
    %v4465 = vpop.f32.mrf.mxu0
    %4466 = vmatprep.mubr.f32.mxu0 0.0
    %4467 = vmatmul.mubr.f32.gmra.mxu0 %v3270
    %v4468 = vpop.f32.mrf.mxu0
    %v4469 = vadd.f32 %v3264, %v4468
    %v4470 = vpop.f32.mrf.mxu0
    %4471 = vdwg.mxu0
    %4472 = vmatprep.subr.mxu0 0.0
    %4473 = vmatpush1.msra.mxu0 0.0
    %4474 = vmatprep.subr.mxu0 0.0
    %4475 = vmatpush1.msra.mxu0 0.0
    %4476 = vmatprep.subr.mxu0 0.0
    %4477 = vmatpush1.msra.mxu0 0.0
    %4478 = vmatprep.subr.mxu0 0.0
    %4479 = vmatpush1.msra.mxu0 0.0
    %4480 = vmatprep.subr.mxu0 0.0
    %4481 = vmatpush1.msra.mxu0 0.0
    %4482 = vmatprep.subr.mxu0 0.0
    %4483 = vmatpush1.msra.mxu0 0.0
    %4484 = vmatprep.subr.mxu0 0.0
    %4485 = vmatpush1.msra.mxu0 0.0
    %4486 = vmatprep.subr.mxu0 0.0
    %4487 = vmatpush1.msra.mxu0 0.0
    %4488 = vmatprep.subr.mxu0 0.0
    %4489 = vmatpush1.msra.mxu0 0.0
    %4490 = vmatprep.subr.mxu0 0.0
    %4491 = vmatpush1.msra.mxu0 0.0
    %4492 = vmatprep.subr.mxu0 0.0
    %4493 = vmatpush1.msra.mxu0 %v3245
    %4494 = vmatprep.subr.mxu0 0.0
    %4495 = vmatpush1.msra.mxu0 %v3244
    %4496 = vmatprep.subr.mxu0 0.0
    %4497 = vmatpush1.msra.mxu0 %v3243
    %4498 = vmatprep.subr.mxu0 0.0
    %4499 = vmatpush1.msra.mxu0 %v3242
    %4500 = vmatprep.subr.mxu0 0.0
    %4501 = vmatpush1.msra.mxu0 %v3241
    %4502 = vmatprep.subr.mxu0 0.0
    %4503 = vmatpush1.msra.mxu0 %v3240
    %4504 = vmatprep.subr.mxu0 0.0
    %4505 = vmatpush2.msra.mxu0 0.0
    %4506 = vmatprep.subr.mxu0 0.0
    %4507 = vmatpush2.msra.mxu0 0.0
    %4508 = vmatprep.subr.mxu0 0.0
    %4509 = vmatpush2.msra.mxu0 0.0
    %4510 = vmatprep.subr.mxu0 0.0
    %4511 = vmatpush2.msra.mxu0 0.0
    %4512 = vmatprep.subr.mxu0 0.0
    %4513 = vmatpush2.msra.mxu0 0.0
    %4514 = vmatprep.subr.mxu0 0.0
    %4515 = vmatpush2.msra.mxu0 0.0
    %4516 = vmatprep.subr.mxu0 0.0
    %4517 = vmatpush2.msra.mxu0 0.0
    %4518 = vmatprep.subr.mxu0 0.0
    %4519 = vmatpush2.msra.mxu0 0.0
    %4520 = vmatprep.subr.mxu0 0.0
    %4521 = vmatpush2.msra.mxu0 0.0
    %4522 = vmatprep.subr.mxu0 0.0
    %4523 = vmatpush2.msra.mxu0 0.0
    %4524 = vmatprep.subr.mxu0 0.0
    %4525 = vmatpush2.msra.mxu0 0.0
    %4526 = vmatprep.subr.mxu0 0.0
    %4527 = vmatpush2.msra.mxu0 0.0
    %4528 = vmatprep.subr.mxu0 0.0
    %4529 = vmatpush2.msra.mxu0 0.0
    %4530 = vmatprep.subr.mxu0 0.0
    %4531 = vmatpush2.msra.mxu0 0.0
    %4532 = vmatprep.subr.mxu0 0.0
    %4533 = vmatpush2.msra.mxu0 0.0
    %4534 = vmatprep.subr.mxu0 0.0
    %4535 = vmatpush2.msra.mxu0 0.0
    %4536 = vmatprep.mubr.f32.mxu0 0.0
    %4537 = vmatmul.mubr.f32.gmra.mxu0 %v3267
    %v4538 = vpop.f32.mrf.mxu0
    %v4539 = vadd.f32 %v3259, %v4538
    %v4540 = vpop.f32.mrf.mxu0
    %4541 = vmatprep.mubr.f32.mxu0 0.0
    %4542 = vmatmul.mubr.f32.gmra.mxu0 %v3270
    %v4543 = vpop.f32.mrf.mxu0
    %v4544 = vadd.f32 %v3264, %v4543
    %v4545 = vpop.f32.mrf.mxu0
    %4546 = vdwg.mxu0
    %4547 = vmatprep.subr.mxu0 0.0
    %4548 = vmatpush1.msra.mxu0 0.0
    %4549 = vmatprep.subr.mxu0 0.0
    %4550 = vmatpush1.msra.mxu0 0.0
    %4551 = vmatprep.subr.mxu0 0.0
    %4552 = vmatpush1.msra.mxu0 0.0
    %4553 = vmatprep.subr.mxu0 0.0
    %4554 = vmatpush1.msra.mxu0 0.0
    %4555 = vmatprep.subr.mxu0 0.0
    %4556 = vmatpush1.msra.mxu0 0.0
    %4557 = vmatprep.subr.mxu0 0.0
    %4558 = vmatpush1.msra.mxu0 0.0
    %4559 = vmatprep.subr.mxu0 0.0
    %4560 = vmatpush1.msra.mxu0 0.0
    %4561 = vmatprep.subr.mxu0 0.0
    %4562 = vmatpush1.msra.mxu0 0.0
    %4563 = vmatprep.subr.mxu0 0.0
    %4564 = vmatpush1.msra.mxu0 0.0
    %4565 = vmatprep.subr.mxu0 0.0
    %4566 = vmatpush1.msra.mxu0 0.0
    %4567 = vmatprep.subr.mxu0 0.0
    %4568 = vmatpush1.msra.mxu0 %v3247
    %4569 = vmatprep.subr.mxu0 0.0
    %4570 = vmatpush1.msra.mxu0 %v3246
    %4571 = vmatprep.subr.mxu0 0.0
    %4572 = vmatpush1.msra.mxu0 %v3245
    %4573 = vmatprep.subr.mxu0 0.0
    %4574 = vmatpush1.msra.mxu0 %v3244
    %4575 = vmatprep.subr.mxu0 0.0
    %4576 = vmatpush1.msra.mxu0 %v3243
    %4577 = vmatprep.subr.mxu0 0.0
    %4578 = vmatpush1.msra.mxu0 %v3242
    %4579 = vmatprep.subr.mxu0 0.0
    %4580 = vmatpush2.msra.mxu0 0.0
    %4581 = vmatprep.subr.mxu0 0.0
    %4582 = vmatpush2.msra.mxu0 0.0
    %4583 = vmatprep.subr.mxu0 0.0
    %4584 = vmatpush2.msra.mxu0 0.0
    %4585 = vmatprep.subr.mxu0 0.0
    %4586 = vmatpush2.msra.mxu0 0.0
    %4587 = vmatprep.subr.mxu0 0.0
    %4588 = vmatpush2.msra.mxu0 0.0
    %4589 = vmatprep.subr.mxu0 0.0
    %4590 = vmatpush2.msra.mxu0 0.0
    %4591 = vmatprep.subr.mxu0 0.0
    %4592 = vmatpush2.msra.mxu0 0.0
    %4593 = vmatprep.subr.mxu0 0.0
    %4594 = vmatpush2.msra.mxu0 0.0
    %4595 = vmatprep.subr.mxu0 0.0
    %4596 = vmatpush2.msra.mxu0 0.0
    %4597 = vmatprep.subr.mxu0 0.0
    %4598 = vmatpush2.msra.mxu0 0.0
    %4599 = vmatprep.subr.mxu0 0.0
    %4600 = vmatpush2.msra.mxu0 0.0
    %4601 = vmatprep.subr.mxu0 0.0
    %4602 = vmatpush2.msra.mxu0 0.0
    %4603 = vmatprep.subr.mxu0 0.0
    %4604 = vmatpush2.msra.mxu0 0.0
    %4605 = vmatprep.subr.mxu0 0.0
    %4606 = vmatpush2.msra.mxu0 0.0
    %4607 = vmatprep.subr.mxu0 0.0
    %4608 = vmatpush2.msra.mxu0 0.0
    %4609 = vmatprep.subr.mxu0 0.0
    %4610 = vmatpush2.msra.mxu0 0.0
    %4611 = vmatprep.mubr.f32.mxu0 0.0
    %4612 = vmatmul.mubr.f32.gmra.mxu0 %v3267
    %v4613 = vpop.f32.mrf.mxu0
    %v4614 = vadd.f32 %v3259, %v4613
    %v4615 = vpop.f32.mrf.mxu0
    %4616 = vmatprep.mubr.f32.mxu0 0.0
    %4617 = vmatmul.mubr.f32.gmra.mxu0 %v3270
    %v4618 = vpop.f32.mrf.mxu0
    %v4619 = vadd.f32 %v3264, %v4618
    %v4620 = vpop.f32.mrf.mxu0
    %4621 = vdwg.mxu0
    %4622 = vmatprep.subr.mxu0 0.0
    %4623 = vmatpush1.msra.mxu0 0.0
    %4624 = vmatprep.subr.mxu0 0.0
    %4625 = vmatpush1.msra.mxu0 0.0
    %4626 = vmatprep.subr.mxu0 0.0
    %4627 = vmatpush1.msra.mxu0 0.0
    %4628 = vmatprep.subr.mxu0 0.0
    %4629 = vmatpush1.msra.mxu0 0.0
    %4630 = vmatprep.subr.mxu0 0.0
    %4631 = vmatpush1.msra.mxu0 0.0
    %4632 = vmatprep.subr.mxu0 0.0
    %4633 = vmatpush1.msra.mxu0 0.0
    %4634 = vmatprep.subr.mxu0 0.0
    %4635 = vmatpush1.msra.mxu0 0.0
    %4636 = vmatprep.subr.mxu0 0.0
    %4637 = vmatpush1.msra.mxu0 0.0
    %4638 = vmatprep.subr.mxu0 0.0
    %4639 = vmatpush1.msra.mxu0 0.0
    %4640 = vmatprep.subr.mxu0 0.0
    %4641 = vmatpush1.msra.mxu0 0.0
    %4642 = vmatprep.subr.mxu0 0.0
    %4643 = vmatpush1.msra.mxu0 %v3249
    %4644 = vmatprep.subr.mxu0 0.0
    %4645 = vmatpush1.msra.mxu0 %v3248
    %4646 = vmatprep.subr.mxu0 0.0
    %4647 = vmatpush1.msra.mxu0 %v3247
    %4648 = vmatprep.subr.mxu0 0.0
    %4649 = vmatpush1.msra.mxu0 %v3246
    %4650 = vmatprep.subr.mxu0 0.0
    %4651 = vmatpush1.msra.mxu0 %v3245
    %4652 = vmatprep.subr.mxu0 0.0
    %4653 = vmatpush1.msra.mxu0 %v3244
    %4654 = vmatprep.subr.mxu0 0.0
    %4655 = vmatpush2.msra.mxu0 0.0
    %4656 = vmatprep.subr.mxu0 0.0
    %4657 = vmatpush2.msra.mxu0 0.0
    %4658 = vmatprep.subr.mxu0 0.0
    %4659 = vmatpush2.msra.mxu0 0.0
    %4660 = vmatprep.subr.mxu0 0.0
    %4661 = vmatpush2.msra.mxu0 0.0
    %4662 = vmatprep.subr.mxu0 0.0
    %4663 = vmatpush2.msra.mxu0 0.0
    %4664 = vmatprep.subr.mxu0 0.0
    %4665 = vmatpush2.msra.mxu0 0.0
    %4666 = vmatprep.subr.mxu0 0.0
    %4667 = vmatpush2.msra.mxu0 0.0
    %4668 = vmatprep.subr.mxu0 0.0
    %4669 = vmatpush2.msra.mxu0 0.0
    %4670 = vmatprep.subr.mxu0 0.0
    %4671 = vmatpush2.msra.mxu0 0.0
    %4672 = vmatprep.subr.mxu0 0.0
    %4673 = vmatpush2.msra.mxu0 0.0
    %4674 = vmatprep.subr.mxu0 0.0
    %4675 = vmatpush2.msra.mxu0 0.0
    %4676 = vmatprep.subr.mxu0 0.0
    %4677 = vmatpush2.msra.mxu0 0.0
    %4678 = vmatprep.subr.mxu0 0.0
    %4679 = vmatpush2.msra.mxu0 0.0
    %4680 = vmatprep.subr.mxu0 0.0
    %4681 = vmatpush2.msra.mxu0 0.0
    %4682 = vmatprep.subr.mxu0 0.0
    %4683 = vmatpush2.msra.mxu0 0.0
    %4684 = vmatprep.subr.mxu0 0.0
    %4685 = vmatpush2.msra.mxu0 0.0
    %4686 = vmatprep.mubr.f32.mxu0 0.0
    %4687 = vmatmul.mubr.f32.gmra.mxu0 %v3267
    %v4688 = vpop.f32.mrf.mxu0
    %v4689 = vadd.f32 %v3259, %v4688
    %v4690 = vpop.f32.mrf.mxu0
    %4691 = vmatprep.mubr.f32.mxu0 0.0
    %4692 = vmatmul.mubr.f32.gmra.mxu0 %v3270
    %v4693 = vpop.f32.mrf.mxu0
    %v4694 = vadd.f32 %v3264, %v4693
    %v4695 = vpop.f32.mrf.mxu0
    %4696 = vdwg.mxu0
    %4697 = vmatprep.subr.mxu0 0.0
    %4698 = vmatpush1.msra.mxu0 0.0
    %4699 = vmatprep.subr.mxu0 0.0
    %4700 = vmatpush1.msra.mxu0 0.0
    %4701 = vmatprep.subr.mxu0 0.0
    %4702 = vmatpush1.msra.mxu0 0.0
    %4703 = vmatprep.subr.mxu0 0.0
    %4704 = vmatpush1.msra.mxu0 0.0
    %4705 = vmatprep.subr.mxu0 0.0
    %4706 = vmatpush1.msra.mxu0 0.0
    %4707 = vmatprep.subr.mxu0 0.0
    %4708 = vmatpush1.msra.mxu0 0.0
    %4709 = vmatprep.subr.mxu0 0.0
    %4710 = vmatpush1.msra.mxu0 0.0
    %4711 = vmatprep.subr.mxu0 0.0
    %4712 = vmatpush1.msra.mxu0 0.0
    %4713 = vmatprep.subr.mxu0 0.0
    %4714 = vmatpush1.msra.mxu0 0.0
    %4715 = vmatprep.subr.mxu0 0.0
    %4716 = vmatpush1.msra.mxu0 0.0
    %4717 = vmatprep.subr.mxu0 0.0
    %4718 = vmatpush1.msra.mxu0 0.0
    %4719 = vmatprep.subr.mxu0 0.0
    %4720 = vmatpush1.msra.mxu0 0.0
    %4721 = vmatprep.subr.mxu0 0.0
    %4722 = vmatpush1.msra.mxu0 %v3249
    %4723 = vmatprep.subr.mxu0 0.0
    %4724 = vmatpush1.msra.mxu0 %v3248
    %4725 = vmatprep.subr.mxu0 0.0
    %4726 = vmatpush1.msra.mxu0 %v3247
    %4727 = vmatprep.subr.mxu0 0.0
    %4728 = vmatpush1.msra.mxu0 %v3246
    %4729 = vmatprep.subr.mxu0 0.0
    %4730 = vmatpush2.msra.mxu0 0.0
    %4731 = vmatprep.subr.mxu0 0.0
    %4732 = vmatpush2.msra.mxu0 0.0
    %4733 = vmatprep.subr.mxu0 0.0
    %4734 = vmatpush2.msra.mxu0 0.0
    %4735 = vmatprep.subr.mxu0 0.0
    %4736 = vmatpush2.msra.mxu0 0.0
    %4737 = vmatprep.subr.mxu0 0.0
    %4738 = vmatpush2.msra.mxu0 0.0
    %4739 = vmatprep.subr.mxu0 0.0
    %4740 = vmatpush2.msra.mxu0 0.0
    %4741 = vmatprep.subr.mxu0 0.0
    %4742 = vmatpush2.msra.mxu0 0.0
    %4743 = vmatprep.subr.mxu0 0.0
    %4744 = vmatpush2.msra.mxu0 0.0
    %4745 = vmatprep.subr.mxu0 0.0
    %4746 = vmatpush2.msra.mxu0 0.0
    %4747 = vmatprep.subr.mxu0 0.0
    %4748 = vmatpush2.msra.mxu0 0.0
    %4749 = vmatprep.subr.mxu0 0.0
    %4750 = vmatpush2.msra.mxu0 0.0
    %4751 = vmatprep.subr.mxu0 0.0
    %4752 = vmatpush2.msra.mxu0 0.0
    %4753 = vmatprep.subr.mxu0 0.0
    %4754 = vmatpush2.msra.mxu0 0.0
    %4755 = vmatprep.subr.mxu0 0.0
    %4756 = vmatpush2.msra.mxu0 0.0
    %4757 = vmatprep.subr.mxu0 0.0
    %4758 = vmatpush2.msra.mxu0 0.0
    %4759 = vmatprep.subr.mxu0 0.0
    %4760 = vmatpush2.msra.mxu0 0.0
    %4761 = vmatprep.mubr.f32.mxu0 0.0
    %4762 = vmatmul.mubr.f32.gmra.mxu0 %v3267
    %v4763 = vpop.f32.mrf.mxu0
    %v4764 = vadd.f32 %v3259, %v4763
    %v4765 = vpop.f32.mrf.mxu0
    %4766 = vmatprep.mubr.f32.mxu0 0.0
    %4767 = vmatmul.mubr.f32.gmra.mxu0 %v3270
    %v4768 = vpop.f32.mrf.mxu0
    %v4769 = vadd.f32 %v3264, %v4768
    %v4770 = vpop.f32.mrf.mxu0
    %4771 = vdwg.mxu0
    %s4772 = scalar_lea.vmem %s1, 32
    %v4773 = vld [vmem:[%s4772] sm:$0xff]
    %v4774 = vld [vmem:[%s4772 + $0x8] sm:$0xff]
    %s4775 = scalar_lea.vmem %s2, 32
    %v4776 = vld [vmem:[%s4775] sm:$0xff]
    %v4777 = vld [vmem:[%s4775 + $0x8] sm:$0xff]
    %4779 = vset.pattern.permute.xlu0 0
    %4780 = vperm.xlu0 %4779, %v4776
    %v4781 = vpop.permute.xlu0 %4780
    %4784 = vset.pattern.permute.xlu0 0
    %4785 = vperm.xlu0 %4784, %v4777
    %v4786 = vpop.permute.xlu0 %4785
    %v4789 = vsel %vm123, %v4773, 0
    %v4792 = vsel %vm123, %v4774, 0
    %4794 = vmatprep.subr.mxu0 0.0
    %4795 = vmatpush1.msra.mxu0 0.0
    %4796 = vmatprep.subr.mxu0 0.0
    %4797 = vmatpush1.msra.mxu0 0.0
    %4798 = vmatprep.subr.mxu0 0.0
    %4799 = vmatpush1.msra.mxu0 0.0
    %4800 = vmatprep.subr.mxu0 0.0
    %4801 = vmatpush1.msra.mxu0 0.0
    %4802 = vmatprep.subr.mxu0 0.0
    %4803 = vmatpush1.msra.mxu0 0.0
    %4804 = vmatprep.subr.mxu0 0.0
    %4805 = vmatpush1.msra.mxu0 0.0
    %4806 = vmatprep.subr.mxu0 0.0
    %4807 = vmatpush1.msra.mxu0 0.0
    %4808 = vmatprep.subr.mxu0 0.0
    %4809 = vmatpush1.msra.mxu0 0.0
    %4810 = vmatprep.subr.mxu0 0.0
    %4811 = vmatpush1.msra.mxu0 0.0
    %4812 = vmatprep.subr.mxu0 0.0
    %4813 = vmatpush1.msra.mxu0 0.0
    %4814 = vmatprep.subr.mxu0 0.0
    %4815 = vmatpush1.msra.mxu0 %v3419
    %4816 = vmatprep.subr.mxu0 0.0
    %4817 = vmatpush1.msra.mxu0 %v3414
    %4818 = vmatprep.subr.mxu0 0.0
    %4819 = vmatpush1.msra.mxu0 %v3344
    %4820 = vmatprep.subr.mxu0 0.0
    %4821 = vmatpush1.msra.mxu0 %v3339
    %4822 = vmatprep.subr.mxu0 0.0
    %4823 = vmatpush1.msra.mxu0 0.0
    %4824 = vmatprep.subr.mxu0 0.0
    %4825 = vmatpush1.msra.mxu0 0.0
    %4826 = vmatprep.subr.mxu0 0.0
    %4827 = vmatpush2.msra.mxu0 0.0
    %4828 = vmatprep.subr.mxu0 0.0
    %4829 = vmatpush2.msra.mxu0 0.0
    %4830 = vmatprep.subr.mxu0 0.0
    %4831 = vmatpush2.msra.mxu0 0.0
    %4832 = vmatprep.subr.mxu0 0.0
    %4833 = vmatpush2.msra.mxu0 0.0
    %4834 = vmatprep.subr.mxu0 0.0
    %4835 = vmatpush2.msra.mxu0 0.0
    %4836 = vmatprep.subr.mxu0 0.0
    %4837 = vmatpush2.msra.mxu0 0.0
    %4838 = vmatprep.subr.mxu0 0.0
    %4839 = vmatpush2.msra.mxu0 0.0
    %4840 = vmatprep.subr.mxu0 0.0
    %4841 = vmatpush2.msra.mxu0 0.0
    %4842 = vmatprep.subr.mxu0 0.0
    %4843 = vmatpush2.msra.mxu0 0.0
    %4844 = vmatprep.subr.mxu0 0.0
    %4845 = vmatpush2.msra.mxu0 0.0
    %4846 = vmatprep.subr.mxu0 0.0
    %4847 = vmatpush2.msra.mxu0 0.0
    %4848 = vmatprep.subr.mxu0 0.0
    %4849 = vmatpush2.msra.mxu0 0.0
    %4850 = vmatprep.subr.mxu0 0.0
    %4851 = vmatpush2.msra.mxu0 0.0
    %4852 = vmatprep.subr.mxu0 0.0
    %4853 = vmatpush2.msra.mxu0 0.0
    %4854 = vmatprep.subr.mxu0 0.0
    %4855 = vmatpush2.msra.mxu0 0.0
    %4856 = vmatprep.subr.mxu0 0.0
    %4857 = vmatpush2.msra.mxu0 0.0
    %4858 = vmatprep.mubr.f32.mxu0 0.0
    %4859 = vmatmul.mubr.f32.gmra.mxu0 %v4789
    %v4860 = vpop.f32.mrf.mxu0
    %v4861 = vadd.f32 %v4781, %v4860
    %v4862 = vpop.f32.mrf.mxu0
    %4863 = vmatprep.mubr.f32.mxu0 0.0
    %4864 = vmatmul.mubr.f32.gmra.mxu0 %v4792
    %v4865 = vpop.f32.mrf.mxu0
    %v4866 = vadd.f32 %v4786, %v4865
    %v4867 = vpop.f32.mrf.mxu0
    %4868 = vdwg.mxu0
    %4869 = vmatprep.subr.mxu0 0.0
    %4870 = vmatpush1.msra.mxu0 0.0
    %4871 = vmatprep.subr.mxu0 0.0
    %4872 = vmatpush1.msra.mxu0 0.0
    %4873 = vmatprep.subr.mxu0 0.0
    %4874 = vmatpush1.msra.mxu0 0.0
    %4875 = vmatprep.subr.mxu0 0.0
    %4876 = vmatpush1.msra.mxu0 0.0
    %4877 = vmatprep.subr.mxu0 0.0
    %4878 = vmatpush1.msra.mxu0 0.0
    %4879 = vmatprep.subr.mxu0 0.0
    %4880 = vmatpush1.msra.mxu0 0.0
    %4881 = vmatprep.subr.mxu0 0.0
    %4882 = vmatpush1.msra.mxu0 0.0
    %4883 = vmatprep.subr.mxu0 0.0
    %4884 = vmatpush1.msra.mxu0 0.0
    %4885 = vmatprep.subr.mxu0 0.0
    %4886 = vmatpush1.msra.mxu0 0.0
    %4887 = vmatprep.subr.mxu0 0.0
    %4888 = vmatpush1.msra.mxu0 0.0
    %4889 = vmatprep.subr.mxu0 0.0
    %4890 = vmatpush1.msra.mxu0 %v3494
    %4891 = vmatprep.subr.mxu0 0.0
    %4892 = vmatpush1.msra.mxu0 %v3489
    %4893 = vmatprep.subr.mxu0 0.0
    %4894 = vmatpush1.msra.mxu0 %v3419
    %4895 = vmatprep.subr.mxu0 0.0
    %4896 = vmatpush1.msra.mxu0 %v3414
    %4897 = vmatprep.subr.mxu0 0.0
    %4898 = vmatpush1.msra.mxu0 %v3344
    %4899 = vmatprep.subr.mxu0 0.0
    %4900 = vmatpush1.msra.mxu0 %v3339
    %4901 = vmatprep.subr.mxu0 0.0
    %4902 = vmatpush2.msra.mxu0 0.0
    %4903 = vmatprep.subr.mxu0 0.0
    %4904 = vmatpush2.msra.mxu0 0.0
    %4905 = vmatprep.subr.mxu0 0.0
    %4906 = vmatpush2.msra.mxu0 0.0
    %4907 = vmatprep.subr.mxu0 0.0
    %4908 = vmatpush2.msra.mxu0 0.0
    %4909 = vmatprep.subr.mxu0 0.0
    %4910 = vmatpush2.msra.mxu0 0.0
    %4911 = vmatprep.subr.mxu0 0.0
    %4912 = vmatpush2.msra.mxu0 0.0
    %4913 = vmatprep.subr.mxu0 0.0
    %4914 = vmatpush2.msra.mxu0 0.0
    %4915 = vmatprep.subr.mxu0 0.0
    %4916 = vmatpush2.msra.mxu0 0.0
    %4917 = vmatprep.subr.mxu0 0.0
    %4918 = vmatpush2.msra.mxu0 0.0
    %4919 = vmatprep.subr.mxu0 0.0
    %4920 = vmatpush2.msra.mxu0 0.0
    %4921 = vmatprep.subr.mxu0 0.0
    %4922 = vmatpush2.msra.mxu0 0.0
    %4923 = vmatprep.subr.mxu0 0.0
    %4924 = vmatpush2.msra.mxu0 0.0
    %4925 = vmatprep.subr.mxu0 0.0
    %4926 = vmatpush2.msra.mxu0 0.0
    %4927 = vmatprep.subr.mxu0 0.0
    %4928 = vmatpush2.msra.mxu0 0.0
    %4929 = vmatprep.subr.mxu0 0.0
    %4930 = vmatpush2.msra.mxu0 0.0
    %4931 = vmatprep.subr.mxu0 0.0
    %4932 = vmatpush2.msra.mxu0 0.0
    %4933 = vmatprep.mubr.f32.mxu0 0.0
    %4934 = vmatmul.mubr.f32.gmra.mxu0 %v4789
    %v4935 = vpop.f32.mrf.mxu0
    %v4936 = vadd.f32 %v4781, %v4935
    %v4937 = vpop.f32.mrf.mxu0
    %4938 = vmatprep.mubr.f32.mxu0 0.0
    %4939 = vmatmul.mubr.f32.gmra.mxu0 %v4792
    %v4940 = vpop.f32.mrf.mxu0
    %v4941 = vadd.f32 %v4786, %v4940
    %v4942 = vpop.f32.mrf.mxu0
    %4943 = vdwg.mxu0
    %4944 = vmatprep.subr.mxu0 0.0
    %4945 = vmatpush1.msra.mxu0 0.0
    %4946 = vmatprep.subr.mxu0 0.0
    %4947 = vmatpush1.msra.mxu0 0.0
    %4948 = vmatprep.subr.mxu0 0.0
    %4949 = vmatpush1.msra.mxu0 0.0
    %4950 = vmatprep.subr.mxu0 0.0
    %4951 = vmatpush1.msra.mxu0 0.0
    %4952 = vmatprep.subr.mxu0 0.0
    %4953 = vmatpush1.msra.mxu0 0.0
    %4954 = vmatprep.subr.mxu0 0.0
    %4955 = vmatpush1.msra.mxu0 0.0
    %4956 = vmatprep.subr.mxu0 0.0
    %4957 = vmatpush1.msra.mxu0 0.0
    %4958 = vmatprep.subr.mxu0 0.0
    %4959 = vmatpush1.msra.mxu0 0.0
    %4960 = vmatprep.subr.mxu0 0.0
    %4961 = vmatpush1.msra.mxu0 0.0
    %4962 = vmatprep.subr.mxu0 0.0
    %4963 = vmatpush1.msra.mxu0 0.0
    %4964 = vmatprep.subr.mxu0 0.0
    %4965 = vmatpush1.msra.mxu0 %v3569
    %4966 = vmatprep.subr.mxu0 0.0
    %4967 = vmatpush1.msra.mxu0 %v3564
    %4968 = vmatprep.subr.mxu0 0.0
    %4969 = vmatpush1.msra.mxu0 %v3494
    %4970 = vmatprep.subr.mxu0 0.0
    %4971 = vmatpush1.msra.mxu0 %v3489
    %4972 = vmatprep.subr.mxu0 0.0
    %4973 = vmatpush1.msra.mxu0 %v3419
    %4974 = vmatprep.subr.mxu0 0.0
    %4975 = vmatpush1.msra.mxu0 %v3414
    %4976 = vmatprep.subr.mxu0 0.0
    %4977 = vmatpush2.msra.mxu0 0.0
    %4978 = vmatprep.subr.mxu0 0.0
    %4979 = vmatpush2.msra.mxu0 0.0
    %4980 = vmatprep.subr.mxu0 0.0
    %4981 = vmatpush2.msra.mxu0 0.0
    %4982 = vmatprep.subr.mxu0 0.0
    %4983 = vmatpush2.msra.mxu0 0.0
    %4984 = vmatprep.subr.mxu0 0.0
    %4985 = vmatpush2.msra.mxu0 0.0
    %4986 = vmatprep.subr.mxu0 0.0
    %4987 = vmatpush2.msra.mxu0 0.0
    %4988 = vmatprep.subr.mxu0 0.0
    %4989 = vmatpush2.msra.mxu0 0.0
    %4990 = vmatprep.subr.mxu0 0.0
    %4991 = vmatpush2.msra.mxu0 0.0
    %4992 = vmatprep.subr.mxu0 0.0
    %4993 = vmatpush2.msra.mxu0 0.0
    %4994 = vmatprep.subr.mxu0 0.0
    %4995 = vmatpush2.msra.mxu0 0.0
    %4996 = vmatprep.subr.mxu0 0.0
    %4997 = vmatpush2.msra.mxu0 0.0
    %4998 = vmatprep.subr.mxu0 0.0
    %4999 = vmatpush2.msra.mxu0 0.0
    %5000 = vmatprep.subr.mxu0 0.0
    %5001 = vmatpush2.msra.mxu0 0.0
    %5002 = vmatprep.subr.mxu0 0.0
    %5003 = vmatpush2.msra.mxu0 0.0
    %5004 = vmatprep.subr.mxu0 0.0
    %5005 = vmatpush2.msra.mxu0 0.0
    %5006 = vmatprep.subr.mxu0 0.0
    %5007 = vmatpush2.msra.mxu0 0.0
    %5008 = vmatprep.mubr.f32.mxu0 0.0
    %5009 = vmatmul.mubr.f32.gmra.mxu0 %v4789
    %v5010 = vpop.f32.mrf.mxu0
    %v5011 = vadd.f32 %v4781, %v5010
    %v5012 = vpop.f32.mrf.mxu0
    %5013 = vmatprep.mubr.f32.mxu0 0.0
    %5014 = vmatmul.mubr.f32.gmra.mxu0 %v4792
    %v5015 = vpop.f32.mrf.mxu0
    %v5016 = vadd.f32 %v4786, %v5015
    %v5017 = vpop.f32.mrf.mxu0
    %5018 = vdwg.mxu0
    %5019 = vmatprep.subr.mxu0 0.0
    %5020 = vmatpush1.msra.mxu0 0.0
    %5021 = vmatprep.subr.mxu0 0.0
    %5022 = vmatpush1.msra.mxu0 0.0
    %5023 = vmatprep.subr.mxu0 0.0
    %5024 = vmatpush1.msra.mxu0 0.0
    %5025 = vmatprep.subr.mxu0 0.0
    %5026 = vmatpush1.msra.mxu0 0.0
    %5027 = vmatprep.subr.mxu0 0.0
    %5028 = vmatpush1.msra.mxu0 0.0
    %5029 = vmatprep.subr.mxu0 0.0
    %5030 = vmatpush1.msra.mxu0 0.0
    %5031 = vmatprep.subr.mxu0 0.0
    %5032 = vmatpush1.msra.mxu0 0.0
    %5033 = vmatprep.subr.mxu0 0.0
    %5034 = vmatpush1.msra.mxu0 0.0
    %5035 = vmatprep.subr.mxu0 0.0
    %5036 = vmatpush1.msra.mxu0 0.0
    %5037 = vmatprep.subr.mxu0 0.0
    %5038 = vmatpush1.msra.mxu0 0.0
    %5039 = vmatprep.subr.mxu0 0.0
    %5040 = vmatpush1.msra.mxu0 %v3644
    %5041 = vmatprep.subr.mxu0 0.0
    %5042 = vmatpush1.msra.mxu0 %v3639
    %5043 = vmatprep.subr.mxu0 0.0
    %5044 = vmatpush1.msra.mxu0 %v3569
    %5045 = vmatprep.subr.mxu0 0.0
    %5046 = vmatpush1.msra.mxu0 %v3564
    %5047 = vmatprep.subr.mxu0 0.0
    %5048 = vmatpush1.msra.mxu0 %v3494
    %5049 = vmatprep.subr.mxu0 0.0
    %5050 = vmatpush1.msra.mxu0 %v3489
    %5051 = vmatprep.subr.mxu0 0.0
    %5052 = vmatpush2.msra.mxu0 0.0
    %5053 = vmatprep.subr.mxu0 0.0
    %5054 = vmatpush2.msra.mxu0 0.0
    %5055 = vmatprep.subr.mxu0 0.0
    %5056 = vmatpush2.msra.mxu0 0.0
    %5057 = vmatprep.subr.mxu0 0.0
    %5058 = vmatpush2.msra.mxu0 0.0
    %5059 = vmatprep.subr.mxu0 0.0
    %5060 = vmatpush2.msra.mxu0 0.0
    %5061 = vmatprep.subr.mxu0 0.0
    %5062 = vmatpush2.msra.mxu0 0.0
    %5063 = vmatprep.subr.mxu0 0.0
    %5064 = vmatpush2.msra.mxu0 0.0
    %5065 = vmatprep.subr.mxu0 0.0
    %5066 = vmatpush2.msra.mxu0 0.0
    %5067 = vmatprep.subr.mxu0 0.0
    %5068 = vmatpush2.msra.mxu0 0.0
    %5069 = vmatprep.subr.mxu0 0.0
    %5070 = vmatpush2.msra.mxu0 0.0
    %5071 = vmatprep.subr.mxu0 0.0
    %5072 = vmatpush2.msra.mxu0 0.0
    %5073 = vmatprep.subr.mxu0 0.0
    %5074 = vmatpush2.msra.mxu0 0.0
    %5075 = vmatprep.subr.mxu0 0.0
    %5076 = vmatpush2.msra.mxu0 0.0
    %5077 = vmatprep.subr.mxu0 0.0
    %5078 = vmatpush2.msra.mxu0 0.0
    %5079 = vmatprep.subr.mxu0 0.0
    %5080 = vmatpush2.msra.mxu0 0.0
    %5081 = vmatprep.subr.mxu0 0.0
    %5082 = vmatpush2.msra.mxu0 0.0
    %5083 = vmatprep.mubr.f32.mxu0 0.0
    %5084 = vmatmul.mubr.f32.gmra.mxu0 %v4789
    %v5085 = vpop.f32.mrf.mxu0
    %v5086 = vadd.f32 %v4781, %v5085
    %v5087 = vpop.f32.mrf.mxu0
    %5088 = vmatprep.mubr.f32.mxu0 0.0
    %5089 = vmatmul.mubr.f32.gmra.mxu0 %v4792
    %v5090 = vpop.f32.mrf.mxu0
    %v5091 = vadd.f32 %v4786, %v5090
    %v5092 = vpop.f32.mrf.mxu0
    %5093 = vdwg.mxu0
    %5094 = vmatprep.subr.mxu0 0.0
    %5095 = vmatpush1.msra.mxu0 0.0
    %5096 = vmatprep.subr.mxu0 0.0
    %5097 = vmatpush1.msra.mxu0 0.0
    %5098 = vmatprep.subr.mxu0 0.0
    %5099 = vmatpush1.msra.mxu0 0.0
    %5100 = vmatprep.subr.mxu0 0.0
    %5101 = vmatpush1.msra.mxu0 0.0
    %5102 = vmatprep.subr.mxu0 0.0
    %5103 = vmatpush1.msra.mxu0 0.0
    %5104 = vmatprep.subr.mxu0 0.0
    %5105 = vmatpush1.msra.mxu0 0.0
    %5106 = vmatprep.subr.mxu0 0.0
    %5107 = vmatpush1.msra.mxu0 0.0
    %5108 = vmatprep.subr.mxu0 0.0
    %5109 = vmatpush1.msra.mxu0 0.0
    %5110 = vmatprep.subr.mxu0 0.0
    %5111 = vmatpush1.msra.mxu0 0.0
    %5112 = vmatprep.subr.mxu0 0.0
    %5113 = vmatpush1.msra.mxu0 0.0
    %5114 = vmatprep.subr.mxu0 0.0
    %5115 = vmatpush1.msra.mxu0 %v3719
    %5116 = vmatprep.subr.mxu0 0.0
    %5117 = vmatpush1.msra.mxu0 %v3714
    %5118 = vmatprep.subr.mxu0 0.0
    %5119 = vmatpush1.msra.mxu0 %v3644
    %5120 = vmatprep.subr.mxu0 0.0
    %5121 = vmatpush1.msra.mxu0 %v3639
    %5122 = vmatprep.subr.mxu0 0.0
    %5123 = vmatpush1.msra.mxu0 %v3569
    %5124 = vmatprep.subr.mxu0 0.0
    %5125 = vmatpush1.msra.mxu0 %v3564
    %5126 = vmatprep.subr.mxu0 0.0
    %5127 = vmatpush2.msra.mxu0 0.0
    %5128 = vmatprep.subr.mxu0 0.0
    %5129 = vmatpush2.msra.mxu0 0.0
    %5130 = vmatprep.subr.mxu0 0.0
    %5131 = vmatpush2.msra.mxu0 0.0
    %5132 = vmatprep.subr.mxu0 0.0
    %5133 = vmatpush2.msra.mxu0 0.0
    %5134 = vmatprep.subr.mxu0 0.0
    %5135 = vmatpush2.msra.mxu0 0.0
    %5136 = vmatprep.subr.mxu0 0.0
    %5137 = vmatpush2.msra.mxu0 0.0
    %5138 = vmatprep.subr.mxu0 0.0
    %5139 = vmatpush2.msra.mxu0 0.0
    %5140 = vmatprep.subr.mxu0 0.0
    %5141 = vmatpush2.msra.mxu0 0.0
    %5142 = vmatprep.subr.mxu0 0.0
    %5143 = vmatpush2.msra.mxu0 0.0
    %5144 = vmatprep.subr.mxu0 0.0
    %5145 = vmatpush2.msra.mxu0 0.0
    %5146 = vmatprep.subr.mxu0 0.0
    %5147 = vmatpush2.msra.mxu0 0.0
    %5148 = vmatprep.subr.mxu0 0.0
    %5149 = vmatpush2.msra.mxu0 0.0
    %5150 = vmatprep.subr.mxu0 0.0
    %5151 = vmatpush2.msra.mxu0 0.0
    %5152 = vmatprep.subr.mxu0 0.0
    %5153 = vmatpush2.msra.mxu0 0.0
    %5154 = vmatprep.subr.mxu0 0.0
    %5155 = vmatpush2.msra.mxu0 0.0
    %5156 = vmatprep.subr.mxu0 0.0
    %5157 = vmatpush2.msra.mxu0 0.0
    %5158 = vmatprep.mubr.f32.mxu0 0.0
    %5159 = vmatmul.mubr.f32.gmra.mxu0 %v4789
    %v5160 = vpop.f32.mrf.mxu0
    %v5161 = vadd.f32 %v4781, %v5160
    %v5162 = vpop.f32.mrf.mxu0
    %5163 = vmatprep.mubr.f32.mxu0 0.0
    %5164 = vmatmul.mubr.f32.gmra.mxu0 %v4792
    %v5165 = vpop.f32.mrf.mxu0
    %v5166 = vadd.f32 %v4786, %v5165
    %v5167 = vpop.f32.mrf.mxu0
    %5168 = vdwg.mxu0
    %5169 = vmatprep.subr.mxu0 0.0
    %5170 = vmatpush1.msra.mxu0 0.0
    %5171 = vmatprep.subr.mxu0 0.0
    %5172 = vmatpush1.msra.mxu0 0.0
    %5173 = vmatprep.subr.mxu0 0.0
    %5174 = vmatpush1.msra.mxu0 0.0
    %5175 = vmatprep.subr.mxu0 0.0
    %5176 = vmatpush1.msra.mxu0 0.0
    %5177 = vmatprep.subr.mxu0 0.0
    %5178 = vmatpush1.msra.mxu0 0.0
    %5179 = vmatprep.subr.mxu0 0.0
    %5180 = vmatpush1.msra.mxu0 0.0
    %5181 = vmatprep.subr.mxu0 0.0
    %5182 = vmatpush1.msra.mxu0 0.0
    %5183 = vmatprep.subr.mxu0 0.0
    %5184 = vmatpush1.msra.mxu0 0.0
    %5185 = vmatprep.subr.mxu0 0.0
    %5186 = vmatpush1.msra.mxu0 0.0
    %5187 = vmatprep.subr.mxu0 0.0
    %5188 = vmatpush1.msra.mxu0 0.0
    %5189 = vmatprep.subr.mxu0 0.0
    %5190 = vmatpush1.msra.mxu0 %v3794
    %5191 = vmatprep.subr.mxu0 0.0
    %5192 = vmatpush1.msra.mxu0 %v3789
    %5193 = vmatprep.subr.mxu0 0.0
    %5194 = vmatpush1.msra.mxu0 %v3719
    %5195 = vmatprep.subr.mxu0 0.0
    %5196 = vmatpush1.msra.mxu0 %v3714
    %5197 = vmatprep.subr.mxu0 0.0
    %5198 = vmatpush1.msra.mxu0 %v3644
    %5199 = vmatprep.subr.mxu0 0.0
    %5200 = vmatpush1.msra.mxu0 %v3639
    %5201 = vmatprep.subr.mxu0 0.0
    %5202 = vmatpush2.msra.mxu0 0.0
    %5203 = vmatprep.subr.mxu0 0.0
    %5204 = vmatpush2.msra.mxu0 0.0
    %5205 = vmatprep.subr.mxu0 0.0
    %5206 = vmatpush2.msra.mxu0 0.0
    %5207 = vmatprep.subr.mxu0 0.0
    %5208 = vmatpush2.msra.mxu0 0.0
    %5209 = vmatprep.subr.mxu0 0.0
    %5210 = vmatpush2.msra.mxu0 0.0
    %5211 = vmatprep.subr.mxu0 0.0
    %5212 = vmatpush2.msra.mxu0 0.0
    %5213 = vmatprep.subr.mxu0 0.0
    %5214 = vmatpush2.msra.mxu0 0.0
    %5215 = vmatprep.subr.mxu0 0.0
    %5216 = vmatpush2.msra.mxu0 0.0
    %5217 = vmatprep.subr.mxu0 0.0
    %5218 = vmatpush2.msra.mxu0 0.0
    %5219 = vmatprep.subr.mxu0 0.0
    %5220 = vmatpush2.msra.mxu0 0.0
    %5221 = vmatprep.subr.mxu0 0.0
    %5222 = vmatpush2.msra.mxu0 0.0
    %5223 = vmatprep.subr.mxu0 0.0
    %5224 = vmatpush2.msra.mxu0 0.0
    %5225 = vmatprep.subr.mxu0 0.0
    %5226 = vmatpush2.msra.mxu0 0.0
    %5227 = vmatprep.subr.mxu0 0.0
    %5228 = vmatpush2.msra.mxu0 0.0
    %5229 = vmatprep.subr.mxu0 0.0
    %5230 = vmatpush2.msra.mxu0 0.0
    %5231 = vmatprep.subr.mxu0 0.0
    %5232 = vmatpush2.msra.mxu0 0.0
    %5233 = vmatprep.mubr.f32.mxu0 0.0
    %5234 = vmatmul.mubr.f32.gmra.mxu0 %v4789
    %v5235 = vpop.f32.mrf.mxu0
    %v5236 = vadd.f32 %v4781, %v5235
    %v5237 = vpop.f32.mrf.mxu0
    %5238 = vmatprep.mubr.f32.mxu0 0.0
    %5239 = vmatmul.mubr.f32.gmra.mxu0 %v4792
    %v5240 = vpop.f32.mrf.mxu0
    %v5241 = vadd.f32 %v4786, %v5240
    %v5242 = vpop.f32.mrf.mxu0
    %5243 = vdwg.mxu0
    %5244 = vmatprep.subr.mxu0 0.0
    %5245 = vmatpush1.msra.mxu0 0.0
    %5246 = vmatprep.subr.mxu0 0.0
    %5247 = vmatpush1.msra.mxu0 0.0
    %5248 = vmatprep.subr.mxu0 0.0
    %5249 = vmatpush1.msra.mxu0 0.0
    %5250 = vmatprep.subr.mxu0 0.0
    %5251 = vmatpush1.msra.mxu0 0.0
    %5252 = vmatprep.subr.mxu0 0.0
    %5253 = vmatpush1.msra.mxu0 0.0
    %5254 = vmatprep.subr.mxu0 0.0
    %5255 = vmatpush1.msra.mxu0 0.0
    %5256 = vmatprep.subr.mxu0 0.0
    %5257 = vmatpush1.msra.mxu0 0.0
    %5258 = vmatprep.subr.mxu0 0.0
    %5259 = vmatpush1.msra.mxu0 0.0
    %5260 = vmatprep.subr.mxu0 0.0
    %5261 = vmatpush1.msra.mxu0 0.0
    %5262 = vmatprep.subr.mxu0 0.0
    %5263 = vmatpush1.msra.mxu0 0.0
    %5264 = vmatprep.subr.mxu0 0.0
    %5265 = vmatpush1.msra.mxu0 %v3869
    %5266 = vmatprep.subr.mxu0 0.0
    %5267 = vmatpush1.msra.mxu0 %v3864
    %5268 = vmatprep.subr.mxu0 0.0
    %5269 = vmatpush1.msra.mxu0 %v3794
    %5270 = vmatprep.subr.mxu0 0.0
    %5271 = vmatpush1.msra.mxu0 %v3789
    %5272 = vmatprep.subr.mxu0 0.0
    %5273 = vmatpush1.msra.mxu0 %v3719
    %5274 = vmatprep.subr.mxu0 0.0
    %5275 = vmatpush1.msra.mxu0 %v3714
    %5276 = vmatprep.subr.mxu0 0.0
    %5277 = vmatpush2.msra.mxu0 0.0
    %5278 = vmatprep.subr.mxu0 0.0
    %5279 = vmatpush2.msra.mxu0 0.0
    %5280 = vmatprep.subr.mxu0 0.0
    %5281 = vmatpush2.msra.mxu0 0.0
    %5282 = vmatprep.subr.mxu0 0.0
    %5283 = vmatpush2.msra.mxu0 0.0
    %5284 = vmatprep.subr.mxu0 0.0
    %5285 = vmatpush2.msra.mxu0 0.0
    %5286 = vmatprep.subr.mxu0 0.0
    %5287 = vmatpush2.msra.mxu0 0.0
    %5288 = vmatprep.subr.mxu0 0.0
    %5289 = vmatpush2.msra.mxu0 0.0
    %5290 = vmatprep.subr.mxu0 0.0
    %5291 = vmatpush2.msra.mxu0 0.0
    %5292 = vmatprep.subr.mxu0 0.0
    %5293 = vmatpush2.msra.mxu0 0.0
    %5294 = vmatprep.subr.mxu0 0.0
    %5295 = vmatpush2.msra.mxu0 0.0
    %5296 = vmatprep.subr.mxu0 0.0
    %5297 = vmatpush2.msra.mxu0 0.0
    %5298 = vmatprep.subr.mxu0 0.0
    %5299 = vmatpush2.msra.mxu0 0.0
    %5300 = vmatprep.subr.mxu0 0.0
    %5301 = vmatpush2.msra.mxu0 0.0
    %5302 = vmatprep.subr.mxu0 0.0
    %5303 = vmatpush2.msra.mxu0 0.0
    %5304 = vmatprep.subr.mxu0 0.0
    %5305 = vmatpush2.msra.mxu0 0.0
    %5306 = vmatprep.subr.mxu0 0.0
    %5307 = vmatpush2.msra.mxu0 0.0
    %5308 = vmatprep.mubr.f32.mxu0 0.0
    %5309 = vmatmul.mubr.f32.gmra.mxu0 %v4789
    %v5310 = vpop.f32.mrf.mxu0
    %v5311 = vadd.f32 %v4781, %v5310
    %v5312 = vpop.f32.mrf.mxu0
    %5313 = vmatprep.mubr.f32.mxu0 0.0
    %5314 = vmatmul.mubr.f32.gmra.mxu0 %v4792
    %v5315 = vpop.f32.mrf.mxu0
    %v5316 = vadd.f32 %v4786, %v5315
    %v5317 = vpop.f32.mrf.mxu0
    %5318 = vdwg.mxu0
    %5319 = vmatprep.subr.mxu0 0.0
    %5320 = vmatpush1.msra.mxu0 0.0
    %5321 = vmatprep.subr.mxu0 0.0
    %5322 = vmatpush1.msra.mxu0 0.0
    %5323 = vmatprep.subr.mxu0 0.0
    %5324 = vmatpush1.msra.mxu0 0.0
    %5325 = vmatprep.subr.mxu0 0.0
    %5326 = vmatpush1.msra.mxu0 0.0
    %5327 = vmatprep.subr.mxu0 0.0
    %5328 = vmatpush1.msra.mxu0 0.0
    %5329 = vmatprep.subr.mxu0 0.0
    %5330 = vmatpush1.msra.mxu0 0.0
    %5331 = vmatprep.subr.mxu0 0.0
    %5332 = vmatpush1.msra.mxu0 0.0
    %5333 = vmatprep.subr.mxu0 0.0
    %5334 = vmatpush1.msra.mxu0 0.0
    %5335 = vmatprep.subr.mxu0 0.0
    %5336 = vmatpush1.msra.mxu0 0.0
    %5337 = vmatprep.subr.mxu0 0.0
    %5338 = vmatpush1.msra.mxu0 0.0
    %5339 = vmatprep.subr.mxu0 0.0
    %5340 = vmatpush1.msra.mxu0 %v3944
    %5341 = vmatprep.subr.mxu0 0.0
    %5342 = vmatpush1.msra.mxu0 %v3939
    %5343 = vmatprep.subr.mxu0 0.0
    %5344 = vmatpush1.msra.mxu0 %v3869
    %5345 = vmatprep.subr.mxu0 0.0
    %5346 = vmatpush1.msra.mxu0 %v3864
    %5347 = vmatprep.subr.mxu0 0.0
    %5348 = vmatpush1.msra.mxu0 %v3794
    %5349 = vmatprep.subr.mxu0 0.0
    %5350 = vmatpush1.msra.mxu0 %v3789
    %5351 = vmatprep.subr.mxu0 0.0
    %5352 = vmatpush2.msra.mxu0 0.0
    %5353 = vmatprep.subr.mxu0 0.0
    %5354 = vmatpush2.msra.mxu0 0.0
    %5355 = vmatprep.subr.mxu0 0.0
    %5356 = vmatpush2.msra.mxu0 0.0
    %5357 = vmatprep.subr.mxu0 0.0
    %5358 = vmatpush2.msra.mxu0 0.0
    %5359 = vmatprep.subr.mxu0 0.0
    %5360 = vmatpush2.msra.mxu0 0.0
    %5361 = vmatprep.subr.mxu0 0.0
    %5362 = vmatpush2.msra.mxu0 0.0
    %5363 = vmatprep.subr.mxu0 0.0
    %5364 = vmatpush2.msra.mxu0 0.0
    %5365 = vmatprep.subr.mxu0 0.0
    %5366 = vmatpush2.msra.mxu0 0.0
    %5367 = vmatprep.subr.mxu0 0.0
    %5368 = vmatpush2.msra.mxu0 0.0
    %5369 = vmatprep.subr.mxu0 0.0
    %5370 = vmatpush2.msra.mxu0 0.0
    %5371 = vmatprep.subr.mxu0 0.0
    %5372 = vmatpush2.msra.mxu0 0.0
    %5373 = vmatprep.subr.mxu0 0.0
    %5374 = vmatpush2.msra.mxu0 0.0
    %5375 = vmatprep.subr.mxu0 0.0
    %5376 = vmatpush2.msra.mxu0 0.0
    %5377 = vmatprep.subr.mxu0 0.0
    %5378 = vmatpush2.msra.mxu0 0.0
    %5379 = vmatprep.subr.mxu0 0.0
    %5380 = vmatpush2.msra.mxu0 0.0
    %5381 = vmatprep.subr.mxu0 0.0
    %5382 = vmatpush2.msra.mxu0 0.0
    %5383 = vmatprep.mubr.f32.mxu0 0.0
    %5384 = vmatmul.mubr.f32.gmra.mxu0 %v4789
    %v5385 = vpop.f32.mrf.mxu0
    %v5386 = vadd.f32 %v4781, %v5385
    %v5387 = vpop.f32.mrf.mxu0
    %5388 = vmatprep.mubr.f32.mxu0 0.0
    %5389 = vmatmul.mubr.f32.gmra.mxu0 %v4792
    %v5390 = vpop.f32.mrf.mxu0
    %v5391 = vadd.f32 %v4786, %v5390
    %v5392 = vpop.f32.mrf.mxu0
    %5393 = vdwg.mxu0
    %5394 = vmatprep.subr.mxu0 0.0
    %5395 = vmatpush1.msra.mxu0 0.0
    %5396 = vmatprep.subr.mxu0 0.0
    %5397 = vmatpush1.msra.mxu0 0.0
    %5398 = vmatprep.subr.mxu0 0.0
    %5399 = vmatpush1.msra.mxu0 0.0
    %5400 = vmatprep.subr.mxu0 0.0
    %5401 = vmatpush1.msra.mxu0 0.0
    %5402 = vmatprep.subr.mxu0 0.0
    %5403 = vmatpush1.msra.mxu0 0.0
    %5404 = vmatprep.subr.mxu0 0.0
    %5405 = vmatpush1.msra.mxu0 0.0
    %5406 = vmatprep.subr.mxu0 0.0
    %5407 = vmatpush1.msra.mxu0 0.0
    %5408 = vmatprep.subr.mxu0 0.0
    %5409 = vmatpush1.msra.mxu0 0.0
    %5410 = vmatprep.subr.mxu0 0.0
    %5411 = vmatpush1.msra.mxu0 0.0
    %5412 = vmatprep.subr.mxu0 0.0
    %5413 = vmatpush1.msra.mxu0 0.0
    %5414 = vmatprep.subr.mxu0 0.0
    %5415 = vmatpush1.msra.mxu0 %v4019
    %5416 = vmatprep.subr.mxu0 0.0
    %5417 = vmatpush1.msra.mxu0 %v4014
    %5418 = vmatprep.subr.mxu0 0.0
    %5419 = vmatpush1.msra.mxu0 %v3944
    %5420 = vmatprep.subr.mxu0 0.0
    %5421 = vmatpush1.msra.mxu0 %v3939
    %5422 = vmatprep.subr.mxu0 0.0
    %5423 = vmatpush1.msra.mxu0 %v3869
    %5424 = vmatprep.subr.mxu0 0.0
    %5425 = vmatpush1.msra.mxu0 %v3864
    %5426 = vmatprep.subr.mxu0 0.0
    %5427 = vmatpush2.msra.mxu0 0.0
    %5428 = vmatprep.subr.mxu0 0.0
    %5429 = vmatpush2.msra.mxu0 0.0
    %5430 = vmatprep.subr.mxu0 0.0
    %5431 = vmatpush2.msra.mxu0 0.0
    %5432 = vmatprep.subr.mxu0 0.0
    %5433 = vmatpush2.msra.mxu0 0.0
    %5434 = vmatprep.subr.mxu0 0.0
    %5435 = vmatpush2.msra.mxu0 0.0
    %5436 = vmatprep.subr.mxu0 0.0
    %5437 = vmatpush2.msra.mxu0 0.0
    %5438 = vmatprep.subr.mxu0 0.0
    %5439 = vmatpush2.msra.mxu0 0.0
    %5440 = vmatprep.subr.mxu0 0.0
    %5441 = vmatpush2.msra.mxu0 0.0
    %5442 = vmatprep.subr.mxu0 0.0
    %5443 = vmatpush2.msra.mxu0 0.0
    %5444 = vmatprep.subr.mxu0 0.0
    %5445 = vmatpush2.msra.mxu0 0.0
    %5446 = vmatprep.subr.mxu0 0.0
    %5447 = vmatpush2.msra.mxu0 0.0
    %5448 = vmatprep.subr.mxu0 0.0
    %5449 = vmatpush2.msra.mxu0 0.0
    %5450 = vmatprep.subr.mxu0 0.0
    %5451 = vmatpush2.msra.mxu0 0.0
    %5452 = vmatprep.subr.mxu0 0.0
    %5453 = vmatpush2.msra.mxu0 0.0
    %5454 = vmatprep.subr.mxu0 0.0
    %5455 = vmatpush2.msra.mxu0 0.0
    %5456 = vmatprep.subr.mxu0 0.0
    %5457 = vmatpush2.msra.mxu0 0.0
    %5458 = vmatprep.mubr.f32.mxu0 0.0
    %5459 = vmatmul.mubr.f32.gmra.mxu0 %v4789
    %v5460 = vpop.f32.mrf.mxu0
    %v5461 = vadd.f32 %v4781, %v5460
    %v5462 = vpop.f32.mrf.mxu0
    %5463 = vmatprep.mubr.f32.mxu0 0.0
    %5464 = vmatmul.mubr.f32.gmra.mxu0 %v4792
    %v5465 = vpop.f32.mrf.mxu0
    %v5466 = vadd.f32 %v4786, %v5465
    %v5467 = vpop.f32.mrf.mxu0
    %5468 = vdwg.mxu0
    %5469 = vmatprep.subr.mxu0 0.0
    %5470 = vmatpush1.msra.mxu0 0.0
    %5471 = vmatprep.subr.mxu0 0.0
    %5472 = vmatpush1.msra.mxu0 0.0
    %5473 = vmatprep.subr.mxu0 0.0
    %5474 = vmatpush1.msra.mxu0 0.0
    %5475 = vmatprep.subr.mxu0 0.0
    %5476 = vmatpush1.msra.mxu0 0.0
    %5477 = vmatprep.subr.mxu0 0.0
    %5478 = vmatpush1.msra.mxu0 0.0
    %5479 = vmatprep.subr.mxu0 0.0
    %5480 = vmatpush1.msra.mxu0 0.0
    %5481 = vmatprep.subr.mxu0 0.0
    %5482 = vmatpush1.msra.mxu0 0.0
    %5483 = vmatprep.subr.mxu0 0.0
    %5484 = vmatpush1.msra.mxu0 0.0
    %5485 = vmatprep.subr.mxu0 0.0
    %5486 = vmatpush1.msra.mxu0 0.0
    %5487 = vmatprep.subr.mxu0 0.0
    %5488 = vmatpush1.msra.mxu0 0.0
    %5489 = vmatprep.subr.mxu0 0.0
    %5490 = vmatpush1.msra.mxu0 %v4094
    %5491 = vmatprep.subr.mxu0 0.0
    %5492 = vmatpush1.msra.mxu0 %v4089
    %5493 = vmatprep.subr.mxu0 0.0
    %5494 = vmatpush1.msra.mxu0 %v4019
    %5495 = vmatprep.subr.mxu0 0.0
    %5496 = vmatpush1.msra.mxu0 %v4014
    %5497 = vmatprep.subr.mxu0 0.0
    %5498 = vmatpush1.msra.mxu0 %v3944
    %5499 = vmatprep.subr.mxu0 0.0
    %5500 = vmatpush1.msra.mxu0 %v3939
    %5501 = vmatprep.subr.mxu0 0.0
    %5502 = vmatpush2.msra.mxu0 0.0
    %5503 = vmatprep.subr.mxu0 0.0
    %5504 = vmatpush2.msra.mxu0 0.0
    %5505 = vmatprep.subr.mxu0 0.0
    %5506 = vmatpush2.msra.mxu0 0.0
    %5507 = vmatprep.subr.mxu0 0.0
    %5508 = vmatpush2.msra.mxu0 0.0
    %5509 = vmatprep.subr.mxu0 0.0
    %5510 = vmatpush2.msra.mxu0 0.0
    %5511 = vmatprep.subr.mxu0 0.0
    %5512 = vmatpush2.msra.mxu0 0.0
    %5513 = vmatprep.subr.mxu0 0.0
    %5514 = vmatpush2.msra.mxu0 0.0
    %5515 = vmatprep.subr.mxu0 0.0
    %5516 = vmatpush2.msra.mxu0 0.0
    %5517 = vmatprep.subr.mxu0 0.0
    %5518 = vmatpush2.msra.mxu0 0.0
    %5519 = vmatprep.subr.mxu0 0.0
    %5520 = vmatpush2.msra.mxu0 0.0
    %5521 = vmatprep.subr.mxu0 0.0
    %5522 = vmatpush2.msra.mxu0 0.0
    %5523 = vmatprep.subr.mxu0 0.0
    %5524 = vmatpush2.msra.mxu0 0.0
    %5525 = vmatprep.subr.mxu0 0.0
    %5526 = vmatpush2.msra.mxu0 0.0
    %5527 = vmatprep.subr.mxu0 0.0
    %5528 = vmatpush2.msra.mxu0 0.0
    %5529 = vmatprep.subr.mxu0 0.0
    %5530 = vmatpush2.msra.mxu0 0.0
    %5531 = vmatprep.subr.mxu0 0.0
    %5532 = vmatpush2.msra.mxu0 0.0
    %5533 = vmatprep.mubr.f32.mxu0 0.0
    %5534 = vmatmul.mubr.f32.gmra.mxu0 %v4789
    %v5535 = vpop.f32.mrf.mxu0
    %v5536 = vadd.f32 %v4781, %v5535
    %v5537 = vpop.f32.mrf.mxu0
    %5538 = vmatprep.mubr.f32.mxu0 0.0
    %5539 = vmatmul.mubr.f32.gmra.mxu0 %v4792
    %v5540 = vpop.f32.mrf.mxu0
    %v5541 = vadd.f32 %v4786, %v5540
    %v5542 = vpop.f32.mrf.mxu0
    %5543 = vdwg.mxu0
    %5544 = vmatprep.subr.mxu0 0.0
    %5545 = vmatpush1.msra.mxu0 0.0
    %5546 = vmatprep.subr.mxu0 0.0
    %5547 = vmatpush1.msra.mxu0 0.0
    %5548 = vmatprep.subr.mxu0 0.0
    %5549 = vmatpush1.msra.mxu0 0.0
    %5550 = vmatprep.subr.mxu0 0.0
    %5551 = vmatpush1.msra.mxu0 0.0
    %5552 = vmatprep.subr.mxu0 0.0
    %5553 = vmatpush1.msra.mxu0 0.0
    %5554 = vmatprep.subr.mxu0 0.0
    %5555 = vmatpush1.msra.mxu0 0.0
    %5556 = vmatprep.subr.mxu0 0.0
    %5557 = vmatpush1.msra.mxu0 0.0
    %5558 = vmatprep.subr.mxu0 0.0
    %5559 = vmatpush1.msra.mxu0 0.0
    %5560 = vmatprep.subr.mxu0 0.0
    %5561 = vmatpush1.msra.mxu0 0.0
    %5562 = vmatprep.subr.mxu0 0.0
    %5563 = vmatpush1.msra.mxu0 0.0
    %5564 = vmatprep.subr.mxu0 0.0
    %5565 = vmatpush1.msra.mxu0 %v4169
    %5566 = vmatprep.subr.mxu0 0.0
    %5567 = vmatpush1.msra.mxu0 %v4164
    %5568 = vmatprep.subr.mxu0 0.0
    %5569 = vmatpush1.msra.mxu0 %v4094
    %5570 = vmatprep.subr.mxu0 0.0
    %5571 = vmatpush1.msra.mxu0 %v4089
    %5572 = vmatprep.subr.mxu0 0.0
    %5573 = vmatpush1.msra.mxu0 %v4019
    %5574 = vmatprep.subr.mxu0 0.0
    %5575 = vmatpush1.msra.mxu0 %v4014
    %5576 = vmatprep.subr.mxu0 0.0
    %5577 = vmatpush2.msra.mxu0 0.0
    %5578 = vmatprep.subr.mxu0 0.0
    %5579 = vmatpush2.msra.mxu0 0.0
    %5580 = vmatprep.subr.mxu0 0.0
    %5581 = vmatpush2.msra.mxu0 0.0
    %5582 = vmatprep.subr.mxu0 0.0
    %5583 = vmatpush2.msra.mxu0 0.0
    %5584 = vmatprep.subr.mxu0 0.0
    %5585 = vmatpush2.msra.mxu0 0.0
    %5586 = vmatprep.subr.mxu0 0.0
    %5587 = vmatpush2.msra.mxu0 0.0
    %5588 = vmatprep.subr.mxu0 0.0
    %5589 = vmatpush2.msra.mxu0 0.0
    %5590 = vmatprep.subr.mxu0 0.0
    %5591 = vmatpush2.msra.mxu0 0.0
    %5592 = vmatprep.subr.mxu0 0.0
    %5593 = vmatpush2.msra.mxu0 0.0
    %5594 = vmatprep.subr.mxu0 0.0
    %5595 = vmatpush2.msra.mxu0 0.0
    %5596 = vmatprep.subr.mxu0 0.0
    %5597 = vmatpush2.msra.mxu0 0.0
    %5598 = vmatprep.subr.mxu0 0.0
    %5599 = vmatpush2.msra.mxu0 0.0
    %5600 = vmatprep.subr.mxu0 0.0
    %5601 = vmatpush2.msra.mxu0 0.0
    %5602 = vmatprep.subr.mxu0 0.0
    %5603 = vmatpush2.msra.mxu0 0.0
    %5604 = vmatprep.subr.mxu0 0.0
    %5605 = vmatpush2.msra.mxu0 0.0
    %5606 = vmatprep.subr.mxu0 0.0
    %5607 = vmatpush2.msra.mxu0 0.0
    %5608 = vmatprep.mubr.f32.mxu0 0.0
    %5609 = vmatmul.mubr.f32.gmra.mxu0 %v4789
    %v5610 = vpop.f32.mrf.mxu0
    %v5611 = vadd.f32 %v4781, %v5610
    %v5612 = vpop.f32.mrf.mxu0
    %5613 = vmatprep.mubr.f32.mxu0 0.0
    %5614 = vmatmul.mubr.f32.gmra.mxu0 %v4792
    %v5615 = vpop.f32.mrf.mxu0
    %v5616 = vadd.f32 %v4786, %v5615
    %v5617 = vpop.f32.mrf.mxu0
    %5618 = vdwg.mxu0
    %5619 = vmatprep.subr.mxu0 0.0
    %5620 = vmatpush1.msra.mxu0 0.0
    %5621 = vmatprep.subr.mxu0 0.0
    %5622 = vmatpush1.msra.mxu0 0.0
    %5623 = vmatprep.subr.mxu0 0.0
    %5624 = vmatpush1.msra.mxu0 0.0
    %5625 = vmatprep.subr.mxu0 0.0
    %5626 = vmatpush1.msra.mxu0 0.0
    %5627 = vmatprep.subr.mxu0 0.0
    %5628 = vmatpush1.msra.mxu0 0.0
    %5629 = vmatprep.subr.mxu0 0.0
    %5630 = vmatpush1.msra.mxu0 0.0
    %5631 = vmatprep.subr.mxu0 0.0
    %5632 = vmatpush1.msra.mxu0 0.0
    %5633 = vmatprep.subr.mxu0 0.0
    %5634 = vmatpush1.msra.mxu0 0.0
    %5635 = vmatprep.subr.mxu0 0.0
    %5636 = vmatpush1.msra.mxu0 0.0
    %5637 = vmatprep.subr.mxu0 0.0
    %5638 = vmatpush1.msra.mxu0 0.0
    %5639 = vmatprep.subr.mxu0 0.0
    %5640 = vmatpush1.msra.mxu0 %v4244
    %5641 = vmatprep.subr.mxu0 0.0
    %5642 = vmatpush1.msra.mxu0 %v4239
    %5643 = vmatprep.subr.mxu0 0.0
    %5644 = vmatpush1.msra.mxu0 %v4169
    %5645 = vmatprep.subr.mxu0 0.0
    %5646 = vmatpush1.msra.mxu0 %v4164
    %5647 = vmatprep.subr.mxu0 0.0
    %5648 = vmatpush1.msra.mxu0 %v4094
    %5649 = vmatprep.subr.mxu0 0.0
    %5650 = vmatpush1.msra.mxu0 %v4089
    %5651 = vmatprep.subr.mxu0 0.0
    %5652 = vmatpush2.msra.mxu0 0.0
    %5653 = vmatprep.subr.mxu0 0.0
    %5654 = vmatpush2.msra.mxu0 0.0
    %5655 = vmatprep.subr.mxu0 0.0
    %5656 = vmatpush2.msra.mxu0 0.0
    %5657 = vmatprep.subr.mxu0 0.0
    %5658 = vmatpush2.msra.mxu0 0.0
    %5659 = vmatprep.subr.mxu0 0.0
    %5660 = vmatpush2.msra.mxu0 0.0
    %5661 = vmatprep.subr.mxu0 0.0
    %5662 = vmatpush2.msra.mxu0 0.0
    %5663 = vmatprep.subr.mxu0 0.0
    %5664 = vmatpush2.msra.mxu0 0.0
    %5665 = vmatprep.subr.mxu0 0.0
    %5666 = vmatpush2.msra.mxu0 0.0
    %5667 = vmatprep.subr.mxu0 0.0
    %5668 = vmatpush2.msra.mxu0 0.0
    %5669 = vmatprep.subr.mxu0 0.0
    %5670 = vmatpush2.msra.mxu0 0.0
    %5671 = vmatprep.subr.mxu0 0.0
    %5672 = vmatpush2.msra.mxu0 0.0
    %5673 = vmatprep.subr.mxu0 0.0
    %5674 = vmatpush2.msra.mxu0 0.0
    %5675 = vmatprep.subr.mxu0 0.0
    %5676 = vmatpush2.msra.mxu0 0.0
    %5677 = vmatprep.subr.mxu0 0.0
    %5678 = vmatpush2.msra.mxu0 0.0
    %5679 = vmatprep.subr.mxu0 0.0
    %5680 = vmatpush2.msra.mxu0 0.0
    %5681 = vmatprep.subr.mxu0 0.0
    %5682 = vmatpush2.msra.mxu0 0.0
    %5683 = vmatprep.mubr.f32.mxu0 0.0
    %5684 = vmatmul.mubr.f32.gmra.mxu0 %v4789
    %v5685 = vpop.f32.mrf.mxu0
    %v5686 = vadd.f32 %v4781, %v5685
    %v5687 = vpop.f32.mrf.mxu0
    %5688 = vmatprep.mubr.f32.mxu0 0.0
    %5689 = vmatmul.mubr.f32.gmra.mxu0 %v4792
    %v5690 = vpop.f32.mrf.mxu0
    %v5691 = vadd.f32 %v4786, %v5690
    %v5692 = vpop.f32.mrf.mxu0
    %5693 = vdwg.mxu0
    %5694 = vmatprep.subr.mxu0 0.0
    %5695 = vmatpush1.msra.mxu0 0.0
    %5696 = vmatprep.subr.mxu0 0.0
    %5697 = vmatpush1.msra.mxu0 0.0
    %5698 = vmatprep.subr.mxu0 0.0
    %5699 = vmatpush1.msra.mxu0 0.0
    %5700 = vmatprep.subr.mxu0 0.0
    %5701 = vmatpush1.msra.mxu0 0.0
    %5702 = vmatprep.subr.mxu0 0.0
    %5703 = vmatpush1.msra.mxu0 0.0
    %5704 = vmatprep.subr.mxu0 0.0
    %5705 = vmatpush1.msra.mxu0 0.0
    %5706 = vmatprep.subr.mxu0 0.0
    %5707 = vmatpush1.msra.mxu0 0.0
    %5708 = vmatprep.subr.mxu0 0.0
    %5709 = vmatpush1.msra.mxu0 0.0
    %5710 = vmatprep.subr.mxu0 0.0
    %5711 = vmatpush1.msra.mxu0 0.0
    %5712 = vmatprep.subr.mxu0 0.0
    %5713 = vmatpush1.msra.mxu0 0.0
    %5714 = vmatprep.subr.mxu0 0.0
    %5715 = vmatpush1.msra.mxu0 %v4319
    %5716 = vmatprep.subr.mxu0 0.0
    %5717 = vmatpush1.msra.mxu0 %v4314
    %5718 = vmatprep.subr.mxu0 0.0
    %5719 = vmatpush1.msra.mxu0 %v4244
    %5720 = vmatprep.subr.mxu0 0.0
    %5721 = vmatpush1.msra.mxu0 %v4239
    %5722 = vmatprep.subr.mxu0 0.0
    %5723 = vmatpush1.msra.mxu0 %v4169
    %5724 = vmatprep.subr.mxu0 0.0
    %5725 = vmatpush1.msra.mxu0 %v4164
    %5726 = vmatprep.subr.mxu0 0.0
    %5727 = vmatpush2.msra.mxu0 0.0
    %5728 = vmatprep.subr.mxu0 0.0
    %5729 = vmatpush2.msra.mxu0 0.0
    %5730 = vmatprep.subr.mxu0 0.0
    %5731 = vmatpush2.msra.mxu0 0.0
    %5732 = vmatprep.subr.mxu0 0.0
    %5733 = vmatpush2.msra.mxu0 0.0
    %5734 = vmatprep.subr.mxu0 0.0
    %5735 = vmatpush2.msra.mxu0 0.0
    %5736 = vmatprep.subr.mxu0 0.0
    %5737 = vmatpush2.msra.mxu0 0.0
    %5738 = vmatprep.subr.mxu0 0.0
    %5739 = vmatpush2.msra.mxu0 0.0
    %5740 = vmatprep.subr.mxu0 0.0
    %5741 = vmatpush2.msra.mxu0 0.0
    %5742 = vmatprep.subr.mxu0 0.0
    %5743 = vmatpush2.msra.mxu0 0.0
    %5744 = vmatprep.subr.mxu0 0.0
    %5745 = vmatpush2.msra.mxu0 0.0
    %5746 = vmatprep.subr.mxu0 0.0
    %5747 = vmatpush2.msra.mxu0 0.0
    %5748 = vmatprep.subr.mxu0 0.0
    %5749 = vmatpush2.msra.mxu0 0.0
    %5750 = vmatprep.subr.mxu0 0.0
    %5751 = vmatpush2.msra.mxu0 0.0
    %5752 = vmatprep.subr.mxu0 0.0
    %5753 = vmatpush2.msra.mxu0 0.0
    %5754 = vmatprep.subr.mxu0 0.0
    %5755 = vmatpush2.msra.mxu0 0.0
    %5756 = vmatprep.subr.mxu0 0.0
    %5757 = vmatpush2.msra.mxu0 0.0
    %5758 = vmatprep.mubr.f32.mxu0 0.0
    %5759 = vmatmul.mubr.f32.gmra.mxu0 %v4789
    %v5760 = vpop.f32.mrf.mxu0
    %v5761 = vadd.f32 %v4781, %v5760
    %v5762 = vpop.f32.mrf.mxu0
    %5763 = vmatprep.mubr.f32.mxu0 0.0
    %5764 = vmatmul.mubr.f32.gmra.mxu0 %v4792
    %v5765 = vpop.f32.mrf.mxu0
    %v5766 = vadd.f32 %v4786, %v5765
    %v5767 = vpop.f32.mrf.mxu0
    %5768 = vdwg.mxu0
    %5769 = vmatprep.subr.mxu0 0.0
    %5770 = vmatpush1.msra.mxu0 0.0
    %5771 = vmatprep.subr.mxu0 0.0
    %5772 = vmatpush1.msra.mxu0 0.0
    %5773 = vmatprep.subr.mxu0 0.0
    %5774 = vmatpush1.msra.mxu0 0.0
    %5775 = vmatprep.subr.mxu0 0.0
    %5776 = vmatpush1.msra.mxu0 0.0
    %5777 = vmatprep.subr.mxu0 0.0
    %5778 = vmatpush1.msra.mxu0 0.0
    %5779 = vmatprep.subr.mxu0 0.0
    %5780 = vmatpush1.msra.mxu0 0.0
    %5781 = vmatprep.subr.mxu0 0.0
    %5782 = vmatpush1.msra.mxu0 0.0
    %5783 = vmatprep.subr.mxu0 0.0
    %5784 = vmatpush1.msra.mxu0 0.0
    %5785 = vmatprep.subr.mxu0 0.0
    %5786 = vmatpush1.msra.mxu0 0.0
    %5787 = vmatprep.subr.mxu0 0.0
    %5788 = vmatpush1.msra.mxu0 0.0
    %5789 = vmatprep.subr.mxu0 0.0
    %5790 = vmatpush1.msra.mxu0 %v4394
    %5791 = vmatprep.subr.mxu0 0.0
    %5792 = vmatpush1.msra.mxu0 %v4389
    %5793 = vmatprep.subr.mxu0 0.0
    %5794 = vmatpush1.msra.mxu0 %v4319
    %5795 = vmatprep.subr.mxu0 0.0
    %5796 = vmatpush1.msra.mxu0 %v4314
    %5797 = vmatprep.subr.mxu0 0.0
    %5798 = vmatpush1.msra.mxu0 %v4244
    %5799 = vmatprep.subr.mxu0 0.0
    %5800 = vmatpush1.msra.mxu0 %v4239
    %5801 = vmatprep.subr.mxu0 0.0
    %5802 = vmatpush2.msra.mxu0 0.0
    %5803 = vmatprep.subr.mxu0 0.0
    %5804 = vmatpush2.msra.mxu0 0.0
    %5805 = vmatprep.subr.mxu0 0.0
    %5806 = vmatpush2.msra.mxu0 0.0
    %5807 = vmatprep.subr.mxu0 0.0
    %5808 = vmatpush2.msra.mxu0 0.0
    %5809 = vmatprep.subr.mxu0 0.0
    %5810 = vmatpush2.msra.mxu0 0.0
    %5811 = vmatprep.subr.mxu0 0.0
    %5812 = vmatpush2.msra.mxu0 0.0
    %5813 = vmatprep.subr.mxu0 0.0
    %5814 = vmatpush2.msra.mxu0 0.0
    %5815 = vmatprep.subr.mxu0 0.0
    %5816 = vmatpush2.msra.mxu0 0.0
    %5817 = vmatprep.subr.mxu0 0.0
    %5818 = vmatpush2.msra.mxu0 0.0
    %5819 = vmatprep.subr.mxu0 0.0
    %5820 = vmatpush2.msra.mxu0 0.0
    %5821 = vmatprep.subr.mxu0 0.0
    %5822 = vmatpush2.msra.mxu0 0.0
    %5823 = vmatprep.subr.mxu0 0.0
    %5824 = vmatpush2.msra.mxu0 0.0
    %5825 = vmatprep.subr.mxu0 0.0
    %5826 = vmatpush2.msra.mxu0 0.0
    %5827 = vmatprep.subr.mxu0 0.0
    %5828 = vmatpush2.msra.mxu0 0.0
    %5829 = vmatprep.subr.mxu0 0.0
    %5830 = vmatpush2.msra.mxu0 0.0
    %5831 = vmatprep.subr.mxu0 0.0
    %5832 = vmatpush2.msra.mxu0 0.0
    %5833 = vmatprep.mubr.f32.mxu0 0.0
    %5834 = vmatmul.mubr.f32.gmra.mxu0 %v4789
    %v5835 = vpop.f32.mrf.mxu0
    %v5836 = vadd.f32 %v4781, %v5835
    %v5837 = vpop.f32.mrf.mxu0
    %5838 = vmatprep.mubr.f32.mxu0 0.0
    %5839 = vmatmul.mubr.f32.gmra.mxu0 %v4792
    %v5840 = vpop.f32.mrf.mxu0
    %v5841 = vadd.f32 %v4786, %v5840
    %v5842 = vpop.f32.mrf.mxu0
    %5843 = vdwg.mxu0
    %5844 = vmatprep.subr.mxu0 0.0
    %5845 = vmatpush1.msra.mxu0 0.0
    %5846 = vmatprep.subr.mxu0 0.0
    %5847 = vmatpush1.msra.mxu0 0.0
    %5848 = vmatprep.subr.mxu0 0.0
    %5849 = vmatpush1.msra.mxu0 0.0
    %5850 = vmatprep.subr.mxu0 0.0
    %5851 = vmatpush1.msra.mxu0 0.0
    %5852 = vmatprep.subr.mxu0 0.0
    %5853 = vmatpush1.msra.mxu0 0.0
    %5854 = vmatprep.subr.mxu0 0.0
    %5855 = vmatpush1.msra.mxu0 0.0
    %5856 = vmatprep.subr.mxu0 0.0
    %5857 = vmatpush1.msra.mxu0 0.0
    %5858 = vmatprep.subr.mxu0 0.0
    %5859 = vmatpush1.msra.mxu0 0.0
    %5860 = vmatprep.subr.mxu0 0.0
    %5861 = vmatpush1.msra.mxu0 0.0
    %5862 = vmatprep.subr.mxu0 0.0
    %5863 = vmatpush1.msra.mxu0 0.0
    %5864 = vmatprep.subr.mxu0 0.0
    %5865 = vmatpush1.msra.mxu0 %v4469
    %5866 = vmatprep.subr.mxu0 0.0
    %5867 = vmatpush1.msra.mxu0 %v4464
    %5868 = vmatprep.subr.mxu0 0.0
    %5869 = vmatpush1.msra.mxu0 %v4394
    %5870 = vmatprep.subr.mxu0 0.0
    %5871 = vmatpush1.msra.mxu0 %v4389
    %5872 = vmatprep.subr.mxu0 0.0
    %5873 = vmatpush1.msra.mxu0 %v4319
    %5874 = vmatprep.subr.mxu0 0.0
    %5875 = vmatpush1.msra.mxu0 %v4314
    %5876 = vmatprep.subr.mxu0 0.0
    %5877 = vmatpush2.msra.mxu0 0.0
    %5878 = vmatprep.subr.mxu0 0.0
    %5879 = vmatpush2.msra.mxu0 0.0
    %5880 = vmatprep.subr.mxu0 0.0
    %5881 = vmatpush2.msra.mxu0 0.0
    %5882 = vmatprep.subr.mxu0 0.0
    %5883 = vmatpush2.msra.mxu0 0.0
    %5884 = vmatprep.subr.mxu0 0.0
    %5885 = vmatpush2.msra.mxu0 0.0
    %5886 = vmatprep.subr.mxu0 0.0
    %5887 = vmatpush2.msra.mxu0 0.0
    %5888 = vmatprep.subr.mxu0 0.0
    %5889 = vmatpush2.msra.mxu0 0.0
    %5890 = vmatprep.subr.mxu0 0.0
    %5891 = vmatpush2.msra.mxu0 0.0
    %5892 = vmatprep.subr.mxu0 0.0
    %5893 = vmatpush2.msra.mxu0 0.0
    %5894 = vmatprep.subr.mxu0 0.0
    %5895 = vmatpush2.msra.mxu0 0.0
    %5896 = vmatprep.subr.mxu0 0.0
    %5897 = vmatpush2.msra.mxu0 0.0
    %5898 = vmatprep.subr.mxu0 0.0
    %5899 = vmatpush2.msra.mxu0 0.0
    %5900 = vmatprep.subr.mxu0 0.0
    %5901 = vmatpush2.msra.mxu0 0.0
    %5902 = vmatprep.subr.mxu0 0.0
    %5903 = vmatpush2.msra.mxu0 0.0
    %5904 = vmatprep.subr.mxu0 0.0
    %5905 = vmatpush2.msra.mxu0 0.0
    %5906 = vmatprep.subr.mxu0 0.0
    %5907 = vmatpush2.msra.mxu0 0.0
    %5908 = vmatprep.mubr.f32.mxu0 0.0
    %5909 = vmatmul.mubr.f32.gmra.mxu0 %v4789
    %v5910 = vpop.f32.mrf.mxu0
    %v5911 = vadd.f32 %v4781, %v5910
    %v5912 = vpop.f32.mrf.mxu0
    %5913 = vmatprep.mubr.f32.mxu0 0.0
    %5914 = vmatmul.mubr.f32.gmra.mxu0 %v4792
    %v5915 = vpop.f32.mrf.mxu0
    %v5916 = vadd.f32 %v4786, %v5915
    %v5917 = vpop.f32.mrf.mxu0
    %5918 = vdwg.mxu0
    %5919 = vmatprep.subr.mxu0 0.0
    %5920 = vmatpush1.msra.mxu0 0.0
    %5921 = vmatprep.subr.mxu0 0.0
    %5922 = vmatpush1.msra.mxu0 0.0
    %5923 = vmatprep.subr.mxu0 0.0
    %5924 = vmatpush1.msra.mxu0 0.0
    %5925 = vmatprep.subr.mxu0 0.0
    %5926 = vmatpush1.msra.mxu0 0.0
    %5927 = vmatprep.subr.mxu0 0.0
    %5928 = vmatpush1.msra.mxu0 0.0
    %5929 = vmatprep.subr.mxu0 0.0
    %5930 = vmatpush1.msra.mxu0 0.0
    %5931 = vmatprep.subr.mxu0 0.0
    %5932 = vmatpush1.msra.mxu0 0.0
    %5933 = vmatprep.subr.mxu0 0.0
    %5934 = vmatpush1.msra.mxu0 0.0
    %5935 = vmatprep.subr.mxu0 0.0
    %5936 = vmatpush1.msra.mxu0 0.0
    %5937 = vmatprep.subr.mxu0 0.0
    %5938 = vmatpush1.msra.mxu0 0.0
    %5939 = vmatprep.subr.mxu0 0.0
    %5940 = vmatpush1.msra.mxu0 %v4544
    %5941 = vmatprep.subr.mxu0 0.0
    %5942 = vmatpush1.msra.mxu0 %v4539
    %5943 = vmatprep.subr.mxu0 0.0
    %5944 = vmatpush1.msra.mxu0 %v4469
    %5945 = vmatprep.subr.mxu0 0.0
    %5946 = vmatpush1.msra.mxu0 %v4464
    %5947 = vmatprep.subr.mxu0 0.0
    %5948 = vmatpush1.msra.mxu0 %v4394
    %5949 = vmatprep.subr.mxu0 0.0
    %5950 = vmatpush1.msra.mxu0 %v4389
    %5951 = vmatprep.subr.mxu0 0.0
    %5952 = vmatpush2.msra.mxu0 0.0
    %5953 = vmatprep.subr.mxu0 0.0
    %5954 = vmatpush2.msra.mxu0 0.0
    %5955 = vmatprep.subr.mxu0 0.0
    %5956 = vmatpush2.msra.mxu0 0.0
    %5957 = vmatprep.subr.mxu0 0.0
    %5958 = vmatpush2.msra.mxu0 0.0
    %5959 = vmatprep.subr.mxu0 0.0
    %5960 = vmatpush2.msra.mxu0 0.0
    %5961 = vmatprep.subr.mxu0 0.0
    %5962 = vmatpush2.msra.mxu0 0.0
    %5963 = vmatprep.subr.mxu0 0.0
    %5964 = vmatpush2.msra.mxu0 0.0
    %5965 = vmatprep.subr.mxu0 0.0
    %5966 = vmatpush2.msra.mxu0 0.0
    %5967 = vmatprep.subr.mxu0 0.0
    %5968 = vmatpush2.msra.mxu0 0.0
    %5969 = vmatprep.subr.mxu0 0.0
    %5970 = vmatpush2.msra.mxu0 0.0
    %5971 = vmatprep.subr.mxu0 0.0
    %5972 = vmatpush2.msra.mxu0 0.0
    %5973 = vmatprep.subr.mxu0 0.0
    %5974 = vmatpush2.msra.mxu0 0.0
    %5975 = vmatprep.subr.mxu0 0.0
    %5976 = vmatpush2.msra.mxu0 0.0
    %5977 = vmatprep.subr.mxu0 0.0
    %5978 = vmatpush2.msra.mxu0 0.0
    %5979 = vmatprep.subr.mxu0 0.0
    %5980 = vmatpush2.msra.mxu0 0.0
    %5981 = vmatprep.subr.mxu0 0.0
    %5982 = vmatpush2.msra.mxu0 0.0
    %5983 = vmatprep.mubr.f32.mxu0 0.0
    %5984 = vmatmul.mubr.f32.gmra.mxu0 %v4789
    %v5985 = vpop.f32.mrf.mxu0
    %v5986 = vadd.f32 %v4781, %v5985
    %v5987 = vpop.f32.mrf.mxu0
    %5988 = vmatprep.mubr.f32.mxu0 0.0
    %5989 = vmatmul.mubr.f32.gmra.mxu0 %v4792
    %v5990 = vpop.f32.mrf.mxu0
    %v5991 = vadd.f32 %v4786, %v5990
    %v5992 = vpop.f32.mrf.mxu0
    %5993 = vdwg.mxu0
    %5994 = vmatprep.subr.mxu0 0.0
    %5995 = vmatpush1.msra.mxu0 0.0
    %5996 = vmatprep.subr.mxu0 0.0
    %5997 = vmatpush1.msra.mxu0 0.0
    %5998 = vmatprep.subr.mxu0 0.0
    %5999 = vmatpush1.msra.mxu0 0.0
    %6000 = vmatprep.subr.mxu0 0.0
    %6001 = vmatpush1.msra.mxu0 0.0
    %6002 = vmatprep.subr.mxu0 0.0
    %6003 = vmatpush1.msra.mxu0 0.0
    %6004 = vmatprep.subr.mxu0 0.0
    %6005 = vmatpush1.msra.mxu0 0.0
    %6006 = vmatprep.subr.mxu0 0.0
    %6007 = vmatpush1.msra.mxu0 0.0
    %6008 = vmatprep.subr.mxu0 0.0
    %6009 = vmatpush1.msra.mxu0 0.0
    %6010 = vmatprep.subr.mxu0 0.0
    %6011 = vmatpush1.msra.mxu0 0.0
    %6012 = vmatprep.subr.mxu0 0.0
    %6013 = vmatpush1.msra.mxu0 0.0
    %6014 = vmatprep.subr.mxu0 0.0
    %6015 = vmatpush1.msra.mxu0 %v4619
    %6016 = vmatprep.subr.mxu0 0.0
    %6017 = vmatpush1.msra.mxu0 %v4614
    %6018 = vmatprep.subr.mxu0 0.0
    %6019 = vmatpush1.msra.mxu0 %v4544
    %6020 = vmatprep.subr.mxu0 0.0
    %6021 = vmatpush1.msra.mxu0 %v4539
    %6022 = vmatprep.subr.mxu0 0.0
    %6023 = vmatpush1.msra.mxu0 %v4469
    %6024 = vmatprep.subr.mxu0 0.0
    %6025 = vmatpush1.msra.mxu0 %v4464
    %6026 = vmatprep.subr.mxu0 0.0
    %6027 = vmatpush2.msra.mxu0 0.0
    %6028 = vmatprep.subr.mxu0 0.0
    %6029 = vmatpush2.msra.mxu0 0.0
    %6030 = vmatprep.subr.mxu0 0.0
    %6031 = vmatpush2.msra.mxu0 0.0
    %6032 = vmatprep.subr.mxu0 0.0
    %6033 = vmatpush2.msra.mxu0 0.0
    %6034 = vmatprep.subr.mxu0 0.0
    %6035 = vmatpush2.msra.mxu0 0.0
    %6036 = vmatprep.subr.mxu0 0.0
    %6037 = vmatpush2.msra.mxu0 0.0
    %6038 = vmatprep.subr.mxu0 0.0
    %6039 = vmatpush2.msra.mxu0 0.0
    %6040 = vmatprep.subr.mxu0 0.0
    %6041 = vmatpush2.msra.mxu0 0.0
    %6042 = vmatprep.subr.mxu0 0.0
    %6043 = vmatpush2.msra.mxu0 0.0
    %6044 = vmatprep.subr.mxu0 0.0
    %6045 = vmatpush2.msra.mxu0 0.0
    %6046 = vmatprep.subr.mxu0 0.0
    %6047 = vmatpush2.msra.mxu0 0.0
    %6048 = vmatprep.subr.mxu0 0.0
    %6049 = vmatpush2.msra.mxu0 0.0
    %6050 = vmatprep.subr.mxu0 0.0
    %6051 = vmatpush2.msra.mxu0 0.0
    %6052 = vmatprep.subr.mxu0 0.0
    %6053 = vmatpush2.msra.mxu0 0.0
    %6054 = vmatprep.subr.mxu0 0.0
    %6055 = vmatpush2.msra.mxu0 0.0
    %6056 = vmatprep.subr.mxu0 0.0
    %6057 = vmatpush2.msra.mxu0 0.0
    %6058 = vmatprep.mubr.f32.mxu0 0.0
    %6059 = vmatmul.mubr.f32.gmra.mxu0 %v4789
    %v6060 = vpop.f32.mrf.mxu0
    %v6061 = vadd.f32 %v4781, %v6060
    %v6062 = vpop.f32.mrf.mxu0
    %6063 = vmatprep.mubr.f32.mxu0 0.0
    %6064 = vmatmul.mubr.f32.gmra.mxu0 %v4792
    %v6065 = vpop.f32.mrf.mxu0
    %v6066 = vadd.f32 %v4786, %v6065
    %v6067 = vpop.f32.mrf.mxu0
    %6068 = vdwg.mxu0
    %6069 = vmatprep.subr.mxu0 0.0
    %6070 = vmatpush1.msra.mxu0 0.0
    %6071 = vmatprep.subr.mxu0 0.0
    %6072 = vmatpush1.msra.mxu0 0.0
    %6073 = vmatprep.subr.mxu0 0.0
    %6074 = vmatpush1.msra.mxu0 0.0
    %6075 = vmatprep.subr.mxu0 0.0
    %6076 = vmatpush1.msra.mxu0 0.0
    %6077 = vmatprep.subr.mxu0 0.0
    %6078 = vmatpush1.msra.mxu0 0.0
    %6079 = vmatprep.subr.mxu0 0.0
    %6080 = vmatpush1.msra.mxu0 0.0
    %6081 = vmatprep.subr.mxu0 0.0
    %6082 = vmatpush1.msra.mxu0 0.0
    %6083 = vmatprep.subr.mxu0 0.0
    %6084 = vmatpush1.msra.mxu0 0.0
    %6085 = vmatprep.subr.mxu0 0.0
    %6086 = vmatpush1.msra.mxu0 0.0
    %6087 = vmatprep.subr.mxu0 0.0
    %6088 = vmatpush1.msra.mxu0 0.0
    %6089 = vmatprep.subr.mxu0 0.0
    %6090 = vmatpush1.msra.mxu0 %v4694
    %6091 = vmatprep.subr.mxu0 0.0
    %6092 = vmatpush1.msra.mxu0 %v4689
    %6093 = vmatprep.subr.mxu0 0.0
    %6094 = vmatpush1.msra.mxu0 %v4619
    %6095 = vmatprep.subr.mxu0 0.0
    %6096 = vmatpush1.msra.mxu0 %v4614
    %6097 = vmatprep.subr.mxu0 0.0
    %6098 = vmatpush1.msra.mxu0 %v4544
    %6099 = vmatprep.subr.mxu0 0.0
    %6100 = vmatpush1.msra.mxu0 %v4539
    %6101 = vmatprep.subr.mxu0 0.0
    %6102 = vmatpush2.msra.mxu0 0.0
    %6103 = vmatprep.subr.mxu0 0.0
    %6104 = vmatpush2.msra.mxu0 0.0
    %6105 = vmatprep.subr.mxu0 0.0
    %6106 = vmatpush2.msra.mxu0 0.0
    %6107 = vmatprep.subr.mxu0 0.0
    %6108 = vmatpush2.msra.mxu0 0.0
    %6109 = vmatprep.subr.mxu0 0.0
    %6110 = vmatpush2.msra.mxu0 0.0
    %6111 = vmatprep.subr.mxu0 0.0
    %6112 = vmatpush2.msra.mxu0 0.0
    %6113 = vmatprep.subr.mxu0 0.0
    %6114 = vmatpush2.msra.mxu0 0.0
    %6115 = vmatprep.subr.mxu0 0.0
    %6116 = vmatpush2.msra.mxu0 0.0
    %6117 = vmatprep.subr.mxu0 0.0
    %6118 = vmatpush2.msra.mxu0 0.0
    %6119 = vmatprep.subr.mxu0 0.0
    %6120 = vmatpush2.msra.mxu0 0.0
    %6121 = vmatprep.subr.mxu0 0.0
    %6122 = vmatpush2.msra.mxu0 0.0
    %6123 = vmatprep.subr.mxu0 0.0
    %6124 = vmatpush2.msra.mxu0 0.0
    %6125 = vmatprep.subr.mxu0 0.0
    %6126 = vmatpush2.msra.mxu0 0.0
    %6127 = vmatprep.subr.mxu0 0.0
    %6128 = vmatpush2.msra.mxu0 0.0
    %6129 = vmatprep.subr.mxu0 0.0
    %6130 = vmatpush2.msra.mxu0 0.0
    %6131 = vmatprep.subr.mxu0 0.0
    %6132 = vmatpush2.msra.mxu0 0.0
    %6133 = vmatprep.mubr.f32.mxu0 0.0
    %6134 = vmatmul.mubr.f32.gmra.mxu0 %v4789
    %v6135 = vpop.f32.mrf.mxu0
    %v6136 = vadd.f32 %v4781, %v6135
    %v6137 = vpop.f32.mrf.mxu0
    %6138 = vmatprep.mubr.f32.mxu0 0.0
    %6139 = vmatmul.mubr.f32.gmra.mxu0 %v4792
    %v6140 = vpop.f32.mrf.mxu0
    %v6141 = vadd.f32 %v4786, %v6140
    %v6142 = vpop.f32.mrf.mxu0
    %6143 = vdwg.mxu0
    %6144 = vmatprep.subr.mxu0 0.0
    %6145 = vmatpush1.msra.mxu0 0.0
    %6146 = vmatprep.subr.mxu0 0.0
    %6147 = vmatpush1.msra.mxu0 0.0
    %6148 = vmatprep.subr.mxu0 0.0
    %6149 = vmatpush1.msra.mxu0 0.0
    %6150 = vmatprep.subr.mxu0 0.0
    %6151 = vmatpush1.msra.mxu0 0.0
    %6152 = vmatprep.subr.mxu0 0.0
    %6153 = vmatpush1.msra.mxu0 0.0
    %6154 = vmatprep.subr.mxu0 0.0
    %6155 = vmatpush1.msra.mxu0 0.0
    %6156 = vmatprep.subr.mxu0 0.0
    %6157 = vmatpush1.msra.mxu0 0.0
    %6158 = vmatprep.subr.mxu0 0.0
    %6159 = vmatpush1.msra.mxu0 0.0
    %6160 = vmatprep.subr.mxu0 0.0
    %6161 = vmatpush1.msra.mxu0 0.0
    %6162 = vmatprep.subr.mxu0 0.0
    %6163 = vmatpush1.msra.mxu0 0.0
    %6164 = vmatprep.subr.mxu0 0.0
    %6165 = vmatpush1.msra.mxu0 %v4769
    %6166 = vmatprep.subr.mxu0 0.0
    %6167 = vmatpush1.msra.mxu0 %v4764
    %6168 = vmatprep.subr.mxu0 0.0
    %6169 = vmatpush1.msra.mxu0 %v4694
    %6170 = vmatprep.subr.mxu0 0.0
    %6171 = vmatpush1.msra.mxu0 %v4689
    %6172 = vmatprep.subr.mxu0 0.0
    %6173 = vmatpush1.msra.mxu0 %v4619
    %6174 = vmatprep.subr.mxu0 0.0
    %6175 = vmatpush1.msra.mxu0 %v4614
    %6176 = vmatprep.subr.mxu0 0.0
    %6177 = vmatpush2.msra.mxu0 0.0
    %6178 = vmatprep.subr.mxu0 0.0
    %6179 = vmatpush2.msra.mxu0 0.0
    %6180 = vmatprep.subr.mxu0 0.0
    %6181 = vmatpush2.msra.mxu0 0.0
    %6182 = vmatprep.subr.mxu0 0.0
    %6183 = vmatpush2.msra.mxu0 0.0
    %6184 = vmatprep.subr.mxu0 0.0
    %6185 = vmatpush2.msra.mxu0 0.0
    %6186 = vmatprep.subr.mxu0 0.0
    %6187 = vmatpush2.msra.mxu0 0.0
    %6188 = vmatprep.subr.mxu0 0.0
    %6189 = vmatpush2.msra.mxu0 0.0
    %6190 = vmatprep.subr.mxu0 0.0
    %6191 = vmatpush2.msra.mxu0 0.0
    %6192 = vmatprep.subr.mxu0 0.0
    %6193 = vmatpush2.msra.mxu0 0.0
    %6194 = vmatprep.subr.mxu0 0.0
    %6195 = vmatpush2.msra.mxu0 0.0
    %6196 = vmatprep.subr.mxu0 0.0
    %6197 = vmatpush2.msra.mxu0 0.0
    %6198 = vmatprep.subr.mxu0 0.0
    %6199 = vmatpush2.msra.mxu0 0.0
    %6200 = vmatprep.subr.mxu0 0.0
    %6201 = vmatpush2.msra.mxu0 0.0
    %6202 = vmatprep.subr.mxu0 0.0
    %6203 = vmatpush2.msra.mxu0 0.0
    %6204 = vmatprep.subr.mxu0 0.0
    %6205 = vmatpush2.msra.mxu0 0.0
    %6206 = vmatprep.subr.mxu0 0.0
    %6207 = vmatpush2.msra.mxu0 0.0
    %6208 = vmatprep.mubr.f32.mxu0 0.0
    %6209 = vmatmul.mubr.f32.gmra.mxu0 %v4789
    %v6210 = vpop.f32.mrf.mxu0
    %v6211 = vadd.f32 %v4781, %v6210
    %v6212 = vpop.f32.mrf.mxu0
    %6213 = vmatprep.mubr.f32.mxu0 0.0
    %6214 = vmatmul.mubr.f32.gmra.mxu0 %v4792
    %v6215 = vpop.f32.mrf.mxu0
    %v6216 = vadd.f32 %v4786, %v6215
    %v6217 = vpop.f32.mrf.mxu0
    %6218 = vdwg.mxu0
    %6219 = vmatprep.subr.mxu0 0.0
    %6220 = vmatpush1.msra.mxu0 0.0
    %6221 = vmatprep.subr.mxu0 0.0
    %6222 = vmatpush1.msra.mxu0 0.0
    %6223 = vmatprep.subr.mxu0 0.0
    %6224 = vmatpush1.msra.mxu0 0.0
    %6225 = vmatprep.subr.mxu0 0.0
    %6226 = vmatpush1.msra.mxu0 0.0
    %6227 = vmatprep.subr.mxu0 0.0
    %6228 = vmatpush1.msra.mxu0 0.0
    %6229 = vmatprep.subr.mxu0 0.0
    %6230 = vmatpush1.msra.mxu0 0.0
    %6231 = vmatprep.subr.mxu0 0.0
    %6232 = vmatpush1.msra.mxu0 0.0
    %6233 = vmatprep.subr.mxu0 0.0
    %6234 = vmatpush1.msra.mxu0 0.0
    %6235 = vmatprep.subr.mxu0 0.0
    %6236 = vmatpush1.msra.mxu0 0.0
    %6237 = vmatprep.subr.mxu0 0.0
    %6238 = vmatpush1.msra.mxu0 0.0
    %6239 = vmatprep.subr.mxu0 0.0
    %6240 = vmatpush1.msra.mxu0 0.0
    %6241 = vmatprep.subr.mxu0 0.0
    %6242 = vmatpush1.msra.mxu0 0.0
    %6243 = vmatprep.subr.mxu0 0.0
    %6244 = vmatpush1.msra.mxu0 %v4769
    %6245 = vmatprep.subr.mxu0 0.0
    %6246 = vmatpush1.msra.mxu0 %v4764
    %6247 = vmatprep.subr.mxu0 0.0
    %6248 = vmatpush1.msra.mxu0 %v4694
    %6249 = vmatprep.subr.mxu0 0.0
    %6250 = vmatpush1.msra.mxu0 %v4689
    %6251 = vmatprep.subr.mxu0 0.0
    %6252 = vmatpush2.msra.mxu0 0.0
    %6253 = vmatprep.subr.mxu0 0.0
    %6254 = vmatpush2.msra.mxu0 0.0
    %6255 = vmatprep.subr.mxu0 0.0
    %6256 = vmatpush2.msra.mxu0 0.0
    %6257 = vmatprep.subr.mxu0 0.0
    %6258 = vmatpush2.msra.mxu0 0.0
    %6259 = vmatprep.subr.mxu0 0.0
    %6260 = vmatpush2.msra.mxu0 0.0
    %6261 = vmatprep.subr.mxu0 0.0
    %6262 = vmatpush2.msra.mxu0 0.0
    %6263 = vmatprep.subr.mxu0 0.0
    %6264 = vmatpush2.msra.mxu0 0.0
    %6265 = vmatprep.subr.mxu0 0.0
    %6266 = vmatpush2.msra.mxu0 0.0
    %6267 = vmatprep.subr.mxu0 0.0
    %6268 = vmatpush2.msra.mxu0 0.0
    %6269 = vmatprep.subr.mxu0 0.0
    %6270 = vmatpush2.msra.mxu0 0.0
    %6271 = vmatprep.subr.mxu0 0.0
    %6272 = vmatpush2.msra.mxu0 0.0
    %6273 = vmatprep.subr.mxu0 0.0
    %6274 = vmatpush2.msra.mxu0 0.0
    %6275 = vmatprep.subr.mxu0 0.0
    %6276 = vmatpush2.msra.mxu0 0.0
    %6277 = vmatprep.subr.mxu0 0.0
    %6278 = vmatpush2.msra.mxu0 0.0
    %6279 = vmatprep.subr.mxu0 0.0
    %6280 = vmatpush2.msra.mxu0 0.0
    %6281 = vmatprep.subr.mxu0 0.0
    %6282 = vmatpush2.msra.mxu0 0.0
    %6283 = vmatprep.mubr.f32.mxu0 0.0
    %6284 = vmatmul.mubr.f32.gmra.mxu0 %v4789
    %v6285 = vpop.f32.mrf.mxu0
    %v6286 = vadd.f32 %v4781, %v6285
    %v6287 = vpop.f32.mrf.mxu0
    %6288 = vmatprep.mubr.f32.mxu0 0.0
    %6289 = vmatmul.mubr.f32.gmra.mxu0 %v4792
    %v6290 = vpop.f32.mrf.mxu0
    %v6291 = vadd.f32 %v4786, %v6290
    %v6292 = vpop.f32.mrf.mxu0
    %6293 = vdwg.mxu0
    %v6294 = vmax.f32 %v4861, 0.0
    %v6295 = vmax.f32 %v4866, 0.0
    %v6296 = vmax.f32 %v4936, 0.0
    %v6297 = vmax.f32 %v4941, 0.0
    %v6298 = vmax.f32 %v5011, 0.0
    %v6299 = vmax.f32 %v5016, 0.0
    %v6300 = vmax.f32 %v5086, 0.0
    %v6301 = vmax.f32 %v5091, 0.0
    %v6302 = vmax.f32 %v5161, 0.0
    %v6303 = vmax.f32 %v5166, 0.0
    %v6304 = vmax.f32 %v5236, 0.0
    %v6305 = vmax.f32 %v5241, 0.0
    %v6306 = vmax.f32 %v5311, 0.0
    %v6307 = vmax.f32 %v5316, 0.0
    %v6308 = vmax.f32 %v5386, 0.0
    %v6309 = vmax.f32 %v5391, 0.0
    %v6310 = vmax.f32 %v5461, 0.0
    %v6311 = vmax.f32 %v5466, 0.0
    %v6312 = vmax.f32 %v5536, 0.0
    %v6313 = vmax.f32 %v5541, 0.0
    %v6314 = vmax.f32 %v5611, 0.0
    %v6315 = vmax.f32 %v5616, 0.0
    %v6316 = vmax.f32 %v5686, 0.0
    %v6317 = vmax.f32 %v5691, 0.0
    %v6318 = vmax.f32 %v5761, 0.0
    %v6319 = vmax.f32 %v5766, 0.0
    %v6320 = vmax.f32 %v5836, 0.0
    %v6321 = vmax.f32 %v5841, 0.0
    %v6322 = vmax.f32 %v5911, 0.0
    %v6323 = vmax.f32 %v5916, 0.0
    %v6324 = vmax.f32 %v5986, 0.0
    %v6325 = vmax.f32 %v5991, 0.0
    %v6326 = vmax.f32 %v6061, 0.0
    %v6327 = vmax.f32 %v6066, 0.0
    %v6328 = vmax.f32 %v6136, 0.0
    %v6329 = vmax.f32 %v6141, 0.0
    %v6330 = vmax.f32 %v6211, 0.0
    %v6331 = vmax.f32 %v6216, 0.0
    %v6332 = vmax.f32 %v6286, 0.0
    %v6333 = vmax.f32 %v6291, 0.0
    %s6334 = scalar_lea.vmem %s1, 48
    %v6335 = vld [vmem:[%s6334] sm:$0xff]
    %v6336 = vld [vmem:[%s6334 + $0x8] sm:$0xff]
    %s6337 = scalar_lea.vmem %s2, 48
    %v6338 = vld [vmem:[%s6337] sm:$0xff]
    %v6339 = vld [vmem:[%s6337 + $0x8] sm:$0xff]
    %6341 = vset.pattern.permute.xlu0 0
    %6342 = vperm.xlu0 %6341, %v6338
    %v6343 = vpop.permute.xlu0 %6342
    %6346 = vset.pattern.permute.xlu0 0
    %6347 = vperm.xlu0 %6346, %v6339
    %v6348 = vpop.permute.xlu0 %6347
    %v6351 = vsel %vm123, %v6335, 0
    %v6354 = vsel %vm123, %v6336, 0
    %6356 = vmatprep.subr.mxu0 0.0
    %6357 = vmatpush1.msra.mxu0 0.0
    %6358 = vmatprep.subr.mxu0 0.0
    %6359 = vmatpush1.msra.mxu0 0.0
    %6360 = vmatprep.subr.mxu0 0.0
    %6361 = vmatpush1.msra.mxu0 0.0
    %6362 = vmatprep.subr.mxu0 0.0
    %6363 = vmatpush1.msra.mxu0 0.0
    %6364 = vmatprep.subr.mxu0 0.0
    %6365 = vmatpush1.msra.mxu0 0.0
    %6366 = vmatprep.subr.mxu0 0.0
    %6367 = vmatpush1.msra.mxu0 0.0
    %6368 = vmatprep.subr.mxu0 0.0
    %6369 = vmatpush1.msra.mxu0 0.0
    %6370 = vmatprep.subr.mxu0 0.0
    %6371 = vmatpush1.msra.mxu0 0.0
    %6372 = vmatprep.subr.mxu0 0.0
    %6373 = vmatpush1.msra.mxu0 0.0
    %6374 = vmatprep.subr.mxu0 0.0
    %6375 = vmatpush1.msra.mxu0 0.0
    %6376 = vmatprep.subr.mxu0 0.0
    %6377 = vmatpush1.msra.mxu0 %v6297
    %6378 = vmatprep.subr.mxu0 0.0
    %6379 = vmatpush1.msra.mxu0 %v6296
    %6380 = vmatprep.subr.mxu0 0.0
    %6381 = vmatpush1.msra.mxu0 %v6295
    %6382 = vmatprep.subr.mxu0 0.0
    %6383 = vmatpush1.msra.mxu0 %v6294
    %6384 = vmatprep.subr.mxu0 0.0
    %6385 = vmatpush1.msra.mxu0 0.0
    %6386 = vmatprep.subr.mxu0 0.0
    %6387 = vmatpush1.msra.mxu0 0.0
    %6388 = vmatprep.subr.mxu0 0.0
    %6389 = vmatpush2.msra.mxu0 0.0
    %6390 = vmatprep.subr.mxu0 0.0
    %6391 = vmatpush2.msra.mxu0 0.0
    %6392 = vmatprep.subr.mxu0 0.0
    %6393 = vmatpush2.msra.mxu0 0.0
    %6394 = vmatprep.subr.mxu0 0.0
    %6395 = vmatpush2.msra.mxu0 0.0
    %6396 = vmatprep.subr.mxu0 0.0
    %6397 = vmatpush2.msra.mxu0 0.0
    %6398 = vmatprep.subr.mxu0 0.0
    %6399 = vmatpush2.msra.mxu0 0.0
    %6400 = vmatprep.subr.mxu0 0.0
    %6401 = vmatpush2.msra.mxu0 0.0
    %6402 = vmatprep.subr.mxu0 0.0
    %6403 = vmatpush2.msra.mxu0 0.0
    %6404 = vmatprep.subr.mxu0 0.0
    %6405 = vmatpush2.msra.mxu0 0.0
    %6406 = vmatprep.subr.mxu0 0.0
    %6407 = vmatpush2.msra.mxu0 0.0
    %6408 = vmatprep.subr.mxu0 0.0
    %6409 = vmatpush2.msra.mxu0 0.0
    %6410 = vmatprep.subr.mxu0 0.0
    %6411 = vmatpush2.msra.mxu0 0.0
    %6412 = vmatprep.subr.mxu0 0.0
    %6413 = vmatpush2.msra.mxu0 0.0
    %6414 = vmatprep.subr.mxu0 0.0
    %6415 = vmatpush2.msra.mxu0 0.0
    %6416 = vmatprep.subr.mxu0 0.0
    %6417 = vmatpush2.msra.mxu0 0.0
    %6418 = vmatprep.subr.mxu0 0.0
    %6419 = vmatpush2.msra.mxu0 0.0
    %6420 = vmatprep.mubr.f32.mxu0 0.0
    %6421 = vmatmul.mubr.f32.gmra.mxu0 %v6351
    %v6422 = vpop.f32.mrf.mxu0
    %v6423 = vadd.f32 %v6343, %v6422
    %v6424 = vpop.f32.mrf.mxu0
    %6425 = vmatprep.mubr.f32.mxu0 0.0
    %6426 = vmatmul.mubr.f32.gmra.mxu0 %v6354
    %v6427 = vpop.f32.mrf.mxu0
    %v6428 = vadd.f32 %v6348, %v6427
    %v6429 = vpop.f32.mrf.mxu0
    %6430 = vdwg.mxu0
    %6431 = vmatprep.subr.mxu0 0.0
    %6432 = vmatpush1.msra.mxu0 0.0
    %6433 = vmatprep.subr.mxu0 0.0
    %6434 = vmatpush1.msra.mxu0 0.0
    %6435 = vmatprep.subr.mxu0 0.0
    %6436 = vmatpush1.msra.mxu0 0.0
    %6437 = vmatprep.subr.mxu0 0.0
    %6438 = vmatpush1.msra.mxu0 0.0
    %6439 = vmatprep.subr.mxu0 0.0
    %6440 = vmatpush1.msra.mxu0 0.0
    %6441 = vmatprep.subr.mxu0 0.0
    %6442 = vmatpush1.msra.mxu0 0.0
    %6443 = vmatprep.subr.mxu0 0.0
    %6444 = vmatpush1.msra.mxu0 0.0
    %6445 = vmatprep.subr.mxu0 0.0
    %6446 = vmatpush1.msra.mxu0 0.0
    %6447 = vmatprep.subr.mxu0 0.0
    %6448 = vmatpush1.msra.mxu0 0.0
    %6449 = vmatprep.subr.mxu0 0.0
    %6450 = vmatpush1.msra.mxu0 0.0
    %6451 = vmatprep.subr.mxu0 0.0
    %6452 = vmatpush1.msra.mxu0 %v6299
    %6453 = vmatprep.subr.mxu0 0.0
    %6454 = vmatpush1.msra.mxu0 %v6298
    %6455 = vmatprep.subr.mxu0 0.0
    %6456 = vmatpush1.msra.mxu0 %v6297
    %6457 = vmatprep.subr.mxu0 0.0
    %6458 = vmatpush1.msra.mxu0 %v6296
    %6459 = vmatprep.subr.mxu0 0.0
    %6460 = vmatpush1.msra.mxu0 %v6295
    %6461 = vmatprep.subr.mxu0 0.0
    %6462 = vmatpush1.msra.mxu0 %v6294
    %6463 = vmatprep.subr.mxu0 0.0
    %6464 = vmatpush2.msra.mxu0 0.0
    %6465 = vmatprep.subr.mxu0 0.0
    %6466 = vmatpush2.msra.mxu0 0.0
    %6467 = vmatprep.subr.mxu0 0.0
    %6468 = vmatpush2.msra.mxu0 0.0
    %6469 = vmatprep.subr.mxu0 0.0
    %6470 = vmatpush2.msra.mxu0 0.0
    %6471 = vmatprep.subr.mxu0 0.0
    %6472 = vmatpush2.msra.mxu0 0.0
    %6473 = vmatprep.subr.mxu0 0.0
    %6474 = vmatpush2.msra.mxu0 0.0
    %6475 = vmatprep.subr.mxu0 0.0
    %6476 = vmatpush2.msra.mxu0 0.0
    %6477 = vmatprep.subr.mxu0 0.0
    %6478 = vmatpush2.msra.mxu0 0.0
    %6479 = vmatprep.subr.mxu0 0.0
    %6480 = vmatpush2.msra.mxu0 0.0
    %6481 = vmatprep.subr.mxu0 0.0
    %6482 = vmatpush2.msra.mxu0 0.0
    %6483 = vmatprep.subr.mxu0 0.0
    %6484 = vmatpush2.msra.mxu0 0.0
    %6485 = vmatprep.subr.mxu0 0.0
    %6486 = vmatpush2.msra.mxu0 0.0
    %6487 = vmatprep.subr.mxu0 0.0
    %6488 = vmatpush2.msra.mxu0 0.0
    %6489 = vmatprep.subr.mxu0 0.0
    %6490 = vmatpush2.msra.mxu0 0.0
    %6491 = vmatprep.subr.mxu0 0.0
    %6492 = vmatpush2.msra.mxu0 0.0
    %6493 = vmatprep.subr.mxu0 0.0
    %6494 = vmatpush2.msra.mxu0 0.0
    %6495 = vmatprep.mubr.f32.mxu0 0.0
    %6496 = vmatmul.mubr.f32.gmra.mxu0 %v6351
    %v6497 = vpop.f32.mrf.mxu0
    %v6498 = vadd.f32 %v6343, %v6497
    %v6499 = vpop.f32.mrf.mxu0
    %6500 = vmatprep.mubr.f32.mxu0 0.0
    %6501 = vmatmul.mubr.f32.gmra.mxu0 %v6354
    %v6502 = vpop.f32.mrf.mxu0
    %v6503 = vadd.f32 %v6348, %v6502
    %v6504 = vpop.f32.mrf.mxu0
    %6505 = vdwg.mxu0
    %6506 = vmatprep.subr.mxu0 0.0
    %6507 = vmatpush1.msra.mxu0 0.0
    %6508 = vmatprep.subr.mxu0 0.0
    %6509 = vmatpush1.msra.mxu0 0.0
    %6510 = vmatprep.subr.mxu0 0.0
    %6511 = vmatpush1.msra.mxu0 0.0
    %6512 = vmatprep.subr.mxu0 0.0
    %6513 = vmatpush1.msra.mxu0 0.0
    %6514 = vmatprep.subr.mxu0 0.0
    %6515 = vmatpush1.msra.mxu0 0.0
    %6516 = vmatprep.subr.mxu0 0.0
    %6517 = vmatpush1.msra.mxu0 0.0
    %6518 = vmatprep.subr.mxu0 0.0
    %6519 = vmatpush1.msra.mxu0 0.0
    %6520 = vmatprep.subr.mxu0 0.0
    %6521 = vmatpush1.msra.mxu0 0.0
    %6522 = vmatprep.subr.mxu0 0.0
    %6523 = vmatpush1.msra.mxu0 0.0
    %6524 = vmatprep.subr.mxu0 0.0
    %6525 = vmatpush1.msra.mxu0 0.0
    %6526 = vmatprep.subr.mxu0 0.0
    %6527 = vmatpush1.msra.mxu0 %v6301
    %6528 = vmatprep.subr.mxu0 0.0
    %6529 = vmatpush1.msra.mxu0 %v6300
    %6530 = vmatprep.subr.mxu0 0.0
    %6531 = vmatpush1.msra.mxu0 %v6299
    %6532 = vmatprep.subr.mxu0 0.0
    %6533 = vmatpush1.msra.mxu0 %v6298
    %6534 = vmatprep.subr.mxu0 0.0
    %6535 = vmatpush1.msra.mxu0 %v6297
    %6536 = vmatprep.subr.mxu0 0.0
    %6537 = vmatpush1.msra.mxu0 %v6296
    %6538 = vmatprep.subr.mxu0 0.0
    %6539 = vmatpush2.msra.mxu0 0.0
    %6540 = vmatprep.subr.mxu0 0.0
    %6541 = vmatpush2.msra.mxu0 0.0
    %6542 = vmatprep.subr.mxu0 0.0
    %6543 = vmatpush2.msra.mxu0 0.0
    %6544 = vmatprep.subr.mxu0 0.0
    %6545 = vmatpush2.msra.mxu0 0.0
    %6546 = vmatprep.subr.mxu0 0.0
    %6547 = vmatpush2.msra.mxu0 0.0
    %6548 = vmatprep.subr.mxu0 0.0
    %6549 = vmatpush2.msra.mxu0 0.0
    %6550 = vmatprep.subr.mxu0 0.0
    %6551 = vmatpush2.msra.mxu0 0.0
    %6552 = vmatprep.subr.mxu0 0.0
    %6553 = vmatpush2.msra.mxu0 0.0
    %6554 = vmatprep.subr.mxu0 0.0
    %6555 = vmatpush2.msra.mxu0 0.0
    %6556 = vmatprep.subr.mxu0 0.0
    %6557 = vmatpush2.msra.mxu0 0.0
    %6558 = vmatprep.subr.mxu0 0.0
    %6559 = vmatpush2.msra.mxu0 0.0
    %6560 = vmatprep.subr.mxu0 0.0
    %6561 = vmatpush2.msra.mxu0 0.0
    %6562 = vmatprep.subr.mxu0 0.0
    %6563 = vmatpush2.msra.mxu0 0.0
    %6564 = vmatprep.subr.mxu0 0.0
    %6565 = vmatpush2.msra.mxu0 0.0
    %6566 = vmatprep.subr.mxu0 0.0
    %6567 = vmatpush2.msra.mxu0 0.0
    %6568 = vmatprep.subr.mxu0 0.0
    %6569 = vmatpush2.msra.mxu0 0.0
    %6570 = vmatprep.mubr.f32.mxu0 0.0
    %6571 = vmatmul.mubr.f32.gmra.mxu0 %v6351
    %v6572 = vpop.f32.mrf.mxu0
    %v6573 = vadd.f32 %v6343, %v6572
    %v6574 = vpop.f32.mrf.mxu0
    %6575 = vmatprep.mubr.f32.mxu0 0.0
    %6576 = vmatmul.mubr.f32.gmra.mxu0 %v6354
    %v6577 = vpop.f32.mrf.mxu0
    %v6578 = vadd.f32 %v6348, %v6577
    %v6579 = vpop.f32.mrf.mxu0
    %6580 = vdwg.mxu0
    %6581 = vmatprep.subr.mxu0 0.0
    %6582 = vmatpush1.msra.mxu0 0.0
    %6583 = vmatprep.subr.mxu0 0.0
    %6584 = vmatpush1.msra.mxu0 0.0
    %6585 = vmatprep.subr.mxu0 0.0
    %6586 = vmatpush1.msra.mxu0 0.0
    %6587 = vmatprep.subr.mxu0 0.0
    %6588 = vmatpush1.msra.mxu0 0.0
    %6589 = vmatprep.subr.mxu0 0.0
    %6590 = vmatpush1.msra.mxu0 0.0
    %6591 = vmatprep.subr.mxu0 0.0
    %6592 = vmatpush1.msra.mxu0 0.0
    %6593 = vmatprep.subr.mxu0 0.0
    %6594 = vmatpush1.msra.mxu0 0.0
    %6595 = vmatprep.subr.mxu0 0.0
    %6596 = vmatpush1.msra.mxu0 0.0
    %6597 = vmatprep.subr.mxu0 0.0
    %6598 = vmatpush1.msra.mxu0 0.0
    %6599 = vmatprep.subr.mxu0 0.0
    %6600 = vmatpush1.msra.mxu0 0.0
    %6601 = vmatprep.subr.mxu0 0.0
    %6602 = vmatpush1.msra.mxu0 %v6303
    %6603 = vmatprep.subr.mxu0 0.0
    %6604 = vmatpush1.msra.mxu0 %v6302
    %6605 = vmatprep.subr.mxu0 0.0
    %6606 = vmatpush1.msra.mxu0 %v6301
    %6607 = vmatprep.subr.mxu0 0.0
    %6608 = vmatpush1.msra.mxu0 %v6300
    %6609 = vmatprep.subr.mxu0 0.0
    %6610 = vmatpush1.msra.mxu0 %v6299
    %6611 = vmatprep.subr.mxu0 0.0
    %6612 = vmatpush1.msra.mxu0 %v6298
    %6613 = vmatprep.subr.mxu0 0.0
    %6614 = vmatpush2.msra.mxu0 0.0
    %6615 = vmatprep.subr.mxu0 0.0
    %6616 = vmatpush2.msra.mxu0 0.0
    %6617 = vmatprep.subr.mxu0 0.0
    %6618 = vmatpush2.msra.mxu0 0.0
    %6619 = vmatprep.subr.mxu0 0.0
    %6620 = vmatpush2.msra.mxu0 0.0
    %6621 = vmatprep.subr.mxu0 0.0
    %6622 = vmatpush2.msra.mxu0 0.0
    %6623 = vmatprep.subr.mxu0 0.0
    %6624 = vmatpush2.msra.mxu0 0.0
    %6625 = vmatprep.subr.mxu0 0.0
    %6626 = vmatpush2.msra.mxu0 0.0
    %6627 = vmatprep.subr.mxu0 0.0
    %6628 = vmatpush2.msra.mxu0 0.0
    %6629 = vmatprep.subr.mxu0 0.0
    %6630 = vmatpush2.msra.mxu0 0.0
    %6631 = vmatprep.subr.mxu0 0.0
    %6632 = vmatpush2.msra.mxu0 0.0
    %6633 = vmatprep.subr.mxu0 0.0
    %6634 = vmatpush2.msra.mxu0 0.0
    %6635 = vmatprep.subr.mxu0 0.0
    %6636 = vmatpush2.msra.mxu0 0.0
    %6637 = vmatprep.subr.mxu0 0.0
    %6638 = vmatpush2.msra.mxu0 0.0
    %6639 = vmatprep.subr.mxu0 0.0
    %6640 = vmatpush2.msra.mxu0 0.0
    %6641 = vmatprep.subr.mxu0 0.0
    %6642 = vmatpush2.msra.mxu0 0.0
    %6643 = vmatprep.subr.mxu0 0.0
    %6644 = vmatpush2.msra.mxu0 0.0
    %6645 = vmatprep.mubr.f32.mxu0 0.0
    %6646 = vmatmul.mubr.f32.gmra.mxu0 %v6351
    %v6647 = vpop.f32.mrf.mxu0
    %v6648 = vadd.f32 %v6343, %v6647
    %v6649 = vpop.f32.mrf.mxu0
    %6650 = vmatprep.mubr.f32.mxu0 0.0
    %6651 = vmatmul.mubr.f32.gmra.mxu0 %v6354
    %v6652 = vpop.f32.mrf.mxu0
    %v6653 = vadd.f32 %v6348, %v6652
    %v6654 = vpop.f32.mrf.mxu0
    %6655 = vdwg.mxu0
    %6656 = vmatprep.subr.mxu0 0.0
    %6657 = vmatpush1.msra.mxu0 0.0
    %6658 = vmatprep.subr.mxu0 0.0
    %6659 = vmatpush1.msra.mxu0 0.0
    %6660 = vmatprep.subr.mxu0 0.0
    %6661 = vmatpush1.msra.mxu0 0.0
    %6662 = vmatprep.subr.mxu0 0.0
    %6663 = vmatpush1.msra.mxu0 0.0
    %6664 = vmatprep.subr.mxu0 0.0
    %6665 = vmatpush1.msra.mxu0 0.0
    %6666 = vmatprep.subr.mxu0 0.0
    %6667 = vmatpush1.msra.mxu0 0.0
    %6668 = vmatprep.subr.mxu0 0.0
    %6669 = vmatpush1.msra.mxu0 0.0
    %6670 = vmatprep.subr.mxu0 0.0
    %6671 = vmatpush1.msra.mxu0 0.0
    %6672 = vmatprep.subr.mxu0 0.0
    %6673 = vmatpush1.msra.mxu0 0.0
    %6674 = vmatprep.subr.mxu0 0.0
    %6675 = vmatpush1.msra.mxu0 0.0
    %6676 = vmatprep.subr.mxu0 0.0
    %6677 = vmatpush1.msra.mxu0 %v6305
    %6678 = vmatprep.subr.mxu0 0.0
    %6679 = vmatpush1.msra.mxu0 %v6304
    %6680 = vmatprep.subr.mxu0 0.0
    %6681 = vmatpush1.msra.mxu0 %v6303
    %6682 = vmatprep.subr.mxu0 0.0
    %6683 = vmatpush1.msra.mxu0 %v6302
    %6684 = vmatprep.subr.mxu0 0.0
    %6685 = vmatpush1.msra.mxu0 %v6301
    %6686 = vmatprep.subr.mxu0 0.0
    %6687 = vmatpush1.msra.mxu0 %v6300
    %6688 = vmatprep.subr.mxu0 0.0
    %6689 = vmatpush2.msra.mxu0 0.0
    %6690 = vmatprep.subr.mxu0 0.0
    %6691 = vmatpush2.msra.mxu0 0.0
    %6692 = vmatprep.subr.mxu0 0.0
    %6693 = vmatpush2.msra.mxu0 0.0
    %6694 = vmatprep.subr.mxu0 0.0
    %6695 = vmatpush2.msra.mxu0 0.0
    %6696 = vmatprep.subr.mxu0 0.0
    %6697 = vmatpush2.msra.mxu0 0.0
    %6698 = vmatprep.subr.mxu0 0.0
    %6699 = vmatpush2.msra.mxu0 0.0
    %6700 = vmatprep.subr.mxu0 0.0
    %6701 = vmatpush2.msra.mxu0 0.0
    %6702 = vmatprep.subr.mxu0 0.0
    %6703 = vmatpush2.msra.mxu0 0.0
    %6704 = vmatprep.subr.mxu0 0.0
    %6705 = vmatpush2.msra.mxu0 0.0
    %6706 = vmatprep.subr.mxu0 0.0
    %6707 = vmatpush2.msra.mxu0 0.0
    %6708 = vmatprep.subr.mxu0 0.0
    %6709 = vmatpush2.msra.mxu0 0.0
    %6710 = vmatprep.subr.mxu0 0.0
    %6711 = vmatpush2.msra.mxu0 0.0
    %6712 = vmatprep.subr.mxu0 0.0
    %6713 = vmatpush2.msra.mxu0 0.0
    %6714 = vmatprep.subr.mxu0 0.0
    %6715 = vmatpush2.msra.mxu0 0.0
    %6716 = vmatprep.subr.mxu0 0.0
    %6717 = vmatpush2.msra.mxu0 0.0
    %6718 = vmatprep.subr.mxu0 0.0
    %6719 = vmatpush2.msra.mxu0 0.0
    %6720 = vmatprep.mubr.f32.mxu0 0.0
    %6721 = vmatmul.mubr.f32.gmra.mxu0 %v6351
    %v6722 = vpop.f32.mrf.mxu0
    %v6723 = vadd.f32 %v6343, %v6722
    %v6724 = vpop.f32.mrf.mxu0
    %6725 = vmatprep.mubr.f32.mxu0 0.0
    %6726 = vmatmul.mubr.f32.gmra.mxu0 %v6354
    %v6727 = vpop.f32.mrf.mxu0
    %v6728 = vadd.f32 %v6348, %v6727
    %v6729 = vpop.f32.mrf.mxu0
    %6730 = vdwg.mxu0
    %6731 = vmatprep.subr.mxu0 0.0
    %6732 = vmatpush1.msra.mxu0 0.0
    %6733 = vmatprep.subr.mxu0 0.0
    %6734 = vmatpush1.msra.mxu0 0.0
    %6735 = vmatprep.subr.mxu0 0.0
    %6736 = vmatpush1.msra.mxu0 0.0
    %6737 = vmatprep.subr.mxu0 0.0
    %6738 = vmatpush1.msra.mxu0 0.0
    %6739 = vmatprep.subr.mxu0 0.0
    %6740 = vmatpush1.msra.mxu0 0.0
    %6741 = vmatprep.subr.mxu0 0.0
    %6742 = vmatpush1.msra.mxu0 0.0
    %6743 = vmatprep.subr.mxu0 0.0
    %6744 = vmatpush1.msra.mxu0 0.0
    %6745 = vmatprep.subr.mxu0 0.0
    %6746 = vmatpush1.msra.mxu0 0.0
    %6747 = vmatprep.subr.mxu0 0.0
    %6748 = vmatpush1.msra.mxu0 0.0
    %6749 = vmatprep.subr.mxu0 0.0
    %6750 = vmatpush1.msra.mxu0 0.0
    %6751 = vmatprep.subr.mxu0 0.0
    %6752 = vmatpush1.msra.mxu0 %v6307
    %6753 = vmatprep.subr.mxu0 0.0
    %6754 = vmatpush1.msra.mxu0 %v6306
    %6755 = vmatprep.subr.mxu0 0.0
    %6756 = vmatpush1.msra.mxu0 %v6305
    %6757 = vmatprep.subr.mxu0 0.0
    %6758 = vmatpush1.msra.mxu0 %v6304
    %6759 = vmatprep.subr.mxu0 0.0
    %6760 = vmatpush1.msra.mxu0 %v6303
    %6761 = vmatprep.subr.mxu0 0.0
    %6762 = vmatpush1.msra.mxu0 %v6302
    %6763 = vmatprep.subr.mxu0 0.0
    %6764 = vmatpush2.msra.mxu0 0.0
    %6765 = vmatprep.subr.mxu0 0.0
    %6766 = vmatpush2.msra.mxu0 0.0
    %6767 = vmatprep.subr.mxu0 0.0
    %6768 = vmatpush2.msra.mxu0 0.0
    %6769 = vmatprep.subr.mxu0 0.0
    %6770 = vmatpush2.msra.mxu0 0.0
    %6771 = vmatprep.subr.mxu0 0.0
    %6772 = vmatpush2.msra.mxu0 0.0
    %6773 = vmatprep.subr.mxu0 0.0
    %6774 = vmatpush2.msra.mxu0 0.0
    %6775 = vmatprep.subr.mxu0 0.0
    %6776 = vmatpush2.msra.mxu0 0.0
    %6777 = vmatprep.subr.mxu0 0.0
    %6778 = vmatpush2.msra.mxu0 0.0
    %6779 = vmatprep.subr.mxu0 0.0
    %6780 = vmatpush2.msra.mxu0 0.0
    %6781 = vmatprep.subr.mxu0 0.0
    %6782 = vmatpush2.msra.mxu0 0.0
    %6783 = vmatprep.subr.mxu0 0.0
    %6784 = vmatpush2.msra.mxu0 0.0
    %6785 = vmatprep.subr.mxu0 0.0
    %6786 = vmatpush2.msra.mxu0 0.0
    %6787 = vmatprep.subr.mxu0 0.0
    %6788 = vmatpush2.msra.mxu0 0.0
    %6789 = vmatprep.subr.mxu0 0.0
    %6790 = vmatpush2.msra.mxu0 0.0
    %6791 = vmatprep.subr.mxu0 0.0
    %6792 = vmatpush2.msra.mxu0 0.0
    %6793 = vmatprep.subr.mxu0 0.0
    %6794 = vmatpush2.msra.mxu0 0.0
    %6795 = vmatprep.mubr.f32.mxu0 0.0
    %6796 = vmatmul.mubr.f32.gmra.mxu0 %v6351
    %v6797 = vpop.f32.mrf.mxu0
    %v6798 = vadd.f32 %v6343, %v6797
    %v6799 = vpop.f32.mrf.mxu0
    %6800 = vmatprep.mubr.f32.mxu0 0.0
    %6801 = vmatmul.mubr.f32.gmra.mxu0 %v6354
    %v6802 = vpop.f32.mrf.mxu0
    %v6803 = vadd.f32 %v6348, %v6802
    %v6804 = vpop.f32.mrf.mxu0
    %6805 = vdwg.mxu0
    %6806 = vmatprep.subr.mxu0 0.0
    %6807 = vmatpush1.msra.mxu0 0.0
    %6808 = vmatprep.subr.mxu0 0.0
    %6809 = vmatpush1.msra.mxu0 0.0
    %6810 = vmatprep.subr.mxu0 0.0
    %6811 = vmatpush1.msra.mxu0 0.0
    %6812 = vmatprep.subr.mxu0 0.0
    %6813 = vmatpush1.msra.mxu0 0.0
    %6814 = vmatprep.subr.mxu0 0.0
    %6815 = vmatpush1.msra.mxu0 0.0
    %6816 = vmatprep.subr.mxu0 0.0
    %6817 = vmatpush1.msra.mxu0 0.0
    %6818 = vmatprep.subr.mxu0 0.0
    %6819 = vmatpush1.msra.mxu0 0.0
    %6820 = vmatprep.subr.mxu0 0.0
    %6821 = vmatpush1.msra.mxu0 0.0
    %6822 = vmatprep.subr.mxu0 0.0
    %6823 = vmatpush1.msra.mxu0 0.0
    %6824 = vmatprep.subr.mxu0 0.0
    %6825 = vmatpush1.msra.mxu0 0.0
    %6826 = vmatprep.subr.mxu0 0.0
    %6827 = vmatpush1.msra.mxu0 %v6309
    %6828 = vmatprep.subr.mxu0 0.0
    %6829 = vmatpush1.msra.mxu0 %v6308
    %6830 = vmatprep.subr.mxu0 0.0
    %6831 = vmatpush1.msra.mxu0 %v6307
    %6832 = vmatprep.subr.mxu0 0.0
    %6833 = vmatpush1.msra.mxu0 %v6306
    %6834 = vmatprep.subr.mxu0 0.0
    %6835 = vmatpush1.msra.mxu0 %v6305
    %6836 = vmatprep.subr.mxu0 0.0
    %6837 = vmatpush1.msra.mxu0 %v6304
    %6838 = vmatprep.subr.mxu0 0.0
    %6839 = vmatpush2.msra.mxu0 0.0
    %6840 = vmatprep.subr.mxu0 0.0
    %6841 = vmatpush2.msra.mxu0 0.0
    %6842 = vmatprep.subr.mxu0 0.0
    %6843 = vmatpush2.msra.mxu0 0.0
    %6844 = vmatprep.subr.mxu0 0.0
    %6845 = vmatpush2.msra.mxu0 0.0
    %6846 = vmatprep.subr.mxu0 0.0
    %6847 = vmatpush2.msra.mxu0 0.0
    %6848 = vmatprep.subr.mxu0 0.0
    %6849 = vmatpush2.msra.mxu0 0.0
    %6850 = vmatprep.subr.mxu0 0.0
    %6851 = vmatpush2.msra.mxu0 0.0
    %6852 = vmatprep.subr.mxu0 0.0
    %6853 = vmatpush2.msra.mxu0 0.0
    %6854 = vmatprep.subr.mxu0 0.0
    %6855 = vmatpush2.msra.mxu0 0.0
    %6856 = vmatprep.subr.mxu0 0.0
    %6857 = vmatpush2.msra.mxu0 0.0
    %6858 = vmatprep.subr.mxu0 0.0
    %6859 = vmatpush2.msra.mxu0 0.0
    %6860 = vmatprep.subr.mxu0 0.0
    %6861 = vmatpush2.msra.mxu0 0.0
    %6862 = vmatprep.subr.mxu0 0.0
    %6863 = vmatpush2.msra.mxu0 0.0
    %6864 = vmatprep.subr.mxu0 0.0
    %6865 = vmatpush2.msra.mxu0 0.0
    %6866 = vmatprep.subr.mxu0 0.0
    %6867 = vmatpush2.msra.mxu0 0.0
    %6868 = vmatprep.subr.mxu0 0.0
    %6869 = vmatpush2.msra.mxu0 0.0
    %6870 = vmatprep.mubr.f32.mxu0 0.0
    %6871 = vmatmul.mubr.f32.gmra.mxu0 %v6351
    %v6872 = vpop.f32.mrf.mxu0
    %v6873 = vadd.f32 %v6343, %v6872
    %v6874 = vpop.f32.mrf.mxu0
    %6875 = vmatprep.mubr.f32.mxu0 0.0
    %6876 = vmatmul.mubr.f32.gmra.mxu0 %v6354
    %v6877 = vpop.f32.mrf.mxu0
    %v6878 = vadd.f32 %v6348, %v6877
    %v6879 = vpop.f32.mrf.mxu0
    %6880 = vdwg.mxu0
    %6881 = vmatprep.subr.mxu0 0.0
    %6882 = vmatpush1.msra.mxu0 0.0
    %6883 = vmatprep.subr.mxu0 0.0
    %6884 = vmatpush1.msra.mxu0 0.0
    %6885 = vmatprep.subr.mxu0 0.0
    %6886 = vmatpush1.msra.mxu0 0.0
    %6887 = vmatprep.subr.mxu0 0.0
    %6888 = vmatpush1.msra.mxu0 0.0
    %6889 = vmatprep.subr.mxu0 0.0
    %6890 = vmatpush1.msra.mxu0 0.0
    %6891 = vmatprep.subr.mxu0 0.0
    %6892 = vmatpush1.msra.mxu0 0.0
    %6893 = vmatprep.subr.mxu0 0.0
    %6894 = vmatpush1.msra.mxu0 0.0
    %6895 = vmatprep.subr.mxu0 0.0
    %6896 = vmatpush1.msra.mxu0 0.0
    %6897 = vmatprep.subr.mxu0 0.0
    %6898 = vmatpush1.msra.mxu0 0.0
    %6899 = vmatprep.subr.mxu0 0.0
    %6900 = vmatpush1.msra.mxu0 0.0
    %6901 = vmatprep.subr.mxu0 0.0
    %6902 = vmatpush1.msra.mxu0 %v6311
    %6903 = vmatprep.subr.mxu0 0.0
    %6904 = vmatpush1.msra.mxu0 %v6310
    %6905 = vmatprep.subr.mxu0 0.0
    %6906 = vmatpush1.msra.mxu0 %v6309
    %6907 = vmatprep.subr.mxu0 0.0
    %6908 = vmatpush1.msra.mxu0 %v6308
    %6909 = vmatprep.subr.mxu0 0.0
    %6910 = vmatpush1.msra.mxu0 %v6307
    %6911 = vmatprep.subr.mxu0 0.0
    %6912 = vmatpush1.msra.mxu0 %v6306
    %6913 = vmatprep.subr.mxu0 0.0
    %6914 = vmatpush2.msra.mxu0 0.0
    %6915 = vmatprep.subr.mxu0 0.0
    %6916 = vmatpush2.msra.mxu0 0.0
    %6917 = vmatprep.subr.mxu0 0.0
    %6918 = vmatpush2.msra.mxu0 0.0
    %6919 = vmatprep.subr.mxu0 0.0
    %6920 = vmatpush2.msra.mxu0 0.0
    %6921 = vmatprep.subr.mxu0 0.0
    %6922 = vmatpush2.msra.mxu0 0.0
    %6923 = vmatprep.subr.mxu0 0.0
    %6924 = vmatpush2.msra.mxu0 0.0
    %6925 = vmatprep.subr.mxu0 0.0
    %6926 = vmatpush2.msra.mxu0 0.0
    %6927 = vmatprep.subr.mxu0 0.0
    %6928 = vmatpush2.msra.mxu0 0.0
    %6929 = vmatprep.subr.mxu0 0.0
    %6930 = vmatpush2.msra.mxu0 0.0
    %6931 = vmatprep.subr.mxu0 0.0
    %6932 = vmatpush2.msra.mxu0 0.0
    %6933 = vmatprep.subr.mxu0 0.0
    %6934 = vmatpush2.msra.mxu0 0.0
    %6935 = vmatprep.subr.mxu0 0.0
    %6936 = vmatpush2.msra.mxu0 0.0
    %6937 = vmatprep.subr.mxu0 0.0
    %6938 = vmatpush2.msra.mxu0 0.0
    %6939 = vmatprep.subr.mxu0 0.0
    %6940 = vmatpush2.msra.mxu0 0.0
    %6941 = vmatprep.subr.mxu0 0.0
    %6942 = vmatpush2.msra.mxu0 0.0
    %6943 = vmatprep.subr.mxu0 0.0
    %6944 = vmatpush2.msra.mxu0 0.0
    %6945 = vmatprep.mubr.f32.mxu0 0.0
    %6946 = vmatmul.mubr.f32.gmra.mxu0 %v6351
    %v6947 = vpop.f32.mrf.mxu0
    %v6948 = vadd.f32 %v6343, %v6947
    %v6949 = vpop.f32.mrf.mxu0
    %6950 = vmatprep.mubr.f32.mxu0 0.0
    %6951 = vmatmul.mubr.f32.gmra.mxu0 %v6354
    %v6952 = vpop.f32.mrf.mxu0
    %v6953 = vadd.f32 %v6348, %v6952
    %v6954 = vpop.f32.mrf.mxu0
    %6955 = vdwg.mxu0
    %6956 = vmatprep.subr.mxu0 0.0
    %6957 = vmatpush1.msra.mxu0 0.0
    %6958 = vmatprep.subr.mxu0 0.0
    %6959 = vmatpush1.msra.mxu0 0.0
    %6960 = vmatprep.subr.mxu0 0.0
    %6961 = vmatpush1.msra.mxu0 0.0
    %6962 = vmatprep.subr.mxu0 0.0
    %6963 = vmatpush1.msra.mxu0 0.0
    %6964 = vmatprep.subr.mxu0 0.0
    %6965 = vmatpush1.msra.mxu0 0.0
    %6966 = vmatprep.subr.mxu0 0.0
    %6967 = vmatpush1.msra.mxu0 0.0
    %6968 = vmatprep.subr.mxu0 0.0
    %6969 = vmatpush1.msra.mxu0 0.0
    %6970 = vmatprep.subr.mxu0 0.0
    %6971 = vmatpush1.msra.mxu0 0.0
    %6972 = vmatprep.subr.mxu0 0.0
    %6973 = vmatpush1.msra.mxu0 0.0
    %6974 = vmatprep.subr.mxu0 0.0
    %6975 = vmatpush1.msra.mxu0 0.0
    %6976 = vmatprep.subr.mxu0 0.0
    %6977 = vmatpush1.msra.mxu0 %v6313
    %6978 = vmatprep.subr.mxu0 0.0
    %6979 = vmatpush1.msra.mxu0 %v6312
    %6980 = vmatprep.subr.mxu0 0.0
    %6981 = vmatpush1.msra.mxu0 %v6311
    %6982 = vmatprep.subr.mxu0 0.0
    %6983 = vmatpush1.msra.mxu0 %v6310
    %6984 = vmatprep.subr.mxu0 0.0
    %6985 = vmatpush1.msra.mxu0 %v6309
    %6986 = vmatprep.subr.mxu0 0.0
    %6987 = vmatpush1.msra.mxu0 %v6308
    %6988 = vmatprep.subr.mxu0 0.0
    %6989 = vmatpush2.msra.mxu0 0.0
    %6990 = vmatprep.subr.mxu0 0.0
    %6991 = vmatpush2.msra.mxu0 0.0
    %6992 = vmatprep.subr.mxu0 0.0
    %6993 = vmatpush2.msra.mxu0 0.0
    %6994 = vmatprep.subr.mxu0 0.0
    %6995 = vmatpush2.msra.mxu0 0.0
    %6996 = vmatprep.subr.mxu0 0.0
    %6997 = vmatpush2.msra.mxu0 0.0
    %6998 = vmatprep.subr.mxu0 0.0
    %6999 = vmatpush2.msra.mxu0 0.0
    %7000 = vmatprep.subr.mxu0 0.0
    %7001 = vmatpush2.msra.mxu0 0.0
    %7002 = vmatprep.subr.mxu0 0.0
    %7003 = vmatpush2.msra.mxu0 0.0
    %7004 = vmatprep.subr.mxu0 0.0
    %7005 = vmatpush2.msra.mxu0 0.0
    %7006 = vmatprep.subr.mxu0 0.0
    %7007 = vmatpush2.msra.mxu0 0.0
    %7008 = vmatprep.subr.mxu0 0.0
    %7009 = vmatpush2.msra.mxu0 0.0
    %7010 = vmatprep.subr.mxu0 0.0
    %7011 = vmatpush2.msra.mxu0 0.0
    %7012 = vmatprep.subr.mxu0 0.0
    %7013 = vmatpush2.msra.mxu0 0.0
    %7014 = vmatprep.subr.mxu0 0.0
    %7015 = vmatpush2.msra.mxu0 0.0
    %7016 = vmatprep.subr.mxu0 0.0
    %7017 = vmatpush2.msra.mxu0 0.0
    %7018 = vmatprep.subr.mxu0 0.0
    %7019 = vmatpush2.msra.mxu0 0.0
    %7020 = vmatprep.mubr.f32.mxu0 0.0
    %7021 = vmatmul.mubr.f32.gmra.mxu0 %v6351
    %v7022 = vpop.f32.mrf.mxu0
    %v7023 = vadd.f32 %v6343, %v7022
    %v7024 = vpop.f32.mrf.mxu0
    %7025 = vmatprep.mubr.f32.mxu0 0.0
    %7026 = vmatmul.mubr.f32.gmra.mxu0 %v6354
    %v7027 = vpop.f32.mrf.mxu0
    %v7028 = vadd.f32 %v6348, %v7027
    %v7029 = vpop.f32.mrf.mxu0
    %7030 = vdwg.mxu0
    %7031 = vmatprep.subr.mxu0 0.0
    %7032 = vmatpush1.msra.mxu0 0.0
    %7033 = vmatprep.subr.mxu0 0.0
    %7034 = vmatpush1.msra.mxu0 0.0
    %7035 = vmatprep.subr.mxu0 0.0
    %7036 = vmatpush1.msra.mxu0 0.0
    %7037 = vmatprep.subr.mxu0 0.0
    %7038 = vmatpush1.msra.mxu0 0.0
    %7039 = vmatprep.subr.mxu0 0.0
    %7040 = vmatpush1.msra.mxu0 0.0
    %7041 = vmatprep.subr.mxu0 0.0
    %7042 = vmatpush1.msra.mxu0 0.0
    %7043 = vmatprep.subr.mxu0 0.0
    %7044 = vmatpush1.msra.mxu0 0.0
    %7045 = vmatprep.subr.mxu0 0.0
    %7046 = vmatpush1.msra.mxu0 0.0
    %7047 = vmatprep.subr.mxu0 0.0
    %7048 = vmatpush1.msra.mxu0 0.0
    %7049 = vmatprep.subr.mxu0 0.0
    %7050 = vmatpush1.msra.mxu0 0.0
    %7051 = vmatprep.subr.mxu0 0.0
    %7052 = vmatpush1.msra.mxu0 %v6315
    %7053 = vmatprep.subr.mxu0 0.0
    %7054 = vmatpush1.msra.mxu0 %v6314
    %7055 = vmatprep.subr.mxu0 0.0
    %7056 = vmatpush1.msra.mxu0 %v6313
    %7057 = vmatprep.subr.mxu0 0.0
    %7058 = vmatpush1.msra.mxu0 %v6312
    %7059 = vmatprep.subr.mxu0 0.0
    %7060 = vmatpush1.msra.mxu0 %v6311
    %7061 = vmatprep.subr.mxu0 0.0
    %7062 = vmatpush1.msra.mxu0 %v6310
    %7063 = vmatprep.subr.mxu0 0.0
    %7064 = vmatpush2.msra.mxu0 0.0
    %7065 = vmatprep.subr.mxu0 0.0
    %7066 = vmatpush2.msra.mxu0 0.0
    %7067 = vmatprep.subr.mxu0 0.0
    %7068 = vmatpush2.msra.mxu0 0.0
    %7069 = vmatprep.subr.mxu0 0.0
    %7070 = vmatpush2.msra.mxu0 0.0
    %7071 = vmatprep.subr.mxu0 0.0
    %7072 = vmatpush2.msra.mxu0 0.0
    %7073 = vmatprep.subr.mxu0 0.0
    %7074 = vmatpush2.msra.mxu0 0.0
    %7075 = vmatprep.subr.mxu0 0.0
    %7076 = vmatpush2.msra.mxu0 0.0
    %7077 = vmatprep.subr.mxu0 0.0
    %7078 = vmatpush2.msra.mxu0 0.0
    %7079 = vmatprep.subr.mxu0 0.0
    %7080 = vmatpush2.msra.mxu0 0.0
    %7081 = vmatprep.subr.mxu0 0.0
    %7082 = vmatpush2.msra.mxu0 0.0
    %7083 = vmatprep.subr.mxu0 0.0
    %7084 = vmatpush2.msra.mxu0 0.0
    %7085 = vmatprep.subr.mxu0 0.0
    %7086 = vmatpush2.msra.mxu0 0.0
    %7087 = vmatprep.subr.mxu0 0.0
    %7088 = vmatpush2.msra.mxu0 0.0
    %7089 = vmatprep.subr.mxu0 0.0
    %7090 = vmatpush2.msra.mxu0 0.0
    %7091 = vmatprep.subr.mxu0 0.0
    %7092 = vmatpush2.msra.mxu0 0.0
    %7093 = vmatprep.subr.mxu0 0.0
    %7094 = vmatpush2.msra.mxu0 0.0
    %7095 = vmatprep.mubr.f32.mxu0 0.0
    %7096 = vmatmul.mubr.f32.gmra.mxu0 %v6351
    %v7097 = vpop.f32.mrf.mxu0
    %v7098 = vadd.f32 %v6343, %v7097
    %v7099 = vpop.f32.mrf.mxu0
    %7100 = vmatprep.mubr.f32.mxu0 0.0
    %7101 = vmatmul.mubr.f32.gmra.mxu0 %v6354
    %v7102 = vpop.f32.mrf.mxu0
    %v7103 = vadd.f32 %v6348, %v7102
    %v7104 = vpop.f32.mrf.mxu0
    %7105 = vdwg.mxu0
    %7106 = vmatprep.subr.mxu0 0.0
    %7107 = vmatpush1.msra.mxu0 0.0
    %7108 = vmatprep.subr.mxu0 0.0
    %7109 = vmatpush1.msra.mxu0 0.0
    %7110 = vmatprep.subr.mxu0 0.0
    %7111 = vmatpush1.msra.mxu0 0.0
    %7112 = vmatprep.subr.mxu0 0.0
    %7113 = vmatpush1.msra.mxu0 0.0
    %7114 = vmatprep.subr.mxu0 0.0
    %7115 = vmatpush1.msra.mxu0 0.0
    %7116 = vmatprep.subr.mxu0 0.0
    %7117 = vmatpush1.msra.mxu0 0.0
    %7118 = vmatprep.subr.mxu0 0.0
    %7119 = vmatpush1.msra.mxu0 0.0
    %7120 = vmatprep.subr.mxu0 0.0
    %7121 = vmatpush1.msra.mxu0 0.0
    %7122 = vmatprep.subr.mxu0 0.0
    %7123 = vmatpush1.msra.mxu0 0.0
    %7124 = vmatprep.subr.mxu0 0.0
    %7125 = vmatpush1.msra.mxu0 0.0
    %7126 = vmatprep.subr.mxu0 0.0
    %7127 = vmatpush1.msra.mxu0 %v6317
    %7128 = vmatprep.subr.mxu0 0.0
    %7129 = vmatpush1.msra.mxu0 %v6316
    %7130 = vmatprep.subr.mxu0 0.0
    %7131 = vmatpush1.msra.mxu0 %v6315
    %7132 = vmatprep.subr.mxu0 0.0
    %7133 = vmatpush1.msra.mxu0 %v6314
    %7134 = vmatprep.subr.mxu0 0.0
    %7135 = vmatpush1.msra.mxu0 %v6313
    %7136 = vmatprep.subr.mxu0 0.0
    %7137 = vmatpush1.msra.mxu0 %v6312
    %7138 = vmatprep.subr.mxu0 0.0
    %7139 = vmatpush2.msra.mxu0 0.0
    %7140 = vmatprep.subr.mxu0 0.0
    %7141 = vmatpush2.msra.mxu0 0.0
    %7142 = vmatprep.subr.mxu0 0.0
    %7143 = vmatpush2.msra.mxu0 0.0
    %7144 = vmatprep.subr.mxu0 0.0
    %7145 = vmatpush2.msra.mxu0 0.0
    %7146 = vmatprep.subr.mxu0 0.0
    %7147 = vmatpush2.msra.mxu0 0.0
    %7148 = vmatprep.subr.mxu0 0.0
    %7149 = vmatpush2.msra.mxu0 0.0
    %7150 = vmatprep.subr.mxu0 0.0
    %7151 = vmatpush2.msra.mxu0 0.0
    %7152 = vmatprep.subr.mxu0 0.0
    %7153 = vmatpush2.msra.mxu0 0.0
    %7154 = vmatprep.subr.mxu0 0.0
    %7155 = vmatpush2.msra.mxu0 0.0
    %7156 = vmatprep.subr.mxu0 0.0
    %7157 = vmatpush2.msra.mxu0 0.0
    %7158 = vmatprep.subr.mxu0 0.0
    %7159 = vmatpush2.msra.mxu0 0.0
    %7160 = vmatprep.subr.mxu0 0.0
    %7161 = vmatpush2.msra.mxu0 0.0
    %7162 = vmatprep.subr.mxu0 0.0
    %7163 = vmatpush2.msra.mxu0 0.0
    %7164 = vmatprep.subr.mxu0 0.0
    %7165 = vmatpush2.msra.mxu0 0.0
    %7166 = vmatprep.subr.mxu0 0.0
    %7167 = vmatpush2.msra.mxu0 0.0
    %7168 = vmatprep.subr.mxu0 0.0
    %7169 = vmatpush2.msra.mxu0 0.0
    %7170 = vmatprep.mubr.f32.mxu0 0.0
    %7171 = vmatmul.mubr.f32.gmra.mxu0 %v6351
    %v7172 = vpop.f32.mrf.mxu0
    %v7173 = vadd.f32 %v6343, %v7172
    %v7174 = vpop.f32.mrf.mxu0
    %7175 = vmatprep.mubr.f32.mxu0 0.0
    %7176 = vmatmul.mubr.f32.gmra.mxu0 %v6354
    %v7177 = vpop.f32.mrf.mxu0
    %v7178 = vadd.f32 %v6348, %v7177
    %v7179 = vpop.f32.mrf.mxu0
    %7180 = vdwg.mxu0
    %7181 = vmatprep.subr.mxu0 0.0
    %7182 = vmatpush1.msra.mxu0 0.0
    %7183 = vmatprep.subr.mxu0 0.0
    %7184 = vmatpush1.msra.mxu0 0.0
    %7185 = vmatprep.subr.mxu0 0.0
    %7186 = vmatpush1.msra.mxu0 0.0
    %7187 = vmatprep.subr.mxu0 0.0
    %7188 = vmatpush1.msra.mxu0 0.0
    %7189 = vmatprep.subr.mxu0 0.0
    %7190 = vmatpush1.msra.mxu0 0.0
    %7191 = vmatprep.subr.mxu0 0.0
    %7192 = vmatpush1.msra.mxu0 0.0
    %7193 = vmatprep.subr.mxu0 0.0
    %7194 = vmatpush1.msra.mxu0 0.0
    %7195 = vmatprep.subr.mxu0 0.0
    %7196 = vmatpush1.msra.mxu0 0.0
    %7197 = vmatprep.subr.mxu0 0.0
    %7198 = vmatpush1.msra.mxu0 0.0
    %7199 = vmatprep.subr.mxu0 0.0
    %7200 = vmatpush1.msra.mxu0 0.0
    %7201 = vmatprep.subr.mxu0 0.0
    %7202 = vmatpush1.msra.mxu0 %v6319
    %7203 = vmatprep.subr.mxu0 0.0
    %7204 = vmatpush1.msra.mxu0 %v6318
    %7205 = vmatprep.subr.mxu0 0.0
    %7206 = vmatpush1.msra.mxu0 %v6317
    %7207 = vmatprep.subr.mxu0 0.0
    %7208 = vmatpush1.msra.mxu0 %v6316
    %7209 = vmatprep.subr.mxu0 0.0
    %7210 = vmatpush1.msra.mxu0 %v6315
    %7211 = vmatprep.subr.mxu0 0.0
    %7212 = vmatpush1.msra.mxu0 %v6314
    %7213 = vmatprep.subr.mxu0 0.0
    %7214 = vmatpush2.msra.mxu0 0.0
    %7215 = vmatprep.subr.mxu0 0.0
    %7216 = vmatpush2.msra.mxu0 0.0
    %7217 = vmatprep.subr.mxu0 0.0
    %7218 = vmatpush2.msra.mxu0 0.0
    %7219 = vmatprep.subr.mxu0 0.0
    %7220 = vmatpush2.msra.mxu0 0.0
    %7221 = vmatprep.subr.mxu0 0.0
    %7222 = vmatpush2.msra.mxu0 0.0
    %7223 = vmatprep.subr.mxu0 0.0
    %7224 = vmatpush2.msra.mxu0 0.0
    %7225 = vmatprep.subr.mxu0 0.0
    %7226 = vmatpush2.msra.mxu0 0.0
    %7227 = vmatprep.subr.mxu0 0.0
    %7228 = vmatpush2.msra.mxu0 0.0
    %7229 = vmatprep.subr.mxu0 0.0
    %7230 = vmatpush2.msra.mxu0 0.0
    %7231 = vmatprep.subr.mxu0 0.0
    %7232 = vmatpush2.msra.mxu0 0.0
    %7233 = vmatprep.subr.mxu0 0.0
    %7234 = vmatpush2.msra.mxu0 0.0
    %7235 = vmatprep.subr.mxu0 0.0
    %7236 = vmatpush2.msra.mxu0 0.0
    %7237 = vmatprep.subr.mxu0 0.0
    %7238 = vmatpush2.msra.mxu0 0.0
    %7239 = vmatprep.subr.mxu0 0.0
    %7240 = vmatpush2.msra.mxu0 0.0
    %7241 = vmatprep.subr.mxu0 0.0
    %7242 = vmatpush2.msra.mxu0 0.0
    %7243 = vmatprep.subr.mxu0 0.0
    %7244 = vmatpush2.msra.mxu0 0.0
    %7245 = vmatprep.mubr.f32.mxu0 0.0
    %7246 = vmatmul.mubr.f32.gmra.mxu0 %v6351
    %v7247 = vpop.f32.mrf.mxu0
    %v7248 = vadd.f32 %v6343, %v7247
    %v7249 = vpop.f32.mrf.mxu0
    %7250 = vmatprep.mubr.f32.mxu0 0.0
    %7251 = vmatmul.mubr.f32.gmra.mxu0 %v6354
    %v7252 = vpop.f32.mrf.mxu0
    %v7253 = vadd.f32 %v6348, %v7252
    %v7254 = vpop.f32.mrf.mxu0
    %7255 = vdwg.mxu0
    %7256 = vmatprep.subr.mxu0 0.0
    %7257 = vmatpush1.msra.mxu0 0.0
    %7258 = vmatprep.subr.mxu0 0.0
    %7259 = vmatpush1.msra.mxu0 0.0
    %7260 = vmatprep.subr.mxu0 0.0
    %7261 = vmatpush1.msra.mxu0 0.0
    %7262 = vmatprep.subr.mxu0 0.0
    %7263 = vmatpush1.msra.mxu0 0.0
    %7264 = vmatprep.subr.mxu0 0.0
    %7265 = vmatpush1.msra.mxu0 0.0
    %7266 = vmatprep.subr.mxu0 0.0
    %7267 = vmatpush1.msra.mxu0 0.0
    %7268 = vmatprep.subr.mxu0 0.0
    %7269 = vmatpush1.msra.mxu0 0.0
    %7270 = vmatprep.subr.mxu0 0.0
    %7271 = vmatpush1.msra.mxu0 0.0
    %7272 = vmatprep.subr.mxu0 0.0
    %7273 = vmatpush1.msra.mxu0 0.0
    %7274 = vmatprep.subr.mxu0 0.0
    %7275 = vmatpush1.msra.mxu0 0.0
    %7276 = vmatprep.subr.mxu0 0.0
    %7277 = vmatpush1.msra.mxu0 %v6321
    %7278 = vmatprep.subr.mxu0 0.0
    %7279 = vmatpush1.msra.mxu0 %v6320
    %7280 = vmatprep.subr.mxu0 0.0
    %7281 = vmatpush1.msra.mxu0 %v6319
    %7282 = vmatprep.subr.mxu0 0.0
    %7283 = vmatpush1.msra.mxu0 %v6318
    %7284 = vmatprep.subr.mxu0 0.0
    %7285 = vmatpush1.msra.mxu0 %v6317
    %7286 = vmatprep.subr.mxu0 0.0
    %7287 = vmatpush1.msra.mxu0 %v6316
    %7288 = vmatprep.subr.mxu0 0.0
    %7289 = vmatpush2.msra.mxu0 0.0
    %7290 = vmatprep.subr.mxu0 0.0
    %7291 = vmatpush2.msra.mxu0 0.0
    %7292 = vmatprep.subr.mxu0 0.0
    %7293 = vmatpush2.msra.mxu0 0.0
    %7294 = vmatprep.subr.mxu0 0.0
    %7295 = vmatpush2.msra.mxu0 0.0
    %7296 = vmatprep.subr.mxu0 0.0
    %7297 = vmatpush2.msra.mxu0 0.0
    %7298 = vmatprep.subr.mxu0 0.0
    %7299 = vmatpush2.msra.mxu0 0.0
    %7300 = vmatprep.subr.mxu0 0.0
    %7301 = vmatpush2.msra.mxu0 0.0
    %7302 = vmatprep.subr.mxu0 0.0
    %7303 = vmatpush2.msra.mxu0 0.0
    %7304 = vmatprep.subr.mxu0 0.0
    %7305 = vmatpush2.msra.mxu0 0.0
    %7306 = vmatprep.subr.mxu0 0.0
    %7307 = vmatpush2.msra.mxu0 0.0
    %7308 = vmatprep.subr.mxu0 0.0
    %7309 = vmatpush2.msra.mxu0 0.0
    %7310 = vmatprep.subr.mxu0 0.0
    %7311 = vmatpush2.msra.mxu0 0.0
    %7312 = vmatprep.subr.mxu0 0.0
    %7313 = vmatpush2.msra.mxu0 0.0
    %7314 = vmatprep.subr.mxu0 0.0
    %7315 = vmatpush2.msra.mxu0 0.0
    %7316 = vmatprep.subr.mxu0 0.0
    %7317 = vmatpush2.msra.mxu0 0.0
    %7318 = vmatprep.subr.mxu0 0.0
    %7319 = vmatpush2.msra.mxu0 0.0
    %7320 = vmatprep.mubr.f32.mxu0 0.0
    %7321 = vmatmul.mubr.f32.gmra.mxu0 %v6351
    %v7322 = vpop.f32.mrf.mxu0
    %v7323 = vadd.f32 %v6343, %v7322
    %v7324 = vpop.f32.mrf.mxu0
    %7325 = vmatprep.mubr.f32.mxu0 0.0
    %7326 = vmatmul.mubr.f32.gmra.mxu0 %v6354
    %v7327 = vpop.f32.mrf.mxu0
    %v7328 = vadd.f32 %v6348, %v7327
    %v7329 = vpop.f32.mrf.mxu0
    %7330 = vdwg.mxu0
    %7331 = vmatprep.subr.mxu0 0.0
    %7332 = vmatpush1.msra.mxu0 0.0
    %7333 = vmatprep.subr.mxu0 0.0
    %7334 = vmatpush1.msra.mxu0 0.0
    %7335 = vmatprep.subr.mxu0 0.0
    %7336 = vmatpush1.msra.mxu0 0.0
    %7337 = vmatprep.subr.mxu0 0.0
    %7338 = vmatpush1.msra.mxu0 0.0
    %7339 = vmatprep.subr.mxu0 0.0
    %7340 = vmatpush1.msra.mxu0 0.0
    %7341 = vmatprep.subr.mxu0 0.0
    %7342 = vmatpush1.msra.mxu0 0.0
    %7343 = vmatprep.subr.mxu0 0.0
    %7344 = vmatpush1.msra.mxu0 0.0
    %7345 = vmatprep.subr.mxu0 0.0
    %7346 = vmatpush1.msra.mxu0 0.0
    %7347 = vmatprep.subr.mxu0 0.0
    %7348 = vmatpush1.msra.mxu0 0.0
    %7349 = vmatprep.subr.mxu0 0.0
    %7350 = vmatpush1.msra.mxu0 0.0
    %7351 = vmatprep.subr.mxu0 0.0
    %7352 = vmatpush1.msra.mxu0 %v6323
    %7353 = vmatprep.subr.mxu0 0.0
    %7354 = vmatpush1.msra.mxu0 %v6322
    %7355 = vmatprep.subr.mxu0 0.0
    %7356 = vmatpush1.msra.mxu0 %v6321
    %7357 = vmatprep.subr.mxu0 0.0
    %7358 = vmatpush1.msra.mxu0 %v6320
    %7359 = vmatprep.subr.mxu0 0.0
    %7360 = vmatpush1.msra.mxu0 %v6319
    %7361 = vmatprep.subr.mxu0 0.0
    %7362 = vmatpush1.msra.mxu0 %v6318
    %7363 = vmatprep.subr.mxu0 0.0
    %7364 = vmatpush2.msra.mxu0 0.0
    %7365 = vmatprep.subr.mxu0 0.0
    %7366 = vmatpush2.msra.mxu0 0.0
    %7367 = vmatprep.subr.mxu0 0.0
    %7368 = vmatpush2.msra.mxu0 0.0
    %7369 = vmatprep.subr.mxu0 0.0
    %7370 = vmatpush2.msra.mxu0 0.0
    %7371 = vmatprep.subr.mxu0 0.0
    %7372 = vmatpush2.msra.mxu0 0.0
    %7373 = vmatprep.subr.mxu0 0.0
    %7374 = vmatpush2.msra.mxu0 0.0
    %7375 = vmatprep.subr.mxu0 0.0
    %7376 = vmatpush2.msra.mxu0 0.0
    %7377 = vmatprep.subr.mxu0 0.0
    %7378 = vmatpush2.msra.mxu0 0.0
    %7379 = vmatprep.subr.mxu0 0.0
    %7380 = vmatpush2.msra.mxu0 0.0
    %7381 = vmatprep.subr.mxu0 0.0
    %7382 = vmatpush2.msra.mxu0 0.0
    %7383 = vmatprep.subr.mxu0 0.0
    %7384 = vmatpush2.msra.mxu0 0.0
    %7385 = vmatprep.subr.mxu0 0.0
    %7386 = vmatpush2.msra.mxu0 0.0
    %7387 = vmatprep.subr.mxu0 0.0
    %7388 = vmatpush2.msra.mxu0 0.0
    %7389 = vmatprep.subr.mxu0 0.0
    %7390 = vmatpush2.msra.mxu0 0.0
    %7391 = vmatprep.subr.mxu0 0.0
    %7392 = vmatpush2.msra.mxu0 0.0
    %7393 = vmatprep.subr.mxu0 0.0
    %7394 = vmatpush2.msra.mxu0 0.0
    %7395 = vmatprep.mubr.f32.mxu0 0.0
    %7396 = vmatmul.mubr.f32.gmra.mxu0 %v6351
    %v7397 = vpop.f32.mrf.mxu0
    %v7398 = vadd.f32 %v6343, %v7397
    %v7399 = vpop.f32.mrf.mxu0
    %7400 = vmatprep.mubr.f32.mxu0 0.0
    %7401 = vmatmul.mubr.f32.gmra.mxu0 %v6354
    %v7402 = vpop.f32.mrf.mxu0
    %v7403 = vadd.f32 %v6348, %v7402
    %v7404 = vpop.f32.mrf.mxu0
    %7405 = vdwg.mxu0
    %7406 = vmatprep.subr.mxu0 0.0
    %7407 = vmatpush1.msra.mxu0 0.0
    %7408 = vmatprep.subr.mxu0 0.0
    %7409 = vmatpush1.msra.mxu0 0.0
    %7410 = vmatprep.subr.mxu0 0.0
    %7411 = vmatpush1.msra.mxu0 0.0
    %7412 = vmatprep.subr.mxu0 0.0
    %7413 = vmatpush1.msra.mxu0 0.0
    %7414 = vmatprep.subr.mxu0 0.0
    %7415 = vmatpush1.msra.mxu0 0.0
    %7416 = vmatprep.subr.mxu0 0.0
    %7417 = vmatpush1.msra.mxu0 0.0
    %7418 = vmatprep.subr.mxu0 0.0
    %7419 = vmatpush1.msra.mxu0 0.0
    %7420 = vmatprep.subr.mxu0 0.0
    %7421 = vmatpush1.msra.mxu0 0.0
    %7422 = vmatprep.subr.mxu0 0.0
    %7423 = vmatpush1.msra.mxu0 0.0
    %7424 = vmatprep.subr.mxu0 0.0
    %7425 = vmatpush1.msra.mxu0 0.0
    %7426 = vmatprep.subr.mxu0 0.0
    %7427 = vmatpush1.msra.mxu0 %v6325
    %7428 = vmatprep.subr.mxu0 0.0
    %7429 = vmatpush1.msra.mxu0 %v6324
    %7430 = vmatprep.subr.mxu0 0.0
    %7431 = vmatpush1.msra.mxu0 %v6323
    %7432 = vmatprep.subr.mxu0 0.0
    %7433 = vmatpush1.msra.mxu0 %v6322
    %7434 = vmatprep.subr.mxu0 0.0
    %7435 = vmatpush1.msra.mxu0 %v6321
    %7436 = vmatprep.subr.mxu0 0.0
    %7437 = vmatpush1.msra.mxu0 %v6320
    %7438 = vmatprep.subr.mxu0 0.0
    %7439 = vmatpush2.msra.mxu0 0.0
    %7440 = vmatprep.subr.mxu0 0.0
    %7441 = vmatpush2.msra.mxu0 0.0
    %7442 = vmatprep.subr.mxu0 0.0
    %7443 = vmatpush2.msra.mxu0 0.0
    %7444 = vmatprep.subr.mxu0 0.0
    %7445 = vmatpush2.msra.mxu0 0.0
    %7446 = vmatprep.subr.mxu0 0.0
    %7447 = vmatpush2.msra.mxu0 0.0
    %7448 = vmatprep.subr.mxu0 0.0
    %7449 = vmatpush2.msra.mxu0 0.0
    %7450 = vmatprep.subr.mxu0 0.0
    %7451 = vmatpush2.msra.mxu0 0.0
    %7452 = vmatprep.subr.mxu0 0.0
    %7453 = vmatpush2.msra.mxu0 0.0
    %7454 = vmatprep.subr.mxu0 0.0
    %7455 = vmatpush2.msra.mxu0 0.0
    %7456 = vmatprep.subr.mxu0 0.0
    %7457 = vmatpush2.msra.mxu0 0.0
    %7458 = vmatprep.subr.mxu0 0.0
    %7459 = vmatpush2.msra.mxu0 0.0
    %7460 = vmatprep.subr.mxu0 0.0
    %7461 = vmatpush2.msra.mxu0 0.0
    %7462 = vmatprep.subr.mxu0 0.0
    %7463 = vmatpush2.msra.mxu0 0.0
    %7464 = vmatprep.subr.mxu0 0.0
    %7465 = vmatpush2.msra.mxu0 0.0
    %7466 = vmatprep.subr.mxu0 0.0
    %7467 = vmatpush2.msra.mxu0 0.0
    %7468 = vmatprep.subr.mxu0 0.0
    %7469 = vmatpush2.msra.mxu0 0.0
    %7470 = vmatprep.mubr.f32.mxu0 0.0
    %7471 = vmatmul.mubr.f32.gmra.mxu0 %v6351
    %v7472 = vpop.f32.mrf.mxu0
    %v7473 = vadd.f32 %v6343, %v7472
    %v7474 = vpop.f32.mrf.mxu0
    %7475 = vmatprep.mubr.f32.mxu0 0.0
    %7476 = vmatmul.mubr.f32.gmra.mxu0 %v6354
    %v7477 = vpop.f32.mrf.mxu0
    %v7478 = vadd.f32 %v6348, %v7477
    %v7479 = vpop.f32.mrf.mxu0
    %7480 = vdwg.mxu0
    %7481 = vmatprep.subr.mxu0 0.0
    %7482 = vmatpush1.msra.mxu0 0.0
    %7483 = vmatprep.subr.mxu0 0.0
    %7484 = vmatpush1.msra.mxu0 0.0
    %7485 = vmatprep.subr.mxu0 0.0
    %7486 = vmatpush1.msra.mxu0 0.0
    %7487 = vmatprep.subr.mxu0 0.0
    %7488 = vmatpush1.msra.mxu0 0.0
    %7489 = vmatprep.subr.mxu0 0.0
    %7490 = vmatpush1.msra.mxu0 0.0
    %7491 = vmatprep.subr.mxu0 0.0
    %7492 = vmatpush1.msra.mxu0 0.0
    %7493 = vmatprep.subr.mxu0 0.0
    %7494 = vmatpush1.msra.mxu0 0.0
    %7495 = vmatprep.subr.mxu0 0.0
    %7496 = vmatpush1.msra.mxu0 0.0
    %7497 = vmatprep.subr.mxu0 0.0
    %7498 = vmatpush1.msra.mxu0 0.0
    %7499 = vmatprep.subr.mxu0 0.0
    %7500 = vmatpush1.msra.mxu0 0.0
    %7501 = vmatprep.subr.mxu0 0.0
    %7502 = vmatpush1.msra.mxu0 %v6327
    %7503 = vmatprep.subr.mxu0 0.0
    %7504 = vmatpush1.msra.mxu0 %v6326
    %7505 = vmatprep.subr.mxu0 0.0
    %7506 = vmatpush1.msra.mxu0 %v6325
    %7507 = vmatprep.subr.mxu0 0.0
    %7508 = vmatpush1.msra.mxu0 %v6324
    %7509 = vmatprep.subr.mxu0 0.0
    %7510 = vmatpush1.msra.mxu0 %v6323
    %7511 = vmatprep.subr.mxu0 0.0
    %7512 = vmatpush1.msra.mxu0 %v6322
    %7513 = vmatprep.subr.mxu0 0.0
    %7514 = vmatpush2.msra.mxu0 0.0
    %7515 = vmatprep.subr.mxu0 0.0
    %7516 = vmatpush2.msra.mxu0 0.0
    %7517 = vmatprep.subr.mxu0 0.0
    %7518 = vmatpush2.msra.mxu0 0.0
    %7519 = vmatprep.subr.mxu0 0.0
    %7520 = vmatpush2.msra.mxu0 0.0
    %7521 = vmatprep.subr.mxu0 0.0
    %7522 = vmatpush2.msra.mxu0 0.0
    %7523 = vmatprep.subr.mxu0 0.0
    %7524 = vmatpush2.msra.mxu0 0.0
    %7525 = vmatprep.subr.mxu0 0.0
    %7526 = vmatpush2.msra.mxu0 0.0
    %7527 = vmatprep.subr.mxu0 0.0
    %7528 = vmatpush2.msra.mxu0 0.0
    %7529 = vmatprep.subr.mxu0 0.0
    %7530 = vmatpush2.msra.mxu0 0.0
    %7531 = vmatprep.subr.mxu0 0.0
    %7532 = vmatpush2.msra.mxu0 0.0
    %7533 = vmatprep.subr.mxu0 0.0
    %7534 = vmatpush2.msra.mxu0 0.0
    %7535 = vmatprep.subr.mxu0 0.0
    %7536 = vmatpush2.msra.mxu0 0.0
    %7537 = vmatprep.subr.mxu0 0.0
    %7538 = vmatpush2.msra.mxu0 0.0
    %7539 = vmatprep.subr.mxu0 0.0
    %7540 = vmatpush2.msra.mxu0 0.0
    %7541 = vmatprep.subr.mxu0 0.0
    %7542 = vmatpush2.msra.mxu0 0.0
    %7543 = vmatprep.subr.mxu0 0.0
    %7544 = vmatpush2.msra.mxu0 0.0
    %7545 = vmatprep.mubr.f32.mxu0 0.0
    %7546 = vmatmul.mubr.f32.gmra.mxu0 %v6351
    %v7547 = vpop.f32.mrf.mxu0
    %v7548 = vadd.f32 %v6343, %v7547
    %v7549 = vpop.f32.mrf.mxu0
    %7550 = vmatprep.mubr.f32.mxu0 0.0
    %7551 = vmatmul.mubr.f32.gmra.mxu0 %v6354
    %v7552 = vpop.f32.mrf.mxu0
    %v7553 = vadd.f32 %v6348, %v7552
    %v7554 = vpop.f32.mrf.mxu0
    %7555 = vdwg.mxu0
    %7556 = vmatprep.subr.mxu0 0.0
    %7557 = vmatpush1.msra.mxu0 0.0
    %7558 = vmatprep.subr.mxu0 0.0
    %7559 = vmatpush1.msra.mxu0 0.0
    %7560 = vmatprep.subr.mxu0 0.0
    %7561 = vmatpush1.msra.mxu0 0.0
    %7562 = vmatprep.subr.mxu0 0.0
    %7563 = vmatpush1.msra.mxu0 0.0
    %7564 = vmatprep.subr.mxu0 0.0
    %7565 = vmatpush1.msra.mxu0 0.0
    %7566 = vmatprep.subr.mxu0 0.0
    %7567 = vmatpush1.msra.mxu0 0.0
    %7568 = vmatprep.subr.mxu0 0.0
    %7569 = vmatpush1.msra.mxu0 0.0
    %7570 = vmatprep.subr.mxu0 0.0
    %7571 = vmatpush1.msra.mxu0 0.0
    %7572 = vmatprep.subr.mxu0 0.0
    %7573 = vmatpush1.msra.mxu0 0.0
    %7574 = vmatprep.subr.mxu0 0.0
    %7575 = vmatpush1.msra.mxu0 0.0
    %7576 = vmatprep.subr.mxu0 0.0
    %7577 = vmatpush1.msra.mxu0 %v6329
    %7578 = vmatprep.subr.mxu0 0.0
    %7579 = vmatpush1.msra.mxu0 %v6328
    %7580 = vmatprep.subr.mxu0 0.0
    %7581 = vmatpush1.msra.mxu0 %v6327
    %7582 = vmatprep.subr.mxu0 0.0
    %7583 = vmatpush1.msra.mxu0 %v6326
    %7584 = vmatprep.subr.mxu0 0.0
    %7585 = vmatpush1.msra.mxu0 %v6325
    %7586 = vmatprep.subr.mxu0 0.0
    %7587 = vmatpush1.msra.mxu0 %v6324
    %7588 = vmatprep.subr.mxu0 0.0
    %7589 = vmatpush2.msra.mxu0 0.0
    %7590 = vmatprep.subr.mxu0 0.0
    %7591 = vmatpush2.msra.mxu0 0.0
    %7592 = vmatprep.subr.mxu0 0.0
    %7593 = vmatpush2.msra.mxu0 0.0
    %7594 = vmatprep.subr.mxu0 0.0
    %7595 = vmatpush2.msra.mxu0 0.0
    %7596 = vmatprep.subr.mxu0 0.0
    %7597 = vmatpush2.msra.mxu0 0.0
    %7598 = vmatprep.subr.mxu0 0.0
    %7599 = vmatpush2.msra.mxu0 0.0
    %7600 = vmatprep.subr.mxu0 0.0
    %7601 = vmatpush2.msra.mxu0 0.0
    %7602 = vmatprep.subr.mxu0 0.0
    %7603 = vmatpush2.msra.mxu0 0.0
    %7604 = vmatprep.subr.mxu0 0.0
    %7605 = vmatpush2.msra.mxu0 0.0
    %7606 = vmatprep.subr.mxu0 0.0
    %7607 = vmatpush2.msra.mxu0 0.0
    %7608 = vmatprep.subr.mxu0 0.0
    %7609 = vmatpush2.msra.mxu0 0.0
    %7610 = vmatprep.subr.mxu0 0.0
    %7611 = vmatpush2.msra.mxu0 0.0
    %7612 = vmatprep.subr.mxu0 0.0
    %7613 = vmatpush2.msra.mxu0 0.0
    %7614 = vmatprep.subr.mxu0 0.0
    %7615 = vmatpush2.msra.mxu0 0.0
    %7616 = vmatprep.subr.mxu0 0.0
    %7617 = vmatpush2.msra.mxu0 0.0
    %7618 = vmatprep.subr.mxu0 0.0
    %7619 = vmatpush2.msra.mxu0 0.0
    %7620 = vmatprep.mubr.f32.mxu0 0.0
    %7621 = vmatmul.mubr.f32.gmra.mxu0 %v6351
    %v7622 = vpop.f32.mrf.mxu0
    %v7623 = vadd.f32 %v6343, %v7622
    %v7624 = vpop.f32.mrf.mxu0
    %7625 = vmatprep.mubr.f32.mxu0 0.0
    %7626 = vmatmul.mubr.f32.gmra.mxu0 %v6354
    %v7627 = vpop.f32.mrf.mxu0
    %v7628 = vadd.f32 %v6348, %v7627
    %v7629 = vpop.f32.mrf.mxu0
    %7630 = vdwg.mxu0
    %7631 = vmatprep.subr.mxu0 0.0
    %7632 = vmatpush1.msra.mxu0 0.0
    %7633 = vmatprep.subr.mxu0 0.0
    %7634 = vmatpush1.msra.mxu0 0.0
    %7635 = vmatprep.subr.mxu0 0.0
    %7636 = vmatpush1.msra.mxu0 0.0
    %7637 = vmatprep.subr.mxu0 0.0
    %7638 = vmatpush1.msra.mxu0 0.0
    %7639 = vmatprep.subr.mxu0 0.0
    %7640 = vmatpush1.msra.mxu0 0.0
    %7641 = vmatprep.subr.mxu0 0.0
    %7642 = vmatpush1.msra.mxu0 0.0
    %7643 = vmatprep.subr.mxu0 0.0
    %7644 = vmatpush1.msra.mxu0 0.0
    %7645 = vmatprep.subr.mxu0 0.0
    %7646 = vmatpush1.msra.mxu0 0.0
    %7647 = vmatprep.subr.mxu0 0.0
    %7648 = vmatpush1.msra.mxu0 0.0
    %7649 = vmatprep.subr.mxu0 0.0
    %7650 = vmatpush1.msra.mxu0 0.0
    %7651 = vmatprep.subr.mxu0 0.0
    %7652 = vmatpush1.msra.mxu0 %v6331
    %7653 = vmatprep.subr.mxu0 0.0
    %7654 = vmatpush1.msra.mxu0 %v6330
    %7655 = vmatprep.subr.mxu0 0.0
    %7656 = vmatpush1.msra.mxu0 %v6329
    %7657 = vmatprep.subr.mxu0 0.0
    %7658 = vmatpush1.msra.mxu0 %v6328
    %7659 = vmatprep.subr.mxu0 0.0
    %7660 = vmatpush1.msra.mxu0 %v6327
    %7661 = vmatprep.subr.mxu0 0.0
    %7662 = vmatpush1.msra.mxu0 %v6326
    %7663 = vmatprep.subr.mxu0 0.0
    %7664 = vmatpush2.msra.mxu0 0.0
    %7665 = vmatprep.subr.mxu0 0.0
    %7666 = vmatpush2.msra.mxu0 0.0
    %7667 = vmatprep.subr.mxu0 0.0
    %7668 = vmatpush2.msra.mxu0 0.0
    %7669 = vmatprep.subr.mxu0 0.0
    %7670 = vmatpush2.msra.mxu0 0.0
    %7671 = vmatprep.subr.mxu0 0.0
    %7672 = vmatpush2.msra.mxu0 0.0
    %7673 = vmatprep.subr.mxu0 0.0
    %7674 = vmatpush2.msra.mxu0 0.0
    %7675 = vmatprep.subr.mxu0 0.0
    %7676 = vmatpush2.msra.mxu0 0.0
    %7677 = vmatprep.subr.mxu0 0.0
    %7678 = vmatpush2.msra.mxu0 0.0
    %7679 = vmatprep.subr.mxu0 0.0
    %7680 = vmatpush2.msra.mxu0 0.0
    %7681 = vmatprep.subr.mxu0 0.0
    %7682 = vmatpush2.msra.mxu0 0.0
    %7683 = vmatprep.subr.mxu0 0.0
    %7684 = vmatpush2.msra.mxu0 0.0
    %7685 = vmatprep.subr.mxu0 0.0
    %7686 = vmatpush2.msra.mxu0 0.0
    %7687 = vmatprep.subr.mxu0 0.0
    %7688 = vmatpush2.msra.mxu0 0.0
    %7689 = vmatprep.subr.mxu0 0.0
    %7690 = vmatpush2.msra.mxu0 0.0
    %7691 = vmatprep.subr.mxu0 0.0
    %7692 = vmatpush2.msra.mxu0 0.0
    %7693 = vmatprep.subr.mxu0 0.0
    %7694 = vmatpush2.msra.mxu0 0.0
    %7695 = vmatprep.mubr.f32.mxu0 0.0
    %7696 = vmatmul.mubr.f32.gmra.mxu0 %v6351
    %v7697 = vpop.f32.mrf.mxu0
    %v7698 = vadd.f32 %v6343, %v7697
    %v7699 = vpop.f32.mrf.mxu0
    %7700 = vmatprep.mubr.f32.mxu0 0.0
    %7701 = vmatmul.mubr.f32.gmra.mxu0 %v6354
    %v7702 = vpop.f32.mrf.mxu0
    %v7703 = vadd.f32 %v6348, %v7702
    %v7704 = vpop.f32.mrf.mxu0
    %7705 = vdwg.mxu0
    %7706 = vmatprep.subr.mxu0 0.0
    %7707 = vmatpush1.msra.mxu0 0.0
    %7708 = vmatprep.subr.mxu0 0.0
    %7709 = vmatpush1.msra.mxu0 0.0
    %7710 = vmatprep.subr.mxu0 0.0
    %7711 = vmatpush1.msra.mxu0 0.0
    %7712 = vmatprep.subr.mxu0 0.0
    %7713 = vmatpush1.msra.mxu0 0.0
    %7714 = vmatprep.subr.mxu0 0.0
    %7715 = vmatpush1.msra.mxu0 0.0
    %7716 = vmatprep.subr.mxu0 0.0
    %7717 = vmatpush1.msra.mxu0 0.0
    %7718 = vmatprep.subr.mxu0 0.0
    %7719 = vmatpush1.msra.mxu0 0.0
    %7720 = vmatprep.subr.mxu0 0.0
    %7721 = vmatpush1.msra.mxu0 0.0
    %7722 = vmatprep.subr.mxu0 0.0
    %7723 = vmatpush1.msra.mxu0 0.0
    %7724 = vmatprep.subr.mxu0 0.0
    %7725 = vmatpush1.msra.mxu0 0.0
    %7726 = vmatprep.subr.mxu0 0.0
    %7727 = vmatpush1.msra.mxu0 %v6333
    %7728 = vmatprep.subr.mxu0 0.0
    %7729 = vmatpush1.msra.mxu0 %v6332
    %7730 = vmatprep.subr.mxu0 0.0
    %7731 = vmatpush1.msra.mxu0 %v6331
    %7732 = vmatprep.subr.mxu0 0.0
    %7733 = vmatpush1.msra.mxu0 %v6330
    %7734 = vmatprep.subr.mxu0 0.0
    %7735 = vmatpush1.msra.mxu0 %v6329
    %7736 = vmatprep.subr.mxu0 0.0
    %7737 = vmatpush1.msra.mxu0 %v6328
    %7738 = vmatprep.subr.mxu0 0.0
    %7739 = vmatpush2.msra.mxu0 0.0
    %7740 = vmatprep.subr.mxu0 0.0
    %7741 = vmatpush2.msra.mxu0 0.0
    %7742 = vmatprep.subr.mxu0 0.0
    %7743 = vmatpush2.msra.mxu0 0.0
    %7744 = vmatprep.subr.mxu0 0.0
    %7745 = vmatpush2.msra.mxu0 0.0
    %7746 = vmatprep.subr.mxu0 0.0
    %7747 = vmatpush2.msra.mxu0 0.0
    %7748 = vmatprep.subr.mxu0 0.0
    %7749 = vmatpush2.msra.mxu0 0.0
    %7750 = vmatprep.subr.mxu0 0.0
    %7751 = vmatpush2.msra.mxu0 0.0
    %7752 = vmatprep.subr.mxu0 0.0
    %7753 = vmatpush2.msra.mxu0 0.0
    %7754 = vmatprep.subr.mxu0 0.0
    %7755 = vmatpush2.msra.mxu0 0.0
    %7756 = vmatprep.subr.mxu0 0.0
    %7757 = vmatpush2.msra.mxu0 0.0
    %7758 = vmatprep.subr.mxu0 0.0
    %7759 = vmatpush2.msra.mxu0 0.0
    %7760 = vmatprep.subr.mxu0 0.0
    %7761 = vmatpush2.msra.mxu0 0.0
    %7762 = vmatprep.subr.mxu0 0.0
    %7763 = vmatpush2.msra.mxu0 0.0
    %7764 = vmatprep.subr.mxu0 0.0
    %7765 = vmatpush2.msra.mxu0 0.0
    %7766 = vmatprep.subr.mxu0 0.0
    %7767 = vmatpush2.msra.mxu0 0.0
    %7768 = vmatprep.subr.mxu0 0.0
    %7769 = vmatpush2.msra.mxu0 0.0
    %7770 = vmatprep.mubr.f32.mxu0 0.0
    %7771 = vmatmul.mubr.f32.gmra.mxu0 %v6351
    %v7772 = vpop.f32.mrf.mxu0
    %v7773 = vadd.f32 %v6343, %v7772
    %v7774 = vpop.f32.mrf.mxu0
    %7775 = vmatprep.mubr.f32.mxu0 0.0
    %7776 = vmatmul.mubr.f32.gmra.mxu0 %v6354
    %v7777 = vpop.f32.mrf.mxu0
    %v7778 = vadd.f32 %v6348, %v7777
    %v7779 = vpop.f32.mrf.mxu0
    %7780 = vdwg.mxu0
    %7781 = vmatprep.subr.mxu0 0.0
    %7782 = vmatpush1.msra.mxu0 0.0
    %7783 = vmatprep.subr.mxu0 0.0
    %7784 = vmatpush1.msra.mxu0 0.0
    %7785 = vmatprep.subr.mxu0 0.0
    %7786 = vmatpush1.msra.mxu0 0.0
    %7787 = vmatprep.subr.mxu0 0.0
    %7788 = vmatpush1.msra.mxu0 0.0
    %7789 = vmatprep.subr.mxu0 0.0
    %7790 = vmatpush1.msra.mxu0 0.0
    %7791 = vmatprep.subr.mxu0 0.0
    %7792 = vmatpush1.msra.mxu0 0.0
    %7793 = vmatprep.subr.mxu0 0.0
    %7794 = vmatpush1.msra.mxu0 0.0
    %7795 = vmatprep.subr.mxu0 0.0
    %7796 = vmatpush1.msra.mxu0 0.0
    %7797 = vmatprep.subr.mxu0 0.0
    %7798 = vmatpush1.msra.mxu0 0.0
    %7799 = vmatprep.subr.mxu0 0.0
    %7800 = vmatpush1.msra.mxu0 0.0
    %7801 = vmatprep.subr.mxu0 0.0
    %7802 = vmatpush1.msra.mxu0 0.0
    %7803 = vmatprep.subr.mxu0 0.0
    %7804 = vmatpush1.msra.mxu0 0.0
    %7805 = vmatprep.subr.mxu0 0.0
    %7806 = vmatpush1.msra.mxu0 %v6333
    %7807 = vmatprep.subr.mxu0 0.0
    %7808 = vmatpush1.msra.mxu0 %v6332
    %7809 = vmatprep.subr.mxu0 0.0
    %7810 = vmatpush1.msra.mxu0 %v6331
    %7811 = vmatprep.subr.mxu0 0.0
    %7812 = vmatpush1.msra.mxu0 %v6330
    %7813 = vmatprep.subr.mxu0 0.0
    %7814 = vmatpush2.msra.mxu0 0.0
    %7815 = vmatprep.subr.mxu0 0.0
    %7816 = vmatpush2.msra.mxu0 0.0
    %7817 = vmatprep.subr.mxu0 0.0
    %7818 = vmatpush2.msra.mxu0 0.0
    %7819 = vmatprep.subr.mxu0 0.0
    %7820 = vmatpush2.msra.mxu0 0.0
    %7821 = vmatprep.subr.mxu0 0.0
    %7822 = vmatpush2.msra.mxu0 0.0
    %7823 = vmatprep.subr.mxu0 0.0
    %7824 = vmatpush2.msra.mxu0 0.0
    %7825 = vmatprep.subr.mxu0 0.0
    %7826 = vmatpush2.msra.mxu0 0.0
    %7827 = vmatprep.subr.mxu0 0.0
    %7828 = vmatpush2.msra.mxu0 0.0
    %7829 = vmatprep.subr.mxu0 0.0
    %7830 = vmatpush2.msra.mxu0 0.0
    %7831 = vmatprep.subr.mxu0 0.0
    %7832 = vmatpush2.msra.mxu0 0.0
    %7833 = vmatprep.subr.mxu0 0.0
    %7834 = vmatpush2.msra.mxu0 0.0
    %7835 = vmatprep.subr.mxu0 0.0
    %7836 = vmatpush2.msra.mxu0 0.0
    %7837 = vmatprep.subr.mxu0 0.0
    %7838 = vmatpush2.msra.mxu0 0.0
    %7839 = vmatprep.subr.mxu0 0.0
    %7840 = vmatpush2.msra.mxu0 0.0
    %7841 = vmatprep.subr.mxu0 0.0
    %7842 = vmatpush2.msra.mxu0 0.0
    %7843 = vmatprep.subr.mxu0 0.0
    %7844 = vmatpush2.msra.mxu0 0.0
    %7845 = vmatprep.mubr.f32.mxu0 0.0
    %7846 = vmatmul.mubr.f32.gmra.mxu0 %v6351
    %v7847 = vpop.f32.mrf.mxu0
    %v7848 = vadd.f32 %v6343, %v7847
    %v7849 = vpop.f32.mrf.mxu0
    %7850 = vmatprep.mubr.f32.mxu0 0.0
    %7851 = vmatmul.mubr.f32.gmra.mxu0 %v6354
    %v7852 = vpop.f32.mrf.mxu0
    %v7853 = vadd.f32 %v6348, %v7852
    %v7854 = vpop.f32.mrf.mxu0
    %7855 = vdwg.mxu0
    %v7856 = vmax.f32 %v6423, %v6498
    %v7857 = vmax.f32 %v6428, %v6503
    %v7858 = vmax.f32 %v6573, %v6648
    %v7859 = vmax.f32 %v6578, %v6653
    %v7860 = vmax.f32 %v6723, %v6798
    %v7861 = vmax.f32 %v6728, %v6803
    %v7862 = vmax.f32 %v6873, %v6948
    %v7863 = vmax.f32 %v6878, %v6953
    %v7864 = vmax.f32 %v7023, %v7098
    %v7865 = vmax.f32 %v7028, %v7103
    %v7866 = vmax.f32 %v7173, %v7248
    %v7867 = vmax.f32 %v7178, %v7253
    %v7868 = vmax.f32 %v7323, %v7398
    %v7869 = vmax.f32 %v7328, %v7403
    %v7870 = vmax.f32 %v7473, %v7548
    %v7871 = vmax.f32 %v7478, %v7553
    %v7872 = vmax.f32 %v7623, %v7698
    %v7873 = vmax.f32 %v7628, %v7703
    %v7874 = vmax.f32 %v7773, %v7848
    %v7875 = vmax.f32 %v7778, %v7853
    %s7876 = scalar_lea.vmem %s1, 64
    %v7877 = vld [vmem:[%s7876] sm:$0xff]
    %v7878 = vld [vmem:[%s7876 + $0x8] sm:$0xff]
    %s7879 = scalar_lea.vmem %s2, 64
    %v7880 = vld [vmem:[%s7879] sm:$0xff]
    %v7881 = vld [vmem:[%s7879 + $0x8] sm:$0xff]
    %7883 = vset.pattern.permute.xlu0 0
    %7884 = vperm.xlu0 %7883, %v7880
    %v7885 = vpop.permute.xlu0 %7884
    %7888 = vset.pattern.permute.xlu0 0
    %7889 = vperm.xlu0 %7888, %v7881
    %v7890 = vpop.permute.xlu0 %7889
    %v7893 = vsel %vm123, %v7877, 0
    %v7896 = vsel %vm123, %v7878, 0
    %7898 = vmatprep.subr.mxu0 0.0
    %7899 = vmatpush1.msra.mxu0 0.0
    %7900 = vmatprep.subr.mxu0 0.0
    %7901 = vmatpush1.msra.mxu0 0.0
    %7902 = vmatprep.subr.mxu0 0.0
    %7903 = vmatpush1.msra.mxu0 0.0
    %7904 = vmatprep.subr.mxu0 0.0
    %7905 = vmatpush1.msra.mxu0 0.0
    %7906 = vmatprep.subr.mxu0 0.0
    %7907 = vmatpush1.msra.mxu0 0.0
    %7908 = vmatprep.subr.mxu0 0.0
    %7909 = vmatpush1.msra.mxu0 0.0
    %7910 = vmatprep.subr.mxu0 0.0
    %7911 = vmatpush1.msra.mxu0 0.0
    %7912 = vmatprep.subr.mxu0 0.0
    %7913 = vmatpush1.msra.mxu0 0.0
    %7914 = vmatprep.subr.mxu0 0.0
    %7915 = vmatpush1.msra.mxu0 0.0
    %7916 = vmatprep.subr.mxu0 0.0
    %7917 = vmatpush1.msra.mxu0 0.0
    %7918 = vmatprep.subr.mxu0 0.0
    %7919 = vmatpush1.msra.mxu0 %v7859
    %7920 = vmatprep.subr.mxu0 0.0
    %7921 = vmatpush1.msra.mxu0 %v7858
    %7922 = vmatprep.subr.mxu0 0.0
    %7923 = vmatpush1.msra.mxu0 %v7857
    %7924 = vmatprep.subr.mxu0 0.0
    %7925 = vmatpush1.msra.mxu0 %v7856
    %7926 = vmatprep.subr.mxu0 0.0
    %7927 = vmatpush1.msra.mxu0 0.0
    %7928 = vmatprep.subr.mxu0 0.0
    %7929 = vmatpush1.msra.mxu0 0.0
    %7930 = vmatprep.subr.mxu0 0.0
    %7931 = vmatpush2.msra.mxu0 0.0
    %7932 = vmatprep.subr.mxu0 0.0
    %7933 = vmatpush2.msra.mxu0 0.0
    %7934 = vmatprep.subr.mxu0 0.0
    %7935 = vmatpush2.msra.mxu0 0.0
    %7936 = vmatprep.subr.mxu0 0.0
    %7937 = vmatpush2.msra.mxu0 0.0
    %7938 = vmatprep.subr.mxu0 0.0
    %7939 = vmatpush2.msra.mxu0 0.0
    %7940 = vmatprep.subr.mxu0 0.0
    %7941 = vmatpush2.msra.mxu0 0.0
    %7942 = vmatprep.subr.mxu0 0.0
    %7943 = vmatpush2.msra.mxu0 0.0
    %7944 = vmatprep.subr.mxu0 0.0
    %7945 = vmatpush2.msra.mxu0 0.0
    %7946 = vmatprep.subr.mxu0 0.0
    %7947 = vmatpush2.msra.mxu0 0.0
    %7948 = vmatprep.subr.mxu0 0.0
    %7949 = vmatpush2.msra.mxu0 0.0
    %7950 = vmatprep.subr.mxu0 0.0
    %7951 = vmatpush2.msra.mxu0 0.0
    %7952 = vmatprep.subr.mxu0 0.0
    %7953 = vmatpush2.msra.mxu0 0.0
    %7954 = vmatprep.subr.mxu0 0.0
    %7955 = vmatpush2.msra.mxu0 0.0
    %7956 = vmatprep.subr.mxu0 0.0
    %7957 = vmatpush2.msra.mxu0 0.0
    %7958 = vmatprep.subr.mxu0 0.0
    %7959 = vmatpush2.msra.mxu0 0.0
    %7960 = vmatprep.subr.mxu0 0.0
    %7961 = vmatpush2.msra.mxu0 0.0
    %7962 = vmatprep.mubr.f32.mxu0 0.0
    %7963 = vmatmul.mubr.f32.gmra.mxu0 %v7893
    %v7964 = vpop.f32.mrf.mxu0
    %v7965 = vadd.f32 %v7885, %v7964
    %v7966 = vpop.f32.mrf.mxu0
    %7967 = vmatprep.mubr.f32.mxu0 0.0
    %7968 = vmatmul.mubr.f32.gmra.mxu0 %v7896
    %v7969 = vpop.f32.mrf.mxu0
    %v7970 = vadd.f32 %v7890, %v7969
    %v7971 = vpop.f32.mrf.mxu0
    %7972 = vdwg.mxu0
    %7973 = vmatprep.subr.mxu0 0.0
    %7974 = vmatpush1.msra.mxu0 0.0
    %7975 = vmatprep.subr.mxu0 0.0
    %7976 = vmatpush1.msra.mxu0 0.0
    %7977 = vmatprep.subr.mxu0 0.0
    %7978 = vmatpush1.msra.mxu0 0.0
    %7979 = vmatprep.subr.mxu0 0.0
    %7980 = vmatpush1.msra.mxu0 0.0
    %7981 = vmatprep.subr.mxu0 0.0
    %7982 = vmatpush1.msra.mxu0 0.0
    %7983 = vmatprep.subr.mxu0 0.0
    %7984 = vmatpush1.msra.mxu0 0.0
    %7985 = vmatprep.subr.mxu0 0.0
    %7986 = vmatpush1.msra.mxu0 0.0
    %7987 = vmatprep.subr.mxu0 0.0
    %7988 = vmatpush1.msra.mxu0 0.0
    %7989 = vmatprep.subr.mxu0 0.0
    %7990 = vmatpush1.msra.mxu0 0.0
    %7991 = vmatprep.subr.mxu0 0.0
    %7992 = vmatpush1.msra.mxu0 0.0
    %7993 = vmatprep.subr.mxu0 0.0
    %7994 = vmatpush1.msra.mxu0 %v7861
    %7995 = vmatprep.subr.mxu0 0.0
    %7996 = vmatpush1.msra.mxu0 %v7860
    %7997 = vmatprep.subr.mxu0 0.0
    %7998 = vmatpush1.msra.mxu0 %v7859
    %7999 = vmatprep.subr.mxu0 0.0
    %8000 = vmatpush1.msra.mxu0 %v7858
    %8001 = vmatprep.subr.mxu0 0.0
    %8002 = vmatpush1.msra.mxu0 %v7857
    %8003 = vmatprep.subr.mxu0 0.0
    %8004 = vmatpush1.msra.mxu0 %v7856
    %8005 = vmatprep.subr.mxu0 0.0
    %8006 = vmatpush2.msra.mxu0 0.0
    %8007 = vmatprep.subr.mxu0 0.0
    %8008 = vmatpush2.msra.mxu0 0.0
    %8009 = vmatprep.subr.mxu0 0.0
    %8010 = vmatpush2.msra.mxu0 0.0
    %8011 = vmatprep.subr.mxu0 0.0
    %8012 = vmatpush2.msra.mxu0 0.0
    %8013 = vmatprep.subr.mxu0 0.0
    %8014 = vmatpush2.msra.mxu0 0.0
    %8015 = vmatprep.subr.mxu0 0.0
    %8016 = vmatpush2.msra.mxu0 0.0
    %8017 = vmatprep.subr.mxu0 0.0
    %8018 = vmatpush2.msra.mxu0 0.0
    %8019 = vmatprep.subr.mxu0 0.0
    %8020 = vmatpush2.msra.mxu0 0.0
    %8021 = vmatprep.subr.mxu0 0.0
    %8022 = vmatpush2.msra.mxu0 0.0
    %8023 = vmatprep.subr.mxu0 0.0
    %8024 = vmatpush2.msra.mxu0 0.0
    %8025 = vmatprep.subr.mxu0 0.0
    %8026 = vmatpush2.msra.mxu0 0.0
    %8027 = vmatprep.subr.mxu0 0.0
    %8028 = vmatpush2.msra.mxu0 0.0
    %8029 = vmatprep.subr.mxu0 0.0
    %8030 = vmatpush2.msra.mxu0 0.0
    %8031 = vmatprep.subr.mxu0 0.0
    %8032 = vmatpush2.msra.mxu0 0.0
    %8033 = vmatprep.subr.mxu0 0.0
    %8034 = vmatpush2.msra.mxu0 0.0
    %8035 = vmatprep.subr.mxu0 0.0
    %8036 = vmatpush2.msra.mxu0 0.0
    %8037 = vmatprep.mubr.f32.mxu0 0.0
    %8038 = vmatmul.mubr.f32.gmra.mxu0 %v7893
    %v8039 = vpop.f32.mrf.mxu0
    %v8040 = vadd.f32 %v7885, %v8039
    %v8041 = vpop.f32.mrf.mxu0
    %8042 = vmatprep.mubr.f32.mxu0 0.0
    %8043 = vmatmul.mubr.f32.gmra.mxu0 %v7896
    %v8044 = vpop.f32.mrf.mxu0
    %v8045 = vadd.f32 %v7890, %v8044
    %v8046 = vpop.f32.mrf.mxu0
    %8047 = vdwg.mxu0
    %8048 = vmatprep.subr.mxu0 0.0
    %8049 = vmatpush1.msra.mxu0 0.0
    %8050 = vmatprep.subr.mxu0 0.0
    %8051 = vmatpush1.msra.mxu0 0.0
    %8052 = vmatprep.subr.mxu0 0.0
    %8053 = vmatpush1.msra.mxu0 0.0
    %8054 = vmatprep.subr.mxu0 0.0
    %8055 = vmatpush1.msra.mxu0 0.0
    %8056 = vmatprep.subr.mxu0 0.0
    %8057 = vmatpush1.msra.mxu0 0.0
    %8058 = vmatprep.subr.mxu0 0.0
    %8059 = vmatpush1.msra.mxu0 0.0
    %8060 = vmatprep.subr.mxu0 0.0
    %8061 = vmatpush1.msra.mxu0 0.0
    %8062 = vmatprep.subr.mxu0 0.0
    %8063 = vmatpush1.msra.mxu0 0.0
    %8064 = vmatprep.subr.mxu0 0.0
    %8065 = vmatpush1.msra.mxu0 0.0
    %8066 = vmatprep.subr.mxu0 0.0
    %8067 = vmatpush1.msra.mxu0 0.0
    %8068 = vmatprep.subr.mxu0 0.0
    %8069 = vmatpush1.msra.mxu0 %v7863
    %8070 = vmatprep.subr.mxu0 0.0
    %8071 = vmatpush1.msra.mxu0 %v7862
    %8072 = vmatprep.subr.mxu0 0.0
    %8073 = vmatpush1.msra.mxu0 %v7861
    %8074 = vmatprep.subr.mxu0 0.0
    %8075 = vmatpush1.msra.mxu0 %v7860
    %8076 = vmatprep.subr.mxu0 0.0
    %8077 = vmatpush1.msra.mxu0 %v7859
    %8078 = vmatprep.subr.mxu0 0.0
    %8079 = vmatpush1.msra.mxu0 %v7858
    %8080 = vmatprep.subr.mxu0 0.0
    %8081 = vmatpush2.msra.mxu0 0.0
    %8082 = vmatprep.subr.mxu0 0.0
    %8083 = vmatpush2.msra.mxu0 0.0
    %8084 = vmatprep.subr.mxu0 0.0
    %8085 = vmatpush2.msra.mxu0 0.0
    %8086 = vmatprep.subr.mxu0 0.0
    %8087 = vmatpush2.msra.mxu0 0.0
    %8088 = vmatprep.subr.mxu0 0.0
    %8089 = vmatpush2.msra.mxu0 0.0
    %8090 = vmatprep.subr.mxu0 0.0
    %8091 = vmatpush2.msra.mxu0 0.0
    %8092 = vmatprep.subr.mxu0 0.0
    %8093 = vmatpush2.msra.mxu0 0.0
    %8094 = vmatprep.subr.mxu0 0.0
    %8095 = vmatpush2.msra.mxu0 0.0
    %8096 = vmatprep.subr.mxu0 0.0
    %8097 = vmatpush2.msra.mxu0 0.0
    %8098 = vmatprep.subr.mxu0 0.0
    %8099 = vmatpush2.msra.mxu0 0.0
    %8100 = vmatprep.subr.mxu0 0.0
    %8101 = vmatpush2.msra.mxu0 0.0
    %8102 = vmatprep.subr.mxu0 0.0
    %8103 = vmatpush2.msra.mxu0 0.0
    %8104 = vmatprep.subr.mxu0 0.0
    %8105 = vmatpush2.msra.mxu0 0.0
    %8106 = vmatprep.subr.mxu0 0.0
    %8107 = vmatpush2.msra.mxu0 0.0
    %8108 = vmatprep.subr.mxu0 0.0
    %8109 = vmatpush2.msra.mxu0 0.0
    %8110 = vmatprep.subr.mxu0 0.0
    %8111 = vmatpush2.msra.mxu0 0.0
    %8112 = vmatprep.mubr.f32.mxu0 0.0
    %8113 = vmatmul.mubr.f32.gmra.mxu0 %v7893
    %v8114 = vpop.f32.mrf.mxu0
    %v8115 = vadd.f32 %v7885, %v8114
    %v8116 = vpop.f32.mrf.mxu0
    %8117 = vmatprep.mubr.f32.mxu0 0.0
    %8118 = vmatmul.mubr.f32.gmra.mxu0 %v7896
    %v8119 = vpop.f32.mrf.mxu0
    %v8120 = vadd.f32 %v7890, %v8119
    %v8121 = vpop.f32.mrf.mxu0
    %8122 = vdwg.mxu0
    %8123 = vmatprep.subr.mxu0 0.0
    %8124 = vmatpush1.msra.mxu0 0.0
    %8125 = vmatprep.subr.mxu0 0.0
    %8126 = vmatpush1.msra.mxu0 0.0
    %8127 = vmatprep.subr.mxu0 0.0
    %8128 = vmatpush1.msra.mxu0 0.0
    %8129 = vmatprep.subr.mxu0 0.0
    %8130 = vmatpush1.msra.mxu0 0.0
    %8131 = vmatprep.subr.mxu0 0.0
    %8132 = vmatpush1.msra.mxu0 0.0
    %8133 = vmatprep.subr.mxu0 0.0
    %8134 = vmatpush1.msra.mxu0 0.0
    %8135 = vmatprep.subr.mxu0 0.0
    %8136 = vmatpush1.msra.mxu0 0.0
    %8137 = vmatprep.subr.mxu0 0.0
    %8138 = vmatpush1.msra.mxu0 0.0
    %8139 = vmatprep.subr.mxu0 0.0
    %8140 = vmatpush1.msra.mxu0 0.0
    %8141 = vmatprep.subr.mxu0 0.0
    %8142 = vmatpush1.msra.mxu0 0.0
    %8143 = vmatprep.subr.mxu0 0.0
    %8144 = vmatpush1.msra.mxu0 %v7865
    %8145 = vmatprep.subr.mxu0 0.0
    %8146 = vmatpush1.msra.mxu0 %v7864
    %8147 = vmatprep.subr.mxu0 0.0
    %8148 = vmatpush1.msra.mxu0 %v7863
    %8149 = vmatprep.subr.mxu0 0.0
    %8150 = vmatpush1.msra.mxu0 %v7862
    %8151 = vmatprep.subr.mxu0 0.0
    %8152 = vmatpush1.msra.mxu0 %v7861
    %8153 = vmatprep.subr.mxu0 0.0
    %8154 = vmatpush1.msra.mxu0 %v7860
    %8155 = vmatprep.subr.mxu0 0.0
    %8156 = vmatpush2.msra.mxu0 0.0
    %8157 = vmatprep.subr.mxu0 0.0
    %8158 = vmatpush2.msra.mxu0 0.0
    %8159 = vmatprep.subr.mxu0 0.0
    %8160 = vmatpush2.msra.mxu0 0.0
    %8161 = vmatprep.subr.mxu0 0.0
    %8162 = vmatpush2.msra.mxu0 0.0
    %8163 = vmatprep.subr.mxu0 0.0
    %8164 = vmatpush2.msra.mxu0 0.0
    %8165 = vmatprep.subr.mxu0 0.0
    %8166 = vmatpush2.msra.mxu0 0.0
    %8167 = vmatprep.subr.mxu0 0.0
    %8168 = vmatpush2.msra.mxu0 0.0
    %8169 = vmatprep.subr.mxu0 0.0
    %8170 = vmatpush2.msra.mxu0 0.0
    %8171 = vmatprep.subr.mxu0 0.0
    %8172 = vmatpush2.msra.mxu0 0.0
    %8173 = vmatprep.subr.mxu0 0.0
    %8174 = vmatpush2.msra.mxu0 0.0
    %8175 = vmatprep.subr.mxu0 0.0
    %8176 = vmatpush2.msra.mxu0 0.0
    %8177 = vmatprep.subr.mxu0 0.0
    %8178 = vmatpush2.msra.mxu0 0.0
    %8179 = vmatprep.subr.mxu0 0.0
    %8180 = vmatpush2.msra.mxu0 0.0
    %8181 = vmatprep.subr.mxu0 0.0
    %8182 = vmatpush2.msra.mxu0 0.0
    %8183 = vmatprep.subr.mxu0 0.0
    %8184 = vmatpush2.msra.mxu0 0.0
    %8185 = vmatprep.subr.mxu0 0.0
    %8186 = vmatpush2.msra.mxu0 0.0
    %8187 = vmatprep.mubr.f32.mxu0 0.0
    %8188 = vmatmul.mubr.f32.gmra.mxu0 %v7893
    %v8189 = vpop.f32.mrf.mxu0
    %v8190 = vadd.f32 %v7885, %v8189
    %v8191 = vpop.f32.mrf.mxu0
    %8192 = vmatprep.mubr.f32.mxu0 0.0
    %8193 = vmatmul.mubr.f32.gmra.mxu0 %v7896
    %v8194 = vpop.f32.mrf.mxu0
    %v8195 = vadd.f32 %v7890, %v8194
    %v8196 = vpop.f32.mrf.mxu0
    %8197 = vdwg.mxu0
    %8198 = vmatprep.subr.mxu0 0.0
    %8199 = vmatpush1.msra.mxu0 0.0
    %8200 = vmatprep.subr.mxu0 0.0
    %8201 = vmatpush1.msra.mxu0 0.0
    %8202 = vmatprep.subr.mxu0 0.0
    %8203 = vmatpush1.msra.mxu0 0.0
    %8204 = vmatprep.subr.mxu0 0.0
    %8205 = vmatpush1.msra.mxu0 0.0
    %8206 = vmatprep.subr.mxu0 0.0
    %8207 = vmatpush1.msra.mxu0 0.0
    %8208 = vmatprep.subr.mxu0 0.0
    %8209 = vmatpush1.msra.mxu0 0.0
    %8210 = vmatprep.subr.mxu0 0.0
    %8211 = vmatpush1.msra.mxu0 0.0
    %8212 = vmatprep.subr.mxu0 0.0
    %8213 = vmatpush1.msra.mxu0 0.0
    %8214 = vmatprep.subr.mxu0 0.0
    %8215 = vmatpush1.msra.mxu0 0.0
    %8216 = vmatprep.subr.mxu0 0.0
    %8217 = vmatpush1.msra.mxu0 0.0
    %8218 = vmatprep.subr.mxu0 0.0
    %8219 = vmatpush1.msra.mxu0 %v7867
    %8220 = vmatprep.subr.mxu0 0.0
    %8221 = vmatpush1.msra.mxu0 %v7866
    %8222 = vmatprep.subr.mxu0 0.0
    %8223 = vmatpush1.msra.mxu0 %v7865
    %8224 = vmatprep.subr.mxu0 0.0
    %8225 = vmatpush1.msra.mxu0 %v7864
    %8226 = vmatprep.subr.mxu0 0.0
    %8227 = vmatpush1.msra.mxu0 %v7863
    %8228 = vmatprep.subr.mxu0 0.0
    %8229 = vmatpush1.msra.mxu0 %v7862
    %8230 = vmatprep.subr.mxu0 0.0
    %8231 = vmatpush2.msra.mxu0 0.0
    %8232 = vmatprep.subr.mxu0 0.0
    %8233 = vmatpush2.msra.mxu0 0.0
    %8234 = vmatprep.subr.mxu0 0.0
    %8235 = vmatpush2.msra.mxu0 0.0
    %8236 = vmatprep.subr.mxu0 0.0
    %8237 = vmatpush2.msra.mxu0 0.0
    %8238 = vmatprep.subr.mxu0 0.0
    %8239 = vmatpush2.msra.mxu0 0.0
    %8240 = vmatprep.subr.mxu0 0.0
    %8241 = vmatpush2.msra.mxu0 0.0
    %8242 = vmatprep.subr.mxu0 0.0
    %8243 = vmatpush2.msra.mxu0 0.0
    %8244 = vmatprep.subr.mxu0 0.0
    %8245 = vmatpush2.msra.mxu0 0.0
    %8246 = vmatprep.subr.mxu0 0.0
    %8247 = vmatpush2.msra.mxu0 0.0
    %8248 = vmatprep.subr.mxu0 0.0
    %8249 = vmatpush2.msra.mxu0 0.0
    %8250 = vmatprep.subr.mxu0 0.0
    %8251 = vmatpush2.msra.mxu0 0.0
    %8252 = vmatprep.subr.mxu0 0.0
    %8253 = vmatpush2.msra.mxu0 0.0
    %8254 = vmatprep.subr.mxu0 0.0
    %8255 = vmatpush2.msra.mxu0 0.0
    %8256 = vmatprep.subr.mxu0 0.0
    %8257 = vmatpush2.msra.mxu0 0.0
    %8258 = vmatprep.subr.mxu0 0.0
    %8259 = vmatpush2.msra.mxu0 0.0
    %8260 = vmatprep.subr.mxu0 0.0
    %8261 = vmatpush2.msra.mxu0 0.0
    %8262 = vmatprep.mubr.f32.mxu0 0.0
    %8263 = vmatmul.mubr.f32.gmra.mxu0 %v7893
    %v8264 = vpop.f32.mrf.mxu0
    %v8265 = vadd.f32 %v7885, %v8264
    %v8266 = vpop.f32.mrf.mxu0
    %8267 = vmatprep.mubr.f32.mxu0 0.0
    %8268 = vmatmul.mubr.f32.gmra.mxu0 %v7896
    %v8269 = vpop.f32.mrf.mxu0
    %v8270 = vadd.f32 %v7890, %v8269
    %v8271 = vpop.f32.mrf.mxu0
    %8272 = vdwg.mxu0
    %8273 = vmatprep.subr.mxu0 0.0
    %8274 = vmatpush1.msra.mxu0 0.0
    %8275 = vmatprep.subr.mxu0 0.0
    %8276 = vmatpush1.msra.mxu0 0.0
    %8277 = vmatprep.subr.mxu0 0.0
    %8278 = vmatpush1.msra.mxu0 0.0
    %8279 = vmatprep.subr.mxu0 0.0
    %8280 = vmatpush1.msra.mxu0 0.0
    %8281 = vmatprep.subr.mxu0 0.0
    %8282 = vmatpush1.msra.mxu0 0.0
    %8283 = vmatprep.subr.mxu0 0.0
    %8284 = vmatpush1.msra.mxu0 0.0
    %8285 = vmatprep.subr.mxu0 0.0
    %8286 = vmatpush1.msra.mxu0 0.0
    %8287 = vmatprep.subr.mxu0 0.0
    %8288 = vmatpush1.msra.mxu0 0.0
    %8289 = vmatprep.subr.mxu0 0.0
    %8290 = vmatpush1.msra.mxu0 0.0
    %8291 = vmatprep.subr.mxu0 0.0
    %8292 = vmatpush1.msra.mxu0 0.0
    %8293 = vmatprep.subr.mxu0 0.0
    %8294 = vmatpush1.msra.mxu0 %v7869
    %8295 = vmatprep.subr.mxu0 0.0
    %8296 = vmatpush1.msra.mxu0 %v7868
    %8297 = vmatprep.subr.mxu0 0.0
    %8298 = vmatpush1.msra.mxu0 %v7867
    %8299 = vmatprep.subr.mxu0 0.0
    %8300 = vmatpush1.msra.mxu0 %v7866
    %8301 = vmatprep.subr.mxu0 0.0
    %8302 = vmatpush1.msra.mxu0 %v7865
    %8303 = vmatprep.subr.mxu0 0.0
    %8304 = vmatpush1.msra.mxu0 %v7864
    %8305 = vmatprep.subr.mxu0 0.0
    %8306 = vmatpush2.msra.mxu0 0.0
    %8307 = vmatprep.subr.mxu0 0.0
    %8308 = vmatpush2.msra.mxu0 0.0
    %8309 = vmatprep.subr.mxu0 0.0
    %8310 = vmatpush2.msra.mxu0 0.0
    %8311 = vmatprep.subr.mxu0 0.0
    %8312 = vmatpush2.msra.mxu0 0.0
    %8313 = vmatprep.subr.mxu0 0.0
    %8314 = vmatpush2.msra.mxu0 0.0
    %8315 = vmatprep.subr.mxu0 0.0
    %8316 = vmatpush2.msra.mxu0 0.0
    %8317 = vmatprep.subr.mxu0 0.0
    %8318 = vmatpush2.msra.mxu0 0.0
    %8319 = vmatprep.subr.mxu0 0.0
    %8320 = vmatpush2.msra.mxu0 0.0
    %8321 = vmatprep.subr.mxu0 0.0
    %8322 = vmatpush2.msra.mxu0 0.0
    %8323 = vmatprep.subr.mxu0 0.0
    %8324 = vmatpush2.msra.mxu0 0.0
    %8325 = vmatprep.subr.mxu0 0.0
    %8326 = vmatpush2.msra.mxu0 0.0
    %8327 = vmatprep.subr.mxu0 0.0
    %8328 = vmatpush2.msra.mxu0 0.0
    %8329 = vmatprep.subr.mxu0 0.0
    %8330 = vmatpush2.msra.mxu0 0.0
    %8331 = vmatprep.subr.mxu0 0.0
    %8332 = vmatpush2.msra.mxu0 0.0
    %8333 = vmatprep.subr.mxu0 0.0
    %8334 = vmatpush2.msra.mxu0 0.0
    %8335 = vmatprep.subr.mxu0 0.0
    %8336 = vmatpush2.msra.mxu0 0.0
    %8337 = vmatprep.mubr.f32.mxu0 0.0
    %8338 = vmatmul.mubr.f32.gmra.mxu0 %v7893
    %v8339 = vpop.f32.mrf.mxu0
    %v8340 = vadd.f32 %v7885, %v8339
    %v8341 = vpop.f32.mrf.mxu0
    %8342 = vmatprep.mubr.f32.mxu0 0.0
    %8343 = vmatmul.mubr.f32.gmra.mxu0 %v7896
    %v8344 = vpop.f32.mrf.mxu0
    %v8345 = vadd.f32 %v7890, %v8344
    %v8346 = vpop.f32.mrf.mxu0
    %8347 = vdwg.mxu0
    %8348 = vmatprep.subr.mxu0 0.0
    %8349 = vmatpush1.msra.mxu0 0.0
    %8350 = vmatprep.subr.mxu0 0.0
    %8351 = vmatpush1.msra.mxu0 0.0
    %8352 = vmatprep.subr.mxu0 0.0
    %8353 = vmatpush1.msra.mxu0 0.0
    %8354 = vmatprep.subr.mxu0 0.0
    %8355 = vmatpush1.msra.mxu0 0.0
    %8356 = vmatprep.subr.mxu0 0.0
    %8357 = vmatpush1.msra.mxu0 0.0
    %8358 = vmatprep.subr.mxu0 0.0
    %8359 = vmatpush1.msra.mxu0 0.0
    %8360 = vmatprep.subr.mxu0 0.0
    %8361 = vmatpush1.msra.mxu0 0.0
    %8362 = vmatprep.subr.mxu0 0.0
    %8363 = vmatpush1.msra.mxu0 0.0
    %8364 = vmatprep.subr.mxu0 0.0
    %8365 = vmatpush1.msra.mxu0 0.0
    %8366 = vmatprep.subr.mxu0 0.0
    %8367 = vmatpush1.msra.mxu0 0.0
    %8368 = vmatprep.subr.mxu0 0.0
    %8369 = vmatpush1.msra.mxu0 %v7871
    %8370 = vmatprep.subr.mxu0 0.0
    %8371 = vmatpush1.msra.mxu0 %v7870
    %8372 = vmatprep.subr.mxu0 0.0
    %8373 = vmatpush1.msra.mxu0 %v7869
    %8374 = vmatprep.subr.mxu0 0.0
    %8375 = vmatpush1.msra.mxu0 %v7868
    %8376 = vmatprep.subr.mxu0 0.0
    %8377 = vmatpush1.msra.mxu0 %v7867
    %8378 = vmatprep.subr.mxu0 0.0
    %8379 = vmatpush1.msra.mxu0 %v7866
    %8380 = vmatprep.subr.mxu0 0.0
    %8381 = vmatpush2.msra.mxu0 0.0
    %8382 = vmatprep.subr.mxu0 0.0
    %8383 = vmatpush2.msra.mxu0 0.0
    %8384 = vmatprep.subr.mxu0 0.0
    %8385 = vmatpush2.msra.mxu0 0.0
    %8386 = vmatprep.subr.mxu0 0.0
    %8387 = vmatpush2.msra.mxu0 0.0
    %8388 = vmatprep.subr.mxu0 0.0
    %8389 = vmatpush2.msra.mxu0 0.0
    %8390 = vmatprep.subr.mxu0 0.0
    %8391 = vmatpush2.msra.mxu0 0.0
    %8392 = vmatprep.subr.mxu0 0.0
    %8393 = vmatpush2.msra.mxu0 0.0
    %8394 = vmatprep.subr.mxu0 0.0
    %8395 = vmatpush2.msra.mxu0 0.0
    %8396 = vmatprep.subr.mxu0 0.0
    %8397 = vmatpush2.msra.mxu0 0.0
    %8398 = vmatprep.subr.mxu0 0.0
    %8399 = vmatpush2.msra.mxu0 0.0
    %8400 = vmatprep.subr.mxu0 0.0
    %8401 = vmatpush2.msra.mxu0 0.0
    %8402 = vmatprep.subr.mxu0 0.0
    %8403 = vmatpush2.msra.mxu0 0.0
    %8404 = vmatprep.subr.mxu0 0.0
    %8405 = vmatpush2.msra.mxu0 0.0
    %8406 = vmatprep.subr.mxu0 0.0
    %8407 = vmatpush2.msra.mxu0 0.0
    %8408 = vmatprep.subr.mxu0 0.0
    %8409 = vmatpush2.msra.mxu0 0.0
    %8410 = vmatprep.subr.mxu0 0.0
    %8411 = vmatpush2.msra.mxu0 0.0
    %8412 = vmatprep.mubr.f32.mxu0 0.0
    %8413 = vmatmul.mubr.f32.gmra.mxu0 %v7893
    %v8414 = vpop.f32.mrf.mxu0
    %v8415 = vadd.f32 %v7885, %v8414
    %v8416 = vpop.f32.mrf.mxu0
    %8417 = vmatprep.mubr.f32.mxu0 0.0
    %8418 = vmatmul.mubr.f32.gmra.mxu0 %v7896
    %v8419 = vpop.f32.mrf.mxu0
    %v8420 = vadd.f32 %v7890, %v8419
    %v8421 = vpop.f32.mrf.mxu0
    %8422 = vdwg.mxu0
    %8423 = vmatprep.subr.mxu0 0.0
    %8424 = vmatpush1.msra.mxu0 0.0
    %8425 = vmatprep.subr.mxu0 0.0
    %8426 = vmatpush1.msra.mxu0 0.0
    %8427 = vmatprep.subr.mxu0 0.0
    %8428 = vmatpush1.msra.mxu0 0.0
    %8429 = vmatprep.subr.mxu0 0.0
    %8430 = vmatpush1.msra.mxu0 0.0
    %8431 = vmatprep.subr.mxu0 0.0
    %8432 = vmatpush1.msra.mxu0 0.0
    %8433 = vmatprep.subr.mxu0 0.0
    %8434 = vmatpush1.msra.mxu0 0.0
    %8435 = vmatprep.subr.mxu0 0.0
    %8436 = vmatpush1.msra.mxu0 0.0
    %8437 = vmatprep.subr.mxu0 0.0
    %8438 = vmatpush1.msra.mxu0 0.0
    %8439 = vmatprep.subr.mxu0 0.0
    %8440 = vmatpush1.msra.mxu0 0.0
    %8441 = vmatprep.subr.mxu0 0.0
    %8442 = vmatpush1.msra.mxu0 0.0
    %8443 = vmatprep.subr.mxu0 0.0
    %8444 = vmatpush1.msra.mxu0 %v7873
    %8445 = vmatprep.subr.mxu0 0.0
    %8446 = vmatpush1.msra.mxu0 %v7872
    %8447 = vmatprep.subr.mxu0 0.0
    %8448 = vmatpush1.msra.mxu0 %v7871
    %8449 = vmatprep.subr.mxu0 0.0
    %8450 = vmatpush1.msra.mxu0 %v7870
    %8451 = vmatprep.subr.mxu0 0.0
    %8452 = vmatpush1.msra.mxu0 %v7869
    %8453 = vmatprep.subr.mxu0 0.0
    %8454 = vmatpush1.msra.mxu0 %v7868
    %8455 = vmatprep.subr.mxu0 0.0
    %8456 = vmatpush2.msra.mxu0 0.0
    %8457 = vmatprep.subr.mxu0 0.0
    %8458 = vmatpush2.msra.mxu0 0.0
    %8459 = vmatprep.subr.mxu0 0.0
    %8460 = vmatpush2.msra.mxu0 0.0
    %8461 = vmatprep.subr.mxu0 0.0
    %8462 = vmatpush2.msra.mxu0 0.0
    %8463 = vmatprep.subr.mxu0 0.0
    %8464 = vmatpush2.msra.mxu0 0.0
    %8465 = vmatprep.subr.mxu0 0.0
    %8466 = vmatpush2.msra.mxu0 0.0
    %8467 = vmatprep.subr.mxu0 0.0
    %8468 = vmatpush2.msra.mxu0 0.0
    %8469 = vmatprep.subr.mxu0 0.0
    %8470 = vmatpush2.msra.mxu0 0.0
    %8471 = vmatprep.subr.mxu0 0.0
    %8472 = vmatpush2.msra.mxu0 0.0
    %8473 = vmatprep.subr.mxu0 0.0
    %8474 = vmatpush2.msra.mxu0 0.0
    %8475 = vmatprep.subr.mxu0 0.0
    %8476 = vmatpush2.msra.mxu0 0.0
    %8477 = vmatprep.subr.mxu0 0.0
    %8478 = vmatpush2.msra.mxu0 0.0
    %8479 = vmatprep.subr.mxu0 0.0
    %8480 = vmatpush2.msra.mxu0 0.0
    %8481 = vmatprep.subr.mxu0 0.0
    %8482 = vmatpush2.msra.mxu0 0.0
    %8483 = vmatprep.subr.mxu0 0.0
    %8484 = vmatpush2.msra.mxu0 0.0
    %8485 = vmatprep.subr.mxu0 0.0
    %8486 = vmatpush2.msra.mxu0 0.0
    %8487 = vmatprep.mubr.f32.mxu0 0.0
    %8488 = vmatmul.mubr.f32.gmra.mxu0 %v7893
    %v8489 = vpop.f32.mrf.mxu0
    %v8490 = vadd.f32 %v7885, %v8489
    %v8491 = vpop.f32.mrf.mxu0
    %8492 = vmatprep.mubr.f32.mxu0 0.0
    %8493 = vmatmul.mubr.f32.gmra.mxu0 %v7896
    %v8494 = vpop.f32.mrf.mxu0
    %v8495 = vadd.f32 %v7890, %v8494
    %v8496 = vpop.f32.mrf.mxu0
    %8497 = vdwg.mxu0
    %8498 = vmatprep.subr.mxu0 0.0
    %8499 = vmatpush1.msra.mxu0 0.0
    %8500 = vmatprep.subr.mxu0 0.0
    %8501 = vmatpush1.msra.mxu0 0.0
    %8502 = vmatprep.subr.mxu0 0.0
    %8503 = vmatpush1.msra.mxu0 0.0
    %8504 = vmatprep.subr.mxu0 0.0
    %8505 = vmatpush1.msra.mxu0 0.0
    %8506 = vmatprep.subr.mxu0 0.0
    %8507 = vmatpush1.msra.mxu0 0.0
    %8508 = vmatprep.subr.mxu0 0.0
    %8509 = vmatpush1.msra.mxu0 0.0
    %8510 = vmatprep.subr.mxu0 0.0
    %8511 = vmatpush1.msra.mxu0 0.0
    %8512 = vmatprep.subr.mxu0 0.0
    %8513 = vmatpush1.msra.mxu0 0.0
    %8514 = vmatprep.subr.mxu0 0.0
    %8515 = vmatpush1.msra.mxu0 0.0
    %8516 = vmatprep.subr.mxu0 0.0
    %8517 = vmatpush1.msra.mxu0 0.0
    %8518 = vmatprep.subr.mxu0 0.0
    %8519 = vmatpush1.msra.mxu0 %v7875
    %8520 = vmatprep.subr.mxu0 0.0
    %8521 = vmatpush1.msra.mxu0 %v7874
    %8522 = vmatprep.subr.mxu0 0.0
    %8523 = vmatpush1.msra.mxu0 %v7873
    %8524 = vmatprep.subr.mxu0 0.0
    %8525 = vmatpush1.msra.mxu0 %v7872
    %8526 = vmatprep.subr.mxu0 0.0
    %8527 = vmatpush1.msra.mxu0 %v7871
    %8528 = vmatprep.subr.mxu0 0.0
    %8529 = vmatpush1.msra.mxu0 %v7870
    %8530 = vmatprep.subr.mxu0 0.0
    %8531 = vmatpush2.msra.mxu0 0.0
    %8532 = vmatprep.subr.mxu0 0.0
    %8533 = vmatpush2.msra.mxu0 0.0
    %8534 = vmatprep.subr.mxu0 0.0
    %8535 = vmatpush2.msra.mxu0 0.0
    %8536 = vmatprep.subr.mxu0 0.0
    %8537 = vmatpush2.msra.mxu0 0.0
    %8538 = vmatprep.subr.mxu0 0.0
    %8539 = vmatpush2.msra.mxu0 0.0
    %8540 = vmatprep.subr.mxu0 0.0
    %8541 = vmatpush2.msra.mxu0 0.0
    %8542 = vmatprep.subr.mxu0 0.0
    %8543 = vmatpush2.msra.mxu0 0.0
    %8544 = vmatprep.subr.mxu0 0.0
    %8545 = vmatpush2.msra.mxu0 0.0
    %8546 = vmatprep.subr.mxu0 0.0
    %8547 = vmatpush2.msra.mxu0 0.0
    %8548 = vmatprep.subr.mxu0 0.0
    %8549 = vmatpush2.msra.mxu0 0.0
    %8550 = vmatprep.subr.mxu0 0.0
    %8551 = vmatpush2.msra.mxu0 0.0
    %8552 = vmatprep.subr.mxu0 0.0
    %8553 = vmatpush2.msra.mxu0 0.0
    %8554 = vmatprep.subr.mxu0 0.0
    %8555 = vmatpush2.msra.mxu0 0.0
    %8556 = vmatprep.subr.mxu0 0.0
    %8557 = vmatpush2.msra.mxu0 0.0
    %8558 = vmatprep.subr.mxu0 0.0
    %8559 = vmatpush2.msra.mxu0 0.0
    %8560 = vmatprep.subr.mxu0 0.0
    %8561 = vmatpush2.msra.mxu0 0.0
    %8562 = vmatprep.mubr.f32.mxu0 0.0
    %8563 = vmatmul.mubr.f32.gmra.mxu0 %v7893
    %v8564 = vpop.f32.mrf.mxu0
    %v8565 = vadd.f32 %v7885, %v8564
    %v8566 = vpop.f32.mrf.mxu0
    %8567 = vmatprep.mubr.f32.mxu0 0.0
    %8568 = vmatmul.mubr.f32.gmra.mxu0 %v7896
    %v8569 = vpop.f32.mrf.mxu0
    %v8570 = vadd.f32 %v7890, %v8569
    %v8571 = vpop.f32.mrf.mxu0
    %8572 = vdwg.mxu0
    %8573 = vmatprep.subr.mxu0 0.0
    %8574 = vmatpush1.msra.mxu0 0.0
    %8575 = vmatprep.subr.mxu0 0.0
    %8576 = vmatpush1.msra.mxu0 0.0
    %8577 = vmatprep.subr.mxu0 0.0
    %8578 = vmatpush1.msra.mxu0 0.0
    %8579 = vmatprep.subr.mxu0 0.0
    %8580 = vmatpush1.msra.mxu0 0.0
    %8581 = vmatprep.subr.mxu0 0.0
    %8582 = vmatpush1.msra.mxu0 0.0
    %8583 = vmatprep.subr.mxu0 0.0
    %8584 = vmatpush1.msra.mxu0 0.0
    %8585 = vmatprep.subr.mxu0 0.0
    %8586 = vmatpush1.msra.mxu0 0.0
    %8587 = vmatprep.subr.mxu0 0.0
    %8588 = vmatpush1.msra.mxu0 0.0
    %8589 = vmatprep.subr.mxu0 0.0
    %8590 = vmatpush1.msra.mxu0 0.0
    %8591 = vmatprep.subr.mxu0 0.0
    %8592 = vmatpush1.msra.mxu0 0.0
    %8593 = vmatprep.subr.mxu0 0.0
    %8594 = vmatpush1.msra.mxu0 0.0
    %8595 = vmatprep.subr.mxu0 0.0
    %8596 = vmatpush1.msra.mxu0 0.0
    %8597 = vmatprep.subr.mxu0 0.0
    %8598 = vmatpush1.msra.mxu0 %v7875
    %8599 = vmatprep.subr.mxu0 0.0
    %8600 = vmatpush1.msra.mxu0 %v7874
    %8601 = vmatprep.subr.mxu0 0.0
    %8602 = vmatpush1.msra.mxu0 %v7873
    %8603 = vmatprep.subr.mxu0 0.0
    %8604 = vmatpush1.msra.mxu0 %v7872
    %8605 = vmatprep.subr.mxu0 0.0
    %8606 = vmatpush2.msra.mxu0 0.0
    %8607 = vmatprep.subr.mxu0 0.0
    %8608 = vmatpush2.msra.mxu0 0.0
    %8609 = vmatprep.subr.mxu0 0.0
    %8610 = vmatpush2.msra.mxu0 0.0
    %8611 = vmatprep.subr.mxu0 0.0
    %8612 = vmatpush2.msra.mxu0 0.0
    %8613 = vmatprep.subr.mxu0 0.0
    %8614 = vmatpush2.msra.mxu0 0.0
    %8615 = vmatprep.subr.mxu0 0.0
    %8616 = vmatpush2.msra.mxu0 0.0
    %8617 = vmatprep.subr.mxu0 0.0
    %8618 = vmatpush2.msra.mxu0 0.0
    %8619 = vmatprep.subr.mxu0 0.0
    %8620 = vmatpush2.msra.mxu0 0.0
    %8621 = vmatprep.subr.mxu0 0.0
    %8622 = vmatpush2.msra.mxu0 0.0
    %8623 = vmatprep.subr.mxu0 0.0
    %8624 = vmatpush2.msra.mxu0 0.0
    %8625 = vmatprep.subr.mxu0 0.0
    %8626 = vmatpush2.msra.mxu0 0.0
    %8627 = vmatprep.subr.mxu0 0.0
    %8628 = vmatpush2.msra.mxu0 0.0
    %8629 = vmatprep.subr.mxu0 0.0
    %8630 = vmatpush2.msra.mxu0 0.0
    %8631 = vmatprep.subr.mxu0 0.0
    %8632 = vmatpush2.msra.mxu0 0.0
    %8633 = vmatprep.subr.mxu0 0.0
    %8634 = vmatpush2.msra.mxu0 0.0
    %8635 = vmatprep.subr.mxu0 0.0
    %8636 = vmatpush2.msra.mxu0 0.0
    %8637 = vmatprep.mubr.f32.mxu0 0.0
    %8638 = vmatmul.mubr.f32.gmra.mxu0 %v7893
    %v8639 = vpop.f32.mrf.mxu0
    %v8640 = vadd.f32 %v7885, %v8639
    %v8641 = vpop.f32.mrf.mxu0
    %8642 = vmatprep.mubr.f32.mxu0 0.0
    %8643 = vmatmul.mubr.f32.gmra.mxu0 %v7896
    %v8644 = vpop.f32.mrf.mxu0
    %v8645 = vadd.f32 %v7890, %v8644
    %v8646 = vpop.f32.mrf.mxu0
    %8647 = vdwg.mxu0
    %v8648 = vmul.f32 %v7965, 0.75
    %v8649 = vmul.f32 %v7970, 0.75
    %v8650 = vmul.f32 %v8040, 0.75
    %v8651 = vmul.f32 %v8045, 0.75
    %v8652 = vmul.f32 %v8115, 0.75
    %v8653 = vmul.f32 %v8120, 0.75
    %v8654 = vmul.f32 %v8190, 0.75
    %v8655 = vmul.f32 %v8195, 0.75
    %v8656 = vmul.f32 %v8265, 0.75
    %v8657 = vmul.f32 %v8270, 0.75
    %v8658 = vmul.f32 %v8340, 0.75
    %v8659 = vmul.f32 %v8345, 0.75
    %v8660 = vmul.f32 %v8415, 0.75
    %v8661 = vmul.f32 %v8420, 0.75
    %v8662 = vmul.f32 %v8490, 0.75
    %v8663 = vmul.f32 %v8495, 0.75
    %v8664 = vmul.f32 %v8565, 0.75
    %v8665 = vmul.f32 %v8570, 0.75
    %v8666 = vmul.f32 %v8640, 0.75
    %v8667 = vmul.f32 %v8645, 0.75
    %v8668 = vmul.f32 %v7965, 0.25
    %v8669 = vmul.f32 %v7970, 0.25
    %v8670 = vmul.f32 %v8040, 0.25
    %v8671 = vmul.f32 %v8045, 0.25
    %v8672 = vmul.f32 %v8115, 0.25
    %v8673 = vmul.f32 %v8120, 0.25
    %v8674 = vmul.f32 %v8190, 0.25
    %v8675 = vmul.f32 %v8195, 0.25
    %v8676 = vmul.f32 %v8265, 0.25
    %v8677 = vmul.f32 %v8270, 0.25
    %v8678 = vmul.f32 %v8340, 0.25
    %v8679 = vmul.f32 %v8345, 0.25
    %v8680 = vmul.f32 %v8415, 0.25
    %v8681 = vmul.f32 %v8420, 0.25
    %v8682 = vmul.f32 %v8490, 0.25
    %v8683 = vmul.f32 %v8495, 0.25
    %v8684 = vmul.f32 %v8565, 0.25
    %v8685 = vmul.f32 %v8570, 0.25
    %v8686 = vadd.f32 %v8648, %v8668
    %v8687 = vadd.f32 %v8649, %v8669
    %v8688 = vadd.f32 %v8650, %v8668
    %v8689 = vadd.f32 %v8651, %v8669
    %v8690 = vadd.f32 %v8652, %v8670
    %v8691 = vadd.f32 %v8653, %v8671
    %v8692 = vadd.f32 %v8654, %v8672
    %v8693 = vadd.f32 %v8655, %v8673
    %v8694 = vadd.f32 %v8656, %v8674
    %v8695 = vadd.f32 %v8657, %v8675
    %v8696 = vadd.f32 %v8658, %v8676
    %v8697 = vadd.f32 %v8659, %v8677
    %v8698 = vadd.f32 %v8660, %v8678
    %v8699 = vadd.f32 %v8661, %v8679
    %v8700 = vadd.f32 %v8662, %v8680
    %v8701 = vadd.f32 %v8663, %v8681
    %v8702 = vadd.f32 %v8664, %v8682
    %v8703 = vadd.f32 %v8665, %v8683
    %v8704 = vadd.f32 %v8666, %v8684
    %v8705 = vadd.f32 %v8667, %v8685
    %v8706 = vmul.f32 %v8640, 0.25
    %v8707 = vmul.f32 %v8645, 0.25
    %v8708 = vadd.f32 %v8648, %v8670
    %v8709 = vadd.f32 %v8649, %v8671
    %v8710 = vadd.f32 %v8650, %v8672
    %v8711 = vadd.f32 %v8651, %v8673
    %v8712 = vadd.f32 %v8652, %v8674
    %v8713 = vadd.f32 %v8653, %v8675
    %v8714 = vadd.f32 %v8654, %v8676
    %v8715 = vadd.f32 %v8655, %v8677
    %v8716 = vadd.f32 %v8656, %v8678
    %v8717 = vadd.f32 %v8657, %v8679
    %v8718 = vadd.f32 %v8658, %v8680
    %v8719 = vadd.f32 %v8659, %v8681
    %v8720 = vadd.f32 %v8660, %v8682
    %v8721 = vadd.f32 %v8661, %v8683
    %v8722 = vadd.f32 %v8662, %v8684
    %v8723 = vadd.f32 %v8663, %v8685
    %v8724 = vadd.f32 %v8664, %v8706
    %v8725 = vadd.f32 %v8665, %v8707
    %v8726 = vadd.f32 %v8666, %v8706
    %v8727 = vadd.f32 %v8667, %v8707
    %s8728 = scalar_lea.vmem %s1, 80
    %v8729 = vld [vmem:[%s8728] sm:$0xff]
    %v8730 = vld [vmem:[%s8728 + $0x8] sm:$0xff]
    %s8731 = scalar_lea.vmem %s2, 80
    %v8732 = vld [vmem:[%s8731] sm:$0xff]
    %v8733 = vld [vmem:[%s8731 + $0x8] sm:$0xff]
    %8735 = vset.pattern.permute.xlu0 0
    %8736 = vperm.xlu0 %8735, %v8732
    %v8737 = vpop.permute.xlu0 %8736
    %8740 = vset.pattern.permute.xlu0 0
    %8741 = vperm.xlu0 %8740, %v8733
    %v8742 = vpop.permute.xlu0 %8741
    %v8745 = vsel %vm123, %v8729, 0
    %v8748 = vsel %vm123, %v8730, 0
    %8750 = vmatprep.subr.mxu0 0.0
    %8751 = vmatpush1.msra.mxu0 0.0
    %8752 = vmatprep.subr.mxu0 0.0
    %8753 = vmatpush1.msra.mxu0 0.0
    %8754 = vmatprep.subr.mxu0 0.0
    %8755 = vmatpush1.msra.mxu0 0.0
    %8756 = vmatprep.subr.mxu0 0.0
    %8757 = vmatpush1.msra.mxu0 0.0
    %8758 = vmatprep.subr.mxu0 0.0
    %8759 = vmatpush1.msra.mxu0 0.0
    %8760 = vmatprep.subr.mxu0 0.0
    %8761 = vmatpush1.msra.mxu0 0.0
    %8762 = vmatprep.subr.mxu0 0.0
    %8763 = vmatpush1.msra.mxu0 0.0
    %8764 = vmatprep.subr.mxu0 0.0
    %8765 = vmatpush1.msra.mxu0 0.0
    %8766 = vmatprep.subr.mxu0 0.0
    %8767 = vmatpush1.msra.mxu0 0.0
    %8768 = vmatprep.subr.mxu0 0.0
    %8769 = vmatpush1.msra.mxu0 0.0
    %8770 = vmatprep.subr.mxu0 0.0
    %8771 = vmatpush1.msra.mxu0 %v8709
    %8772 = vmatprep.subr.mxu0 0.0
    %8773 = vmatpush1.msra.mxu0 %v8708
    %8774 = vmatprep.subr.mxu0 0.0
    %8775 = vmatpush1.msra.mxu0 %v8687
    %8776 = vmatprep.subr.mxu0 0.0
    %8777 = vmatpush1.msra.mxu0 %v8686
    %8778 = vmatprep.subr.mxu0 0.0
    %8779 = vmatpush1.msra.mxu0 0.0
    %8780 = vmatprep.subr.mxu0 0.0
    %8781 = vmatpush1.msra.mxu0 0.0
    %8782 = vmatprep.subr.mxu0 0.0
    %8783 = vmatpush2.msra.mxu0 0.0
    %8784 = vmatprep.subr.mxu0 0.0
    %8785 = vmatpush2.msra.mxu0 0.0
    %8786 = vmatprep.subr.mxu0 0.0
    %8787 = vmatpush2.msra.mxu0 0.0
    %8788 = vmatprep.subr.mxu0 0.0
    %8789 = vmatpush2.msra.mxu0 0.0
    %8790 = vmatprep.subr.mxu0 0.0
    %8791 = vmatpush2.msra.mxu0 0.0
    %8792 = vmatprep.subr.mxu0 0.0
    %8793 = vmatpush2.msra.mxu0 0.0
    %8794 = vmatprep.subr.mxu0 0.0
    %8795 = vmatpush2.msra.mxu0 0.0
    %8796 = vmatprep.subr.mxu0 0.0
    %8797 = vmatpush2.msra.mxu0 0.0
    %8798 = vmatprep.subr.mxu0 0.0
    %8799 = vmatpush2.msra.mxu0 0.0
    %8800 = vmatprep.subr.mxu0 0.0
    %8801 = vmatpush2.msra.mxu0 0.0
    %8802 = vmatprep.subr.mxu0 0.0
    %8803 = vmatpush2.msra.mxu0 0.0
    %8804 = vmatprep.subr.mxu0 0.0
    %8805 = vmatpush2.msra.mxu0 0.0
    %8806 = vmatprep.subr.mxu0 0.0
    %8807 = vmatpush2.msra.mxu0 0.0
    %8808 = vmatprep.subr.mxu0 0.0
    %8809 = vmatpush2.msra.mxu0 0.0
    %8810 = vmatprep.subr.mxu0 0.0
    %8811 = vmatpush2.msra.mxu0 0.0
    %8812 = vmatprep.subr.mxu0 0.0
    %8813 = vmatpush2.msra.mxu0 0.0
    %8814 = vmatprep.mubr.f32.mxu0 0.0
    %8815 = vmatmul.mubr.f32.gmra.mxu0 %v8745
    %v8816 = vpop.f32.mrf.mxu0
    %v8817 = vadd.f32 %v8737, %v8816
    %v8818 = vpop.f32.mrf.mxu0
    %8819 = vmatprep.mubr.f32.mxu0 0.0
    %8820 = vmatmul.mubr.f32.gmra.mxu0 %v8748
    %v8821 = vpop.f32.mrf.mxu0
    %v8822 = vadd.f32 %v8742, %v8821
    %v8823 = vpop.f32.mrf.mxu0
    %8824 = vdwg.mxu0
    %8825 = vmatprep.subr.mxu0 0.0
    %8826 = vmatpush1.msra.mxu0 0.0
    %8827 = vmatprep.subr.mxu0 0.0
    %8828 = vmatpush1.msra.mxu0 0.0
    %8829 = vmatprep.subr.mxu0 0.0
    %8830 = vmatpush1.msra.mxu0 0.0
    %8831 = vmatprep.subr.mxu0 0.0
    %8832 = vmatpush1.msra.mxu0 0.0
    %8833 = vmatprep.subr.mxu0 0.0
    %8834 = vmatpush1.msra.mxu0 0.0
    %8835 = vmatprep.subr.mxu0 0.0
    %8836 = vmatpush1.msra.mxu0 0.0
    %8837 = vmatprep.subr.mxu0 0.0
    %8838 = vmatpush1.msra.mxu0 0.0
    %8839 = vmatprep.subr.mxu0 0.0
    %8840 = vmatpush1.msra.mxu0 0.0
    %8841 = vmatprep.subr.mxu0 0.0
    %8842 = vmatpush1.msra.mxu0 0.0
    %8843 = vmatprep.subr.mxu0 0.0
    %8844 = vmatpush1.msra.mxu0 0.0
    %8845 = vmatprep.subr.mxu0 0.0
    %8846 = vmatpush1.msra.mxu0 %v8689
    %8847 = vmatprep.subr.mxu0 0.0
    %8848 = vmatpush1.msra.mxu0 %v8688
    %8849 = vmatprep.subr.mxu0 0.0
    %8850 = vmatpush1.msra.mxu0 %v8709
    %8851 = vmatprep.subr.mxu0 0.0
    %8852 = vmatpush1.msra.mxu0 %v8708
    %8853 = vmatprep.subr.mxu0 0.0
    %8854 = vmatpush1.msra.mxu0 %v8687
    %8855 = vmatprep.subr.mxu0 0.0
    %8856 = vmatpush1.msra.mxu0 %v8686
    %8857 = vmatprep.subr.mxu0 0.0
    %8858 = vmatpush2.msra.mxu0 0.0
    %8859 = vmatprep.subr.mxu0 0.0
    %8860 = vmatpush2.msra.mxu0 0.0
    %8861 = vmatprep.subr.mxu0 0.0
    %8862 = vmatpush2.msra.mxu0 0.0
    %8863 = vmatprep.subr.mxu0 0.0
    %8864 = vmatpush2.msra.mxu0 0.0
    %8865 = vmatprep.subr.mxu0 0.0
    %8866 = vmatpush2.msra.mxu0 0.0
    %8867 = vmatprep.subr.mxu0 0.0
    %8868 = vmatpush2.msra.mxu0 0.0
    %8869 = vmatprep.subr.mxu0 0.0
    %8870 = vmatpush2.msra.mxu0 0.0
    %8871 = vmatprep.subr.mxu0 0.0
    %8872 = vmatpush2.msra.mxu0 0.0
    %8873 = vmatprep.subr.mxu0 0.0
    %8874 = vmatpush2.msra.mxu0 0.0
    %8875 = vmatprep.subr.mxu0 0.0
    %8876 = vmatpush2.msra.mxu0 0.0
    %8877 = vmatprep.subr.mxu0 0.0
    %8878 = vmatpush2.msra.mxu0 0.0
    %8879 = vmatprep.subr.mxu0 0.0
    %8880 = vmatpush2.msra.mxu0 0.0
    %8881 = vmatprep.subr.mxu0 0.0
    %8882 = vmatpush2.msra.mxu0 0.0
    %8883 = vmatprep.subr.mxu0 0.0
    %8884 = vmatpush2.msra.mxu0 0.0
    %8885 = vmatprep.subr.mxu0 0.0
    %8886 = vmatpush2.msra.mxu0 0.0
    %8887 = vmatprep.subr.mxu0 0.0
    %8888 = vmatpush2.msra.mxu0 0.0
    %8889 = vmatprep.mubr.f32.mxu0 0.0
    %8890 = vmatmul.mubr.f32.gmra.mxu0 %v8745
    %v8891 = vpop.f32.mrf.mxu0
    %v8892 = vadd.f32 %v8737, %v8891
    %v8893 = vpop.f32.mrf.mxu0
    %8894 = vmatprep.mubr.f32.mxu0 0.0
    %8895 = vmatmul.mubr.f32.gmra.mxu0 %v8748
    %v8896 = vpop.f32.mrf.mxu0
    %v8897 = vadd.f32 %v8742, %v8896
    %v8898 = vpop.f32.mrf.mxu0
    %8899 = vdwg.mxu0
    %8900 = vmatprep.subr.mxu0 0.0
    %8901 = vmatpush1.msra.mxu0 0.0
    %8902 = vmatprep.subr.mxu0 0.0
    %8903 = vmatpush1.msra.mxu0 0.0
    %8904 = vmatprep.subr.mxu0 0.0
    %8905 = vmatpush1.msra.mxu0 0.0
    %8906 = vmatprep.subr.mxu0 0.0
    %8907 = vmatpush1.msra.mxu0 0.0
    %8908 = vmatprep.subr.mxu0 0.0
    %8909 = vmatpush1.msra.mxu0 0.0
    %8910 = vmatprep.subr.mxu0 0.0
    %8911 = vmatpush1.msra.mxu0 0.0
    %8912 = vmatprep.subr.mxu0 0.0
    %8913 = vmatpush1.msra.mxu0 0.0
    %8914 = vmatprep.subr.mxu0 0.0
    %8915 = vmatpush1.msra.mxu0 0.0
    %8916 = vmatprep.subr.mxu0 0.0
    %8917 = vmatpush1.msra.mxu0 0.0
    %8918 = vmatprep.subr.mxu0 0.0
    %8919 = vmatpush1.msra.mxu0 0.0
    %8920 = vmatprep.subr.mxu0 0.0
    %8921 = vmatpush1.msra.mxu0 %v8711
    %8922 = vmatprep.subr.mxu0 0.0
    %8923 = vmatpush1.msra.mxu0 %v8710
    %8924 = vmatprep.subr.mxu0 0.0
    %8925 = vmatpush1.msra.mxu0 %v8689
    %8926 = vmatprep.subr.mxu0 0.0
    %8927 = vmatpush1.msra.mxu0 %v8688
    %8928 = vmatprep.subr.mxu0 0.0
    %8929 = vmatpush1.msra.mxu0 %v8709
    %8930 = vmatprep.subr.mxu0 0.0
    %8931 = vmatpush1.msra.mxu0 %v8708
    %8932 = vmatprep.subr.mxu0 0.0
    %8933 = vmatpush2.msra.mxu0 0.0
    %8934 = vmatprep.subr.mxu0 0.0
    %8935 = vmatpush2.msra.mxu0 0.0
    %8936 = vmatprep.subr.mxu0 0.0
    %8937 = vmatpush2.msra.mxu0 0.0
    %8938 = vmatprep.subr.mxu0 0.0
    %8939 = vmatpush2.msra.mxu0 0.0
    %8940 = vmatprep.subr.mxu0 0.0
    %8941 = vmatpush2.msra.mxu0 0.0
    %8942 = vmatprep.subr.mxu0 0.0
    %8943 = vmatpush2.msra.mxu0 0.0
    %8944 = vmatprep.subr.mxu0 0.0
    %8945 = vmatpush2.msra.mxu0 0.0
    %8946 = vmatprep.subr.mxu0 0.0
    %8947 = vmatpush2.msra.mxu0 0.0
    %8948 = vmatprep.subr.mxu0 0.0
    %8949 = vmatpush2.msra.mxu0 0.0
    %8950 = vmatprep.subr.mxu0 0.0
    %8951 = vmatpush2.msra.mxu0 0.0
    %8952 = vmatprep.subr.mxu0 0.0
    %8953 = vmatpush2.msra.mxu0 0.0
    %8954 = vmatprep.subr.mxu0 0.0
    %8955 = vmatpush2.msra.mxu0 0.0
    %8956 = vmatprep.subr.mxu0 0.0
    %8957 = vmatpush2.msra.mxu0 0.0
    %8958 = vmatprep.subr.mxu0 0.0
    %8959 = vmatpush2.msra.mxu0 0.0
    %8960 = vmatprep.subr.mxu0 0.0
    %8961 = vmatpush2.msra.mxu0 0.0
    %8962 = vmatprep.subr.mxu0 0.0
    %8963 = vmatpush2.msra.mxu0 0.0
    %8964 = vmatprep.mubr.f32.mxu0 0.0
    %8965 = vmatmul.mubr.f32.gmra.mxu0 %v8745
    %v8966 = vpop.f32.mrf.mxu0
    %v8967 = vadd.f32 %v8737, %v8966
    %v8968 = vpop.f32.mrf.mxu0
    %8969 = vmatprep.mubr.f32.mxu0 0.0
    %8970 = vmatmul.mubr.f32.gmra.mxu0 %v8748
    %v8971 = vpop.f32.mrf.mxu0
    %v8972 = vadd.f32 %v8742, %v8971
    %v8973 = vpop.f32.mrf.mxu0
    %8974 = vdwg.mxu0
    %8975 = vmatprep.subr.mxu0 0.0
    %8976 = vmatpush1.msra.mxu0 0.0
    %8977 = vmatprep.subr.mxu0 0.0
    %8978 = vmatpush1.msra.mxu0 0.0
    %8979 = vmatprep.subr.mxu0 0.0
    %8980 = vmatpush1.msra.mxu0 0.0
    %8981 = vmatprep.subr.mxu0 0.0
    %8982 = vmatpush1.msra.mxu0 0.0
    %8983 = vmatprep.subr.mxu0 0.0
    %8984 = vmatpush1.msra.mxu0 0.0
    %8985 = vmatprep.subr.mxu0 0.0
    %8986 = vmatpush1.msra.mxu0 0.0
    %8987 = vmatprep.subr.mxu0 0.0
    %8988 = vmatpush1.msra.mxu0 0.0
    %8989 = vmatprep.subr.mxu0 0.0
    %8990 = vmatpush1.msra.mxu0 0.0
    %8991 = vmatprep.subr.mxu0 0.0
    %8992 = vmatpush1.msra.mxu0 0.0
    %8993 = vmatprep.subr.mxu0 0.0
    %8994 = vmatpush1.msra.mxu0 0.0
    %8995 = vmatprep.subr.mxu0 0.0
    %8996 = vmatpush1.msra.mxu0 %v8691
    %8997 = vmatprep.subr.mxu0 0.0
    %8998 = vmatpush1.msra.mxu0 %v8690
    %8999 = vmatprep.subr.mxu0 0.0
    %9000 = vmatpush1.msra.mxu0 %v8711
    %9001 = vmatprep.subr.mxu0 0.0
    %9002 = vmatpush1.msra.mxu0 %v8710
    %9003 = vmatprep.subr.mxu0 0.0
    %9004 = vmatpush1.msra.mxu0 %v8689
    %9005 = vmatprep.subr.mxu0 0.0
    %9006 = vmatpush1.msra.mxu0 %v8688
    %9007 = vmatprep.subr.mxu0 0.0
    %9008 = vmatpush2.msra.mxu0 0.0
    %9009 = vmatprep.subr.mxu0 0.0
    %9010 = vmatpush2.msra.mxu0 0.0
    %9011 = vmatprep.subr.mxu0 0.0
    %9012 = vmatpush2.msra.mxu0 0.0
    %9013 = vmatprep.subr.mxu0 0.0
    %9014 = vmatpush2.msra.mxu0 0.0
    %9015 = vmatprep.subr.mxu0 0.0
    %9016 = vmatpush2.msra.mxu0 0.0
    %9017 = vmatprep.subr.mxu0 0.0
    %9018 = vmatpush2.msra.mxu0 0.0
    %9019 = vmatprep.subr.mxu0 0.0
    %9020 = vmatpush2.msra.mxu0 0.0
    %9021 = vmatprep.subr.mxu0 0.0
    %9022 = vmatpush2.msra.mxu0 0.0
    %9023 = vmatprep.subr.mxu0 0.0
    %9024 = vmatpush2.msra.mxu0 0.0
    %9025 = vmatprep.subr.mxu0 0.0
    %9026 = vmatpush2.msra.mxu0 0.0
    %9027 = vmatprep.subr.mxu0 0.0
    %9028 = vmatpush2.msra.mxu0 0.0
    %9029 = vmatprep.subr.mxu0 0.0
    %9030 = vmatpush2.msra.mxu0 0.0
    %9031 = vmatprep.subr.mxu0 0.0
    %9032 = vmatpush2.msra.mxu0 0.0
    %9033 = vmatprep.subr.mxu0 0.0
    %9034 = vmatpush2.msra.mxu0 0.0
    %9035 = vmatprep.subr.mxu0 0.0
    %9036 = vmatpush2.msra.mxu0 0.0
    %9037 = vmatprep.subr.mxu0 0.0
    %9038 = vmatpush2.msra.mxu0 0.0
    %9039 = vmatprep.mubr.f32.mxu0 0.0
    %9040 = vmatmul.mubr.f32.gmra.mxu0 %v8745
    %v9041 = vpop.f32.mrf.mxu0
    %v9042 = vadd.f32 %v8737, %v9041
    %v9043 = vpop.f32.mrf.mxu0
    %9044 = vmatprep.mubr.f32.mxu0 0.0
    %9045 = vmatmul.mubr.f32.gmra.mxu0 %v8748
    %v9046 = vpop.f32.mrf.mxu0
    %v9047 = vadd.f32 %v8742, %v9046
    %v9048 = vpop.f32.mrf.mxu0
    %9049 = vdwg.mxu0
    %9050 = vmatprep.subr.mxu0 0.0
    %9051 = vmatpush1.msra.mxu0 0.0
    %9052 = vmatprep.subr.mxu0 0.0
    %9053 = vmatpush1.msra.mxu0 0.0
    %9054 = vmatprep.subr.mxu0 0.0
    %9055 = vmatpush1.msra.mxu0 0.0
    %9056 = vmatprep.subr.mxu0 0.0
    %9057 = vmatpush1.msra.mxu0 0.0
    %9058 = vmatprep.subr.mxu0 0.0
    %9059 = vmatpush1.msra.mxu0 0.0
    %9060 = vmatprep.subr.mxu0 0.0
    %9061 = vmatpush1.msra.mxu0 0.0
    %9062 = vmatprep.subr.mxu0 0.0
    %9063 = vmatpush1.msra.mxu0 0.0
    %9064 = vmatprep.subr.mxu0 0.0
    %9065 = vmatpush1.msra.mxu0 0.0
    %9066 = vmatprep.subr.mxu0 0.0
    %9067 = vmatpush1.msra.mxu0 0.0
    %9068 = vmatprep.subr.mxu0 0.0
    %9069 = vmatpush1.msra.mxu0 0.0
    %9070 = vmatprep.subr.mxu0 0.0
    %9071 = vmatpush1.msra.mxu0 %v8713
    %9072 = vmatprep.subr.mxu0 0.0
    %9073 = vmatpush1.msra.mxu0 %v8712
    %9074 = vmatprep.subr.mxu0 0.0
    %9075 = vmatpush1.msra.mxu0 %v8691
    %9076 = vmatprep.subr.mxu0 0.0
    %9077 = vmatpush1.msra.mxu0 %v8690
    %9078 = vmatprep.subr.mxu0 0.0
    %9079 = vmatpush1.msra.mxu0 %v8711
    %9080 = vmatprep.subr.mxu0 0.0
    %9081 = vmatpush1.msra.mxu0 %v8710
    %9082 = vmatprep.subr.mxu0 0.0
    %9083 = vmatpush2.msra.mxu0 0.0
    %9084 = vmatprep.subr.mxu0 0.0
    %9085 = vmatpush2.msra.mxu0 0.0
    %9086 = vmatprep.subr.mxu0 0.0
    %9087 = vmatpush2.msra.mxu0 0.0
    %9088 = vmatprep.subr.mxu0 0.0
    %9089 = vmatpush2.msra.mxu0 0.0
    %9090 = vmatprep.subr.mxu0 0.0
    %9091 = vmatpush2.msra.mxu0 0.0
    %9092 = vmatprep.subr.mxu0 0.0
    %9093 = vmatpush2.msra.mxu0 0.0
    %9094 = vmatprep.subr.mxu0 0.0
    %9095 = vmatpush2.msra.mxu0 0.0
    %9096 = vmatprep.subr.mxu0 0.0
    %9097 = vmatpush2.msra.mxu0 0.0
    %9098 = vmatprep.subr.mxu0 0.0
    %9099 = vmatpush2.msra.mxu0 0.0
    %9100 = vmatprep.subr.mxu0 0.0
    %9101 = vmatpush2.msra.mxu0 0.0
    %9102 = vmatprep.subr.mxu0 0.0
    %9103 = vmatpush2.msra.mxu0 0.0
    %9104 = vmatprep.subr.mxu0 0.0
    %9105 = vmatpush2.msra.mxu0 0.0
    %9106 = vmatprep.subr.mxu0 0.0
    %9107 = vmatpush2.msra.mxu0 0.0
    %9108 = vmatprep.subr.mxu0 0.0
    %9109 = vmatpush2.msra.mxu0 0.0
    %9110 = vmatprep.subr.mxu0 0.0
    %9111 = vmatpush2.msra.mxu0 0.0
    %9112 = vmatprep.subr.mxu0 0.0
    %9113 = vmatpush2.msra.mxu0 0.0
    %9114 = vmatprep.mubr.f32.mxu0 0.0
    %9115 = vmatmul.mubr.f32.gmra.mxu0 %v8745
    %v9116 = vpop.f32.mrf.mxu0
    %v9117 = vadd.f32 %v8737, %v9116
    %v9118 = vpop.f32.mrf.mxu0
    %9119 = vmatprep.mubr.f32.mxu0 0.0
    %9120 = vmatmul.mubr.f32.gmra.mxu0 %v8748
    %v9121 = vpop.f32.mrf.mxu0
    %v9122 = vadd.f32 %v8742, %v9121
    %v9123 = vpop.f32.mrf.mxu0
    %9124 = vdwg.mxu0
    %9125 = vmatprep.subr.mxu0 0.0
    %9126 = vmatpush1.msra.mxu0 0.0
    %9127 = vmatprep.subr.mxu0 0.0
    %9128 = vmatpush1.msra.mxu0 0.0
    %9129 = vmatprep.subr.mxu0 0.0
    %9130 = vmatpush1.msra.mxu0 0.0
    %9131 = vmatprep.subr.mxu0 0.0
    %9132 = vmatpush1.msra.mxu0 0.0
    %9133 = vmatprep.subr.mxu0 0.0
    %9134 = vmatpush1.msra.mxu0 0.0
    %9135 = vmatprep.subr.mxu0 0.0
    %9136 = vmatpush1.msra.mxu0 0.0
    %9137 = vmatprep.subr.mxu0 0.0
    %9138 = vmatpush1.msra.mxu0 0.0
    %9139 = vmatprep.subr.mxu0 0.0
    %9140 = vmatpush1.msra.mxu0 0.0
    %9141 = vmatprep.subr.mxu0 0.0
    %9142 = vmatpush1.msra.mxu0 0.0
    %9143 = vmatprep.subr.mxu0 0.0
    %9144 = vmatpush1.msra.mxu0 0.0
    %9145 = vmatprep.subr.mxu0 0.0
    %9146 = vmatpush1.msra.mxu0 %v8693
    %9147 = vmatprep.subr.mxu0 0.0
    %9148 = vmatpush1.msra.mxu0 %v8692
    %9149 = vmatprep.subr.mxu0 0.0
    %9150 = vmatpush1.msra.mxu0 %v8713
    %9151 = vmatprep.subr.mxu0 0.0
    %9152 = vmatpush1.msra.mxu0 %v8712
    %9153 = vmatprep.subr.mxu0 0.0
    %9154 = vmatpush1.msra.mxu0 %v8691
    %9155 = vmatprep.subr.mxu0 0.0
    %9156 = vmatpush1.msra.mxu0 %v8690
    %9157 = vmatprep.subr.mxu0 0.0
    %9158 = vmatpush2.msra.mxu0 0.0
    %9159 = vmatprep.subr.mxu0 0.0
    %9160 = vmatpush2.msra.mxu0 0.0
    %9161 = vmatprep.subr.mxu0 0.0
    %9162 = vmatpush2.msra.mxu0 0.0
    %9163 = vmatprep.subr.mxu0 0.0
    %9164 = vmatpush2.msra.mxu0 0.0
    %9165 = vmatprep.subr.mxu0 0.0
    %9166 = vmatpush2.msra.mxu0 0.0
    %9167 = vmatprep.subr.mxu0 0.0
    %9168 = vmatpush2.msra.mxu0 0.0
    %9169 = vmatprep.subr.mxu0 0.0
    %9170 = vmatpush2.msra.mxu0 0.0
    %9171 = vmatprep.subr.mxu0 0.0
    %9172 = vmatpush2.msra.mxu0 0.0
    %9173 = vmatprep.subr.mxu0 0.0
    %9174 = vmatpush2.msra.mxu0 0.0
    %9175 = vmatprep.subr.mxu0 0.0
    %9176 = vmatpush2.msra.mxu0 0.0
    %9177 = vmatprep.subr.mxu0 0.0
    %9178 = vmatpush2.msra.mxu0 0.0
    %9179 = vmatprep.subr.mxu0 0.0
    %9180 = vmatpush2.msra.mxu0 0.0
    %9181 = vmatprep.subr.mxu0 0.0
    %9182 = vmatpush2.msra.mxu0 0.0
    %9183 = vmatprep.subr.mxu0 0.0
    %9184 = vmatpush2.msra.mxu0 0.0
    %9185 = vmatprep.subr.mxu0 0.0
    %9186 = vmatpush2.msra.mxu0 0.0
    %9187 = vmatprep.subr.mxu0 0.0
    %9188 = vmatpush2.msra.mxu0 0.0
    %9189 = vmatprep.mubr.f32.mxu0 0.0
    %9190 = vmatmul.mubr.f32.gmra.mxu0 %v8745
    %v9191 = vpop.f32.mrf.mxu0
    %v9192 = vadd.f32 %v8737, %v9191
    %v9193 = vpop.f32.mrf.mxu0
    %9194 = vmatprep.mubr.f32.mxu0 0.0
    %9195 = vmatmul.mubr.f32.gmra.mxu0 %v8748
    %v9196 = vpop.f32.mrf.mxu0
    %v9197 = vadd.f32 %v8742, %v9196
    %v9198 = vpop.f32.mrf.mxu0
    %9199 = vdwg.mxu0
    %9200 = vmatprep.subr.mxu0 0.0
    %9201 = vmatpush1.msra.mxu0 0.0
    %9202 = vmatprep.subr.mxu0 0.0
    %9203 = vmatpush1.msra.mxu0 0.0
    %9204 = vmatprep.subr.mxu0 0.0
    %9205 = vmatpush1.msra.mxu0 0.0
    %9206 = vmatprep.subr.mxu0 0.0
    %9207 = vmatpush1.msra.mxu0 0.0
    %9208 = vmatprep.subr.mxu0 0.0
    %9209 = vmatpush1.msra.mxu0 0.0
    %9210 = vmatprep.subr.mxu0 0.0
    %9211 = vmatpush1.msra.mxu0 0.0
    %9212 = vmatprep.subr.mxu0 0.0
    %9213 = vmatpush1.msra.mxu0 0.0
    %9214 = vmatprep.subr.mxu0 0.0
    %9215 = vmatpush1.msra.mxu0 0.0
    %9216 = vmatprep.subr.mxu0 0.0
    %9217 = vmatpush1.msra.mxu0 0.0
    %9218 = vmatprep.subr.mxu0 0.0
    %9219 = vmatpush1.msra.mxu0 0.0
    %9220 = vmatprep.subr.mxu0 0.0
    %9221 = vmatpush1.msra.mxu0 %v8715
    %9222 = vmatprep.subr.mxu0 0.0
    %9223 = vmatpush1.msra.mxu0 %v8714
    %9224 = vmatprep.subr.mxu0 0.0
    %9225 = vmatpush1.msra.mxu0 %v8693
    %9226 = vmatprep.subr.mxu0 0.0
    %9227 = vmatpush1.msra.mxu0 %v8692
    %9228 = vmatprep.subr.mxu0 0.0
    %9229 = vmatpush1.msra.mxu0 %v8713
    %9230 = vmatprep.subr.mxu0 0.0
    %9231 = vmatpush1.msra.mxu0 %v8712
    %9232 = vmatprep.subr.mxu0 0.0
    %9233 = vmatpush2.msra.mxu0 0.0
    %9234 = vmatprep.subr.mxu0 0.0
    %9235 = vmatpush2.msra.mxu0 0.0
    %9236 = vmatprep.subr.mxu0 0.0
    %9237 = vmatpush2.msra.mxu0 0.0
    %9238 = vmatprep.subr.mxu0 0.0
    %9239 = vmatpush2.msra.mxu0 0.0
    %9240 = vmatprep.subr.mxu0 0.0
    %9241 = vmatpush2.msra.mxu0 0.0
    %9242 = vmatprep.subr.mxu0 0.0
    %9243 = vmatpush2.msra.mxu0 0.0
    %9244 = vmatprep.subr.mxu0 0.0
    %9245 = vmatpush2.msra.mxu0 0.0
    %9246 = vmatprep.subr.mxu0 0.0
    %9247 = vmatpush2.msra.mxu0 0.0
    %9248 = vmatprep.subr.mxu0 0.0
    %9249 = vmatpush2.msra.mxu0 0.0
    %9250 = vmatprep.subr.mxu0 0.0
    %9251 = vmatpush2.msra.mxu0 0.0
    %9252 = vmatprep.subr.mxu0 0.0
    %9253 = vmatpush2.msra.mxu0 0.0
    %9254 = vmatprep.subr.mxu0 0.0
    %9255 = vmatpush2.msra.mxu0 0.0
    %9256 = vmatprep.subr.mxu0 0.0
    %9257 = vmatpush2.msra.mxu0 0.0
    %9258 = vmatprep.subr.mxu0 0.0
    %9259 = vmatpush2.msra.mxu0 0.0
    %9260 = vmatprep.subr.mxu0 0.0
    %9261 = vmatpush2.msra.mxu0 0.0
    %9262 = vmatprep.subr.mxu0 0.0
    %9263 = vmatpush2.msra.mxu0 0.0
    %9264 = vmatprep.mubr.f32.mxu0 0.0
    %9265 = vmatmul.mubr.f32.gmra.mxu0 %v8745
    %v9266 = vpop.f32.mrf.mxu0
    %v9267 = vadd.f32 %v8737, %v9266
    %v9268 = vpop.f32.mrf.mxu0
    %9269 = vmatprep.mubr.f32.mxu0 0.0
    %9270 = vmatmul.mubr.f32.gmra.mxu0 %v8748
    %v9271 = vpop.f32.mrf.mxu0
    %v9272 = vadd.f32 %v8742, %v9271
    %v9273 = vpop.f32.mrf.mxu0
    %9274 = vdwg.mxu0
    %9275 = vmatprep.subr.mxu0 0.0
    %9276 = vmatpush1.msra.mxu0 0.0
    %9277 = vmatprep.subr.mxu0 0.0
    %9278 = vmatpush1.msra.mxu0 0.0
    %9279 = vmatprep.subr.mxu0 0.0
    %9280 = vmatpush1.msra.mxu0 0.0
    %9281 = vmatprep.subr.mxu0 0.0
    %9282 = vmatpush1.msra.mxu0 0.0
    %9283 = vmatprep.subr.mxu0 0.0
    %9284 = vmatpush1.msra.mxu0 0.0
    %9285 = vmatprep.subr.mxu0 0.0
    %9286 = vmatpush1.msra.mxu0 0.0
    %9287 = vmatprep.subr.mxu0 0.0
    %9288 = vmatpush1.msra.mxu0 0.0
    %9289 = vmatprep.subr.mxu0 0.0
    %9290 = vmatpush1.msra.mxu0 0.0
    %9291 = vmatprep.subr.mxu0 0.0
    %9292 = vmatpush1.msra.mxu0 0.0
    %9293 = vmatprep.subr.mxu0 0.0
    %9294 = vmatpush1.msra.mxu0 0.0
    %9295 = vmatprep.subr.mxu0 0.0
    %9296 = vmatpush1.msra.mxu0 %v8695
    %9297 = vmatprep.subr.mxu0 0.0
    %9298 = vmatpush1.msra.mxu0 %v8694
    %9299 = vmatprep.subr.mxu0 0.0
    %9300 = vmatpush1.msra.mxu0 %v8715
    %9301 = vmatprep.subr.mxu0 0.0
    %9302 = vmatpush1.msra.mxu0 %v8714
    %9303 = vmatprep.subr.mxu0 0.0
    %9304 = vmatpush1.msra.mxu0 %v8693
    %9305 = vmatprep.subr.mxu0 0.0
    %9306 = vmatpush1.msra.mxu0 %v8692
    %9307 = vmatprep.subr.mxu0 0.0
    %9308 = vmatpush2.msra.mxu0 0.0
    %9309 = vmatprep.subr.mxu0 0.0
    %9310 = vmatpush2.msra.mxu0 0.0
    %9311 = vmatprep.subr.mxu0 0.0
    %9312 = vmatpush2.msra.mxu0 0.0
    %9313 = vmatprep.subr.mxu0 0.0
    %9314 = vmatpush2.msra.mxu0 0.0
    %9315 = vmatprep.subr.mxu0 0.0
    %9316 = vmatpush2.msra.mxu0 0.0
    %9317 = vmatprep.subr.mxu0 0.0
    %9318 = vmatpush2.msra.mxu0 0.0
    %9319 = vmatprep.subr.mxu0 0.0
    %9320 = vmatpush2.msra.mxu0 0.0
    %9321 = vmatprep.subr.mxu0 0.0
    %9322 = vmatpush2.msra.mxu0 0.0
    %9323 = vmatprep.subr.mxu0 0.0
    %9324 = vmatpush2.msra.mxu0 0.0
    %9325 = vmatprep.subr.mxu0 0.0
    %9326 = vmatpush2.msra.mxu0 0.0
    %9327 = vmatprep.subr.mxu0 0.0
    %9328 = vmatpush2.msra.mxu0 0.0
    %9329 = vmatprep.subr.mxu0 0.0
    %9330 = vmatpush2.msra.mxu0 0.0
    %9331 = vmatprep.subr.mxu0 0.0
    %9332 = vmatpush2.msra.mxu0 0.0
    %9333 = vmatprep.subr.mxu0 0.0
    %9334 = vmatpush2.msra.mxu0 0.0
    %9335 = vmatprep.subr.mxu0 0.0
    %9336 = vmatpush2.msra.mxu0 0.0
    %9337 = vmatprep.subr.mxu0 0.0
    %9338 = vmatpush2.msra.mxu0 0.0
    %9339 = vmatprep.mubr.f32.mxu0 0.0
    %9340 = vmatmul.mubr.f32.gmra.mxu0 %v8745
    %v9341 = vpop.f32.mrf.mxu0
    %v9342 = vadd.f32 %v8737, %v9341
    %v9343 = vpop.f32.mrf.mxu0
    %9344 = vmatprep.mubr.f32.mxu0 0.0
    %9345 = vmatmul.mubr.f32.gmra.mxu0 %v8748
    %v9346 = vpop.f32.mrf.mxu0
    %v9347 = vadd.f32 %v8742, %v9346
    %v9348 = vpop.f32.mrf.mxu0
    %9349 = vdwg.mxu0
    %9350 = vmatprep.subr.mxu0 0.0
    %9351 = vmatpush1.msra.mxu0 0.0
    %9352 = vmatprep.subr.mxu0 0.0
    %9353 = vmatpush1.msra.mxu0 0.0
    %9354 = vmatprep.subr.mxu0 0.0
    %9355 = vmatpush1.msra.mxu0 0.0
    %9356 = vmatprep.subr.mxu0 0.0
    %9357 = vmatpush1.msra.mxu0 0.0
    %9358 = vmatprep.subr.mxu0 0.0
    %9359 = vmatpush1.msra.mxu0 0.0
    %9360 = vmatprep.subr.mxu0 0.0
    %9361 = vmatpush1.msra.mxu0 0.0
    %9362 = vmatprep.subr.mxu0 0.0
    %9363 = vmatpush1.msra.mxu0 0.0
    %9364 = vmatprep.subr.mxu0 0.0
    %9365 = vmatpush1.msra.mxu0 0.0
    %9366 = vmatprep.subr.mxu0 0.0
    %9367 = vmatpush1.msra.mxu0 0.0
    %9368 = vmatprep.subr.mxu0 0.0
    %9369 = vmatpush1.msra.mxu0 0.0
    %9370 = vmatprep.subr.mxu0 0.0
    %9371 = vmatpush1.msra.mxu0 %v8717
    %9372 = vmatprep.subr.mxu0 0.0
    %9373 = vmatpush1.msra.mxu0 %v8716
    %9374 = vmatprep.subr.mxu0 0.0
    %9375 = vmatpush1.msra.mxu0 %v8695
    %9376 = vmatprep.subr.mxu0 0.0
    %9377 = vmatpush1.msra.mxu0 %v8694
    %9378 = vmatprep.subr.mxu0 0.0
    %9379 = vmatpush1.msra.mxu0 %v8715
    %9380 = vmatprep.subr.mxu0 0.0
    %9381 = vmatpush1.msra.mxu0 %v8714
    %9382 = vmatprep.subr.mxu0 0.0
    %9383 = vmatpush2.msra.mxu0 0.0
    %9384 = vmatprep.subr.mxu0 0.0
    %9385 = vmatpush2.msra.mxu0 0.0
    %9386 = vmatprep.subr.mxu0 0.0
    %9387 = vmatpush2.msra.mxu0 0.0
    %9388 = vmatprep.subr.mxu0 0.0
    %9389 = vmatpush2.msra.mxu0 0.0
    %9390 = vmatprep.subr.mxu0 0.0
    %9391 = vmatpush2.msra.mxu0 0.0
    %9392 = vmatprep.subr.mxu0 0.0
    %9393 = vmatpush2.msra.mxu0 0.0
    %9394 = vmatprep.subr.mxu0 0.0
    %9395 = vmatpush2.msra.mxu0 0.0
    %9396 = vmatprep.subr.mxu0 0.0
    %9397 = vmatpush2.msra.mxu0 0.0
    %9398 = vmatprep.subr.mxu0 0.0
    %9399 = vmatpush2.msra.mxu0 0.0
    %9400 = vmatprep.subr.mxu0 0.0
    %9401 = vmatpush2.msra.mxu0 0.0
    %9402 = vmatprep.subr.mxu0 0.0
    %9403 = vmatpush2.msra.mxu0 0.0
    %9404 = vmatprep.subr.mxu0 0.0
    %9405 = vmatpush2.msra.mxu0 0.0
    %9406 = vmatprep.subr.mxu0 0.0
    %9407 = vmatpush2.msra.mxu0 0.0
    %9408 = vmatprep.subr.mxu0 0.0
    %9409 = vmatpush2.msra.mxu0 0.0
    %9410 = vmatprep.subr.mxu0 0.0
    %9411 = vmatpush2.msra.mxu0 0.0
    %9412 = vmatprep.subr.mxu0 0.0
    %9413 = vmatpush2.msra.mxu0 0.0
    %9414 = vmatprep.mubr.f32.mxu0 0.0
    %9415 = vmatmul.mubr.f32.gmra.mxu0 %v8745
    %v9416 = vpop.f32.mrf.mxu0
    %v9417 = vadd.f32 %v8737, %v9416
    %v9418 = vpop.f32.mrf.mxu0
    %9419 = vmatprep.mubr.f32.mxu0 0.0
    %9420 = vmatmul.mubr.f32.gmra.mxu0 %v8748
    %v9421 = vpop.f32.mrf.mxu0
    %v9422 = vadd.f32 %v8742, %v9421
    %v9423 = vpop.f32.mrf.mxu0
    %9424 = vdwg.mxu0
    %9425 = vmatprep.subr.mxu0 0.0
    %9426 = vmatpush1.msra.mxu0 0.0
    %9427 = vmatprep.subr.mxu0 0.0
    %9428 = vmatpush1.msra.mxu0 0.0
    %9429 = vmatprep.subr.mxu0 0.0
    %9430 = vmatpush1.msra.mxu0 0.0
    %9431 = vmatprep.subr.mxu0 0.0
    %9432 = vmatpush1.msra.mxu0 0.0
    %9433 = vmatprep.subr.mxu0 0.0
    %9434 = vmatpush1.msra.mxu0 0.0
    %9435 = vmatprep.subr.mxu0 0.0
    %9436 = vmatpush1.msra.mxu0 0.0
    %9437 = vmatprep.subr.mxu0 0.0
    %9438 = vmatpush1.msra.mxu0 0.0
    %9439 = vmatprep.subr.mxu0 0.0
    %9440 = vmatpush1.msra.mxu0 0.0
    %9441 = vmatprep.subr.mxu0 0.0
    %9442 = vmatpush1.msra.mxu0 0.0
    %9443 = vmatprep.subr.mxu0 0.0
    %9444 = vmatpush1.msra.mxu0 0.0
    %9445 = vmatprep.subr.mxu0 0.0
    %9446 = vmatpush1.msra.mxu0 %v8697
    %9447 = vmatprep.subr.mxu0 0.0
    %9448 = vmatpush1.msra.mxu0 %v8696
    %9449 = vmatprep.subr.mxu0 0.0
    %9450 = vmatpush1.msra.mxu0 %v8717
    %9451 = vmatprep.subr.mxu0 0.0
    %9452 = vmatpush1.msra.mxu0 %v8716
    %9453 = vmatprep.subr.mxu0 0.0
    %9454 = vmatpush1.msra.mxu0 %v8695
    %9455 = vmatprep.subr.mxu0 0.0
    %9456 = vmatpush1.msra.mxu0 %v8694
    %9457 = vmatprep.subr.mxu0 0.0
    %9458 = vmatpush2.msra.mxu0 0.0
    %9459 = vmatprep.subr.mxu0 0.0
    %9460 = vmatpush2.msra.mxu0 0.0
    %9461 = vmatprep.subr.mxu0 0.0
    %9462 = vmatpush2.msra.mxu0 0.0
    %9463 = vmatprep.subr.mxu0 0.0
    %9464 = vmatpush2.msra.mxu0 0.0
    %9465 = vmatprep.subr.mxu0 0.0
    %9466 = vmatpush2.msra.mxu0 0.0
    %9467 = vmatprep.subr.mxu0 0.0
    %9468 = vmatpush2.msra.mxu0 0.0
    %9469 = vmatprep.subr.mxu0 0.0
    %9470 = vmatpush2.msra.mxu0 0.0
    %9471 = vmatprep.subr.mxu0 0.0
    %9472 = vmatpush2.msra.mxu0 0.0
    %9473 = vmatprep.subr.mxu0 0.0
    %9474 = vmatpush2.msra.mxu0 0.0
    %9475 = vmatprep.subr.mxu0 0.0
    %9476 = vmatpush2.msra.mxu0 0.0
    %9477 = vmatprep.subr.mxu0 0.0
    %9478 = vmatpush2.msra.mxu0 0.0
    %9479 = vmatprep.subr.mxu0 0.0
    %9480 = vmatpush2.msra.mxu0 0.0
    %9481 = vmatprep.subr.mxu0 0.0
    %9482 = vmatpush2.msra.mxu0 0.0
    %9483 = vmatprep.subr.mxu0 0.0
    %9484 = vmatpush2.msra.mxu0 0.0
    %9485 = vmatprep.subr.mxu0 0.0
    %9486 = vmatpush2.msra.mxu0 0.0
    %9487 = vmatprep.subr.mxu0 0.0
    %9488 = vmatpush2.msra.mxu0 0.0
    %9489 = vmatprep.mubr.f32.mxu0 0.0
    %9490 = vmatmul.mubr.f32.gmra.mxu0 %v8745
    %v9491 = vpop.f32.mrf.mxu0
    %v9492 = vadd.f32 %v8737, %v9491
    %v9493 = vpop.f32.mrf.mxu0
    %9494 = vmatprep.mubr.f32.mxu0 0.0
    %9495 = vmatmul.mubr.f32.gmra.mxu0 %v8748
    %v9496 = vpop.f32.mrf.mxu0
    %v9497 = vadd.f32 %v8742, %v9496
    %v9498 = vpop.f32.mrf.mxu0
    %9499 = vdwg.mxu0
    %9500 = vmatprep.subr.mxu0 0.0
    %9501 = vmatpush1.msra.mxu0 0.0
    %9502 = vmatprep.subr.mxu0 0.0
    %9503 = vmatpush1.msra.mxu0 0.0
    %9504 = vmatprep.subr.mxu0 0.0
    %9505 = vmatpush1.msra.mxu0 0.0
    %9506 = vmatprep.subr.mxu0 0.0
    %9507 = vmatpush1.msra.mxu0 0.0
    %9508 = vmatprep.subr.mxu0 0.0
    %9509 = vmatpush1.msra.mxu0 0.0
    %9510 = vmatprep.subr.mxu0 0.0
    %9511 = vmatpush1.msra.mxu0 0.0
    %9512 = vmatprep.subr.mxu0 0.0
    %9513 = vmatpush1.msra.mxu0 0.0
    %9514 = vmatprep.subr.mxu0 0.0
    %9515 = vmatpush1.msra.mxu0 0.0
    %9516 = vmatprep.subr.mxu0 0.0
    %9517 = vmatpush1.msra.mxu0 0.0
    %9518 = vmatprep.subr.mxu0 0.0
    %9519 = vmatpush1.msra.mxu0 0.0
    %9520 = vmatprep.subr.mxu0 0.0
    %9521 = vmatpush1.msra.mxu0 %v8719
    %9522 = vmatprep.subr.mxu0 0.0
    %9523 = vmatpush1.msra.mxu0 %v8718
    %9524 = vmatprep.subr.mxu0 0.0
    %9525 = vmatpush1.msra.mxu0 %v8697
    %9526 = vmatprep.subr.mxu0 0.0
    %9527 = vmatpush1.msra.mxu0 %v8696
    %9528 = vmatprep.subr.mxu0 0.0
    %9529 = vmatpush1.msra.mxu0 %v8717
    %9530 = vmatprep.subr.mxu0 0.0
    %9531 = vmatpush1.msra.mxu0 %v8716
    %9532 = vmatprep.subr.mxu0 0.0
    %9533 = vmatpush2.msra.mxu0 0.0
    %9534 = vmatprep.subr.mxu0 0.0
    %9535 = vmatpush2.msra.mxu0 0.0
    %9536 = vmatprep.subr.mxu0 0.0
    %9537 = vmatpush2.msra.mxu0 0.0
    %9538 = vmatprep.subr.mxu0 0.0
    %9539 = vmatpush2.msra.mxu0 0.0
    %9540 = vmatprep.subr.mxu0 0.0
    %9541 = vmatpush2.msra.mxu0 0.0
    %9542 = vmatprep.subr.mxu0 0.0
    %9543 = vmatpush2.msra.mxu0 0.0
    %9544 = vmatprep.subr.mxu0 0.0
    %9545 = vmatpush2.msra.mxu0 0.0
    %9546 = vmatprep.subr.mxu0 0.0
    %9547 = vmatpush2.msra.mxu0 0.0
    %9548 = vmatprep.subr.mxu0 0.0
    %9549 = vmatpush2.msra.mxu0 0.0
    %9550 = vmatprep.subr.mxu0 0.0
    %9551 = vmatpush2.msra.mxu0 0.0
    %9552 = vmatprep.subr.mxu0 0.0
    %9553 = vmatpush2.msra.mxu0 0.0
    %9554 = vmatprep.subr.mxu0 0.0
    %9555 = vmatpush2.msra.mxu0 0.0
    %9556 = vmatprep.subr.mxu0 0.0
    %9557 = vmatpush2.msra.mxu0 0.0
    %9558 = vmatprep.subr.mxu0 0.0
    %9559 = vmatpush2.msra.mxu0 0.0
    %9560 = vmatprep.subr.mxu0 0.0
    %9561 = vmatpush2.msra.mxu0 0.0
    %9562 = vmatprep.subr.mxu0 0.0
    %9563 = vmatpush2.msra.mxu0 0.0
    %9564 = vmatprep.mubr.f32.mxu0 0.0
    %9565 = vmatmul.mubr.f32.gmra.mxu0 %v8745
    %v9566 = vpop.f32.mrf.mxu0
    %v9567 = vadd.f32 %v8737, %v9566
    %v9568 = vpop.f32.mrf.mxu0
    %9569 = vmatprep.mubr.f32.mxu0 0.0
    %9570 = vmatmul.mubr.f32.gmra.mxu0 %v8748
    %v9571 = vpop.f32.mrf.mxu0
    %v9572 = vadd.f32 %v8742, %v9571
    %v9573 = vpop.f32.mrf.mxu0
    %9574 = vdwg.mxu0
    %9575 = vmatprep.subr.mxu0 0.0
    %9576 = vmatpush1.msra.mxu0 0.0
    %9577 = vmatprep.subr.mxu0 0.0
    %9578 = vmatpush1.msra.mxu0 0.0
    %9579 = vmatprep.subr.mxu0 0.0
    %9580 = vmatpush1.msra.mxu0 0.0
    %9581 = vmatprep.subr.mxu0 0.0
    %9582 = vmatpush1.msra.mxu0 0.0
    %9583 = vmatprep.subr.mxu0 0.0
    %9584 = vmatpush1.msra.mxu0 0.0
    %9585 = vmatprep.subr.mxu0 0.0
    %9586 = vmatpush1.msra.mxu0 0.0
    %9587 = vmatprep.subr.mxu0 0.0
    %9588 = vmatpush1.msra.mxu0 0.0
    %9589 = vmatprep.subr.mxu0 0.0
    %9590 = vmatpush1.msra.mxu0 0.0
    %9591 = vmatprep.subr.mxu0 0.0
    %9592 = vmatpush1.msra.mxu0 0.0
    %9593 = vmatprep.subr.mxu0 0.0
    %9594 = vmatpush1.msra.mxu0 0.0
    %9595 = vmatprep.subr.mxu0 0.0
    %9596 = vmatpush1.msra.mxu0 %v8699
    %9597 = vmatprep.subr.mxu0 0.0
    %9598 = vmatpush1.msra.mxu0 %v8698
    %9599 = vmatprep.subr.mxu0 0.0
    %9600 = vmatpush1.msra.mxu0 %v8719
    %9601 = vmatprep.subr.mxu0 0.0
    %9602 = vmatpush1.msra.mxu0 %v8718
    %9603 = vmatprep.subr.mxu0 0.0
    %9604 = vmatpush1.msra.mxu0 %v8697
    %9605 = vmatprep.subr.mxu0 0.0
    %9606 = vmatpush1.msra.mxu0 %v8696
    %9607 = vmatprep.subr.mxu0 0.0
    %9608 = vmatpush2.msra.mxu0 0.0
    %9609 = vmatprep.subr.mxu0 0.0
    %9610 = vmatpush2.msra.mxu0 0.0
    %9611 = vmatprep.subr.mxu0 0.0
    %9612 = vmatpush2.msra.mxu0 0.0
    %9613 = vmatprep.subr.mxu0 0.0
    %9614 = vmatpush2.msra.mxu0 0.0
    %9615 = vmatprep.subr.mxu0 0.0
    %9616 = vmatpush2.msra.mxu0 0.0
    %9617 = vmatprep.subr.mxu0 0.0
    %9618 = vmatpush2.msra.mxu0 0.0
    %9619 = vmatprep.subr.mxu0 0.0
    %9620 = vmatpush2.msra.mxu0 0.0
    %9621 = vmatprep.subr.mxu0 0.0
    %9622 = vmatpush2.msra.mxu0 0.0
    %9623 = vmatprep.subr.mxu0 0.0
    %9624 = vmatpush2.msra.mxu0 0.0
    %9625 = vmatprep.subr.mxu0 0.0
    %9626 = vmatpush2.msra.mxu0 0.0
    %9627 = vmatprep.subr.mxu0 0.0
    %9628 = vmatpush2.msra.mxu0 0.0
    %9629 = vmatprep.subr.mxu0 0.0
    %9630 = vmatpush2.msra.mxu0 0.0
    %9631 = vmatprep.subr.mxu0 0.0
    %9632 = vmatpush2.msra.mxu0 0.0
    %9633 = vmatprep.subr.mxu0 0.0
    %9634 = vmatpush2.msra.mxu0 0.0
    %9635 = vmatprep.subr.mxu0 0.0
    %9636 = vmatpush2.msra.mxu0 0.0
    %9637 = vmatprep.subr.mxu0 0.0
    %9638 = vmatpush2.msra.mxu0 0.0
    %9639 = vmatprep.mubr.f32.mxu0 0.0
    %9640 = vmatmul.mubr.f32.gmra.mxu0 %v8745
    %v9641 = vpop.f32.mrf.mxu0
    %v9642 = vadd.f32 %v8737, %v9641
    %v9643 = vpop.f32.mrf.mxu0
    %9644 = vmatprep.mubr.f32.mxu0 0.0
    %9645 = vmatmul.mubr.f32.gmra.mxu0 %v8748
    %v9646 = vpop.f32.mrf.mxu0
    %v9647 = vadd.f32 %v8742, %v9646
    %v9648 = vpop.f32.mrf.mxu0
    %9649 = vdwg.mxu0
    %9650 = vmatprep.subr.mxu0 0.0
    %9651 = vmatpush1.msra.mxu0 0.0
    %9652 = vmatprep.subr.mxu0 0.0
    %9653 = vmatpush1.msra.mxu0 0.0
    %9654 = vmatprep.subr.mxu0 0.0
    %9655 = vmatpush1.msra.mxu0 0.0
    %9656 = vmatprep.subr.mxu0 0.0
    %9657 = vmatpush1.msra.mxu0 0.0
    %9658 = vmatprep.subr.mxu0 0.0
    %9659 = vmatpush1.msra.mxu0 0.0
    %9660 = vmatprep.subr.mxu0 0.0
    %9661 = vmatpush1.msra.mxu0 0.0
    %9662 = vmatprep.subr.mxu0 0.0
    %9663 = vmatpush1.msra.mxu0 0.0
    %9664 = vmatprep.subr.mxu0 0.0
    %9665 = vmatpush1.msra.mxu0 0.0
    %9666 = vmatprep.subr.mxu0 0.0
    %9667 = vmatpush1.msra.mxu0 0.0
    %9668 = vmatprep.subr.mxu0 0.0
    %9669 = vmatpush1.msra.mxu0 0.0
    %9670 = vmatprep.subr.mxu0 0.0
    %9671 = vmatpush1.msra.mxu0 %v8721
    %9672 = vmatprep.subr.mxu0 0.0
    %9673 = vmatpush1.msra.mxu0 %v8720
    %9674 = vmatprep.subr.mxu0 0.0
    %9675 = vmatpush1.msra.mxu0 %v8699
    %9676 = vmatprep.subr.mxu0 0.0
    %9677 = vmatpush1.msra.mxu0 %v8698
    %9678 = vmatprep.subr.mxu0 0.0
    %9679 = vmatpush1.msra.mxu0 %v8719
    %9680 = vmatprep.subr.mxu0 0.0
    %9681 = vmatpush1.msra.mxu0 %v8718
    %9682 = vmatprep.subr.mxu0 0.0
    %9683 = vmatpush2.msra.mxu0 0.0
    %9684 = vmatprep.subr.mxu0 0.0
    %9685 = vmatpush2.msra.mxu0 0.0
    %9686 = vmatprep.subr.mxu0 0.0
    %9687 = vmatpush2.msra.mxu0 0.0
    %9688 = vmatprep.subr.mxu0 0.0
    %9689 = vmatpush2.msra.mxu0 0.0
    %9690 = vmatprep.subr.mxu0 0.0
    %9691 = vmatpush2.msra.mxu0 0.0
    %9692 = vmatprep.subr.mxu0 0.0
    %9693 = vmatpush2.msra.mxu0 0.0
    %9694 = vmatprep.subr.mxu0 0.0
    %9695 = vmatpush2.msra.mxu0 0.0
    %9696 = vmatprep.subr.mxu0 0.0
    %9697 = vmatpush2.msra.mxu0 0.0
    %9698 = vmatprep.subr.mxu0 0.0
    %9699 = vmatpush2.msra.mxu0 0.0
    %9700 = vmatprep.subr.mxu0 0.0
    %9701 = vmatpush2.msra.mxu0 0.0
    %9702 = vmatprep.subr.mxu0 0.0
    %9703 = vmatpush2.msra.mxu0 0.0
    %9704 = vmatprep.subr.mxu0 0.0
    %9705 = vmatpush2.msra.mxu0 0.0
    %9706 = vmatprep.subr.mxu0 0.0
    %9707 = vmatpush2.msra.mxu0 0.0
    %9708 = vmatprep.subr.mxu0 0.0
    %9709 = vmatpush2.msra.mxu0 0.0
    %9710 = vmatprep.subr.mxu0 0.0
    %9711 = vmatpush2.msra.mxu0 0.0
    %9712 = vmatprep.subr.mxu0 0.0
    %9713 = vmatpush2.msra.mxu0 0.0
    %9714 = vmatprep.mubr.f32.mxu0 0.0
    %9715 = vmatmul.mubr.f32.gmra.mxu0 %v8745
    %v9716 = vpop.f32.mrf.mxu0
    %v9717 = vadd.f32 %v8737, %v9716
    %v9718 = vpop.f32.mrf.mxu0
    %9719 = vmatprep.mubr.f32.mxu0 0.0
    %9720 = vmatmul.mubr.f32.gmra.mxu0 %v8748
    %v9721 = vpop.f32.mrf.mxu0
    %v9722 = vadd.f32 %v8742, %v9721
    %v9723 = vpop.f32.mrf.mxu0
    %9724 = vdwg.mxu0
    %9725 = vmatprep.subr.mxu0 0.0
    %9726 = vmatpush1.msra.mxu0 0.0
    %9727 = vmatprep.subr.mxu0 0.0
    %9728 = vmatpush1.msra.mxu0 0.0
    %9729 = vmatprep.subr.mxu0 0.0
    %9730 = vmatpush1.msra.mxu0 0.0
    %9731 = vmatprep.subr.mxu0 0.0
    %9732 = vmatpush1.msra.mxu0 0.0
    %9733 = vmatprep.subr.mxu0 0.0
    %9734 = vmatpush1.msra.mxu0 0.0
    %9735 = vmatprep.subr.mxu0 0.0
    %9736 = vmatpush1.msra.mxu0 0.0
    %9737 = vmatprep.subr.mxu0 0.0
    %9738 = vmatpush1.msra.mxu0 0.0
    %9739 = vmatprep.subr.mxu0 0.0
    %9740 = vmatpush1.msra.mxu0 0.0
    %9741 = vmatprep.subr.mxu0 0.0
    %9742 = vmatpush1.msra.mxu0 0.0
    %9743 = vmatprep.subr.mxu0 0.0
    %9744 = vmatpush1.msra.mxu0 0.0
    %9745 = vmatprep.subr.mxu0 0.0
    %9746 = vmatpush1.msra.mxu0 %v8701
    %9747 = vmatprep.subr.mxu0 0.0
    %9748 = vmatpush1.msra.mxu0 %v8700
    %9749 = vmatprep.subr.mxu0 0.0
    %9750 = vmatpush1.msra.mxu0 %v8721
    %9751 = vmatprep.subr.mxu0 0.0
    %9752 = vmatpush1.msra.mxu0 %v8720
    %9753 = vmatprep.subr.mxu0 0.0
    %9754 = vmatpush1.msra.mxu0 %v8699
    %9755 = vmatprep.subr.mxu0 0.0
    %9756 = vmatpush1.msra.mxu0 %v8698
    %9757 = vmatprep.subr.mxu0 0.0
    %9758 = vmatpush2.msra.mxu0 0.0
    %9759 = vmatprep.subr.mxu0 0.0
    %9760 = vmatpush2.msra.mxu0 0.0
    %9761 = vmatprep.subr.mxu0 0.0
    %9762 = vmatpush2.msra.mxu0 0.0
    %9763 = vmatprep.subr.mxu0 0.0
    %9764 = vmatpush2.msra.mxu0 0.0
    %9765 = vmatprep.subr.mxu0 0.0
    %9766 = vmatpush2.msra.mxu0 0.0
    %9767 = vmatprep.subr.mxu0 0.0
    %9768 = vmatpush2.msra.mxu0 0.0
    %9769 = vmatprep.subr.mxu0 0.0
    %9770 = vmatpush2.msra.mxu0 0.0
    %9771 = vmatprep.subr.mxu0 0.0
    %9772 = vmatpush2.msra.mxu0 0.0
    %9773 = vmatprep.subr.mxu0 0.0
    %9774 = vmatpush2.msra.mxu0 0.0
    %9775 = vmatprep.subr.mxu0 0.0
    %9776 = vmatpush2.msra.mxu0 0.0
    %9777 = vmatprep.subr.mxu0 0.0
    %9778 = vmatpush2.msra.mxu0 0.0
    %9779 = vmatprep.subr.mxu0 0.0
    %9780 = vmatpush2.msra.mxu0 0.0
    %9781 = vmatprep.subr.mxu0 0.0
    %9782 = vmatpush2.msra.mxu0 0.0
    %9783 = vmatprep.subr.mxu0 0.0
    %9784 = vmatpush2.msra.mxu0 0.0
    %9785 = vmatprep.subr.mxu0 0.0
    %9786 = vmatpush2.msra.mxu0 0.0
    %9787 = vmatprep.subr.mxu0 0.0
    %9788 = vmatpush2.msra.mxu0 0.0
    %9789 = vmatprep.mubr.f32.mxu0 0.0
    %9790 = vmatmul.mubr.f32.gmra.mxu0 %v8745
    %v9791 = vpop.f32.mrf.mxu0
    %v9792 = vadd.f32 %v8737, %v9791
    %v9793 = vpop.f32.mrf.mxu0
    %9794 = vmatprep.mubr.f32.mxu0 0.0
    %9795 = vmatmul.mubr.f32.gmra.mxu0 %v8748
    %v9796 = vpop.f32.mrf.mxu0
    %v9797 = vadd.f32 %v8742, %v9796
    %v9798 = vpop.f32.mrf.mxu0
    %9799 = vdwg.mxu0
    %9800 = vmatprep.subr.mxu0 0.0
    %9801 = vmatpush1.msra.mxu0 0.0
    %9802 = vmatprep.subr.mxu0 0.0
    %9803 = vmatpush1.msra.mxu0 0.0
    %9804 = vmatprep.subr.mxu0 0.0
    %9805 = vmatpush1.msra.mxu0 0.0
    %9806 = vmatprep.subr.mxu0 0.0
    %9807 = vmatpush1.msra.mxu0 0.0
    %9808 = vmatprep.subr.mxu0 0.0
    %9809 = vmatpush1.msra.mxu0 0.0
    %9810 = vmatprep.subr.mxu0 0.0
    %9811 = vmatpush1.msra.mxu0 0.0
    %9812 = vmatprep.subr.mxu0 0.0
    %9813 = vmatpush1.msra.mxu0 0.0
    %9814 = vmatprep.subr.mxu0 0.0
    %9815 = vmatpush1.msra.mxu0 0.0
    %9816 = vmatprep.subr.mxu0 0.0
    %9817 = vmatpush1.msra.mxu0 0.0
    %9818 = vmatprep.subr.mxu0 0.0
    %9819 = vmatpush1.msra.mxu0 0.0
    %9820 = vmatprep.subr.mxu0 0.0
    %9821 = vmatpush1.msra.mxu0 %v8723
    %9822 = vmatprep.subr.mxu0 0.0
    %9823 = vmatpush1.msra.mxu0 %v8722
    %9824 = vmatprep.subr.mxu0 0.0
    %9825 = vmatpush1.msra.mxu0 %v8701
    %9826 = vmatprep.subr.mxu0 0.0
    %9827 = vmatpush1.msra.mxu0 %v8700
    %9828 = vmatprep.subr.mxu0 0.0
    %9829 = vmatpush1.msra.mxu0 %v8721
    %9830 = vmatprep.subr.mxu0 0.0
    %9831 = vmatpush1.msra.mxu0 %v8720
    %9832 = vmatprep.subr.mxu0 0.0
    %9833 = vmatpush2.msra.mxu0 0.0
    %9834 = vmatprep.subr.mxu0 0.0
    %9835 = vmatpush2.msra.mxu0 0.0
    %9836 = vmatprep.subr.mxu0 0.0
    %9837 = vmatpush2.msra.mxu0 0.0
    %9838 = vmatprep.subr.mxu0 0.0
    %9839 = vmatpush2.msra.mxu0 0.0
    %9840 = vmatprep.subr.mxu0 0.0
    %9841 = vmatpush2.msra.mxu0 0.0
    %9842 = vmatprep.subr.mxu0 0.0
    %9843 = vmatpush2.msra.mxu0 0.0
    %9844 = vmatprep.subr.mxu0 0.0
    %9845 = vmatpush2.msra.mxu0 0.0
    %9846 = vmatprep.subr.mxu0 0.0
    %9847 = vmatpush2.msra.mxu0 0.0
    %9848 = vmatprep.subr.mxu0 0.0
    %9849 = vmatpush2.msra.mxu0 0.0
    %9850 = vmatprep.subr.mxu0 0.0
    %9851 = vmatpush2.msra.mxu0 0.0
    %9852 = vmatprep.subr.mxu0 0.0
    %9853 = vmatpush2.msra.mxu0 0.0
    %9854 = vmatprep.subr.mxu0 0.0
    %9855 = vmatpush2.msra.mxu0 0.0
    %9856 = vmatprep.subr.mxu0 0.0
    %9857 = vmatpush2.msra.mxu0 0.0
    %9858 = vmatprep.subr.mxu0 0.0
    %9859 = vmatpush2.msra.mxu0 0.0
    %9860 = vmatprep.subr.mxu0 0.0
    %9861 = vmatpush2.msra.mxu0 0.0
    %9862 = vmatprep.subr.mxu0 0.0
    %9863 = vmatpush2.msra.mxu0 0.0
    %9864 = vmatprep.mubr.f32.mxu0 0.0
    %9865 = vmatmul.mubr.f32.gmra.mxu0 %v8745
    %v9866 = vpop.f32.mrf.mxu0
    %v9867 = vadd.f32 %v8737, %v9866
    %v9868 = vpop.f32.mrf.mxu0
    %9869 = vmatprep.mubr.f32.mxu0 0.0
    %9870 = vmatmul.mubr.f32.gmra.mxu0 %v8748
    %v9871 = vpop.f32.mrf.mxu0
    %v9872 = vadd.f32 %v8742, %v9871
    %v9873 = vpop.f32.mrf.mxu0
    %9874 = vdwg.mxu0
    %9875 = vmatprep.subr.mxu0 0.0
    %9876 = vmatpush1.msra.mxu0 0.0
    %9877 = vmatprep.subr.mxu0 0.0
    %9878 = vmatpush1.msra.mxu0 0.0
    %9879 = vmatprep.subr.mxu0 0.0
    %9880 = vmatpush1.msra.mxu0 0.0
    %9881 = vmatprep.subr.mxu0 0.0
    %9882 = vmatpush1.msra.mxu0 0.0
    %9883 = vmatprep.subr.mxu0 0.0
    %9884 = vmatpush1.msra.mxu0 0.0
    %9885 = vmatprep.subr.mxu0 0.0
    %9886 = vmatpush1.msra.mxu0 0.0
    %9887 = vmatprep.subr.mxu0 0.0
    %9888 = vmatpush1.msra.mxu0 0.0
    %9889 = vmatprep.subr.mxu0 0.0
    %9890 = vmatpush1.msra.mxu0 0.0
    %9891 = vmatprep.subr.mxu0 0.0
    %9892 = vmatpush1.msra.mxu0 0.0
    %9893 = vmatprep.subr.mxu0 0.0
    %9894 = vmatpush1.msra.mxu0 0.0
    %9895 = vmatprep.subr.mxu0 0.0
    %9896 = vmatpush1.msra.mxu0 %v8703
    %9897 = vmatprep.subr.mxu0 0.0
    %9898 = vmatpush1.msra.mxu0 %v8702
    %9899 = vmatprep.subr.mxu0 0.0
    %9900 = vmatpush1.msra.mxu0 %v8723
    %9901 = vmatprep.subr.mxu0 0.0
    %9902 = vmatpush1.msra.mxu0 %v8722
    %9903 = vmatprep.subr.mxu0 0.0
    %9904 = vmatpush1.msra.mxu0 %v8701
    %9905 = vmatprep.subr.mxu0 0.0
    %9906 = vmatpush1.msra.mxu0 %v8700
    %9907 = vmatprep.subr.mxu0 0.0
    %9908 = vmatpush2.msra.mxu0 0.0
    %9909 = vmatprep.subr.mxu0 0.0
    %9910 = vmatpush2.msra.mxu0 0.0
    %9911 = vmatprep.subr.mxu0 0.0
    %9912 = vmatpush2.msra.mxu0 0.0
    %9913 = vmatprep.subr.mxu0 0.0
    %9914 = vmatpush2.msra.mxu0 0.0
    %9915 = vmatprep.subr.mxu0 0.0
    %9916 = vmatpush2.msra.mxu0 0.0
    %9917 = vmatprep.subr.mxu0 0.0
    %9918 = vmatpush2.msra.mxu0 0.0
    %9919 = vmatprep.subr.mxu0 0.0
    %9920 = vmatpush2.msra.mxu0 0.0
    %9921 = vmatprep.subr.mxu0 0.0
    %9922 = vmatpush2.msra.mxu0 0.0
    %9923 = vmatprep.subr.mxu0 0.0
    %9924 = vmatpush2.msra.mxu0 0.0
    %9925 = vmatprep.subr.mxu0 0.0
    %9926 = vmatpush2.msra.mxu0 0.0
    %9927 = vmatprep.subr.mxu0 0.0
    %9928 = vmatpush2.msra.mxu0 0.0
    %9929 = vmatprep.subr.mxu0 0.0
    %9930 = vmatpush2.msra.mxu0 0.0
    %9931 = vmatprep.subr.mxu0 0.0
    %9932 = vmatpush2.msra.mxu0 0.0
    %9933 = vmatprep.subr.mxu0 0.0
    %9934 = vmatpush2.msra.mxu0 0.0
    %9935 = vmatprep.subr.mxu0 0.0
    %9936 = vmatpush2.msra.mxu0 0.0
    %9937 = vmatprep.subr.mxu0 0.0
    %9938 = vmatpush2.msra.mxu0 0.0
    %9939 = vmatprep.mubr.f32.mxu0 0.0
    %9940 = vmatmul.mubr.f32.gmra.mxu0 %v8745
    %v9941 = vpop.f32.mrf.mxu0
    %v9942 = vadd.f32 %v8737, %v9941
    %v9943 = vpop.f32.mrf.mxu0
    %9944 = vmatprep.mubr.f32.mxu0 0.0
    %9945 = vmatmul.mubr.f32.gmra.mxu0 %v8748
    %v9946 = vpop.f32.mrf.mxu0
    %v9947 = vadd.f32 %v8742, %v9946
    %v9948 = vpop.f32.mrf.mxu0
    %9949 = vdwg.mxu0
    %9950 = vmatprep.subr.mxu0 0.0
    %9951 = vmatpush1.msra.mxu0 0.0
    %9952 = vmatprep.subr.mxu0 0.0
    %9953 = vmatpush1.msra.mxu0 0.0
    %9954 = vmatprep.subr.mxu0 0.0
    %9955 = vmatpush1.msra.mxu0 0.0
    %9956 = vmatprep.subr.mxu0 0.0
    %9957 = vmatpush1.msra.mxu0 0.0
    %9958 = vmatprep.subr.mxu0 0.0
    %9959 = vmatpush1.msra.mxu0 0.0
    %9960 = vmatprep.subr.mxu0 0.0
    %9961 = vmatpush1.msra.mxu0 0.0
    %9962 = vmatprep.subr.mxu0 0.0
    %9963 = vmatpush1.msra.mxu0 0.0
    %9964 = vmatprep.subr.mxu0 0.0
    %9965 = vmatpush1.msra.mxu0 0.0
    %9966 = vmatprep.subr.mxu0 0.0
    %9967 = vmatpush1.msra.mxu0 0.0
    %9968 = vmatprep.subr.mxu0 0.0
    %9969 = vmatpush1.msra.mxu0 0.0
    %9970 = vmatprep.subr.mxu0 0.0
    %9971 = vmatpush1.msra.mxu0 %v8725
    %9972 = vmatprep.subr.mxu0 0.0
    %9973 = vmatpush1.msra.mxu0 %v8724
    %9974 = vmatprep.subr.mxu0 0.0
    %9975 = vmatpush1.msra.mxu0 %v8703
    %9976 = vmatprep.subr.mxu0 0.0
    %9977 = vmatpush1.msra.mxu0 %v8702
    %9978 = vmatprep.subr.mxu0 0.0
    %9979 = vmatpush1.msra.mxu0 %v8723
    %9980 = vmatprep.subr.mxu0 0.0
    %9981 = vmatpush1.msra.mxu0 %v8722
    %9982 = vmatprep.subr.mxu0 0.0
    %9983 = vmatpush2.msra.mxu0 0.0
    %9984 = vmatprep.subr.mxu0 0.0
    %9985 = vmatpush2.msra.mxu0 0.0
    %9986 = vmatprep.subr.mxu0 0.0
    %9987 = vmatpush2.msra.mxu0 0.0
    %9988 = vmatprep.subr.mxu0 0.0
    %9989 = vmatpush2.msra.mxu0 0.0
    %9990 = vmatprep.subr.mxu0 0.0
    %9991 = vmatpush2.msra.mxu0 0.0
    %9992 = vmatprep.subr.mxu0 0.0
    %9993 = vmatpush2.msra.mxu0 0.0
    %9994 = vmatprep.subr.mxu0 0.0
    %9995 = vmatpush2.msra.mxu0 0.0
    %9996 = vmatprep.subr.mxu0 0.0
    %9997 = vmatpush2.msra.mxu0 0.0
    %9998 = vmatprep.subr.mxu0 0.0
    %9999 = vmatpush2.msra.mxu0 0.0
    %10000 = vmatprep.subr.mxu0 0.0
    %10001 = vmatpush2.msra.mxu0 0.0
    %10002 = vmatprep.subr.mxu0 0.0
    %10003 = vmatpush2.msra.mxu0 0.0
    %10004 = vmatprep.subr.mxu0 0.0
    %10005 = vmatpush2.msra.mxu0 0.0
    %10006 = vmatprep.subr.mxu0 0.0
    %10007 = vmatpush2.msra.mxu0 0.0
    %10008 = vmatprep.subr.mxu0 0.0
    %10009 = vmatpush2.msra.mxu0 0.0
    %10010 = vmatprep.subr.mxu0 0.0
    %10011 = vmatpush2.msra.mxu0 0.0
    %10012 = vmatprep.subr.mxu0 0.0
    %10013 = vmatpush2.msra.mxu0 0.0
    %10014 = vmatprep.mubr.f32.mxu0 0.0
    %10015 = vmatmul.mubr.f32.gmra.mxu0 %v8745
    %v10016 = vpop.f32.mrf.mxu0
    %v10017 = vadd.f32 %v8737, %v10016
    %v10018 = vpop.f32.mrf.mxu0
    %10019 = vmatprep.mubr.f32.mxu0 0.0
    %10020 = vmatmul.mubr.f32.gmra.mxu0 %v8748
    %v10021 = vpop.f32.mrf.mxu0
    %v10022 = vadd.f32 %v8742, %v10021
    %v10023 = vpop.f32.mrf.mxu0
    %10024 = vdwg.mxu0
    %10025 = vmatprep.subr.mxu0 0.0
    %10026 = vmatpush1.msra.mxu0 0.0
    %10027 = vmatprep.subr.mxu0 0.0
    %10028 = vmatpush1.msra.mxu0 0.0
    %10029 = vmatprep.subr.mxu0 0.0
    %10030 = vmatpush1.msra.mxu0 0.0
    %10031 = vmatprep.subr.mxu0 0.0
    %10032 = vmatpush1.msra.mxu0 0.0
    %10033 = vmatprep.subr.mxu0 0.0
    %10034 = vmatpush1.msra.mxu0 0.0
    %10035 = vmatprep.subr.mxu0 0.0
    %10036 = vmatpush1.msra.mxu0 0.0
    %10037 = vmatprep.subr.mxu0 0.0
    %10038 = vmatpush1.msra.mxu0 0.0
    %10039 = vmatprep.subr.mxu0 0.0
    %10040 = vmatpush1.msra.mxu0 0.0
    %10041 = vmatprep.subr.mxu0 0.0
    %10042 = vmatpush1.msra.mxu0 0.0
    %10043 = vmatprep.subr.mxu0 0.0
    %10044 = vmatpush1.msra.mxu0 0.0
    %10045 = vmatprep.subr.mxu0 0.0
    %10046 = vmatpush1.msra.mxu0 %v8705
    %10047 = vmatprep.subr.mxu0 0.0
    %10048 = vmatpush1.msra.mxu0 %v8704
    %10049 = vmatprep.subr.mxu0 0.0
    %10050 = vmatpush1.msra.mxu0 %v8725
    %10051 = vmatprep.subr.mxu0 0.0
    %10052 = vmatpush1.msra.mxu0 %v8724
    %10053 = vmatprep.subr.mxu0 0.0
    %10054 = vmatpush1.msra.mxu0 %v8703
    %10055 = vmatprep.subr.mxu0 0.0
    %10056 = vmatpush1.msra.mxu0 %v8702
    %10057 = vmatprep.subr.mxu0 0.0
    %10058 = vmatpush2.msra.mxu0 0.0
    %10059 = vmatprep.subr.mxu0 0.0
    %10060 = vmatpush2.msra.mxu0 0.0
    %10061 = vmatprep.subr.mxu0 0.0
    %10062 = vmatpush2.msra.mxu0 0.0
    %10063 = vmatprep.subr.mxu0 0.0
    %10064 = vmatpush2.msra.mxu0 0.0
    %10065 = vmatprep.subr.mxu0 0.0
    %10066 = vmatpush2.msra.mxu0 0.0
    %10067 = vmatprep.subr.mxu0 0.0
    %10068 = vmatpush2.msra.mxu0 0.0
    %10069 = vmatprep.subr.mxu0 0.0
    %10070 = vmatpush2.msra.mxu0 0.0
    %10071 = vmatprep.subr.mxu0 0.0
    %10072 = vmatpush2.msra.mxu0 0.0
    %10073 = vmatprep.subr.mxu0 0.0
    %10074 = vmatpush2.msra.mxu0 0.0
    %10075 = vmatprep.subr.mxu0 0.0
    %10076 = vmatpush2.msra.mxu0 0.0
    %10077 = vmatprep.subr.mxu0 0.0
    %10078 = vmatpush2.msra.mxu0 0.0
    %10079 = vmatprep.subr.mxu0 0.0
    %10080 = vmatpush2.msra.mxu0 0.0
    %10081 = vmatprep.subr.mxu0 0.0
    %10082 = vmatpush2.msra.mxu0 0.0
    %10083 = vmatprep.subr.mxu0 0.0
    %10084 = vmatpush2.msra.mxu0 0.0
    %10085 = vmatprep.subr.mxu0 0.0
    %10086 = vmatpush2.msra.mxu0 0.0
    %10087 = vmatprep.subr.mxu0 0.0
    %10088 = vmatpush2.msra.mxu0 0.0
    %10089 = vmatprep.mubr.f32.mxu0 0.0
    %10090 = vmatmul.mubr.f32.gmra.mxu0 %v8745
    %v10091 = vpop.f32.mrf.mxu0
    %v10092 = vadd.f32 %v8737, %v10091
    %v10093 = vpop.f32.mrf.mxu0
    %10094 = vmatprep.mubr.f32.mxu0 0.0
    %10095 = vmatmul.mubr.f32.gmra.mxu0 %v8748
    %v10096 = vpop.f32.mrf.mxu0
    %v10097 = vadd.f32 %v8742, %v10096
    %v10098 = vpop.f32.mrf.mxu0
    %10099 = vdwg.mxu0
    %10100 = vmatprep.subr.mxu0 0.0
    %10101 = vmatpush1.msra.mxu0 0.0
    %10102 = vmatprep.subr.mxu0 0.0
    %10103 = vmatpush1.msra.mxu0 0.0
    %10104 = vmatprep.subr.mxu0 0.0
    %10105 = vmatpush1.msra.mxu0 0.0
    %10106 = vmatprep.subr.mxu0 0.0
    %10107 = vmatpush1.msra.mxu0 0.0
    %10108 = vmatprep.subr.mxu0 0.0
    %10109 = vmatpush1.msra.mxu0 0.0
    %10110 = vmatprep.subr.mxu0 0.0
    %10111 = vmatpush1.msra.mxu0 0.0
    %10112 = vmatprep.subr.mxu0 0.0
    %10113 = vmatpush1.msra.mxu0 0.0
    %10114 = vmatprep.subr.mxu0 0.0
    %10115 = vmatpush1.msra.mxu0 0.0
    %10116 = vmatprep.subr.mxu0 0.0
    %10117 = vmatpush1.msra.mxu0 0.0
    %10118 = vmatprep.subr.mxu0 0.0
    %10119 = vmatpush1.msra.mxu0 0.0
    %10120 = vmatprep.subr.mxu0 0.0
    %10121 = vmatpush1.msra.mxu0 %v8727
    %10122 = vmatprep.subr.mxu0 0.0
    %10123 = vmatpush1.msra.mxu0 %v8726
    %10124 = vmatprep.subr.mxu0 0.0
    %10125 = vmatpush1.msra.mxu0 %v8705
    %10126 = vmatprep.subr.mxu0 0.0
    %10127 = vmatpush1.msra.mxu0 %v8704
    %10128 = vmatprep.subr.mxu0 0.0
    %10129 = vmatpush1.msra.mxu0 %v8725
    %10130 = vmatprep.subr.mxu0 0.0
    %10131 = vmatpush1.msra.mxu0 %v8724
    %10132 = vmatprep.subr.mxu0 0.0
    %10133 = vmatpush2.msra.mxu0 0.0
    %10134 = vmatprep.subr.mxu0 0.0
    %10135 = vmatpush2.msra.mxu0 0.0
    %10136 = vmatprep.subr.mxu0 0.0
    %10137 = vmatpush2.msra.mxu0 0.0
    %10138 = vmatprep.subr.mxu0 0.0
    %10139 = vmatpush2.msra.mxu0 0.0
    %10140 = vmatprep.subr.mxu0 0.0
    %10141 = vmatpush2.msra.mxu0 0.0
    %10142 = vmatprep.subr.mxu0 0.0
    %10143 = vmatpush2.msra.mxu0 0.0
    %10144 = vmatprep.subr.mxu0 0.0
    %10145 = vmatpush2.msra.mxu0 0.0
    %10146 = vmatprep.subr.mxu0 0.0
    %10147 = vmatpush2.msra.mxu0 0.0
    %10148 = vmatprep.subr.mxu0 0.0
    %10149 = vmatpush2.msra.mxu0 0.0
    %10150 = vmatprep.subr.mxu0 0.0
    %10151 = vmatpush2.msra.mxu0 0.0
    %10152 = vmatprep.subr.mxu0 0.0
    %10153 = vmatpush2.msra.mxu0 0.0
    %10154 = vmatprep.subr.mxu0 0.0
    %10155 = vmatpush2.msra.mxu0 0.0
    %10156 = vmatprep.subr.mxu0 0.0
    %10157 = vmatpush2.msra.mxu0 0.0
    %10158 = vmatprep.subr.mxu0 0.0
    %10159 = vmatpush2.msra.mxu0 0.0
    %10160 = vmatprep.subr.mxu0 0.0
    %10161 = vmatpush2.msra.mxu0 0.0
    %10162 = vmatprep.subr.mxu0 0.0
    %10163 = vmatpush2.msra.mxu0 0.0
    %10164 = vmatprep.mubr.f32.mxu0 0.0
    %10165 = vmatmul.mubr.f32.gmra.mxu0 %v8745
    %v10166 = vpop.f32.mrf.mxu0
    %v10167 = vadd.f32 %v8737, %v10166
    %v10168 = vpop.f32.mrf.mxu0
    %10169 = vmatprep.mubr.f32.mxu0 0.0
    %10170 = vmatmul.mubr.f32.gmra.mxu0 %v8748
    %v10171 = vpop.f32.mrf.mxu0
    %v10172 = vadd.f32 %v8742, %v10171
    %v10173 = vpop.f32.mrf.mxu0
    %10174 = vdwg.mxu0
    %10175 = vmatprep.subr.mxu0 0.0
    %10176 = vmatpush1.msra.mxu0 0.0
    %10177 = vmatprep.subr.mxu0 0.0
    %10178 = vmatpush1.msra.mxu0 0.0
    %10179 = vmatprep.subr.mxu0 0.0
    %10180 = vmatpush1.msra.mxu0 0.0
    %10181 = vmatprep.subr.mxu0 0.0
    %10182 = vmatpush1.msra.mxu0 0.0
    %10183 = vmatprep.subr.mxu0 0.0
    %10184 = vmatpush1.msra.mxu0 0.0
    %10185 = vmatprep.subr.mxu0 0.0
    %10186 = vmatpush1.msra.mxu0 0.0
    %10187 = vmatprep.subr.mxu0 0.0
    %10188 = vmatpush1.msra.mxu0 0.0
    %10189 = vmatprep.subr.mxu0 0.0
    %10190 = vmatpush1.msra.mxu0 0.0
    %10191 = vmatprep.subr.mxu0 0.0
    %10192 = vmatpush1.msra.mxu0 0.0
    %10193 = vmatprep.subr.mxu0 0.0
    %10194 = vmatpush1.msra.mxu0 0.0
    %10195 = vmatprep.subr.mxu0 0.0
    %10196 = vmatpush1.msra.mxu0 0.0
    %10197 = vmatprep.subr.mxu0 0.0
    %10198 = vmatpush1.msra.mxu0 0.0
    %10199 = vmatprep.subr.mxu0 0.0
    %10200 = vmatpush1.msra.mxu0 %v8727
    %10201 = vmatprep.subr.mxu0 0.0
    %10202 = vmatpush1.msra.mxu0 %v8726
    %10203 = vmatprep.subr.mxu0 0.0
    %10204 = vmatpush1.msra.mxu0 %v8705
    %10205 = vmatprep.subr.mxu0 0.0
    %10206 = vmatpush1.msra.mxu0 %v8704
    %10207 = vmatprep.subr.mxu0 0.0
    %10208 = vmatpush2.msra.mxu0 0.0
    %10209 = vmatprep.subr.mxu0 0.0
    %10210 = vmatpush2.msra.mxu0 0.0
    %10211 = vmatprep.subr.mxu0 0.0
    %10212 = vmatpush2.msra.mxu0 0.0
    %10213 = vmatprep.subr.mxu0 0.0
    %10214 = vmatpush2.msra.mxu0 0.0
    %10215 = vmatprep.subr.mxu0 0.0
    %10216 = vmatpush2.msra.mxu0 0.0
    %10217 = vmatprep.subr.mxu0 0.0
    %10218 = vmatpush2.msra.mxu0 0.0
    %10219 = vmatprep.subr.mxu0 0.0
    %10220 = vmatpush2.msra.mxu0 0.0
    %10221 = vmatprep.subr.mxu0 0.0
    %10222 = vmatpush2.msra.mxu0 0.0
    %10223 = vmatprep.subr.mxu0 0.0
    %10224 = vmatpush2.msra.mxu0 0.0
    %10225 = vmatprep.subr.mxu0 0.0
    %10226 = vmatpush2.msra.mxu0 0.0
    %10227 = vmatprep.subr.mxu0 0.0
    %10228 = vmatpush2.msra.mxu0 0.0
    %10229 = vmatprep.subr.mxu0 0.0
    %10230 = vmatpush2.msra.mxu0 0.0
    %10231 = vmatprep.subr.mxu0 0.0
    %10232 = vmatpush2.msra.mxu0 0.0
    %10233 = vmatprep.subr.mxu0 0.0
    %10234 = vmatpush2.msra.mxu0 0.0
    %10235 = vmatprep.subr.mxu0 0.0
    %10236 = vmatpush2.msra.mxu0 0.0
    %10237 = vmatprep.subr.mxu0 0.0
    %10238 = vmatpush2.msra.mxu0 0.0
    %10239 = vmatprep.mubr.f32.mxu0 0.0
    %10240 = vmatmul.mubr.f32.gmra.mxu0 %v8745
    %v10241 = vpop.f32.mrf.mxu0
    %v10242 = vadd.f32 %v8737, %v10241
    %v10243 = vpop.f32.mrf.mxu0
    %10244 = vmatprep.mubr.f32.mxu0 0.0
    %10245 = vmatmul.mubr.f32.gmra.mxu0 %v8748
    %v10246 = vpop.f32.mrf.mxu0
    %v10247 = vadd.f32 %v8742, %v10246
    %v10248 = vpop.f32.mrf.mxu0
    %10249 = vdwg.mxu0
    %v10250 = vmax.f32 %v8817, %v8892
    %v10251 = vmax.f32 %v8822, %v8897
    %v10252 = vmax.f32 %v8967, %v9042
    %v10253 = vmax.f32 %v8972, %v9047
    %v10254 = vmax.f32 %v9117, %v9192
    %v10255 = vmax.f32 %v9122, %v9197
    %v10256 = vmax.f32 %v9267, %v9342
    %v10257 = vmax.f32 %v9272, %v9347
    %v10258 = vmax.f32 %v9417, %v9492
    %v10259 = vmax.f32 %v9422, %v9497
    %v10260 = vmax.f32 %v9567, %v9642
    %v10261 = vmax.f32 %v9572, %v9647
    %v10262 = vmax.f32 %v9717, %v9792
    %v10263 = vmax.f32 %v9722, %v9797
    %v10264 = vmax.f32 %v9867, %v9942
    %v10265 = vmax.f32 %v9872, %v9947
    %v10266 = vmax.f32 %v10017, %v10092
    %v10267 = vmax.f32 %v10022, %v10097
    %v10268 = vmax.f32 %v10167, %v10242
    %v10269 = vmax.f32 %v10172, %v10247
    %v10270 = vmax.f32 %v10250, 0.0
    %v10271 = vmax.f32 %v10251, 0.0
    %v10272 = vmax.f32 %v10252, 0.0
    %v10273 = vmax.f32 %v10253, 0.0
    %v10274 = vmax.f32 %v10254, 0.0
    %v10275 = vmax.f32 %v10255, 0.0
    %v10276 = vmax.f32 %v10256, 0.0
    %v10277 = vmax.f32 %v10257, 0.0
    %v10278 = vmax.f32 %v10258, 0.0
    %v10279 = vmax.f32 %v10259, 0.0
    %v10280 = vmax.f32 %v10260, 0.0
    %v10281 = vmax.f32 %v10261, 0.0
    %v10282 = vmax.f32 %v10262, 0.0
    %v10283 = vmax.f32 %v10263, 0.0
    %v10284 = vmax.f32 %v10264, 0.0
    %v10285 = vmax.f32 %v10265, 0.0
    %v10286 = vmax.f32 %v10266, 0.0
    %v10287 = vmax.f32 %v10267, 0.0
    %v10288 = vmax.f32 %v10268, 0.0
    %v10289 = vmax.f32 %v10269, 0.0
    %s10290 = scalar_lea.vmem %s1, 96
    %v10291 = vld [vmem:[%s10290] sm:$0xff]
    %v10292 = vld [vmem:[%s10290 + $0x8] sm:$0xff]
    %s10293 = scalar_lea.vmem %s2, 96
    %v10294 = vld [vmem:[%s10293] sm:$0xff]
    %v10295 = vld [vmem:[%s10293 + $0x8] sm:$0xff]
    %10297 = vset.pattern.permute.xlu0 0
    %10298 = vperm.xlu0 %10297, %v10294
    %v10299 = vpop.permute.xlu0 %10298
    %10302 = vset.pattern.permute.xlu0 0
    %10303 = vperm.xlu0 %10302, %v10295
    %v10304 = vpop.permute.xlu0 %10303
    %v10307 = vsel %vm123, %v10291, 0
    %v10310 = vsel %vm123, %v10292, 0
    %10312 = vmatprep.subr.mxu0 0.0
    %10313 = vmatpush1.msra.mxu0 0.0
    %10314 = vmatprep.subr.mxu0 0.0
    %10315 = vmatpush1.msra.mxu0 0.0
    %10316 = vmatprep.subr.mxu0 0.0
    %10317 = vmatpush1.msra.mxu0 0.0
    %10318 = vmatprep.subr.mxu0 0.0
    %10319 = vmatpush1.msra.mxu0 0.0
    %10320 = vmatprep.subr.mxu0 0.0
    %10321 = vmatpush1.msra.mxu0 0.0
    %10322 = vmatprep.subr.mxu0 0.0
    %10323 = vmatpush1.msra.mxu0 0.0
    %10324 = vmatprep.subr.mxu0 0.0
    %10325 = vmatpush1.msra.mxu0 0.0
    %10326 = vmatprep.subr.mxu0 0.0
    %10327 = vmatpush1.msra.mxu0 0.0
    %10328 = vmatprep.subr.mxu0 0.0
    %10329 = vmatpush1.msra.mxu0 0.0
    %10330 = vmatprep.subr.mxu0 0.0
    %10331 = vmatpush1.msra.mxu0 0.0
    %10332 = vmatprep.subr.mxu0 0.0
    %10333 = vmatpush1.msra.mxu0 %v10273
    %10334 = vmatprep.subr.mxu0 0.0
    %10335 = vmatpush1.msra.mxu0 %v10272
    %10336 = vmatprep.subr.mxu0 0.0
    %10337 = vmatpush1.msra.mxu0 %v10271
    %10338 = vmatprep.subr.mxu0 0.0
    %10339 = vmatpush1.msra.mxu0 %v10270
    %10340 = vmatprep.subr.mxu0 0.0
    %10341 = vmatpush1.msra.mxu0 0.0
    %10342 = vmatprep.subr.mxu0 0.0
    %10343 = vmatpush1.msra.mxu0 0.0
    %10344 = vmatprep.subr.mxu0 0.0
    %10345 = vmatpush2.msra.mxu0 0.0
    %10346 = vmatprep.subr.mxu0 0.0
    %10347 = vmatpush2.msra.mxu0 0.0
    %10348 = vmatprep.subr.mxu0 0.0
    %10349 = vmatpush2.msra.mxu0 0.0
    %10350 = vmatprep.subr.mxu0 0.0
    %10351 = vmatpush2.msra.mxu0 0.0
    %10352 = vmatprep.subr.mxu0 0.0
    %10353 = vmatpush2.msra.mxu0 0.0
    %10354 = vmatprep.subr.mxu0 0.0
    %10355 = vmatpush2.msra.mxu0 0.0
    %10356 = vmatprep.subr.mxu0 0.0
    %10357 = vmatpush2.msra.mxu0 0.0
    %10358 = vmatprep.subr.mxu0 0.0
    %10359 = vmatpush2.msra.mxu0 0.0
    %10360 = vmatprep.subr.mxu0 0.0
    %10361 = vmatpush2.msra.mxu0 0.0
    %10362 = vmatprep.subr.mxu0 0.0
    %10363 = vmatpush2.msra.mxu0 0.0
    %10364 = vmatprep.subr.mxu0 0.0
    %10365 = vmatpush2.msra.mxu0 0.0
    %10366 = vmatprep.subr.mxu0 0.0
    %10367 = vmatpush2.msra.mxu0 0.0
    %10368 = vmatprep.subr.mxu0 0.0
    %10369 = vmatpush2.msra.mxu0 0.0
    %10370 = vmatprep.subr.mxu0 0.0
    %10371 = vmatpush2.msra.mxu0 0.0
    %10372 = vmatprep.subr.mxu0 0.0
    %10373 = vmatpush2.msra.mxu0 0.0
    %10374 = vmatprep.subr.mxu0 0.0
    %10375 = vmatpush2.msra.mxu0 0.0
    %10376 = vmatprep.mubr.f32.mxu0 0.0
    %10377 = vmatmul.mubr.f32.gmra.mxu0 %v10307
    %v10378 = vpop.f32.mrf.mxu0
    %v10379 = vadd.f32 %v10299, %v10378
    %v10380 = vpop.f32.mrf.mxu0
    %10381 = vmatprep.mubr.f32.mxu0 0.0
    %10382 = vmatmul.mubr.f32.gmra.mxu0 %v10310
    %v10383 = vpop.f32.mrf.mxu0
    %v10384 = vadd.f32 %v10304, %v10383
    %v10385 = vpop.f32.mrf.mxu0
    %10386 = vdwg.mxu0
    %10387 = vmatprep.subr.mxu0 0.0
    %10388 = vmatpush1.msra.mxu0 0.0
    %10389 = vmatprep.subr.mxu0 0.0
    %10390 = vmatpush1.msra.mxu0 0.0
    %10391 = vmatprep.subr.mxu0 0.0
    %10392 = vmatpush1.msra.mxu0 0.0
    %10393 = vmatprep.subr.mxu0 0.0
    %10394 = vmatpush1.msra.mxu0 0.0
    %10395 = vmatprep.subr.mxu0 0.0
    %10396 = vmatpush1.msra.mxu0 0.0
    %10397 = vmatprep.subr.mxu0 0.0
    %10398 = vmatpush1.msra.mxu0 0.0
    %10399 = vmatprep.subr.mxu0 0.0
    %10400 = vmatpush1.msra.mxu0 0.0
    %10401 = vmatprep.subr.mxu0 0.0
    %10402 = vmatpush1.msra.mxu0 0.0
    %10403 = vmatprep.subr.mxu0 0.0
    %10404 = vmatpush1.msra.mxu0 0.0
    %10405 = vmatprep.subr.mxu0 0.0
    %10406 = vmatpush1.msra.mxu0 0.0
    %10407 = vmatprep.subr.mxu0 0.0
    %10408 = vmatpush1.msra.mxu0 %v10275
    %10409 = vmatprep.subr.mxu0 0.0
    %10410 = vmatpush1.msra.mxu0 %v10274
    %10411 = vmatprep.subr.mxu0 0.0
    %10412 = vmatpush1.msra.mxu0 %v10273
    %10413 = vmatprep.subr.mxu0 0.0
    %10414 = vmatpush1.msra.mxu0 %v10272
    %10415 = vmatprep.subr.mxu0 0.0
    %10416 = vmatpush1.msra.mxu0 %v10271
    %10417 = vmatprep.subr.mxu0 0.0
    %10418 = vmatpush1.msra.mxu0 %v10270
    %10419 = vmatprep.subr.mxu0 0.0
    %10420 = vmatpush2.msra.mxu0 0.0
    %10421 = vmatprep.subr.mxu0 0.0
    %10422 = vmatpush2.msra.mxu0 0.0
    %10423 = vmatprep.subr.mxu0 0.0
    %10424 = vmatpush2.msra.mxu0 0.0
    %10425 = vmatprep.subr.mxu0 0.0
    %10426 = vmatpush2.msra.mxu0 0.0
    %10427 = vmatprep.subr.mxu0 0.0
    %10428 = vmatpush2.msra.mxu0 0.0
    %10429 = vmatprep.subr.mxu0 0.0
    %10430 = vmatpush2.msra.mxu0 0.0
    %10431 = vmatprep.subr.mxu0 0.0
    %10432 = vmatpush2.msra.mxu0 0.0
    %10433 = vmatprep.subr.mxu0 0.0
    %10434 = vmatpush2.msra.mxu0 0.0
    %10435 = vmatprep.subr.mxu0 0.0
    %10436 = vmatpush2.msra.mxu0 0.0
    %10437 = vmatprep.subr.mxu0 0.0
    %10438 = vmatpush2.msra.mxu0 0.0
    %10439 = vmatprep.subr.mxu0 0.0
    %10440 = vmatpush2.msra.mxu0 0.0
    %10441 = vmatprep.subr.mxu0 0.0
    %10442 = vmatpush2.msra.mxu0 0.0
    %10443 = vmatprep.subr.mxu0 0.0
    %10444 = vmatpush2.msra.mxu0 0.0
    %10445 = vmatprep.subr.mxu0 0.0
    %10446 = vmatpush2.msra.mxu0 0.0
    %10447 = vmatprep.subr.mxu0 0.0
    %10448 = vmatpush2.msra.mxu0 0.0
    %10449 = vmatprep.subr.mxu0 0.0
    %10450 = vmatpush2.msra.mxu0 0.0
    %10451 = vmatprep.mubr.f32.mxu0 0.0
    %10452 = vmatmul.mubr.f32.gmra.mxu0 %v10307
    %v10453 = vpop.f32.mrf.mxu0
    %v10454 = vadd.f32 %v10299, %v10453
    %v10455 = vpop.f32.mrf.mxu0
    %10456 = vmatprep.mubr.f32.mxu0 0.0
    %10457 = vmatmul.mubr.f32.gmra.mxu0 %v10310
    %v10458 = vpop.f32.mrf.mxu0
    %v10459 = vadd.f32 %v10304, %v10458
    %v10460 = vpop.f32.mrf.mxu0
    %10461 = vdwg.mxu0
    %10462 = vmatprep.subr.mxu0 0.0
    %10463 = vmatpush1.msra.mxu0 0.0
    %10464 = vmatprep.subr.mxu0 0.0
    %10465 = vmatpush1.msra.mxu0 0.0
    %10466 = vmatprep.subr.mxu0 0.0
    %10467 = vmatpush1.msra.mxu0 0.0
    %10468 = vmatprep.subr.mxu0 0.0
    %10469 = vmatpush1.msra.mxu0 0.0
    %10470 = vmatprep.subr.mxu0 0.0
    %10471 = vmatpush1.msra.mxu0 0.0
    %10472 = vmatprep.subr.mxu0 0.0
    %10473 = vmatpush1.msra.mxu0 0.0
    %10474 = vmatprep.subr.mxu0 0.0
    %10475 = vmatpush1.msra.mxu0 0.0
    %10476 = vmatprep.subr.mxu0 0.0
    %10477 = vmatpush1.msra.mxu0 0.0
    %10478 = vmatprep.subr.mxu0 0.0
    %10479 = vmatpush1.msra.mxu0 0.0
    %10480 = vmatprep.subr.mxu0 0.0
    %10481 = vmatpush1.msra.mxu0 0.0
    %10482 = vmatprep.subr.mxu0 0.0
    %10483 = vmatpush1.msra.mxu0 %v10277
    %10484 = vmatprep.subr.mxu0 0.0
    %10485 = vmatpush1.msra.mxu0 %v10276
    %10486 = vmatprep.subr.mxu0 0.0
    %10487 = vmatpush1.msra.mxu0 %v10275
    %10488 = vmatprep.subr.mxu0 0.0
    %10489 = vmatpush1.msra.mxu0 %v10274
    %10490 = vmatprep.subr.mxu0 0.0
    %10491 = vmatpush1.msra.mxu0 %v10273
    %10492 = vmatprep.subr.mxu0 0.0
    %10493 = vmatpush1.msra.mxu0 %v10272
    %10494 = vmatprep.subr.mxu0 0.0
    %10495 = vmatpush2.msra.mxu0 0.0
    %10496 = vmatprep.subr.mxu0 0.0
    %10497 = vmatpush2.msra.mxu0 0.0
    %10498 = vmatprep.subr.mxu0 0.0
    %10499 = vmatpush2.msra.mxu0 0.0
    %10500 = vmatprep.subr.mxu0 0.0
    %10501 = vmatpush2.msra.mxu0 0.0
    %10502 = vmatprep.subr.mxu0 0.0
    %10503 = vmatpush2.msra.mxu0 0.0
    %10504 = vmatprep.subr.mxu0 0.0
    %10505 = vmatpush2.msra.mxu0 0.0
    %10506 = vmatprep.subr.mxu0 0.0
    %10507 = vmatpush2.msra.mxu0 0.0
    %10508 = vmatprep.subr.mxu0 0.0
    %10509 = vmatpush2.msra.mxu0 0.0
    %10510 = vmatprep.subr.mxu0 0.0
    %10511 = vmatpush2.msra.mxu0 0.0
    %10512 = vmatprep.subr.mxu0 0.0
    %10513 = vmatpush2.msra.mxu0 0.0
    %10514 = vmatprep.subr.mxu0 0.0
    %10515 = vmatpush2.msra.mxu0 0.0
    %10516 = vmatprep.subr.mxu0 0.0
    %10517 = vmatpush2.msra.mxu0 0.0
    %10518 = vmatprep.subr.mxu0 0.0
    %10519 = vmatpush2.msra.mxu0 0.0
    %10520 = vmatprep.subr.mxu0 0.0
    %10521 = vmatpush2.msra.mxu0 0.0
    %10522 = vmatprep.subr.mxu0 0.0
    %10523 = vmatpush2.msra.mxu0 0.0
    %10524 = vmatprep.subr.mxu0 0.0
    %10525 = vmatpush2.msra.mxu0 0.0
    %10526 = vmatprep.mubr.f32.mxu0 0.0
    %10527 = vmatmul.mubr.f32.gmra.mxu0 %v10307
    %v10528 = vpop.f32.mrf.mxu0
    %v10529 = vadd.f32 %v10299, %v10528
    %v10530 = vpop.f32.mrf.mxu0
    %10531 = vmatprep.mubr.f32.mxu0 0.0
    %10532 = vmatmul.mubr.f32.gmra.mxu0 %v10310
    %v10533 = vpop.f32.mrf.mxu0
    %v10534 = vadd.f32 %v10304, %v10533
    %v10535 = vpop.f32.mrf.mxu0
    %10536 = vdwg.mxu0
    %10537 = vmatprep.subr.mxu0 0.0
    %10538 = vmatpush1.msra.mxu0 0.0
    %10539 = vmatprep.subr.mxu0 0.0
    %10540 = vmatpush1.msra.mxu0 0.0
    %10541 = vmatprep.subr.mxu0 0.0
    %10542 = vmatpush1.msra.mxu0 0.0
    %10543 = vmatprep.subr.mxu0 0.0
    %10544 = vmatpush1.msra.mxu0 0.0
    %10545 = vmatprep.subr.mxu0 0.0
    %10546 = vmatpush1.msra.mxu0 0.0
    %10547 = vmatprep.subr.mxu0 0.0
    %10548 = vmatpush1.msra.mxu0 0.0
    %10549 = vmatprep.subr.mxu0 0.0
    %10550 = vmatpush1.msra.mxu0 0.0
    %10551 = vmatprep.subr.mxu0 0.0
    %10552 = vmatpush1.msra.mxu0 0.0
    %10553 = vmatprep.subr.mxu0 0.0
    %10554 = vmatpush1.msra.mxu0 0.0
    %10555 = vmatprep.subr.mxu0 0.0
    %10556 = vmatpush1.msra.mxu0 0.0
    %10557 = vmatprep.subr.mxu0 0.0
    %10558 = vmatpush1.msra.mxu0 %v10279
    %10559 = vmatprep.subr.mxu0 0.0
    %10560 = vmatpush1.msra.mxu0 %v10278
    %10561 = vmatprep.subr.mxu0 0.0
    %10562 = vmatpush1.msra.mxu0 %v10277
    %10563 = vmatprep.subr.mxu0 0.0
    %10564 = vmatpush1.msra.mxu0 %v10276
    %10565 = vmatprep.subr.mxu0 0.0
    %10566 = vmatpush1.msra.mxu0 %v10275
    %10567 = vmatprep.subr.mxu0 0.0
    %10568 = vmatpush1.msra.mxu0 %v10274
    %10569 = vmatprep.subr.mxu0 0.0
    %10570 = vmatpush2.msra.mxu0 0.0
    %10571 = vmatprep.subr.mxu0 0.0
    %10572 = vmatpush2.msra.mxu0 0.0
    %10573 = vmatprep.subr.mxu0 0.0
    %10574 = vmatpush2.msra.mxu0 0.0
    %10575 = vmatprep.subr.mxu0 0.0
    %10576 = vmatpush2.msra.mxu0 0.0
    %10577 = vmatprep.subr.mxu0 0.0
    %10578 = vmatpush2.msra.mxu0 0.0
    %10579 = vmatprep.subr.mxu0 0.0
    %10580 = vmatpush2.msra.mxu0 0.0
    %10581 = vmatprep.subr.mxu0 0.0
    %10582 = vmatpush2.msra.mxu0 0.0
    %10583 = vmatprep.subr.mxu0 0.0
    %10584 = vmatpush2.msra.mxu0 0.0
    %10585 = vmatprep.subr.mxu0 0.0
    %10586 = vmatpush2.msra.mxu0 0.0
    %10587 = vmatprep.subr.mxu0 0.0
    %10588 = vmatpush2.msra.mxu0 0.0
    %10589 = vmatprep.subr.mxu0 0.0
    %10590 = vmatpush2.msra.mxu0 0.0
    %10591 = vmatprep.subr.mxu0 0.0
    %10592 = vmatpush2.msra.mxu0 0.0
    %10593 = vmatprep.subr.mxu0 0.0
    %10594 = vmatpush2.msra.mxu0 0.0
    %10595 = vmatprep.subr.mxu0 0.0
    %10596 = vmatpush2.msra.mxu0 0.0
    %10597 = vmatprep.subr.mxu0 0.0
    %10598 = vmatpush2.msra.mxu0 0.0
    %10599 = vmatprep.subr.mxu0 0.0
    %10600 = vmatpush2.msra.mxu0 0.0
    %10601 = vmatprep.mubr.f32.mxu0 0.0
    %10602 = vmatmul.mubr.f32.gmra.mxu0 %v10307
    %v10603 = vpop.f32.mrf.mxu0
    %v10604 = vadd.f32 %v10299, %v10603
    %v10605 = vpop.f32.mrf.mxu0
    %10606 = vmatprep.mubr.f32.mxu0 0.0
    %10607 = vmatmul.mubr.f32.gmra.mxu0 %v10310
    %v10608 = vpop.f32.mrf.mxu0
    %v10609 = vadd.f32 %v10304, %v10608
    %v10610 = vpop.f32.mrf.mxu0
    %10611 = vdwg.mxu0
    %10612 = vmatprep.subr.mxu0 0.0
    %10613 = vmatpush1.msra.mxu0 0.0
    %10614 = vmatprep.subr.mxu0 0.0
    %10615 = vmatpush1.msra.mxu0 0.0
    %10616 = vmatprep.subr.mxu0 0.0
    %10617 = vmatpush1.msra.mxu0 0.0
    %10618 = vmatprep.subr.mxu0 0.0
    %10619 = vmatpush1.msra.mxu0 0.0
    %10620 = vmatprep.subr.mxu0 0.0
    %10621 = vmatpush1.msra.mxu0 0.0
    %10622 = vmatprep.subr.mxu0 0.0
    %10623 = vmatpush1.msra.mxu0 0.0
    %10624 = vmatprep.subr.mxu0 0.0
    %10625 = vmatpush1.msra.mxu0 0.0
    %10626 = vmatprep.subr.mxu0 0.0
    %10627 = vmatpush1.msra.mxu0 0.0
    %10628 = vmatprep.subr.mxu0 0.0
    %10629 = vmatpush1.msra.mxu0 0.0
    %10630 = vmatprep.subr.mxu0 0.0
    %10631 = vmatpush1.msra.mxu0 0.0
    %10632 = vmatprep.subr.mxu0 0.0
    %10633 = vmatpush1.msra.mxu0 %v10281
    %10634 = vmatprep.subr.mxu0 0.0
    %10635 = vmatpush1.msra.mxu0 %v10280
    %10636 = vmatprep.subr.mxu0 0.0
    %10637 = vmatpush1.msra.mxu0 %v10279
    %10638 = vmatprep.subr.mxu0 0.0
    %10639 = vmatpush1.msra.mxu0 %v10278
    %10640 = vmatprep.subr.mxu0 0.0
    %10641 = vmatpush1.msra.mxu0 %v10277
    %10642 = vmatprep.subr.mxu0 0.0
    %10643 = vmatpush1.msra.mxu0 %v10276
    %10644 = vmatprep.subr.mxu0 0.0
    %10645 = vmatpush2.msra.mxu0 0.0
    %10646 = vmatprep.subr.mxu0 0.0
    %10647 = vmatpush2.msra.mxu0 0.0
    %10648 = vmatprep.subr.mxu0 0.0
    %10649 = vmatpush2.msra.mxu0 0.0
    %10650 = vmatprep.subr.mxu0 0.0
    %10651 = vmatpush2.msra.mxu0 0.0
    %10652 = vmatprep.subr.mxu0 0.0
    %10653 = vmatpush2.msra.mxu0 0.0
    %10654 = vmatprep.subr.mxu0 0.0
    %10655 = vmatpush2.msra.mxu0 0.0
    %10656 = vmatprep.subr.mxu0 0.0
    %10657 = vmatpush2.msra.mxu0 0.0
    %10658 = vmatprep.subr.mxu0 0.0
    %10659 = vmatpush2.msra.mxu0 0.0
    %10660 = vmatprep.subr.mxu0 0.0
    %10661 = vmatpush2.msra.mxu0 0.0
    %10662 = vmatprep.subr.mxu0 0.0
    %10663 = vmatpush2.msra.mxu0 0.0
    %10664 = vmatprep.subr.mxu0 0.0
    %10665 = vmatpush2.msra.mxu0 0.0
    %10666 = vmatprep.subr.mxu0 0.0
    %10667 = vmatpush2.msra.mxu0 0.0
    %10668 = vmatprep.subr.mxu0 0.0
    %10669 = vmatpush2.msra.mxu0 0.0
    %10670 = vmatprep.subr.mxu0 0.0
    %10671 = vmatpush2.msra.mxu0 0.0
    %10672 = vmatprep.subr.mxu0 0.0
    %10673 = vmatpush2.msra.mxu0 0.0
    %10674 = vmatprep.subr.mxu0 0.0
    %10675 = vmatpush2.msra.mxu0 0.0
    %10676 = vmatprep.mubr.f32.mxu0 0.0
    %10677 = vmatmul.mubr.f32.gmra.mxu0 %v10307
    %v10678 = vpop.f32.mrf.mxu0
    %v10679 = vadd.f32 %v10299, %v10678
    %v10680 = vpop.f32.mrf.mxu0
    %10681 = vmatprep.mubr.f32.mxu0 0.0
    %10682 = vmatmul.mubr.f32.gmra.mxu0 %v10310
    %v10683 = vpop.f32.mrf.mxu0
    %v10684 = vadd.f32 %v10304, %v10683
    %v10685 = vpop.f32.mrf.mxu0
    %10686 = vdwg.mxu0
    %10687 = vmatprep.subr.mxu0 0.0
    %10688 = vmatpush1.msra.mxu0 0.0
    %10689 = vmatprep.subr.mxu0 0.0
    %10690 = vmatpush1.msra.mxu0 0.0
    %10691 = vmatprep.subr.mxu0 0.0
    %10692 = vmatpush1.msra.mxu0 0.0
    %10693 = vmatprep.subr.mxu0 0.0
    %10694 = vmatpush1.msra.mxu0 0.0
    %10695 = vmatprep.subr.mxu0 0.0
    %10696 = vmatpush1.msra.mxu0 0.0
    %10697 = vmatprep.subr.mxu0 0.0
    %10698 = vmatpush1.msra.mxu0 0.0
    %10699 = vmatprep.subr.mxu0 0.0
    %10700 = vmatpush1.msra.mxu0 0.0
    %10701 = vmatprep.subr.mxu0 0.0
    %10702 = vmatpush1.msra.mxu0 0.0
    %10703 = vmatprep.subr.mxu0 0.0
    %10704 = vmatpush1.msra.mxu0 0.0
    %10705 = vmatprep.subr.mxu0 0.0
    %10706 = vmatpush1.msra.mxu0 0.0
    %10707 = vmatprep.subr.mxu0 0.0
    %10708 = vmatpush1.msra.mxu0 %v10283
    %10709 = vmatprep.subr.mxu0 0.0
    %10710 = vmatpush1.msra.mxu0 %v10282
    %10711 = vmatprep.subr.mxu0 0.0
    %10712 = vmatpush1.msra.mxu0 %v10281
    %10713 = vmatprep.subr.mxu0 0.0
    %10714 = vmatpush1.msra.mxu0 %v10280
    %10715 = vmatprep.subr.mxu0 0.0
    %10716 = vmatpush1.msra.mxu0 %v10279
    %10717 = vmatprep.subr.mxu0 0.0
    %10718 = vmatpush1.msra.mxu0 %v10278
    %10719 = vmatprep.subr.mxu0 0.0
    %10720 = vmatpush2.msra.mxu0 0.0
    %10721 = vmatprep.subr.mxu0 0.0
    %10722 = vmatpush2.msra.mxu0 0.0
    %10723 = vmatprep.subr.mxu0 0.0
    %10724 = vmatpush2.msra.mxu0 0.0
    %10725 = vmatprep.subr.mxu0 0.0
    %10726 = vmatpush2.msra.mxu0 0.0
    %10727 = vmatprep.subr.mxu0 0.0
    %10728 = vmatpush2.msra.mxu0 0.0
    %10729 = vmatprep.subr.mxu0 0.0
    %10730 = vmatpush2.msra.mxu0 0.0
    %10731 = vmatprep.subr.mxu0 0.0
    %10732 = vmatpush2.msra.mxu0 0.0
    %10733 = vmatprep.subr.mxu0 0.0
    %10734 = vmatpush2.msra.mxu0 0.0
    %10735 = vmatprep.subr.mxu0 0.0
    %10736 = vmatpush2.msra.mxu0 0.0
    %10737 = vmatprep.subr.mxu0 0.0
    %10738 = vmatpush2.msra.mxu0 0.0
    %10739 = vmatprep.subr.mxu0 0.0
    %10740 = vmatpush2.msra.mxu0 0.0
    %10741 = vmatprep.subr.mxu0 0.0
    %10742 = vmatpush2.msra.mxu0 0.0
    %10743 = vmatprep.subr.mxu0 0.0
    %10744 = vmatpush2.msra.mxu0 0.0
    %10745 = vmatprep.subr.mxu0 0.0
    %10746 = vmatpush2.msra.mxu0 0.0
    %10747 = vmatprep.subr.mxu0 0.0
    %10748 = vmatpush2.msra.mxu0 0.0
    %10749 = vmatprep.subr.mxu0 0.0
    %10750 = vmatpush2.msra.mxu0 0.0
    %10751 = vmatprep.mubr.f32.mxu0 0.0
    %10752 = vmatmul.mubr.f32.gmra.mxu0 %v10307
    %v10753 = vpop.f32.mrf.mxu0
    %v10754 = vadd.f32 %v10299, %v10753
    %v10755 = vpop.f32.mrf.mxu0
    %10756 = vmatprep.mubr.f32.mxu0 0.0
    %10757 = vmatmul.mubr.f32.gmra.mxu0 %v10310
    %v10758 = vpop.f32.mrf.mxu0
    %v10759 = vadd.f32 %v10304, %v10758
    %v10760 = vpop.f32.mrf.mxu0
    %10761 = vdwg.mxu0
    %10762 = vmatprep.subr.mxu0 0.0
    %10763 = vmatpush1.msra.mxu0 0.0
    %10764 = vmatprep.subr.mxu0 0.0
    %10765 = vmatpush1.msra.mxu0 0.0
    %10766 = vmatprep.subr.mxu0 0.0
    %10767 = vmatpush1.msra.mxu0 0.0
    %10768 = vmatprep.subr.mxu0 0.0
    %10769 = vmatpush1.msra.mxu0 0.0
    %10770 = vmatprep.subr.mxu0 0.0
    %10771 = vmatpush1.msra.mxu0 0.0
    %10772 = vmatprep.subr.mxu0 0.0
    %10773 = vmatpush1.msra.mxu0 0.0
    %10774 = vmatprep.subr.mxu0 0.0
    %10775 = vmatpush1.msra.mxu0 0.0
    %10776 = vmatprep.subr.mxu0 0.0
    %10777 = vmatpush1.msra.mxu0 0.0
    %10778 = vmatprep.subr.mxu0 0.0
    %10779 = vmatpush1.msra.mxu0 0.0
    %10780 = vmatprep.subr.mxu0 0.0
    %10781 = vmatpush1.msra.mxu0 0.0
    %10782 = vmatprep.subr.mxu0 0.0
    %10783 = vmatpush1.msra.mxu0 %v10285
    %10784 = vmatprep.subr.mxu0 0.0
    %10785 = vmatpush1.msra.mxu0 %v10284
    %10786 = vmatprep.subr.mxu0 0.0
    %10787 = vmatpush1.msra.mxu0 %v10283
    %10788 = vmatprep.subr.mxu0 0.0
    %10789 = vmatpush1.msra.mxu0 %v10282
    %10790 = vmatprep.subr.mxu0 0.0
    %10791 = vmatpush1.msra.mxu0 %v10281
    %10792 = vmatprep.subr.mxu0 0.0
    %10793 = vmatpush1.msra.mxu0 %v10280
    %10794 = vmatprep.subr.mxu0 0.0
    %10795 = vmatpush2.msra.mxu0 0.0
    %10796 = vmatprep.subr.mxu0 0.0
    %10797 = vmatpush2.msra.mxu0 0.0
    %10798 = vmatprep.subr.mxu0 0.0
    %10799 = vmatpush2.msra.mxu0 0.0
    %10800 = vmatprep.subr.mxu0 0.0
    %10801 = vmatpush2.msra.mxu0 0.0
    %10802 = vmatprep.subr.mxu0 0.0
    %10803 = vmatpush2.msra.mxu0 0.0
    %10804 = vmatprep.subr.mxu0 0.0
    %10805 = vmatpush2.msra.mxu0 0.0
    %10806 = vmatprep.subr.mxu0 0.0
    %10807 = vmatpush2.msra.mxu0 0.0
    %10808 = vmatprep.subr.mxu0 0.0
    %10809 = vmatpush2.msra.mxu0 0.0
    %10810 = vmatprep.subr.mxu0 0.0
    %10811 = vmatpush2.msra.mxu0 0.0
    %10812 = vmatprep.subr.mxu0 0.0
    %10813 = vmatpush2.msra.mxu0 0.0
    %10814 = vmatprep.subr.mxu0 0.0
    %10815 = vmatpush2.msra.mxu0 0.0
    %10816 = vmatprep.subr.mxu0 0.0
    %10817 = vmatpush2.msra.mxu0 0.0
    %10818 = vmatprep.subr.mxu0 0.0
    %10819 = vmatpush2.msra.mxu0 0.0
    %10820 = vmatprep.subr.mxu0 0.0
    %10821 = vmatpush2.msra.mxu0 0.0
    %10822 = vmatprep.subr.mxu0 0.0
    %10823 = vmatpush2.msra.mxu0 0.0
    %10824 = vmatprep.subr.mxu0 0.0
    %10825 = vmatpush2.msra.mxu0 0.0
    %10826 = vmatprep.mubr.f32.mxu0 0.0
    %10827 = vmatmul.mubr.f32.gmra.mxu0 %v10307
    %v10828 = vpop.f32.mrf.mxu0
    %v10829 = vadd.f32 %v10299, %v10828
    %v10830 = vpop.f32.mrf.mxu0
    %10831 = vmatprep.mubr.f32.mxu0 0.0
    %10832 = vmatmul.mubr.f32.gmra.mxu0 %v10310
    %v10833 = vpop.f32.mrf.mxu0
    %v10834 = vadd.f32 %v10304, %v10833
    %v10835 = vpop.f32.mrf.mxu0
    %10836 = vdwg.mxu0
    %10837 = vmatprep.subr.mxu0 0.0
    %10838 = vmatpush1.msra.mxu0 0.0
    %10839 = vmatprep.subr.mxu0 0.0
    %10840 = vmatpush1.msra.mxu0 0.0
    %10841 = vmatprep.subr.mxu0 0.0
    %10842 = vmatpush1.msra.mxu0 0.0
    %10843 = vmatprep.subr.mxu0 0.0
    %10844 = vmatpush1.msra.mxu0 0.0
    %10845 = vmatprep.subr.mxu0 0.0
    %10846 = vmatpush1.msra.mxu0 0.0
    %10847 = vmatprep.subr.mxu0 0.0
    %10848 = vmatpush1.msra.mxu0 0.0
    %10849 = vmatprep.subr.mxu0 0.0
    %10850 = vmatpush1.msra.mxu0 0.0
    %10851 = vmatprep.subr.mxu0 0.0
    %10852 = vmatpush1.msra.mxu0 0.0
    %10853 = vmatprep.subr.mxu0 0.0
    %10854 = vmatpush1.msra.mxu0 0.0
    %10855 = vmatprep.subr.mxu0 0.0
    %10856 = vmatpush1.msra.mxu0 0.0
    %10857 = vmatprep.subr.mxu0 0.0
    %10858 = vmatpush1.msra.mxu0 %v10287
    %10859 = vmatprep.subr.mxu0 0.0
    %10860 = vmatpush1.msra.mxu0 %v10286
    %10861 = vmatprep.subr.mxu0 0.0
    %10862 = vmatpush1.msra.mxu0 %v10285
    %10863 = vmatprep.subr.mxu0 0.0
    %10864 = vmatpush1.msra.mxu0 %v10284
    %10865 = vmatprep.subr.mxu0 0.0
    %10866 = vmatpush1.msra.mxu0 %v10283
    %10867 = vmatprep.subr.mxu0 0.0
    %10868 = vmatpush1.msra.mxu0 %v10282
    %10869 = vmatprep.subr.mxu0 0.0
    %10870 = vmatpush2.msra.mxu0 0.0
    %10871 = vmatprep.subr.mxu0 0.0
    %10872 = vmatpush2.msra.mxu0 0.0
    %10873 = vmatprep.subr.mxu0 0.0
    %10874 = vmatpush2.msra.mxu0 0.0
    %10875 = vmatprep.subr.mxu0 0.0
    %10876 = vmatpush2.msra.mxu0 0.0
    %10877 = vmatprep.subr.mxu0 0.0
    %10878 = vmatpush2.msra.mxu0 0.0
    %10879 = vmatprep.subr.mxu0 0.0
    %10880 = vmatpush2.msra.mxu0 0.0
    %10881 = vmatprep.subr.mxu0 0.0
    %10882 = vmatpush2.msra.mxu0 0.0
    %10883 = vmatprep.subr.mxu0 0.0
    %10884 = vmatpush2.msra.mxu0 0.0
    %10885 = vmatprep.subr.mxu0 0.0
    %10886 = vmatpush2.msra.mxu0 0.0
    %10887 = vmatprep.subr.mxu0 0.0
    %10888 = vmatpush2.msra.mxu0 0.0
    %10889 = vmatprep.subr.mxu0 0.0
    %10890 = vmatpush2.msra.mxu0 0.0
    %10891 = vmatprep.subr.mxu0 0.0
    %10892 = vmatpush2.msra.mxu0 0.0
    %10893 = vmatprep.subr.mxu0 0.0
    %10894 = vmatpush2.msra.mxu0 0.0
    %10895 = vmatprep.subr.mxu0 0.0
    %10896 = vmatpush2.msra.mxu0 0.0
    %10897 = vmatprep.subr.mxu0 0.0
    %10898 = vmatpush2.msra.mxu0 0.0
    %10899 = vmatprep.subr.mxu0 0.0
    %10900 = vmatpush2.msra.mxu0 0.0
    %10901 = vmatprep.mubr.f32.mxu0 0.0
    %10902 = vmatmul.mubr.f32.gmra.mxu0 %v10307
    %v10903 = vpop.f32.mrf.mxu0
    %v10904 = vadd.f32 %v10299, %v10903
    %v10905 = vpop.f32.mrf.mxu0
    %10906 = vmatprep.mubr.f32.mxu0 0.0
    %10907 = vmatmul.mubr.f32.gmra.mxu0 %v10310
    %v10908 = vpop.f32.mrf.mxu0
    %v10909 = vadd.f32 %v10304, %v10908
    %v10910 = vpop.f32.mrf.mxu0
    %10911 = vdwg.mxu0
    %10912 = vmatprep.subr.mxu0 0.0
    %10913 = vmatpush1.msra.mxu0 0.0
    %10914 = vmatprep.subr.mxu0 0.0
    %10915 = vmatpush1.msra.mxu0 0.0
    %10916 = vmatprep.subr.mxu0 0.0
    %10917 = vmatpush1.msra.mxu0 0.0
    %10918 = vmatprep.subr.mxu0 0.0
    %10919 = vmatpush1.msra.mxu0 0.0
    %10920 = vmatprep.subr.mxu0 0.0
    %10921 = vmatpush1.msra.mxu0 0.0
    %10922 = vmatprep.subr.mxu0 0.0
    %10923 = vmatpush1.msra.mxu0 0.0
    %10924 = vmatprep.subr.mxu0 0.0
    %10925 = vmatpush1.msra.mxu0 0.0
    %10926 = vmatprep.subr.mxu0 0.0
    %10927 = vmatpush1.msra.mxu0 0.0
    %10928 = vmatprep.subr.mxu0 0.0
    %10929 = vmatpush1.msra.mxu0 0.0
    %10930 = vmatprep.subr.mxu0 0.0
    %10931 = vmatpush1.msra.mxu0 0.0
    %10932 = vmatprep.subr.mxu0 0.0
    %10933 = vmatpush1.msra.mxu0 %v10289
    %10934 = vmatprep.subr.mxu0 0.0
    %10935 = vmatpush1.msra.mxu0 %v10288
    %10936 = vmatprep.subr.mxu0 0.0
    %10937 = vmatpush1.msra.mxu0 %v10287
    %10938 = vmatprep.subr.mxu0 0.0
    %10939 = vmatpush1.msra.mxu0 %v10286
    %10940 = vmatprep.subr.mxu0 0.0
    %10941 = vmatpush1.msra.mxu0 %v10285
    %10942 = vmatprep.subr.mxu0 0.0
    %10943 = vmatpush1.msra.mxu0 %v10284
    %10944 = vmatprep.subr.mxu0 0.0
    %10945 = vmatpush2.msra.mxu0 0.0
    %10946 = vmatprep.subr.mxu0 0.0
    %10947 = vmatpush2.msra.mxu0 0.0
    %10948 = vmatprep.subr.mxu0 0.0
    %10949 = vmatpush2.msra.mxu0 0.0
    %10950 = vmatprep.subr.mxu0 0.0
    %10951 = vmatpush2.msra.mxu0 0.0
    %10952 = vmatprep.subr.mxu0 0.0
    %10953 = vmatpush2.msra.mxu0 0.0
    %10954 = vmatprep.subr.mxu0 0.0
    %10955 = vmatpush2.msra.mxu0 0.0
    %10956 = vmatprep.subr.mxu0 0.0
    %10957 = vmatpush2.msra.mxu0 0.0
    %10958 = vmatprep.subr.mxu0 0.0
    %10959 = vmatpush2.msra.mxu0 0.0
    %10960 = vmatprep.subr.mxu0 0.0
    %10961 = vmatpush2.msra.mxu0 0.0
    %10962 = vmatprep.subr.mxu0 0.0
    %10963 = vmatpush2.msra.mxu0 0.0
    %10964 = vmatprep.subr.mxu0 0.0
    %10965 = vmatpush2.msra.mxu0 0.0
    %10966 = vmatprep.subr.mxu0 0.0
    %10967 = vmatpush2.msra.mxu0 0.0
    %10968 = vmatprep.subr.mxu0 0.0
    %10969 = vmatpush2.msra.mxu0 0.0
    %10970 = vmatprep.subr.mxu0 0.0
    %10971 = vmatpush2.msra.mxu0 0.0
    %10972 = vmatprep.subr.mxu0 0.0
    %10973 = vmatpush2.msra.mxu0 0.0
    %10974 = vmatprep.subr.mxu0 0.0
    %10975 = vmatpush2.msra.mxu0 0.0
    %10976 = vmatprep.mubr.f32.mxu0 0.0
    %10977 = vmatmul.mubr.f32.gmra.mxu0 %v10307
    %v10978 = vpop.f32.mrf.mxu0
    %v10979 = vadd.f32 %v10299, %v10978
    %v10980 = vpop.f32.mrf.mxu0
    %10981 = vmatprep.mubr.f32.mxu0 0.0
    %10982 = vmatmul.mubr.f32.gmra.mxu0 %v10310
    %v10983 = vpop.f32.mrf.mxu0
    %v10984 = vadd.f32 %v10304, %v10983
    %v10985 = vpop.f32.mrf.mxu0
    %10986 = vdwg.mxu0
    %10987 = vmatprep.subr.mxu0 0.0
    %10988 = vmatpush1.msra.mxu0 0.0
    %10989 = vmatprep.subr.mxu0 0.0
    %10990 = vmatpush1.msra.mxu0 0.0
    %10991 = vmatprep.subr.mxu0 0.0
    %10992 = vmatpush1.msra.mxu0 0.0
    %10993 = vmatprep.subr.mxu0 0.0
    %10994 = vmatpush1.msra.mxu0 0.0
    %10995 = vmatprep.subr.mxu0 0.0
    %10996 = vmatpush1.msra.mxu0 0.0
    %10997 = vmatprep.subr.mxu0 0.0
    %10998 = vmatpush1.msra.mxu0 0.0
    %10999 = vmatprep.subr.mxu0 0.0
    %11000 = vmatpush1.msra.mxu0 0.0
    %11001 = vmatprep.subr.mxu0 0.0
    %11002 = vmatpush1.msra.mxu0 0.0
    %11003 = vmatprep.subr.mxu0 0.0
    %11004 = vmatpush1.msra.mxu0 0.0
    %11005 = vmatprep.subr.mxu0 0.0
    %11006 = vmatpush1.msra.mxu0 0.0
    %11007 = vmatprep.subr.mxu0 0.0
    %11008 = vmatpush1.msra.mxu0 0.0
    %11009 = vmatprep.subr.mxu0 0.0
    %11010 = vmatpush1.msra.mxu0 0.0
    %11011 = vmatprep.subr.mxu0 0.0
    %11012 = vmatpush1.msra.mxu0 %v10289
    %11013 = vmatprep.subr.mxu0 0.0
    %11014 = vmatpush1.msra.mxu0 %v10288
    %11015 = vmatprep.subr.mxu0 0.0
    %11016 = vmatpush1.msra.mxu0 %v10287
    %11017 = vmatprep.subr.mxu0 0.0
    %11018 = vmatpush1.msra.mxu0 %v10286
    %11019 = vmatprep.subr.mxu0 0.0
    %11020 = vmatpush2.msra.mxu0 0.0
    %11021 = vmatprep.subr.mxu0 0.0
    %11022 = vmatpush2.msra.mxu0 0.0
    %11023 = vmatprep.subr.mxu0 0.0
    %11024 = vmatpush2.msra.mxu0 0.0
    %11025 = vmatprep.subr.mxu0 0.0
    %11026 = vmatpush2.msra.mxu0 0.0
    %11027 = vmatprep.subr.mxu0 0.0
    %11028 = vmatpush2.msra.mxu0 0.0
    %11029 = vmatprep.subr.mxu0 0.0
    %11030 = vmatpush2.msra.mxu0 0.0
    %11031 = vmatprep.subr.mxu0 0.0
    %11032 = vmatpush2.msra.mxu0 0.0
    %11033 = vmatprep.subr.mxu0 0.0
    %11034 = vmatpush2.msra.mxu0 0.0
    %11035 = vmatprep.subr.mxu0 0.0
    %11036 = vmatpush2.msra.mxu0 0.0
    %11037 = vmatprep.subr.mxu0 0.0
    %11038 = vmatpush2.msra.mxu0 0.0
    %11039 = vmatprep.subr.mxu0 0.0
    %11040 = vmatpush2.msra.mxu0 0.0
    %11041 = vmatprep.subr.mxu0 0.0
    %11042 = vmatpush2.msra.mxu0 0.0
    %11043 = vmatprep.subr.mxu0 0.0
    %11044 = vmatpush2.msra.mxu0 0.0
    %11045 = vmatprep.subr.mxu0 0.0
    %11046 = vmatpush2.msra.mxu0 0.0
    %11047 = vmatprep.subr.mxu0 0.0
    %11048 = vmatpush2.msra.mxu0 0.0
    %11049 = vmatprep.subr.mxu0 0.0
    %11050 = vmatpush2.msra.mxu0 0.0
    %11051 = vmatprep.mubr.f32.mxu0 0.0
    %11052 = vmatmul.mubr.f32.gmra.mxu0 %v10307
    %v11053 = vpop.f32.mrf.mxu0
    %v11054 = vadd.f32 %v10299, %v11053
    %v11055 = vpop.f32.mrf.mxu0
    %11056 = vmatprep.mubr.f32.mxu0 0.0
    %11057 = vmatmul.mubr.f32.gmra.mxu0 %v10310
    %v11058 = vpop.f32.mrf.mxu0
    %v11059 = vadd.f32 %v10304, %v11058
    %v11060 = vpop.f32.mrf.mxu0
    %11061 = vdwg.mxu0
    %v11062 = vadd.f32 %v10379, %v10454
    %v11063 = vadd.f32 %v10384, %v10459
    %v11064 = vadd.f32 %v10754, %v10829
    %v11065 = vadd.f32 %v10759, %v10834
    %v11066 = vadd.f32 %v11062, %v10529
    %v11067 = vadd.f32 %v11063, %v10534
    %v11068 = vadd.f32 %v11064, %v10904
    %v11069 = vadd.f32 %v11065, %v10909
    %v11070 = vadd.f32 %v11066, %v10604
    %v11071 = vadd.f32 %v11067, %v10609
    %v11072 = vadd.f32 %v11068, %v10979
    %v11073 = vadd.f32 %v11069, %v10984
    %v11074 = vadd.f32 %v11070, %v10679
    %v11075 = vadd.f32 %v11071, %v10684
    %v11076 = vadd.f32 %v11072, %v11054
    %v11077 = vadd.f32 %v11073, %v11059
    %v11078 = vmul.f32 %v11074, 0.2
    %v11079 = vmul.f32 %v11075, 0.2
    %v11080 = vmul.f32 %v11076, 0.2
    %v11081 = vmul.f32 %v11077, 0.2
    %v11082 = vxor.u32 %v11078, 2147483648
    %v11083 = vxor.u32 %v11079, 2147483648
    %v11084 = vxor.u32 %v11080, 2147483648
    %v11085 = vxor.u32 %v11081, 2147483648
    %v11086 = vmul.f32 %v11082, 1.442695
    %v11087 = vpow.pop %v11086
    %v11088 = vmul.f32 %v11083, 1.442695
    %v11089 = vpow.pop %v11088
    %v11090 = vmul.f32 %v11084, 1.442695
    %v11091 = vpow.pop %v11090
    %v11092 = vmul.f32 %v11085, 1.442695
    %v11093 = vpow.pop %v11092
    %v11094 = vadd.f32 %v11087, 1.0
    %v11095 = vadd.f32 %v11089, 1.0
    %v11096 = vadd.f32 %v11091, 1.0
    %v11097 = vadd.f32 %v11093, 1.0
    %v11098 = vrcp.pop %v11094
    %v11099 = vmul.f32 1.0, %v11098
    %v11100 = vrcp.pop %v11095
    %v11101 = vmul.f32 1.0, %v11100
    %v11102 = vrcp.pop %v11096
    %v11103 = vmul.f32 1.0, %v11102
    %v11104 = vrcp.pop %v11097
    %v11105 = vmul.f32 1.0, %v11104
    %11106 = vst [vmem:[#allocation5] sm:$0xff] %v11099
    %11107 = vst [vmem:[#allocation5 + $0x8] sm:$0xff] %v11101
    %11108 = vst [vmem:[#allocation5 + $0x10] sm:$0xff] %v11103
    %11109 = vst [vmem:[#allocation5 + $0x18] sm:$0xff] %v11105
    // Predicated region
    $region18: #{tpu_custom_call.1} parent=1 // pred_check
      _
    $region19: #{tpu_custom_call.1} parent=1 // pred_check_branch
      %11111 = sbr.rel (0) target = $region21
    $region20: #{tpu_custom_call.1} parent=1 // pred_region
      %s11113 = ssub.s32 512, 512
      %11114 = vsyncadd [#allocation4], %s11113
      %s11115 = sshll.u32 [#allocation5], 4
      %s11116 = int_to_ptr.vmem [resolvable:$true] %s11115
      %11121 = dma.vmem_to_hbm [thread:$0]  %s11116, 512, %s3, [#allocation4], 128, 128, 8
    $region21: #{tpu_custom_call.1} parent=1 // pred_fallthru
      _
    // Predicated region
    $region22: #{tpu_custom_call.1} parent=1 // pred_check
      _
    $region23: #{tpu_custom_call.1} parent=1 // pred_check_branch
      %11123 = sbr.rel (0) target = $region25
    $region24: #{tpu_custom_call.1} parent=1 // pred_region
      %11124 = dma.done [#allocation4], 512
    $region25: #{tpu_custom_call.1} parent=1 // pred_fallthru
      _
    %11125 = vsyncpa [#allocation3], 1
    %11126 = vsyncpa [#allocation4], 1

</llo_original>
